<compile_context>
chip_gen: v7x
topology: tpu7x:2x2x1
jax: 0.10.0
libtpu: 0.0.40
codegen_flags: <defaults>
</compile_context>

<pallas_src>
import functools

import jax
import jax.numpy as jnp
from jax import lax
from jax.experimental import pallas as pl
from jax.experimental.pallas import tpu as pltpu


def _round_up(x, m):
    return (x + m - 1) // m * m


# --------------------------------------------------------------------------
# Weight preparation (plain JAX, done once): interleave the two directions
# into one 8H-wide gate layout  [i_f, i_b, f_f, f_b, o_f, o_b, g_f, g_b].
# --------------------------------------------------------------------------
def _place_gates(w, H, direction):
    """w: (in, 4H) with PyTorch gate column order [i, f, g, o].

    Returns (in, 8H) with w's gate blocks placed in the forward (direction=0)
    or backward (direction=1) slots of the interleaved layout, zeros elsewhere.
    """
    i, f, g, o = (w[:, k * H:(k + 1) * H] for k in range(4))
    z = jnp.zeros_like(i)
    if direction == 0:
        blocks = (i, z, f, z, o, z, g, z)
    else:
        blocks = (z, i, z, f, z, o, z, g)
    return jnp.concatenate(blocks, axis=1)


def prepare_kernel_params(p, c_pad):
    """Raw per-direction params -> interleaved / bf16 / lane-padded params."""
    H = p["whh0f"].shape[0]
    bf16 = jnp.bfloat16

    def stack_layer(wihf, whhf, bf_, wihb, whhb, bb_):
        # wx_* feed the hoisted (T*B, in) @ (in, 8H) pre-activation GEMMs.
        # The zero-padded opposite-direction slots keep the per-step add with
        # the recurrent dot shuffle-free; their extra FLOPs are off the
        # serial critical path.
        wx_f = _place_gates(wihf, H, 0).astype(bf16)               # (in, 8H)
        wx_b = _place_gates(wihb, H, 1).astype(bf16)               # (in, 8H)
        whh = jnp.concatenate([_place_gates(whhf, H, 0),           # rows :H  = h_fwd
                               _place_gates(whhb, H, 1)],          # rows H:  = h_bwd
                              axis=0).astype(bf16)                 # (2H, 8H)
        b = (_place_gates(bf_, H, 0) + _place_gates(bb_, H, 1)).astype(jnp.float32)
        return wx_f, wx_b, whh, b

    wx0f, wx0b, whh0, b0 = stack_layer(p["wih0f"], p["whh0f"], p["b0f"],
                                       p["wih0b"], p["whh0b"], p["b0b"])
    wx1f, wx1b, whh1, b1 = stack_layer(p["wih1f"], p["whh1f"], p["b1f"],
                                       p["wih1b"], p["whh1b"], p["b1b"])
    # fc head: pad the class dim to a 128-lane multiple -> lane-dense output.
    C = p["fcw"].shape[1]
    fcw = jnp.pad(p["fcw"].astype(jnp.float32), ((0, 0), (0, c_pad - C)))
    fcb = jnp.pad(p["fcb"].astype(jnp.float32), ((0, 0), (0, c_pad - C)))
    return dict(wx0f=wx0f, wx0b=wx0b, whh0=whh0, b0=b0,
                wx1f=wx1f, wx1b=wx1b, whh1=whh1, b1=b1, fcw=fcw, fcb=fcb)


# --------------------------------------------------------------------------
# Kernel: full 2-layer bidirectional LSTM + linear head for one batch tile.
# --------------------------------------------------------------------------
def bilstm_kernel(x_ref, mask_ref,
                  wx0f_ref, wx0b_ref, whh0_ref, b0_ref,
                  wx1f_ref, wx1b_ref, whh1_ref, b1_ref,
                  fcw_ref, fcb_ref,
                  out_ref,
                  h01_scr, pre_f_scr, pre_b_scr,
                  *, B, T, H, unroll):
    f32, bf16 = jnp.float32, jnp.bfloat16
    H2, H4, H6, H8 = 2 * H, 4 * H, 6 * H, 8 * H

    # Lane selector (hoisted constant): cols [:H] of the carried state hold
    # the forward direction, cols [H:] the backward direction.
    is_fwd = lax.broadcasted_iota(jnp.int32, (1, H2), 1) < H

    def step_mask(t, tr):
        # Validity of time t (forward half) / time tr (backward half).
        m = jnp.where(is_fwd, mask_ref[t], mask_ref[tr])           # (B, 2H) f32
        return m != 0.0

    def cell(pre, h, c, whh_ref, m):
        # Only the recurrent dot remains on the serial chain.
        gates = pre + jnp.dot(h.astype(bf16), whh_ref[...],
                              preferred_element_type=f32)          # (B, 8H)
        ifo = jax.nn.sigmoid(gates[:, :H6])                        # [i|f|o] pairs
        g = jnp.tanh(gates[:, H6:])                                # [g] pair
        c_new = ifo[:, H2:H4] * c + ifo[:, :H2] * g
        h_new = ifo[:, H4:H6] * jnp.tanh(c_new)
        # packed-sequence semantics: freeze state on padded timesteps.
        h = jnp.where(m, h_new, h)
        c = jnp.where(m, c_new, c)
        return h, c

    zeros = jnp.zeros((B, H2), f32)

    # ---- layer 0: hoisted input projections (M = T*B rows fills the MXU). ----
    x2d = x_ref[0]                                                 # (T*B, E) bf16
    pre_f_scr[...] = (jnp.dot(x2d, wx0f_ref[...], preferred_element_type=f32)
                      + b0_ref[...])
    pre_b_scr[...] = jnp.dot(x2d, wx0b_ref[...], preferred_element_type=f32)

    def l0_step(t, carry):
        h, c = carry
        tr = T - 1 - t
        off_t = pl.multiple_of(t * B, B)
        off_r = pl.multiple_of(tr * B, B)
        pre = pre_f_scr[pl.ds(off_t, B), :] + pre_b_scr[pl.ds(off_r, B), :]
        h, c = cell(pre, h, c, whh0_ref, step_mask(t, tr))
        # Stash layer-0 outputs time-aligned for layer 1.  (Half-lane writes
        # when H < 128; lane-dense at production H >= 128.)
        h01_scr[pl.ds(off_t, B), :H] = h[:, :H].astype(h01_scr.dtype)
        h01_scr[pl.ds(off_r, B), H:] = h[:, H:].astype(h01_scr.dtype)
        return h, c

    lax.fori_loop(0, T, l0_step, (zeros, zeros), unroll=unroll)

    # Inter-layer Dropout(0.3) is identity at inference time.

    # ---- layer 1: hoisted input projections from the layer-0 outputs,
    # reusing the pre-activation scratches. ----
    h01 = h01_scr[...].astype(bf16)                                # (T*B, 2H)
    pre_f_scr[...] = (jnp.dot(h01, wx1f_ref[...], preferred_element_type=f32)
                      + b1_ref[...])
    pre_b_scr[...] = jnp.dot(h01, wx1b_ref[...], preferred_element_type=f32)

    def l1_step(t, carry):
        h, c = carry
        tr = T - 1 - t
        off_t = pl.multiple_of(t * B, B)
        off_r = pl.multiple_of(tr * B, B)
        pre = pre_f_scr[pl.ds(off_t, B), :] + pre_b_scr[pl.ds(off_r, B), :]
        return cell(pre, h, c, whh1_ref, step_mask(t, tr))

    h_fin, _ = lax.fori_loop(0, T, l1_step, (zeros, zeros), unroll=unroll)

    # hidden = cat(hidden[-2], hidden[-1]) == h_fin ([fwd_final | bwd_final]).
    # fc: Dropout identity in eval; Linear(2H -> C_pad) in f32, lane-dense out.
    out_ref[...] = (jnp.dot(h_fin, fcw_ref[...], preferred_element_type=f32)
                    + fcb_ref[...])


# --------------------------------------------------------------------------
# Wrapper
# --------------------------------------------------------------------------
def bilstm_forward(text, lengths, params):
    """text: (B, T) int32 token ids, lengths: (B,) int32 valid lengths."""
    emb = params["embedding"][text]                   # token gather (XLA glue)
    B, T, E = emb.shape
    H = params["whh0f"].shape[0]
    C = params["fcw"].shape[1]
    Cp = _round_up(max(C, 128), 128)

    kp = prepare_kernel_params(params, Cp)
    weight_names = ("wx0f", "wx0b", "whh0", "b0", "wx1f", "wx1b", "whh1", "b1",
                    "fcw", "fcb")
    weight_bytes = sum(int(kp[k].size) * kp[k].dtype.itemsize
                       for k in weight_names)

    # ---- size the batch tile against the chip's actual VMEM capacity. ----
    try:
        vmem_cap = int(pltpu.get_tpu_info().vmem_capacity_bytes)
    except Exception:
        vmem_cap = 64 * 1024 * 1024      # v7x-safe default (v5e/v6e have 128 MiB)

    def tile_footprint(bt):
        tb = T * bt
        return (2 * tb * E * 2            # x block (bf16, 2 pipeline buffers)
                + 2 * T * bt * 4          # (T, bt, 1) f32 validity mask
                + 2 * weight_bytes        # full-block weights (2 buffers)
                + 2 * bt * Cp * 4         # output block
                + tb * 2 * H * 4          # h01 scratch (<= f32)
                + 2 * tb * 8 * H * 4)     # pre-activation scratches (f32)

    budget = int(0.70 * vmem_cap)
    B8 = _round_up(B, 8)
    B_TILE = 8
    while B_TILE < min(128, B8):
        B_TILE *= 2
    while B_TILE > 8 and tile_footprint(B_TILE) > budget:
        B_TILE //= 2
    # TODO(synk): on v7x with a single batch tile, split the fwd/bwd chains
    # across the two TensorCores (core_map + VMEM_SHARED) instead of leaving
    # one core idle on a size-1 "parallel" grid.
    B_pad = _round_up(B8, B_TILE)
    G = B_pad // B_TILE
    TB = T * B_TILE
    vmem_limit = int(min(max(tile_footprint(B_TILE) + (8 << 20), 32 << 20),
                         int(0.9 * vmem_cap)))

    # Time-major bf16 activations, regrouped so each batch tile is one
    # lane-dense (T*B_TILE, E) slab feeding the hoisted input GEMM directly.
    x = jnp.transpose(emb, (1, 0, 2)).astype(jnp.bfloat16)          # (T, B, E)
    x = jnp.pad(x, ((0, 0), (0, B_pad - B), (0, 0)))                # (T, B_pad, E)
    x = x.reshape(T, G, B_TILE, E).transpose(1, 0, 2, 3).reshape(G, TB, E)

    # Tiny (T, B_pad, 1) validity mask (padded batch rows get length 0).
    lens = jnp.pad(lengths.astype(jnp.int32), (0, B_pad - B))
    valid = (jnp.arange(T)[:, None] < lens[None, :]).astype(jnp.float32)
    valid = valid[:, :, None]                                       # (T, B_pad, 1)

    # Sub-16-row sublane offsets into a packed bf16 scratch only occur for the
    # tiny-demo tile; use f32 there, bf16 once the tile is >= 16 rows.
    h01_dtype = jnp.bfloat16 if B_TILE % 16 == 0 else jnp.float32

    kernel = functools.partial(bilstm_kernel, B=B_TILE, T=T, H=H,
                               unroll=(T if T <= 16 else 4))

    def wspec(a):
        # Loop-invariant full-block weights (index map ignores the grid).
        return pl.BlockSpec(a.shape, lambda *_: (0,) * a.ndim)

    out = pl.pallas_call(
        kernel,
        out_shape=jax.ShapeDtypeStruct((B_pad, Cp), jnp.float32),
        grid=(G,),                                    # independent batch tiles
        in_specs=[
            pl.BlockSpec((1, TB, E), lambda b: (b, 0, 0)),          # x
            pl.BlockSpec((T, B_TILE, 1), lambda b: (0, b, 0)),      # validity
            wspec(kp["wx0f"]), wspec(kp["wx0b"]),
            wspec(kp["whh0"]), wspec(kp["b0"]),
            wspec(kp["wx1f"]), wspec(kp["wx1b"]),
            wspec(kp["whh1"]), wspec(kp["b1"]),
            wspec(kp["fcw"]), wspec(kp["fcb"]),
        ],
        out_specs=pl.BlockSpec((B_TILE, Cp), lambda b: (b, 0)),
        scratch_shapes=[
            pltpu.VMEM((TB, 2 * H), h01_dtype),       # layer-0 outputs
            pltpu.VMEM((TB, 8 * H), jnp.float32),     # fwd pre-activations
            pltpu.VMEM((TB, 8 * H), jnp.float32),     # bwd pre-activations
        ],
        compiler_params=pltpu.CompilerParams(
            dimension_semantics=("parallel",),        # megacore split on v7x
            vmem_limit_bytes=vmem_limit),
    )(x, valid,
      kp["wx0f"], kp["wx0b"], kp["whh0"], kp["b0"],
      kp["wx1f"], kp["wx1b"], kp["whh1"], kp["b1"],
      kp["fcw"], kp["fcb"])
    return out[:B, :C]


# --------------------------------------------------------------------------
# Raw parameters (per-direction, PyTorch gate order [i, f, g, o], transposed).
# --------------------------------------------------------------------------
def init_params(key, vocab_size, embedding_dim, hidden_dim, num_classes):
    E, H, C = embedding_dim, hidden_dim, num_classes
    ks = jax.random.split(key, 16)

    def u(k, shape, scale=0.1):
        return jax.random.uniform(k, shape, jnp.float32, -scale, scale)

    # biases are the combined (b_ih + b_hh) of the PyTorch LSTM.
    return {
        "embedding": jax.random.normal(ks[0], (vocab_size, E), jnp.float32),
        # layer 0 forward / backward
        "wih0f": u(ks[1], (E, 4 * H)), "whh0f": u(ks[2], (H, 4 * H)), "b0f": u(ks[3], (1, 4 * H)),
        "wih0b": u(ks[4], (E, 4 * H)), "whh0b": u(ks[5], (H, 4 * H)), "b0b": u(ks[6], (1, 4 * H)),
        # layer 1 forward / backward (input is 2H wide)
        "wih1f": u(ks[7], (2 * H, 4 * H)), "whh1f": u(ks[8], (H, 4 * H)), "b1f": u(ks[9], (1, 4 * H)),
        "wih1b": u(ks[10], (2 * H, 4 * H)), "whh1b": u(ks[11], (H, 4 * H)), "b1b": u(ks[12], (1, 4 * H)),
        # fc head
        "fcw": u(ks[13], (2 * H, C)), "fcb": u(ks[14], (1, C)),
    }


# --------------------------------------------------------------------------
# Pure-JAX reference (same bf16-operand / f32-accum precision) for self-check.
# --------------------------------------------------------------------------
def bilstm_reference(text, lengths, params):
    emb = params["embedding"][text].astype(jnp.float32)            # (B, T, E)
    x = jnp.transpose(emb, (1, 0, 2))                               # (T, B, E)
    T, B, _ = x.shape
    H = params["whh0f"].shape[0]
    mask = jnp.arange(T)[:, None] < lengths[None, :]                # (T, B) bool
    bf16 = jnp.bfloat16

    def run_dir(xs, wih, whh, b, reverse):
        h = jnp.zeros((B, H), jnp.float32)
        c = jnp.zeros((B, H), jnp.float32)
        outs = [None] * T
        order = range(T - 1, -1, -1) if reverse else range(T)
        for t in order:
            gates = (jnp.dot(xs[t].astype(bf16), wih.astype(bf16),
                             preferred_element_type=jnp.float32)
                     + jnp.dot(h.astype(bf16), whh.astype(bf16),
                               preferred_element_type=jnp.float32) + b)
            i = jax.nn.sigmoid(gates[:, :H])
            f = jax.nn.sigmoid(gates[:, H:2 * H])
            g = jnp.tanh(gates[:, 2 * H:3 * H])
            o = jax.nn.sigmoid(gates[:, 3 * H:])
            c_new = f * c + i * g
            h_new = o * jnp.tanh(c_new)
            m = mask[t][:, None]
            h = jnp.where(m, h_new, h)
            c = jnp.where(m, c_new, c)
            outs[t] = h
        return h, jnp.stack(outs)

    _, h0f = run_dir(x, params["wih0f"], params["whh0f"], params["b0f"], False)
    _, h0b = run_dir(x, params["wih0b"], params["whh0b"], params["b0b"], True)
    x1 = jnp.concatenate([h0f, h0b], axis=-1)                       # (T, B, 2H)
    hf, _ = run_dir(x1, params["wih1f"], params["whh1f"], params["b1f"], False)
    hb, _ = run_dir(x1, params["wih1b"], params["whh1b"], params["b1b"], True)
    hidden = jnp.concatenate([hf, hb], axis=1)
    return jnp.dot(hidden, params["fcw"]) + params["fcb"]


if __name__ == "__main__":
    VOCAB, E, H, C = 50, 32, 64, 5          # H=64 -> 2H=128: lane-aligned state
    B, T = 4, 10

    key = jax.random.PRNGKey(0)
    k_params, k_text = jax.random.split(key)
    params = init_params(k_params, VOCAB, E, H, C)

    text = jax.random.randint(k_text, (B, T), 0, VOCAB, dtype=jnp.int32)
    lengths = jnp.array([10, 7, 4, 1], dtype=jnp.int32)   # packed-seq lengths

    logits = bilstm_forward(text, lengths, params)
    jax.block_until_ready(logits)
    assert logits.shape == (B, C)

    ref = jax.jit(bilstm_reference)(text, lengths, params)
    err = float(jnp.max(jnp.abs(logits - ref)))
    assert err < 2e-2, f"kernel/reference mismatch, max abs err = {err}"
    print("KERNEL_OK")
</pallas_src>

<mosaic_0001>
module attributes {stable_mosaic.version = 11 : i64} {
  func.func @bilstm_kernel(%arg0: i32, %arg1: memref<1x80x32xbf16, #tpu.memory_space<vmem>>, %arg2: memref<10x8x1xf32, #tpu.memory_space<vmem>>, %arg3: memref<32x512xbf16, #tpu.memory_space<vmem>>, %arg4: memref<32x512xbf16, #tpu.memory_space<vmem>>, %arg5: memref<128x512xbf16, #tpu.memory_space<vmem>>, %arg6: memref<1x512xf32, #tpu.memory_space<vmem>>, %arg7: memref<128x512xbf16, #tpu.memory_space<vmem>>, %arg8: memref<128x512xbf16, #tpu.memory_space<vmem>>, %arg9: memref<128x512xbf16, #tpu.memory_space<vmem>>, %arg10: memref<1x512xf32, #tpu.memory_space<vmem>>, %arg11: memref<128x128xf32, #tpu.memory_space<vmem>>, %arg12: memref<1x128xf32, #tpu.memory_space<vmem>>, %arg13: memref<8x128xf32, #tpu.memory_space<vmem>>, %arg14: memref<80x128xf32, #tpu.memory_space<vmem>>, %arg15: memref<80x512xf32, #tpu.memory_space<vmem>>, %arg16: memref<80x512xf32, #tpu.memory_space<vmem>>) attributes {dimension_semantics = [#tpu.dimension_semantics<parallel>], iteration_bounds = array<i64: 1>, scalar_prefetch = 0 : i64, scratch_operands = 3 : i64, tpu.core_type = #tpu.core_type<tc>, window_params = [{transform_indices = @transform_0, window_bounds = array<i64: 1, 80, 32>}, {transform_indices = @transform_1, window_bounds = array<i64: 10, 8, 1>}, {pipeline_mode = #tpu.pipeline_mode<synchronous>, transform_indices = @transform_2, window_bounds = array<i64: 32, 512>}, {pipeline_mode = #tpu.pipeline_mode<synchronous>, transform_indices = @transform_3, window_bounds = array<i64: 32, 512>}, {pipeline_mode = #tpu.pipeline_mode<synchronous>, transform_indices = @transform_4, window_bounds = array<i64: 128, 512>}, {pipeline_mode = #tpu.pipeline_mode<synchronous>, transform_indices = @transform_5, window_bounds = array<i64: 1, 512>}, {pipeline_mode = #tpu.pipeline_mode<synchronous>, transform_indices = @transform_6, window_bounds = array<i64: 128, 512>}, {pipeline_mode = #tpu.pipeline_mode<synchronous>, transform_indices = @transform_7, window_bounds = array<i64: 128, 512>}, {pipeline_mode = #tpu.pipeline_mode<synchronous>, transform_indices = @transform_8, window_bounds = array<i64: 128, 512>}, {pipeline_mode = #tpu.pipeline_mode<synchronous>, transform_indices = @transform_9, window_bounds = array<i64: 1, 512>}, {pipeline_mode = #tpu.pipeline_mode<synchronous>, transform_indices = @transform_10, window_bounds = array<i64: 128, 128>}, {pipeline_mode = #tpu.pipeline_mode<synchronous>, transform_indices = @transform_11, window_bounds = array<i64: 1, 128>}, {transform_indices = @transform_12, window_bounds = array<i64: 8, 128>}]} {
    %0 = tpu.iota {dimensions = array<i32: 1>} : vector<1x128xi32>
    %c64_i32 = arith.constant 64 : i32
    %1 = vector.broadcast %c64_i32 : i32 to vector<1x128xi32>
    %2 = arith.cmpi slt, %0, %1 : vector<1x128xi32>
    %cst = arith.constant 0.000000e+00 : f32
    %3 = vector.broadcast %cst : f32 to vector<8x128xf32>
    %c0 = arith.constant 0 : index
    %c0_0 = arith.constant 0 : index
    %c0_1 = arith.constant 0 : index
    %4 = vector.load %arg1[%c0, %c0_0, %c0_1] : memref<1x80x32xbf16, #tpu.memory_space<vmem>>, vector<1x80x32xbf16>
    %5 = vector.shape_cast %4 : vector<1x80x32xbf16> to vector<80x32xbf16>
    %c0_2 = arith.constant 0 : index
    %c0_3 = arith.constant 0 : index
    %6 = vector.load %arg3[%c0_2, %c0_3] : memref<32x512xbf16, #tpu.memory_space<vmem>>, vector<32x512xbf16>
    %cst_4 = arith.constant dense<0.000000e+00> : vector<80x512xf32>
    %7 = tpu.matmul %5, %6, %cst_4 {dimension_numbers = #tpu.dot_dimension_numbers<[1], [0], [0], [1], [0, 0, 1, 1], [], []>} : vector<80x32xbf16>, vector<32x512xbf16>, vector<80x512xf32> -> vector<80x512xf32>
    %c0_5 = arith.constant 0 : index
    %c0_6 = arith.constant 0 : index
    %8 = vector.load %arg6[%c0_5, %c0_6] : memref<1x512xf32, #tpu.memory_space<vmem>>, vector<1x512xf32>
    %9 = vector.broadcast %8 : vector<1x512xf32> to vector<80x512xf32>
    %10 = arith.addf %7, %9 : vector<80x512xf32>
    %c0_7 = arith.constant 0 : index
    %c0_8 = arith.constant 0 : index
    %11 = vector.load %arg15[%c0_7, %c0_8] : memref<80x512xf32, #tpu.memory_space<vmem>>, vector<80x512xf32>
    tpu.vector_store %arg15[%c0_7, %c0_8], %10 {strides = array<i32>} : memref<80x512xf32, #tpu.memory_space<vmem>>, vector<80x512xf32>,
    %c0_9 = arith.constant 0 : index
    %c0_10 = arith.constant 0 : index
    %12 = vector.load %arg4[%c0_9, %c0_10] : memref<32x512xbf16, #tpu.memory_space<vmem>>, vector<32x512xbf16>
    %cst_11 = arith.constant dense<0.000000e+00> : vector<80x512xf32>
    %13 = tpu.matmul %5, %12, %cst_11 {dimension_numbers = #tpu.dot_dimension_numbers<[1], [0], [0], [1], [0, 0, 1, 1], [], []>} : vector<80x32xbf16>, vector<32x512xbf16>, vector<80x512xf32> -> vector<80x512xf32>
    %c0_12 = arith.constant 0 : index
    %c0_13 = arith.constant 0 : index
    %14 = vector.load %arg16[%c0_12, %c0_13] : memref<80x512xf32, #tpu.memory_space<vmem>>, vector<80x512xf32>
    tpu.vector_store %arg16[%c0_12, %c0_13], %13 {strides = array<i32>} : memref<80x512xf32, #tpu.memory_space<vmem>>, vector<80x512xf32>,
    %c0_i32 = arith.constant 0 : i32
    %c9_i32 = arith.constant 9 : i32
    %15 = arith.subi %c9_i32, %c0_i32 : i32
    %c8_i32 = arith.constant 8 : i32
    %16 = arith.muli %c0_i32, %c8_i32 : i32
    %17 = tpu.assume_multiple %16, 8 : i32
    %c8_i32_14 = arith.constant 8 : i32
    %18 = arith.muli %15, %c8_i32_14 : i32
    %19 = tpu.assume_multiple %18, 8 : i32
    %20 = arith.index_cast %17 : i32 to index
    %c0_15 = arith.constant 0 : index
    %21 = vector.load %arg15[%20, %c0_15] : memref<80x512xf32, #tpu.memory_space<vmem>>, vector<8x512xf32>
    %22 = arith.index_cast %19 : i32 to index
    %c0_16 = arith.constant 0 : index
    %23 = vector.load %arg16[%22, %c0_16] : memref<80x512xf32, #tpu.memory_space<vmem>>, vector<8x512xf32>
    %24 = arith.addf %21, %23 : vector<8x512xf32>
    %25 = arith.index_cast %c0_i32 : i32 to index
    %c0_17 = arith.constant 0 : index
    %c0_18 = arith.constant 0 : index
    %26 = vector.load %arg2[%25, %c0_17, %c0_18] : memref<10x8x1xf32, #tpu.memory_space<vmem>>, vector<1x8x1xf32>
    %27 = vector.shape_cast %26 : vector<1x8x1xf32> to vector<8x1xf32>
    %28 = arith.index_cast %15 : i32 to index
    %c0_19 = arith.constant 0 : index
    %c0_20 = arith.constant 0 : index
    %29 = vector.load %arg2[%28, %c0_19, %c0_20] : memref<10x8x1xf32, #tpu.memory_space<vmem>>, vector<1x8x1xf32>
    %30 = vector.shape_cast %29 : vector<1x8x1xf32> to vector<8x1xf32>
    %31 = vector.shape_cast %2 : vector<1x128xi1> to vector<1x128xi1>
    %32 = vector.broadcast %31 : vector<1x128xi1> to vector<8x128xi1>
    %33 = vector.shape_cast %27 : vector<8x1xf32> to vector<8x1xf32>
    %34 = vector.broadcast %33 : vector<8x1xf32> to vector<8x128xf32>
    %35 = vector.shape_cast %30 : vector<8x1xf32> to vector<8x1xf32>
    %36 = vector.broadcast %35 : vector<8x1xf32> to vector<8x128xf32>
    %37 = arith.select %32, %34, %36 : vector<8x128xi1>, vector<8x128xf32>
    %cst_21 = arith.constant 0.000000e+00 : f32
    %38 = vector.broadcast %cst_21 : f32 to vector<8x128xf32>
    %39 = arith.cmpf one, %37, %38 : vector<8x128xf32>
    %40 = arith.truncf %3 : vector<8x128xf32> to vector<8x128xbf16>
    %c0_22 = arith.constant 0 : index
    %c0_23 = arith.constant 0 : index
    %41 = vector.load %arg5[%c0_22, %c0_23] : memref<128x512xbf16, #tpu.memory_space<vmem>>, vector<128x512xbf16>
    %cst_24 = arith.constant dense<0.000000e+00> : vector<8x512xf32>
    %42 = tpu.matmul %40, %41, %cst_24 {dimension_numbers = #tpu.dot_dimension_numbers<[1], [0], [0], [1], [0, 0, 1, 1], [], []>} : vector<8x128xbf16>, vector<128x512xbf16>, vector<8x512xf32> -> vector<8x512xf32>
    %43 = arith.addf %24, %42 : vector<8x512xf32>
    %44 = vector.extract_strided_slice %43 {offsets = [0, 0], sizes = [8, 384], strides = [1, 1]} : vector<8x512xf32> to vector<8x384xf32>
    %45 = arith.negf %44 : vector<8x384xf32>
    %46 = math.exp %45 : vector<8x384xf32>
    %cst_25 = arith.constant 1.000000e+00 : f32
    %47 = vector.broadcast %cst_25 : f32 to vector<8x384xf32>
    %48 = arith.addf %47, %46 : vector<8x384xf32>
    %49 = arith.divf %47, %48 : vector<8x384xf32>
    %50 = vector.extract_strided_slice %43 {offsets = [0, 384], sizes = [8, 128], strides = [1, 1]} : vector<8x512xf32> to vector<8x128xf32>
    %51 = math.tanh %50 : vector<8x128xf32>
    %52 = vector.extract_strided_slice %49 {offsets = [0, 128], sizes = [8, 128], strides = [1, 1]} : vector<8x384xf32> to vector<8x128xf32>
    %53 = arith.mulf %52, %3 : vector<8x128xf32>
    %54 = vector.extract_strided_slice %49 {offsets = [0, 0], sizes = [8, 128], strides = [1, 1]} : vector<8x384xf32> to vector<8x128xf32>
    %55 = arith.mulf %54, %51 : vector<8x128xf32>
    %56 = arith.addf %53, %55 : vector<8x128xf32>
    %57 = vector.extract_strided_slice %49 {offsets = [0, 256], sizes = [8, 128], strides = [1, 1]} : vector<8x384xf32> to vector<8x128xf32>
    %58 = math.tanh %56 : vector<8x128xf32>
    %59 = arith.mulf %57, %58 : vector<8x128xf32>
    %60 = arith.select %39, %59, %3 : vector<8x128xi1>, vector<8x128xf32>
    %61 = arith.select %39, %56, %3 : vector<8x128xi1>, vector<8x128xf32>
    %62 = vector.extract_strided_slice %60 {offsets = [0, 0], sizes = [8, 64], strides = [1, 1]} : vector<8x128xf32> to vector<8x64xf32>
    %63 = arith.index_cast %17 : i32 to index
    %c0_26 = arith.constant 0 : index
    %64 = vector.load %arg14[%63, %c0_26] : memref<80x128xf32, #tpu.memory_space<vmem>>, vector<8x64xf32>
    tpu.vector_store %arg14[%63, %c0_26], %62 {strides = array<i32>} : memref<80x128xf32, #tpu.memory_space<vmem>>, vector<8x64xf32>,
    %65 = vector.extract_strided_slice %60 {offsets = [0, 64], sizes = [8, 64], strides = [1, 1]} : vector<8x128xf32> to vector<8x64xf32>
    %66 = arith.index_cast %19 : i32 to index
    %c64 = arith.constant 64 : index
    %67 = vector.load %arg14[%66, %c64] : memref<80x128xf32, #tpu.memory_space<vmem>>, vector<8x64xf32>
    tpu.vector_store %arg14[%66, %c64], %65 {strides = array<i32>} : memref<80x128xf32, #tpu.memory_space<vmem>>, vector<8x64xf32>,
    %c1_i32 = arith.constant 1 : i32
    %c9_i32_27 = arith.constant 9 : i32
    %68 = arith.subi %c9_i32_27, %c1_i32 : i32
    %c8_i32_28 = arith.constant 8 : i32
    %69 = arith.muli %c1_i32, %c8_i32_28 : i32
    %70 = tpu.assume_multiple %69, 8 : i32
    %c8_i32_29 = arith.constant 8 : i32
    %71 = arith.muli %68, %c8_i32_29 : i32
    %72 = tpu.assume_multiple %71, 8 : i32
    %73 = arith.index_cast %70 : i32 to index
    %c0_30 = arith.constant 0 : index
    %74 = vector.load %arg15[%73, %c0_30] : memref<80x512xf32, #tpu.memory_space<vmem>>, vector<8x512xf32>
    %75 = arith.index_cast %72 : i32 to index
    %c0_31 = arith.constant 0 : index
    %76 = vector.load %arg16[%75, %c0_31] : memref<80x512xf32, #tpu.memory_space<vmem>>, vector<8x512xf32>
    %77 = arith.addf %74, %76 : vector<8x512xf32>
    %78 = arith.index_cast %c1_i32 : i32 to index
    %c0_32 = arith.constant 0 : index
    %c0_33 = arith.constant 0 : index
    %79 = vector.load %arg2[%78, %c0_32, %c0_33] : memref<10x8x1xf32, #tpu.memory_space<vmem>>, vector<1x8x1xf32>
    %80 = vector.shape_cast %79 : vector<1x8x1xf32> to vector<8x1xf32>
    %81 = arith.index_cast %68 : i32 to index
    %c0_34 = arith.constant 0 : index
    %c0_35 = arith.constant 0 : index
    %82 = vector.load %arg2[%81, %c0_34, %c0_35] : memref<10x8x1xf32, #tpu.memory_space<vmem>>, vector<1x8x1xf32>
    %83 = vector.shape_cast %82 : vector<1x8x1xf32> to vector<8x1xf32>
    %84 = vector.shape_cast %2 : vector<1x128xi1> to vector<1x128xi1>
    %85 = vector.broadcast %84 : vector<1x128xi1> to vector<8x128xi1>
    %86 = vector.shape_cast %80 : vector<8x1xf32> to vector<8x1xf32>
    %87 = vector.broadcast %86 : vector<8x1xf32> to vector<8x128xf32>
    %88 = vector.shape_cast %83 : vector<8x1xf32> to vector<8x1xf32>
    %89 = vector.broadcast %88 : vector<8x1xf32> to vector<8x128xf32>
    %90 = arith.select %85, %87, %89 : vector<8x128xi1>, vector<8x128xf32>
    %cst_36 = arith.constant 0.000000e+00 : f32
    %91 = vector.broadcast %cst_36 : f32 to vector<8x128xf32>
    %92 = arith.cmpf one, %90, %91 : vector<8x128xf32>
    %93 = arith.truncf %60 : vector<8x128xf32> to vector<8x128xbf16>
    %c0_37 = arith.constant 0 : index
    %c0_38 = arith.constant 0 : index
    %94 = vector.load %arg5[%c0_37, %c0_38] : memref<128x512xbf16, #tpu.memory_space<vmem>>, vector<128x512xbf16>
    %cst_39 = arith.constant dense<0.000000e+00> : vector<8x512xf32>
    %95 = tpu.matmul %93, %94, %cst_39 {dimension_numbers = #tpu.dot_dimension_numbers<[1], [0], [0], [1], [0, 0, 1, 1], [], []>} : vector<8x128xbf16>, vector<128x512xbf16>, vector<8x512xf32> -> vector<8x512xf32>
    %96 = arith.addf %77, %95 : vector<8x512xf32>
    %97 = vector.extract_strided_slice %96 {offsets = [0, 0], sizes = [8, 384], strides = [1, 1]} : vector<8x512xf32> to vector<8x384xf32>
    %98 = arith.negf %97 : vector<8x384xf32>
    %99 = math.exp %98 : vector<8x384xf32>
    %cst_40 = arith.constant 1.000000e+00 : f32
    %100 = vector.broadcast %cst_40 : f32 to vector<8x384xf32>
    %101 = arith.addf %100, %99 : vector<8x384xf32>
    %102 = arith.divf %100, %101 : vector<8x384xf32>
    %103 = vector.extract_strided_slice %96 {offsets = [0, 384], sizes = [8, 128], strides = [1, 1]} : vector<8x512xf32> to vector<8x128xf32>
    %104 = math.tanh %103 : vector<8x128xf32>
    %105 = vector.extract_strided_slice %102 {offsets = [0, 128], sizes = [8, 128], strides = [1, 1]} : vector<8x384xf32> to vector<8x128xf32>
    %106 = arith.mulf %105, %61 : vector<8x128xf32>
    %107 = vector.extract_strided_slice %102 {offsets = [0, 0], sizes = [8, 128], strides = [1, 1]} : vector<8x384xf32> to vector<8x128xf32>
    %108 = arith.mulf %107, %104 : vector<8x128xf32>
    %109 = arith.addf %106, %108 : vector<8x128xf32>
    %110 = vector.extract_strided_slice %102 {offsets = [0, 256], sizes = [8, 128], strides = [1, 1]} : vector<8x384xf32> to vector<8x128xf32>
    %111 = math.tanh %109 : vector<8x128xf32>
    %112 = arith.mulf %110, %111 : vector<8x128xf32>
    %113 = arith.select %92, %112, %60 : vector<8x128xi1>, vector<8x128xf32>
    %114 = arith.select %92, %109, %61 : vector<8x128xi1>, vector<8x128xf32>
    %115 = vector.extract_strided_slice %113 {offsets = [0, 0], sizes = [8, 64], strides = [1, 1]} : vector<8x128xf32> to vector<8x64xf32>
    %116 = arith.index_cast %70 : i32 to index
    %c0_41 = arith.constant 0 : index
    %117 = vector.load %arg14[%116, %c0_41] : memref<80x128xf32, #tpu.memory_space<vmem>>, vector<8x64xf32>
    tpu.vector_store %arg14[%116, %c0_41], %115 {strides = array<i32>} : memref<80x128xf32, #tpu.memory_space<vmem>>, vector<8x64xf32>,
    %118 = vector.extract_strided_slice %113 {offsets = [0, 64], sizes = [8, 64], strides = [1, 1]} : vector<8x128xf32> to vector<8x64xf32>
    %119 = arith.index_cast %72 : i32 to index
    %c64_42 = arith.constant 64 : index
    %120 = vector.load %arg14[%119, %c64_42] : memref<80x128xf32, #tpu.memory_space<vmem>>, vector<8x64xf32>
    tpu.vector_store %arg14[%119, %c64_42], %118 {strides = array<i32>} : memref<80x128xf32, #tpu.memory_space<vmem>>, vector<8x64xf32>,
    %c2_i32 = arith.constant 2 : i32
    %c9_i32_43 = arith.constant 9 : i32
    %121 = arith.subi %c9_i32_43, %c2_i32 : i32
    %c8_i32_44 = arith.constant 8 : i32
    %122 = arith.muli %c2_i32, %c8_i32_44 : i32
    %123 = tpu.assume_multiple %122, 8 : i32
    %c8_i32_45 = arith.constant 8 : i32
    %124 = arith.muli %121, %c8_i32_45 : i32
    %125 = tpu.assume_multiple %124, 8 : i32
    %126 = arith.index_cast %123 : i32 to index
    %c0_46 = arith.constant 0 : index
    %127 = vector.load %arg15[%126, %c0_46] : memref<80x512xf32, #tpu.memory_space<vmem>>, vector<8x512xf32>
    %128 = arith.index_cast %125 : i32 to index
    %c0_47 = arith.constant 0 : index
    %129 = vector.load %arg16[%128, %c0_47] : memref<80x512xf32, #tpu.memory_space<vmem>>, vector<8x512xf32>
    %130 = arith.addf %127, %129 : vector<8x512xf32>
    %131 = arith.index_cast %c2_i32 : i32 to index
    %c0_48 = arith.constant 0 : index
    %c0_49 = arith.constant 0 : index
    %132 = vector.load %arg2[%131, %c0_48, %c0_49] : memref<10x8x1xf32, #tpu.memory_space<vmem>>, vector<1x8x1xf32>
    %133 = vector.shape_cast %132 : vector<1x8x1xf32> to vector<8x1xf32>
    %134 = arith.index_cast %121 : i32 to index
    %c0_50 = arith.constant 0 : index
    %c0_51 = arith.constant 0 : index
    %135 = vector.load %arg2[%134, %c0_50, %c0_51] : memref<10x8x1xf32, #tpu.memory_space<vmem>>, vector<1x8x1xf32>
    %136 = vector.shape_cast %135 : vector<1x8x1xf32> to vector<8x1xf32>
    %137 = vector.shape_cast %2 : vector<1x128xi1> to vector<1x128xi1>
    %138 = vector.broadcast %137 : vector<1x128xi1> to vector<8x128xi1>
    %139 = vector.shape_cast %133 : vector<8x1xf32> to vector<8x1xf32>
    %140 = vector.broadcast %139 : vector<8x1xf32> to vector<8x128xf32>
    %141 = vector.shape_cast %136 : vector<8x1xf32> to vector<8x1xf32>
    %142 = vector.broadcast %141 : vector<8x1xf32> to vector<8x128xf32>
    %143 = arith.select %138, %140, %142 : vector<8x128xi1>, vector<8x128xf32>
    %cst_52 = arith.constant 0.000000e+00 : f32
    %144 = vector.broadcast %cst_52 : f32 to vector<8x128xf32>
    %145 = arith.cmpf one, %143, %144 : vector<8x128xf32>
    %146 = arith.truncf %113 : vector<8x128xf32> to vector<8x128xbf16>
    %c0_53 = arith.constant 0 : index
    %c0_54 = arith.constant 0 : index
    %147 = vector.load %arg5[%c0_53, %c0_54] : memref<128x512xbf16, #tpu.memory_space<vmem>>, vector<128x512xbf16>
    %cst_55 = arith.constant dense<0.000000e+00> : vector<8x512xf32>
    %148 = tpu.matmul %146, %147, %cst_55 {dimension_numbers = #tpu.dot_dimension_numbers<[1], [0], [0], [1], [0, 0, 1, 1], [], []>} : vector<8x128xbf16>, vector<128x512xbf16>, vector<8x512xf32> -> vector<8x512xf32>
    %149 = arith.addf %130, %148 : vector<8x512xf32>
    %150 = vector.extract_strided_slice %149 {offsets = [0, 0], sizes = [8, 384], strides = [1, 1]} : vector<8x512xf32> to vector<8x384xf32>
    %151 = arith.negf %150 : vector<8x384xf32>
    %152 = math.exp %151 : vector<8x384xf32>
    %cst_56 = arith.constant 1.000000e+00 : f32
    %153 = vector.broadcast %cst_56 : f32 to vector<8x384xf32>
    %154 = arith.addf %153, %152 : vector<8x384xf32>
    %155 = arith.divf %153, %154 : vector<8x384xf32>
    %156 = vector.extract_strided_slice %149 {offsets = [0, 384], sizes = [8, 128], strides = [1, 1]} : vector<8x512xf32> to vector<8x128xf32>
    %157 = math.tanh %156 : vector<8x128xf32>
    %158 = vector.extract_strided_slice %155 {offsets = [0, 128], sizes = [8, 128], strides = [1, 1]} : vector<8x384xf32> to vector<8x128xf32>
    %159 = arith.mulf %158, %114 : vector<8x128xf32>
    %160 = vector.extract_strided_slice %155 {offsets = [0, 0], sizes = [8, 128], strides = [1, 1]} : vector<8x384xf32> to vector<8x128xf32>
    %161 = arith.mulf %160, %157 : vector<8x128xf32>
    %162 = arith.addf %159, %161 : vector<8x128xf32>
    %163 = vector.extract_strided_slice %155 {offsets = [0, 256], sizes = [8, 128], strides = [1, 1]} : vector<8x384xf32> to vector<8x128xf32>
    %164 = math.tanh %162 : vector<8x128xf32>
    %165 = arith.mulf %163, %164 : vector<8x128xf32>
    %166 = arith.select %145, %165, %113 : vector<8x128xi1>, vector<8x128xf32>
    %167 = arith.select %145, %162, %114 : vector<8x128xi1>, vector<8x128xf32>
    %168 = vector.extract_strided_slice %166 {offsets = [0, 0], sizes = [8, 64], strides = [1, 1]} : vector<8x128xf32> to vector<8x64xf32>
    %169 = arith.index_cast %123 : i32 to index
    %c0_57 = arith.constant 0 : index
    %170 = vector.load %arg14[%169, %c0_57] : memref<80x128xf32, #tpu.memory_space<vmem>>, vector<8x64xf32>
    tpu.vector_store %arg14[%169, %c0_57], %168 {strides = array<i32>} : memref<80x128xf32, #tpu.memory_space<vmem>>, vector<8x64xf32>,
    %171 = vector.extract_strided_slice %166 {offsets = [0, 64], sizes = [8, 64], strides = [1, 1]} : vector<8x128xf32> to vector<8x64xf32>
    %172 = arith.index_cast %125 : i32 to index
    %c64_58 = arith.constant 64 : index
    %173 = vector.load %arg14[%172, %c64_58] : memref<80x128xf32, #tpu.memory_space<vmem>>, vector<8x64xf32>
    tpu.vector_store %arg14[%172, %c64_58], %171 {strides = array<i32>} : memref<80x128xf32, #tpu.memory_space<vmem>>, vector<8x64xf32>,
    %c3_i32 = arith.constant 3 : i32
    %c9_i32_59 = arith.constant 9 : i32
    %174 = arith.subi %c9_i32_59, %c3_i32 : i32
    %c8_i32_60 = arith.constant 8 : i32
    %175 = arith.muli %c3_i32, %c8_i32_60 : i32
    %176 = tpu.assume_multiple %175, 8 : i32
    %c8_i32_61 = arith.constant 8 : i32
    %177 = arith.muli %174, %c8_i32_61 : i32
    %178 = tpu.assume_multiple %177, 8 : i32
    %179 = arith.index_cast %176 : i32 to index
    %c0_62 = arith.constant 0 : index
    %180 = vector.load %arg15[%179, %c0_62] : memref<80x512xf32, #tpu.memory_space<vmem>>, vector<8x512xf32>
    %181 = arith.index_cast %178 : i32 to index
    %c0_63 = arith.constant 0 : index
    %182 = vector.load %arg16[%181, %c0_63] : memref<80x512xf32, #tpu.memory_space<vmem>>, vector<8x512xf32>
    %183 = arith.addf %180, %182 : vector<8x512xf32>
    %184 = arith.index_cast %c3_i32 : i32 to index
    %c0_64 = arith.constant 0 : index
    %c0_65 = arith.constant 0 : index
    %185 = vector.load %arg2[%184, %c0_64, %c0_65] : memref<10x8x1xf32, #tpu.memory_space<vmem>>, vector<1x8x1xf32>
    %186 = vector.shape_cast %185 : vector<1x8x1xf32> to vector<8x1xf32>
    %187 = arith.index_cast %174 : i32 to index
    %c0_66 = arith.constant 0 : index
    %c0_67 = arith.constant 0 : index
    %188 = vector.load %arg2[%187, %c0_66, %c0_67] : memref<10x8x1xf32, #tpu.memory_space<vmem>>, vector<1x8x1xf32>
    %189 = vector.shape_cast %188 : vector<1x8x1xf32> to vector<8x1xf32>
    %190 = vector.shape_cast %2 : vector<1x128xi1> to vector<1x128xi1>
    %191 = vector.broadcast %190 : vector<1x128xi1> to vector<8x128xi1>
    %192 = vector.shape_cast %186 : vector<8x1xf32> to vector<8x1xf32>
    %193 = vector.broadcast %192 : vector<8x1xf32> to vector<8x128xf32>
    %194 = vector.shape_cast %189 : vector<8x1xf32> to vector<8x1xf32>
    %195 = vector.broadcast %194 : vector<8x1xf32> to vector<8x128xf32>
    %196 = arith.select %191, %193, %195 : vector<8x128xi1>, vector<8x128xf32>
    %cst_68 = arith.constant 0.000000e+00 : f32
    %197 = vector.broadcast %cst_68 : f32 to vector<8x128xf32>
    %198 = arith.cmpf one, %196, %197 : vector<8x128xf32>
    %199 = arith.truncf %166 : vector<8x128xf32> to vector<8x128xbf16>
    %c0_69 = arith.constant 0 : index
    %c0_70 = arith.constant 0 : index
    %200 = vector.load %arg5[%c0_69, %c0_70] : memref<128x512xbf16, #tpu.memory_space<vmem>>, vector<128x512xbf16>
    %cst_71 = arith.constant dense<0.000000e+00> : vector<8x512xf32>
    %201 = tpu.matmul %199, %200, %cst_71 {dimension_numbers = #tpu.dot_dimension_numbers<[1], [0], [0], [1], [0, 0, 1, 1], [], []>} : vector<8x128xbf16>, vector<128x512xbf16>, vector<8x512xf32> -> vector<8x512xf32>
    %202 = arith.addf %183, %201 : vector<8x512xf32>
    %203 = vector.extract_strided_slice %202 {offsets = [0, 0], sizes = [8, 384], strides = [1, 1]} : vector<8x512xf32> to vector<8x384xf32>
    %204 = arith.negf %203 : vector<8x384xf32>
    %205 = math.exp %204 : vector<8x384xf32>
    %cst_72 = arith.constant 1.000000e+00 : f32
    %206 = vector.broadcast %cst_72 : f32 to vector<8x384xf32>
    %207 = arith.addf %206, %205 : vector<8x384xf32>
    %208 = arith.divf %206, %207 : vector<8x384xf32>
    %209 = vector.extract_strided_slice %202 {offsets = [0, 384], sizes = [8, 128], strides = [1, 1]} : vector<8x512xf32> to vector<8x128xf32>
    %210 = math.tanh %209 : vector<8x128xf32>
    %211 = vector.extract_strided_slice %208 {offsets = [0, 128], sizes = [8, 128], strides = [1, 1]} : vector<8x384xf32> to vector<8x128xf32>
    %212 = arith.mulf %211, %167 : vector<8x128xf32>
    %213 = vector.extract_strided_slice %208 {offsets = [0, 0], sizes = [8, 128], strides = [1, 1]} : vector<8x384xf32> to vector<8x128xf32>
    %214 = arith.mulf %213, %210 : vector<8x128xf32>
    %215 = arith.addf %212, %214 : vector<8x128xf32>
    %216 = vector.extract_strided_slice %208 {offsets = [0, 256], sizes = [8, 128], strides = [1, 1]} : vector<8x384xf32> to vector<8x128xf32>
    %217 = math.tanh %215 : vector<8x128xf32>
    %218 = arith.mulf %216, %217 : vector<8x128xf32>
    %219 = arith.select %198, %218, %166 : vector<8x128xi1>, vector<8x128xf32>
    %220 = arith.select %198, %215, %167 : vector<8x128xi1>, vector<8x128xf32>
    %221 = vector.extract_strided_slice %219 {offsets = [0, 0], sizes = [8, 64], strides = [1, 1]} : vector<8x128xf32> to vector<8x64xf32>
    %222 = arith.index_cast %176 : i32 to index
    %c0_73 = arith.constant 0 : index
    %223 = vector.load %arg14[%222, %c0_73] : memref<80x128xf32, #tpu.memory_space<vmem>>, vector<8x64xf32>
    tpu.vector_store %arg14[%222, %c0_73], %221 {strides = array<i32>} : memref<80x128xf32, #tpu.memory_space<vmem>>, vector<8x64xf32>,
    %224 = vector.extract_strided_slice %219 {offsets = [0, 64], sizes = [8, 64], strides = [1, 1]} : vector<8x128xf32> to vector<8x64xf32>
    %225 = arith.index_cast %178 : i32 to index
    %c64_74 = arith.constant 64 : index
    %226 = vector.load %arg14[%225, %c64_74] : memref<80x128xf32, #tpu.memory_space<vmem>>, vector<8x64xf32>
    tpu.vector_store %arg14[%225, %c64_74], %224 {strides = array<i32>} : memref<80x128xf32, #tpu.memory_space<vmem>>, vector<8x64xf32>,
    %c4_i32 = arith.constant 4 : i32
    %c9_i32_75 = arith.constant 9 : i32
    %227 = arith.subi %c9_i32_75, %c4_i32 : i32
    %c8_i32_76 = arith.constant 8 : i32
    %228 = arith.muli %c4_i32, %c8_i32_76 : i32
    %229 = tpu.assume_multiple %228, 8 : i32
    %c8_i32_77 = arith.constant 8 : i32
    %230 = arith.muli %227, %c8_i32_77 : i32
    %231 = tpu.assume_multiple %230, 8 : i32
    %232 = arith.index_cast %229 : i32 to index
    %c0_78 = arith.constant 0 : index
    %233 = vector.load %arg15[%232, %c0_78] : memref<80x512xf32, #tpu.memory_space<vmem>>, vector<8x512xf32>
    %234 = arith.index_cast %231 : i32 to index
    %c0_79 = arith.constant 0 : index
    %235 = vector.load %arg16[%234, %c0_79] : memref<80x512xf32, #tpu.memory_space<vmem>>, vector<8x512xf32>
    %236 = arith.addf %233, %235 : vector<8x512xf32>
    %237 = arith.index_cast %c4_i32 : i32 to index
    %c0_80 = arith.constant 0 : index
    %c0_81 = arith.constant 0 : index
    %238 = vector.load %arg2[%237, %c0_80, %c0_81] : memref<10x8x1xf32, #tpu.memory_space<vmem>>, vector<1x8x1xf32>
    %239 = vector.shape_cast %238 : vector<1x8x1xf32> to vector<8x1xf32>
    %240 = arith.index_cast %227 : i32 to index
    %c0_82 = arith.constant 0 : index
    %c0_83 = arith.constant 0 : index
    %241 = vector.load %arg2[%240, %c0_82, %c0_83] : memref<10x8x1xf32, #tpu.memory_space<vmem>>, vector<1x8x1xf32>
    %242 = vector.shape_cast %241 : vector<1x8x1xf32> to vector<8x1xf32>
    %243 = vector.shape_cast %2 : vector<1x128xi1> to vector<1x128xi1>
    %244 = vector.broadcast %243 : vector<1x128xi1> to vector<8x128xi1>
    %245 = vector.shape_cast %239 : vector<8x1xf32> to vector<8x1xf32>
    %246 = vector.broadcast %245 : vector<8x1xf32> to vector<8x128xf32>
    %247 = vector.shape_cast %242 : vector<8x1xf32> to vector<8x1xf32>
    %248 = vector.broadcast %247 : vector<8x1xf32> to vector<8x128xf32>
    %249 = arith.select %244, %246, %248 : vector<8x128xi1>, vector<8x128xf32>
    %cst_84 = arith.constant 0.000000e+00 : f32
    %250 = vector.broadcast %cst_84 : f32 to vector<8x128xf32>
    %251 = arith.cmpf one, %249, %250 : vector<8x128xf32>
    %252 = arith.truncf %219 : vector<8x128xf32> to vector<8x128xbf16>
    %c0_85 = arith.constant 0 : index
    %c0_86 = arith.constant 0 : index
    %253 = vector.load %arg5[%c0_85, %c0_86] : memref<128x512xbf16, #tpu.memory_space<vmem>>, vector<128x512xbf16>
    %cst_87 = arith.constant dense<0.000000e+00> : vector<8x512xf32>
    %254 = tpu.matmul %252, %253, %cst_87 {dimension_numbers = #tpu.dot_dimension_numbers<[1], [0], [0], [1], [0, 0, 1, 1], [], []>} : vector<8x128xbf16>, vector<128x512xbf16>, vector<8x512xf32> -> vector<8x512xf32>
    %255 = arith.addf %236, %254 : vector<8x512xf32>
    %256 = vector.extract_strided_slice %255 {offsets = [0, 0], sizes = [8, 384], strides = [1, 1]} : vector<8x512xf32> to vector<8x384xf32>
    %257 = arith.negf %256 : vector<8x384xf32>
    %258 = math.exp %257 : vector<8x384xf32>
    %cst_88 = arith.constant 1.000000e+00 : f32
    %259 = vector.broadcast %cst_88 : f32 to vector<8x384xf32>
    %260 = arith.addf %259, %258 : vector<8x384xf32>
    %261 = arith.divf %259, %260 : vector<8x384xf32>
    %262 = vector.extract_strided_slice %255 {offsets = [0, 384], sizes = [8, 128], strides = [1, 1]} : vector<8x512xf32> to vector<8x128xf32>
    %263 = math.tanh %262 : vector<8x128xf32>
    %264 = vector.extract_strided_slice %261 {offsets = [0, 128], sizes = [8, 128], strides = [1, 1]} : vector<8x384xf32> to vector<8x128xf32>
    %265 = arith.mulf %264, %220 : vector<8x128xf32>
    %266 = vector.extract_strided_slice %261 {offsets = [0, 0], sizes = [8, 128], strides = [1, 1]} : vector<8x384xf32> to vector<8x128xf32>
    %267 = arith.mulf %266, %263 : vector<8x128xf32>
    %268 = arith.addf %265, %267 : vector<8x128xf32>
    %269 = vector.extract_strided_slice %261 {offsets = [0, 256], sizes = [8, 128], strides = [1, 1]} : vector<8x384xf32> to vector<8x128xf32>
    %270 = math.tanh %268 : vector<8x128xf32>
    %271 = arith.mulf %269, %270 : vector<8x128xf32>
    %272 = arith.select %251, %271, %219 : vector<8x128xi1>, vector<8x128xf32>
    %273 = arith.select %251, %268, %220 : vector<8x128xi1>, vector<8x128xf32>
    %274 = vector.extract_strided_slice %272 {offsets = [0, 0], sizes = [8, 64], strides = [1, 1]} : vector<8x128xf32> to vector<8x64xf32>
    %275 = arith.index_cast %229 : i32 to index
    %c0_89 = arith.constant 0 : index
    %276 = vector.load %arg14[%275, %c0_89] : memref<80x128xf32, #tpu.memory_space<vmem>>, vector<8x64xf32>
    tpu.vector_store %arg14[%275, %c0_89], %274 {strides = array<i32>} : memref<80x128xf32, #tpu.memory_space<vmem>>, vector<8x64xf32>,
    %277 = vector.extract_strided_slice %272 {offsets = [0, 64], sizes = [8, 64], strides = [1, 1]} : vector<8x128xf32> to vector<8x64xf32>
    %278 = arith.index_cast %231 : i32 to index
    %c64_90 = arith.constant 64 : index
    %279 = vector.load %arg14[%278, %c64_90] : memref<80x128xf32, #tpu.memory_space<vmem>>, vector<8x64xf32>
    tpu.vector_store %arg14[%278, %c64_90], %277 {strides = array<i32>} : memref<80x128xf32, #tpu.memory_space<vmem>>, vector<8x64xf32>,
    %c5_i32 = arith.constant 5 : i32
    %c9_i32_91 = arith.constant 9 : i32
    %280 = arith.subi %c9_i32_91, %c5_i32 : i32
    %c8_i32_92 = arith.constant 8 : i32
    %281 = arith.muli %c5_i32, %c8_i32_92 : i32
    %282 = tpu.assume_multiple %281, 8 : i32
    %c8_i32_93 = arith.constant 8 : i32
    %283 = arith.muli %280, %c8_i32_93 : i32
    %284 = tpu.assume_multiple %283, 8 : i32
    %285 = arith.index_cast %282 : i32 to index
    %c0_94 = arith.constant 0 : index
    %286 = vector.load %arg15[%285, %c0_94] : memref<80x512xf32, #tpu.memory_space<vmem>>, vector<8x512xf32>
    %287 = arith.index_cast %284 : i32 to index
    %c0_95 = arith.constant 0 : index
    %288 = vector.load %arg16[%287, %c0_95] : memref<80x512xf32, #tpu.memory_space<vmem>>, vector<8x512xf32>
    %289 = arith.addf %286, %288 : vector<8x512xf32>
    %290 = arith.index_cast %c5_i32 : i32 to index
    %c0_96 = arith.constant 0 : index
    %c0_97 = arith.constant 0 : index
    %291 = vector.load %arg2[%290, %c0_96, %c0_97] : memref<10x8x1xf32, #tpu.memory_space<vmem>>, vector<1x8x1xf32>
    %292 = vector.shape_cast %291 : vector<1x8x1xf32> to vector<8x1xf32>
    %293 = arith.index_cast %280 : i32 to index
    %c0_98 = arith.constant 0 : index
    %c0_99 = arith.constant 0 : index
    %294 = vector.load %arg2[%293, %c0_98, %c0_99] : memref<10x8x1xf32, #tpu.memory_space<vmem>>, vector<1x8x1xf32>
    %295 = vector.shape_cast %294 : vector<1x8x1xf32> to vector<8x1xf32>
    %296 = vector.shape_cast %2 : vector<1x128xi1> to vector<1x128xi1>
    %297 = vector.broadcast %296 : vector<1x128xi1> to vector<8x128xi1>
    %298 = vector.shape_cast %292 : vector<8x1xf32> to vector<8x1xf32>
    %299 = vector.broadcast %298 : vector<8x1xf32> to vector<8x128xf32>
    %300 = vector.shape_cast %295 : vector<8x1xf32> to vector<8x1xf32>
    %301 = vector.broadcast %300 : vector<8x1xf32> to vector<8x128xf32>
    %302 = arith.select %297, %299, %301 : vector<8x128xi1>, vector<8x128xf32>
    %cst_100 = arith.constant 0.000000e+00 : f32
    %303 = vector.broadcast %cst_100 : f32 to vector<8x128xf32>
    %304 = arith.cmpf one, %302, %303 : vector<8x128xf32>
    %305 = arith.truncf %272 : vector<8x128xf32> to vector<8x128xbf16>
    %c0_101 = arith.constant 0 : index
    %c0_102 = arith.constant 0 : index
    %306 = vector.load %arg5[%c0_101, %c0_102] : memref<128x512xbf16, #tpu.memory_space<vmem>>, vector<128x512xbf16>
    %cst_103 = arith.constant dense<0.000000e+00> : vector<8x512xf32>
    %307 = tpu.matmul %305, %306, %cst_103 {dimension_numbers = #tpu.dot_dimension_numbers<[1], [0], [0], [1], [0, 0, 1, 1], [], []>} : vector<8x128xbf16>, vector<128x512xbf16>, vector<8x512xf32> -> vector<8x512xf32>
    %308 = arith.addf %289, %307 : vector<8x512xf32>
    %309 = vector.extract_strided_slice %308 {offsets = [0, 0], sizes = [8, 384], strides = [1, 1]} : vector<8x512xf32> to vector<8x384xf32>
    %310 = arith.negf %309 : vector<8x384xf32>
    %311 = math.exp %310 : vector<8x384xf32>
    %cst_104 = arith.constant 1.000000e+00 : f32
    %312 = vector.broadcast %cst_104 : f32 to vector<8x384xf32>
    %313 = arith.addf %312, %311 : vector<8x384xf32>
    %314 = arith.divf %312, %313 : vector<8x384xf32>
    %315 = vector.extract_strided_slice %308 {offsets = [0, 384], sizes = [8, 128], strides = [1, 1]} : vector<8x512xf32> to vector<8x128xf32>
    %316 = math.tanh %315 : vector<8x128xf32>
    %317 = vector.extract_strided_slice %314 {offsets = [0, 128], sizes = [8, 128], strides = [1, 1]} : vector<8x384xf32> to vector<8x128xf32>
    %318 = arith.mulf %317, %273 : vector<8x128xf32>
    %319 = vector.extract_strided_slice %314 {offsets = [0, 0], sizes = [8, 128], strides = [1, 1]} : vector<8x384xf32> to vector<8x128xf32>
    %320 = arith.mulf %319, %316 : vector<8x128xf32>
    %321 = arith.addf %318, %320 : vector<8x128xf32>
    %322 = vector.extract_strided_slice %314 {offsets = [0, 256], sizes = [8, 128], strides = [1, 1]} : vector<8x384xf32> to vector<8x128xf32>
    %323 = math.tanh %321 : vector<8x128xf32>
    %324 = arith.mulf %322, %323 : vector<8x128xf32>
    %325 = arith.select %304, %324, %272 : vector<8x128xi1>, vector<8x128xf32>
    %326 = arith.select %304, %321, %273 : vector<8x128xi1>, vector<8x128xf32>
    %327 = vector.extract_strided_slice %325 {offsets = [0, 0], sizes = [8, 64], strides = [1, 1]} : vector<8x128xf32> to vector<8x64xf32>
    %328 = arith.index_cast %282 : i32 to index
    %c0_105 = arith.constant 0 : index
    %329 = vector.load %arg14[%328, %c0_105] : memref<80x128xf32, #tpu.memory_space<vmem>>, vector<8x64xf32>
    tpu.vector_store %arg14[%328, %c0_105], %327 {strides = array<i32>} : memref<80x128xf32, #tpu.memory_space<vmem>>, vector<8x64xf32>,
    %330 = vector.extract_strided_slice %325 {offsets = [0, 64], sizes = [8, 64], strides = [1, 1]} : vector<8x128xf32> to vector<8x64xf32>
    %331 = arith.index_cast %284 : i32 to index
    %c64_106 = arith.constant 64 : index
    %332 = vector.load %arg14[%331, %c64_106] : memref<80x128xf32, #tpu.memory_space<vmem>>, vector<8x64xf32>
    tpu.vector_store %arg14[%331, %c64_106], %330 {strides = array<i32>} : memref<80x128xf32, #tpu.memory_space<vmem>>, vector<8x64xf32>,
    %c6_i32 = arith.constant 6 : i32
    %c9_i32_107 = arith.constant 9 : i32
    %333 = arith.subi %c9_i32_107, %c6_i32 : i32
    %c8_i32_108 = arith.constant 8 : i32
    %334 = arith.muli %c6_i32, %c8_i32_108 : i32
    %335 = tpu.assume_multiple %334, 8 : i32
    %c8_i32_109 = arith.constant 8 : i32
    %336 = arith.muli %333, %c8_i32_109 : i32
    %337 = tpu.assume_multiple %336, 8 : i32
    %338 = arith.index_cast %335 : i32 to index
    %c0_110 = arith.constant 0 : index
    %339 = vector.load %arg15[%338, %c0_110] : memref<80x512xf32, #tpu.memory_space<vmem>>, vector<8x512xf32>
    %340 = arith.index_cast %337 : i32 to index
    %c0_111 = arith.constant 0 : index
    %341 = vector.load %arg16[%340, %c0_111] : memref<80x512xf32, #tpu.memory_space<vmem>>, vector<8x512xf32>
    %342 = arith.addf %339, %341 : vector<8x512xf32>
    %343 = arith.index_cast %c6_i32 : i32 to index
    %c0_112 = arith.constant 0 : index
    %c0_113 = arith.constant 0 : index
    %344 = vector.load %arg2[%343, %c0_112, %c0_113] : memref<10x8x1xf32, #tpu.memory_space<vmem>>, vector<1x8x1xf32>
    %345 = vector.shape_cast %344 : vector<1x8x1xf32> to vector<8x1xf32>
    %346 = arith.index_cast %333 : i32 to index
    %c0_114 = arith.constant 0 : index
    %c0_115 = arith.constant 0 : index
    %347 = vector.load %arg2[%346, %c0_114, %c0_115] : memref<10x8x1xf32, #tpu.memory_space<vmem>>, vector<1x8x1xf32>
    %348 = vector.shape_cast %347 : vector<1x8x1xf32> to vector<8x1xf32>
    %349 = vector.shape_cast %2 : vector<1x128xi1> to vector<1x128xi1>
    %350 = vector.broadcast %349 : vector<1x128xi1> to vector<8x128xi1>
    %351 = vector.shape_cast %345 : vector<8x1xf32> to vector<8x1xf32>
    %352 = vector.broadcast %351 : vector<8x1xf32> to vector<8x128xf32>
    %353 = vector.shape_cast %348 : vector<8x1xf32> to vector<8x1xf32>
    %354 = vector.broadcast %353 : vector<8x1xf32> to vector<8x128xf32>
    %355 = arith.select %350, %352, %354 : vector<8x128xi1>, vector<8x128xf32>
    %cst_116 = arith.constant 0.000000e+00 : f32
    %356 = vector.broadcast %cst_116 : f32 to vector<8x128xf32>
    %357 = arith.cmpf one, %355, %356 : vector<8x128xf32>
    %358 = arith.truncf %325 : vector<8x128xf32> to vector<8x128xbf16>
    %c0_117 = arith.constant 0 : index
    %c0_118 = arith.constant 0 : index
    %359 = vector.load %arg5[%c0_117, %c0_118] : memref<128x512xbf16, #tpu.memory_space<vmem>>, vector<128x512xbf16>
    %cst_119 = arith.constant dense<0.000000e+00> : vector<8x512xf32>
    %360 = tpu.matmul %358, %359, %cst_119 {dimension_numbers = #tpu.dot_dimension_numbers<[1], [0], [0], [1], [0, 0, 1, 1], [], []>} : vector<8x128xbf16>, vector<128x512xbf16>, vector<8x512xf32> -> vector<8x512xf32>
    %361 = arith.addf %342, %360 : vector<8x512xf32>
    %362 = vector.extract_strided_slice %361 {offsets = [0, 0], sizes = [8, 384], strides = [1, 1]} : vector<8x512xf32> to vector<8x384xf32>
    %363 = arith.negf %362 : vector<8x384xf32>
    %364 = math.exp %363 : vector<8x384xf32>
    %cst_120 = arith.constant 1.000000e+00 : f32
    %365 = vector.broadcast %cst_120 : f32 to vector<8x384xf32>
    %366 = arith.addf %365, %364 : vector<8x384xf32>
    %367 = arith.divf %365, %366 : vector<8x384xf32>
    %368 = vector.extract_strided_slice %361 {offsets = [0, 384], sizes = [8, 128], strides = [1, 1]} : vector<8x512xf32> to vector<8x128xf32>
    %369 = math.tanh %368 : vector<8x128xf32>
    %370 = vector.extract_strided_slice %367 {offsets = [0, 128], sizes = [8, 128], strides = [1, 1]} : vector<8x384xf32> to vector<8x128xf32>
    %371 = arith.mulf %370, %326 : vector<8x128xf32>
    %372 = vector.extract_strided_slice %367 {offsets = [0, 0], sizes = [8, 128], strides = [1, 1]} : vector<8x384xf32> to vector<8x128xf32>
    %373 = arith.mulf %372, %369 : vector<8x128xf32>
    %374 = arith.addf %371, %373 : vector<8x128xf32>
    %375 = vector.extract_strided_slice %367 {offsets = [0, 256], sizes = [8, 128], strides = [1, 1]} : vector<8x384xf32> to vector<8x128xf32>
    %376 = math.tanh %374 : vector<8x128xf32>
    %377 = arith.mulf %375, %376 : vector<8x128xf32>
    %378 = arith.select %357, %377, %325 : vector<8x128xi1>, vector<8x128xf32>
    %379 = arith.select %357, %374, %326 : vector<8x128xi1>, vector<8x128xf32>
    %380 = vector.extract_strided_slice %378 {offsets = [0, 0], sizes = [8, 64], strides = [1, 1]} : vector<8x128xf32> to vector<8x64xf32>
    %381 = arith.index_cast %335 : i32 to index
    %c0_121 = arith.constant 0 : index
    %382 = vector.load %arg14[%381, %c0_121] : memref<80x128xf32, #tpu.memory_space<vmem>>, vector<8x64xf32>
    tpu.vector_store %arg14[%381, %c0_121], %380 {strides = array<i32>} : memref<80x128xf32, #tpu.memory_space<vmem>>, vector<8x64xf32>,
    %383 = vector.extract_strided_slice %378 {offsets = [0, 64], sizes = [8, 64], strides = [1, 1]} : vector<8x128xf32> to vector<8x64xf32>
    %384 = arith.index_cast %337 : i32 to index
    %c64_122 = arith.constant 64 : index
    %385 = vector.load %arg14[%384, %c64_122] : memref<80x128xf32, #tpu.memory_space<vmem>>, vector<8x64xf32>
    tpu.vector_store %arg14[%384, %c64_122], %383 {strides = array<i32>} : memref<80x128xf32, #tpu.memory_space<vmem>>, vector<8x64xf32>,
    %c7_i32 = arith.constant 7 : i32
    %c9_i32_123 = arith.constant 9 : i32
    %386 = arith.subi %c9_i32_123, %c7_i32 : i32
    %c8_i32_124 = arith.constant 8 : i32
    %387 = arith.muli %c7_i32, %c8_i32_124 : i32
    %388 = tpu.assume_multiple %387, 8 : i32
    %c8_i32_125 = arith.constant 8 : i32
    %389 = arith.muli %386, %c8_i32_125 : i32
    %390 = tpu.assume_multiple %389, 8 : i32
    %391 = arith.index_cast %388 : i32 to index
    %c0_126 = arith.constant 0 : index
    %392 = vector.load %arg15[%391, %c0_126] : memref<80x512xf32, #tpu.memory_space<vmem>>, vector<8x512xf32>
    %393 = arith.index_cast %390 : i32 to index
    %c0_127 = arith.constant 0 : index
    %394 = vector.load %arg16[%393, %c0_127] : memref<80x512xf32, #tpu.memory_space<vmem>>, vector<8x512xf32>
    %395 = arith.addf %392, %394 : vector<8x512xf32>
    %396 = arith.index_cast %c7_i32 : i32 to index
    %c0_128 = arith.constant 0 : index
    %c0_129 = arith.constant 0 : index
    %397 = vector.load %arg2[%396, %c0_128, %c0_129] : memref<10x8x1xf32, #tpu.memory_space<vmem>>, vector<1x8x1xf32>
    %398 = vector.shape_cast %397 : vector<1x8x1xf32> to vector<8x1xf32>
    %399 = arith.index_cast %386 : i32 to index
    %c0_130 = arith.constant 0 : index
    %c0_131 = arith.constant 0 : index
    %400 = vector.load %arg2[%399, %c0_130, %c0_131] : memref<10x8x1xf32, #tpu.memory_space<vmem>>, vector<1x8x1xf32>
    %401 = vector.shape_cast %400 : vector<1x8x1xf32> to vector<8x1xf32>
    %402 = vector.shape_cast %2 : vector<1x128xi1> to vector<1x128xi1>
    %403 = vector.broadcast %402 : vector<1x128xi1> to vector<8x128xi1>
    %404 = vector.shape_cast %398 : vector<8x1xf32> to vector<8x1xf32>
    %405 = vector.broadcast %404 : vector<8x1xf32> to vector<8x128xf32>
    %406 = vector.shape_cast %401 : vector<8x1xf32> to vector<8x1xf32>
    %407 = vector.broadcast %406 : vector<8x1xf32> to vector<8x128xf32>
    %408 = arith.select %403, %405, %407 : vector<8x128xi1>, vector<8x128xf32>
    %cst_132 = arith.constant 0.000000e+00 : f32
    %409 = vector.broadcast %cst_132 : f32 to vector<8x128xf32>
    %410 = arith.cmpf one, %408, %409 : vector<8x128xf32>
    %411 = arith.truncf %378 : vector<8x128xf32> to vector<8x128xbf16>
    %c0_133 = arith.constant 0 : index
    %c0_134 = arith.constant 0 : index
    %412 = vector.load %arg5[%c0_133, %c0_134] : memref<128x512xbf16, #tpu.memory_space<vmem>>, vector<128x512xbf16>
    %cst_135 = arith.constant dense<0.000000e+00> : vector<8x512xf32>
    %413 = tpu.matmul %411, %412, %cst_135 {dimension_numbers = #tpu.dot_dimension_numbers<[1], [0], [0], [1], [0, 0, 1, 1], [], []>} : vector<8x128xbf16>, vector<128x512xbf16>, vector<8x512xf32> -> vector<8x512xf32>
    %414 = arith.addf %395, %413 : vector<8x512xf32>
    %415 = vector.extract_strided_slice %414 {offsets = [0, 0], sizes = [8, 384], strides = [1, 1]} : vector<8x512xf32> to vector<8x384xf32>
    %416 = arith.negf %415 : vector<8x384xf32>
    %417 = math.exp %416 : vector<8x384xf32>
    %cst_136 = arith.constant 1.000000e+00 : f32
    %418 = vector.broadcast %cst_136 : f32 to vector<8x384xf32>
    %419 = arith.addf %418, %417 : vector<8x384xf32>
    %420 = arith.divf %418, %419 : vector<8x384xf32>
    %421 = vector.extract_strided_slice %414 {offsets = [0, 384], sizes = [8, 128], strides = [1, 1]} : vector<8x512xf32> to vector<8x128xf32>
    %422 = math.tanh %421 : vector<8x128xf32>
    %423 = vector.extract_strided_slice %420 {offsets = [0, 128], sizes = [8, 128], strides = [1, 1]} : vector<8x384xf32> to vector<8x128xf32>
    %424 = arith.mulf %423, %379 : vector<8x128xf32>
    %425 = vector.extract_strided_slice %420 {offsets = [0, 0], sizes = [8, 128], strides = [1, 1]} : vector<8x384xf32> to vector<8x128xf32>
    %426 = arith.mulf %425, %422 : vector<8x128xf32>
    %427 = arith.addf %424, %426 : vector<8x128xf32>
    %428 = vector.extract_strided_slice %420 {offsets = [0, 256], sizes = [8, 128], strides = [1, 1]} : vector<8x384xf32> to vector<8x128xf32>
    %429 = math.tanh %427 : vector<8x128xf32>
    %430 = arith.mulf %428, %429 : vector<8x128xf32>
    %431 = arith.select %410, %430, %378 : vector<8x128xi1>, vector<8x128xf32>
    %432 = arith.select %410, %427, %379 : vector<8x128xi1>, vector<8x128xf32>
    %433 = vector.extract_strided_slice %431 {offsets = [0, 0], sizes = [8, 64], strides = [1, 1]} : vector<8x128xf32> to vector<8x64xf32>
    %434 = arith.index_cast %388 : i32 to index
    %c0_137 = arith.constant 0 : index
    %435 = vector.load %arg14[%434, %c0_137] : memref<80x128xf32, #tpu.memory_space<vmem>>, vector<8x64xf32>
    tpu.vector_store %arg14[%434, %c0_137], %433 {strides = array<i32>} : memref<80x128xf32, #tpu.memory_space<vmem>>, vector<8x64xf32>,
    %436 = vector.extract_strided_slice %431 {offsets = [0, 64], sizes = [8, 64], strides = [1, 1]} : vector<8x128xf32> to vector<8x64xf32>
    %437 = arith.index_cast %390 : i32 to index
    %c64_138 = arith.constant 64 : index
    %438 = vector.load %arg14[%437, %c64_138] : memref<80x128xf32, #tpu.memory_space<vmem>>, vector<8x64xf32>
    tpu.vector_store %arg14[%437, %c64_138], %436 {strides = array<i32>} : memref<80x128xf32, #tpu.memory_space<vmem>>, vector<8x64xf32>,
    %c8_i32_139 = arith.constant 8 : i32
    %c9_i32_140 = arith.constant 9 : i32
    %439 = arith.subi %c9_i32_140, %c8_i32_139 : i32
    %c8_i32_141 = arith.constant 8 : i32
    %440 = arith.muli %c8_i32_139, %c8_i32_141 : i32
    %441 = tpu.assume_multiple %440, 8 : i32
    %c8_i32_142 = arith.constant 8 : i32
    %442 = arith.muli %439, %c8_i32_142 : i32
    %443 = tpu.assume_multiple %442, 8 : i32
    %444 = arith.index_cast %441 : i32 to index
    %c0_143 = arith.constant 0 : index
    %445 = vector.load %arg15[%444, %c0_143] : memref<80x512xf32, #tpu.memory_space<vmem>>, vector<8x512xf32>
    %446 = arith.index_cast %443 : i32 to index
    %c0_144 = arith.constant 0 : index
    %447 = vector.load %arg16[%446, %c0_144] : memref<80x512xf32, #tpu.memory_space<vmem>>, vector<8x512xf32>
    %448 = arith.addf %445, %447 : vector<8x512xf32>
    %449 = arith.index_cast %c8_i32_139 : i32 to index
    %c0_145 = arith.constant 0 : index
    %c0_146 = arith.constant 0 : index
    %450 = vector.load %arg2[%449, %c0_145, %c0_146] : memref<10x8x1xf32, #tpu.memory_space<vmem>>, vector<1x8x1xf32>
    %451 = vector.shape_cast %450 : vector<1x8x1xf32> to vector<8x1xf32>
    %452 = arith.index_cast %439 : i32 to index
    %c0_147 = arith.constant 0 : index
    %c0_148 = arith.constant 0 : index
    %453 = vector.load %arg2[%452, %c0_147, %c0_148] : memref<10x8x1xf32, #tpu.memory_space<vmem>>, vector<1x8x1xf32>
    %454 = vector.shape_cast %453 : vector<1x8x1xf32> to vector<8x1xf32>
    %455 = vector.shape_cast %2 : vector<1x128xi1> to vector<1x128xi1>
    %456 = vector.broadcast %455 : vector<1x128xi1> to vector<8x128xi1>
    %457 = vector.shape_cast %451 : vector<8x1xf32> to vector<8x1xf32>
    %458 = vector.broadcast %457 : vector<8x1xf32> to vector<8x128xf32>
    %459 = vector.shape_cast %454 : vector<8x1xf32> to vector<8x1xf32>
    %460 = vector.broadcast %459 : vector<8x1xf32> to vector<8x128xf32>
    %461 = arith.select %456, %458, %460 : vector<8x128xi1>, vector<8x128xf32>
    %cst_149 = arith.constant 0.000000e+00 : f32
    %462 = vector.broadcast %cst_149 : f32 to vector<8x128xf32>
    %463 = arith.cmpf one, %461, %462 : vector<8x128xf32>
    %464 = arith.truncf %431 : vector<8x128xf32> to vector<8x128xbf16>
    %c0_150 = arith.constant 0 : index
    %c0_151 = arith.constant 0 : index
    %465 = vector.load %arg5[%c0_150, %c0_151] : memref<128x512xbf16, #tpu.memory_space<vmem>>, vector<128x512xbf16>
    %cst_152 = arith.constant dense<0.000000e+00> : vector<8x512xf32>
    %466 = tpu.matmul %464, %465, %cst_152 {dimension_numbers = #tpu.dot_dimension_numbers<[1], [0], [0], [1], [0, 0, 1, 1], [], []>} : vector<8x128xbf16>, vector<128x512xbf16>, vector<8x512xf32> -> vector<8x512xf32>
    %467 = arith.addf %448, %466 : vector<8x512xf32>
    %468 = vector.extract_strided_slice %467 {offsets = [0, 0], sizes = [8, 384], strides = [1, 1]} : vector<8x512xf32> to vector<8x384xf32>
    %469 = arith.negf %468 : vector<8x384xf32>
    %470 = math.exp %469 : vector<8x384xf32>
    %cst_153 = arith.constant 1.000000e+00 : f32
    %471 = vector.broadcast %cst_153 : f32 to vector<8x384xf32>
    %472 = arith.addf %471, %470 : vector<8x384xf32>
    %473 = arith.divf %471, %472 : vector<8x384xf32>
    %474 = vector.extract_strided_slice %467 {offsets = [0, 384], sizes = [8, 128], strides = [1, 1]} : vector<8x512xf32> to vector<8x128xf32>
    %475 = math.tanh %474 : vector<8x128xf32>
    %476 = vector.extract_strided_slice %473 {offsets = [0, 128], sizes = [8, 128], strides = [1, 1]} : vector<8x384xf32> to vector<8x128xf32>
    %477 = arith.mulf %476, %432 : vector<8x128xf32>
    %478 = vector.extract_strided_slice %473 {offsets = [0, 0], sizes = [8, 128], strides = [1, 1]} : vector<8x384xf32> to vector<8x128xf32>
    %479 = arith.mulf %478, %475 : vector<8x128xf32>
    %480 = arith.addf %477, %479 : vector<8x128xf32>
    %481 = vector.extract_strided_slice %473 {offsets = [0, 256], sizes = [8, 128], strides = [1, 1]} : vector<8x384xf32> to vector<8x128xf32>
    %482 = math.tanh %480 : vector<8x128xf32>
    %483 = arith.mulf %481, %482 : vector<8x128xf32>
    %484 = arith.select %463, %483, %431 : vector<8x128xi1>, vector<8x128xf32>
    %485 = arith.select %463, %480, %432 : vector<8x128xi1>, vector<8x128xf32>
    %486 = vector.extract_strided_slice %484 {offsets = [0, 0], sizes = [8, 64], strides = [1, 1]} : vector<8x128xf32> to vector<8x64xf32>
    %487 = arith.index_cast %441 : i32 to index
    %c0_154 = arith.constant 0 : index
    %488 = vector.load %arg14[%487, %c0_154] : memref<80x128xf32, #tpu.memory_space<vmem>>, vector<8x64xf32>
    tpu.vector_store %arg14[%487, %c0_154], %486 {strides = array<i32>} : memref<80x128xf32, #tpu.memory_space<vmem>>, vector<8x64xf32>,
    %489 = vector.extract_strided_slice %484 {offsets = [0, 64], sizes = [8, 64], strides = [1, 1]} : vector<8x128xf32> to vector<8x64xf32>
    %490 = arith.index_cast %443 : i32 to index
    %c64_155 = arith.constant 64 : index
    %491 = vector.load %arg14[%490, %c64_155] : memref<80x128xf32, #tpu.memory_space<vmem>>, vector<8x64xf32>
    tpu.vector_store %arg14[%490, %c64_155], %489 {strides = array<i32>} : memref<80x128xf32, #tpu.memory_space<vmem>>, vector<8x64xf32>,
    %c9_i32_156 = arith.constant 9 : i32
    %c9_i32_157 = arith.constant 9 : i32
    %492 = arith.subi %c9_i32_157, %c9_i32_156 : i32
    %c8_i32_158 = arith.constant 8 : i32
    %493 = arith.muli %c9_i32_156, %c8_i32_158 : i32
    %494 = tpu.assume_multiple %493, 8 : i32
    %c8_i32_159 = arith.constant 8 : i32
    %495 = arith.muli %492, %c8_i32_159 : i32
    %496 = tpu.assume_multiple %495, 8 : i32
    %497 = arith.index_cast %494 : i32 to index
    %c0_160 = arith.constant 0 : index
    %498 = vector.load %arg15[%497, %c0_160] : memref<80x512xf32, #tpu.memory_space<vmem>>, vector<8x512xf32>
    %499 = arith.index_cast %496 : i32 to index
    %c0_161 = arith.constant 0 : index
    %500 = vector.load %arg16[%499, %c0_161] : memref<80x512xf32, #tpu.memory_space<vmem>>, vector<8x512xf32>
    %501 = arith.addf %498, %500 : vector<8x512xf32>
    %502 = arith.index_cast %c9_i32_156 : i32 to index
    %c0_162 = arith.constant 0 : index
    %c0_163 = arith.constant 0 : index
    %503 = vector.load %arg2[%502, %c0_162, %c0_163] : memref<10x8x1xf32, #tpu.memory_space<vmem>>, vector<1x8x1xf32>
    %504 = vector.shape_cast %503 : vector<1x8x1xf32> to vector<8x1xf32>
    %505 = arith.index_cast %492 : i32 to index
    %c0_164 = arith.constant 0 : index
    %c0_165 = arith.constant 0 : index
    %506 = vector.load %arg2[%505, %c0_164, %c0_165] : memref<10x8x1xf32, #tpu.memory_space<vmem>>, vector<1x8x1xf32>
    %507 = vector.shape_cast %506 : vector<1x8x1xf32> to vector<8x1xf32>
    %508 = vector.shape_cast %2 : vector<1x128xi1> to vector<1x128xi1>
    %509 = vector.broadcast %508 : vector<1x128xi1> to vector<8x128xi1>
    %510 = vector.shape_cast %504 : vector<8x1xf32> to vector<8x1xf32>
    %511 = vector.broadcast %510 : vector<8x1xf32> to vector<8x128xf32>
    %512 = vector.shape_cast %507 : vector<8x1xf32> to vector<8x1xf32>
    %513 = vector.broadcast %512 : vector<8x1xf32> to vector<8x128xf32>
    %514 = arith.select %509, %511, %513 : vector<8x128xi1>, vector<8x128xf32>
    %cst_166 = arith.constant 0.000000e+00 : f32
    %515 = vector.broadcast %cst_166 : f32 to vector<8x128xf32>
    %516 = arith.cmpf one, %514, %515 : vector<8x128xf32>
    %517 = arith.truncf %484 : vector<8x128xf32> to vector<8x128xbf16>
    %c0_167 = arith.constant 0 : index
    %c0_168 = arith.constant 0 : index
    %518 = vector.load %arg5[%c0_167, %c0_168] : memref<128x512xbf16, #tpu.memory_space<vmem>>, vector<128x512xbf16>
    %cst_169 = arith.constant dense<0.000000e+00> : vector<8x512xf32>
    %519 = tpu.matmul %517, %518, %cst_169 {dimension_numbers = #tpu.dot_dimension_numbers<[1], [0], [0], [1], [0, 0, 1, 1], [], []>} : vector<8x128xbf16>, vector<128x512xbf16>, vector<8x512xf32> -> vector<8x512xf32>
    %520 = arith.addf %501, %519 : vector<8x512xf32>
    %521 = vector.extract_strided_slice %520 {offsets = [0, 0], sizes = [8, 384], strides = [1, 1]} : vector<8x512xf32> to vector<8x384xf32>
    %522 = arith.negf %521 : vector<8x384xf32>
    %523 = math.exp %522 : vector<8x384xf32>
    %cst_170 = arith.constant 1.000000e+00 : f32
    %524 = vector.broadcast %cst_170 : f32 to vector<8x384xf32>
    %525 = arith.addf %524, %523 : vector<8x384xf32>
    %526 = arith.divf %524, %525 : vector<8x384xf32>
    %527 = vector.extract_strided_slice %520 {offsets = [0, 384], sizes = [8, 128], strides = [1, 1]} : vector<8x512xf32> to vector<8x128xf32>
    %528 = math.tanh %527 : vector<8x128xf32>
    %529 = vector.extract_strided_slice %526 {offsets = [0, 128], sizes = [8, 128], strides = [1, 1]} : vector<8x384xf32> to vector<8x128xf32>
    %530 = arith.mulf %529, %485 : vector<8x128xf32>
    %531 = vector.extract_strided_slice %526 {offsets = [0, 0], sizes = [8, 128], strides = [1, 1]} : vector<8x384xf32> to vector<8x128xf32>
    %532 = arith.mulf %531, %528 : vector<8x128xf32>
    %533 = arith.addf %530, %532 : vector<8x128xf32>
    %534 = vector.extract_strided_slice %526 {offsets = [0, 256], sizes = [8, 128], strides = [1, 1]} : vector<8x384xf32> to vector<8x128xf32>
    %535 = math.tanh %533 : vector<8x128xf32>
    %536 = arith.mulf %534, %535 : vector<8x128xf32>
    %537 = arith.select %516, %536, %484 : vector<8x128xi1>, vector<8x128xf32>
    %538 = arith.select %516, %533, %485 : vector<8x128xi1>, vector<8x128xf32>
    %539 = vector.extract_strided_slice %537 {offsets = [0, 0], sizes = [8, 64], strides = [1, 1]} : vector<8x128xf32> to vector<8x64xf32>
    %540 = arith.index_cast %494 : i32 to index
    %c0_171 = arith.constant 0 : index
    %541 = vector.load %arg14[%540, %c0_171] : memref<80x128xf32, #tpu.memory_space<vmem>>, vector<8x64xf32>
    tpu.vector_store %arg14[%540, %c0_171], %539 {strides = array<i32>} : memref<80x128xf32, #tpu.memory_space<vmem>>, vector<8x64xf32>,
    %542 = vector.extract_strided_slice %537 {offsets = [0, 64], sizes = [8, 64], strides = [1, 1]} : vector<8x128xf32> to vector<8x64xf32>
    %543 = arith.index_cast %496 : i32 to index
    %c64_172 = arith.constant 64 : index
    %544 = vector.load %arg14[%543, %c64_172] : memref<80x128xf32, #tpu.memory_space<vmem>>, vector<8x64xf32>
    tpu.vector_store %arg14[%543, %c64_172], %542 {strides = array<i32>} : memref<80x128xf32, #tpu.memory_space<vmem>>, vector<8x64xf32>,
    %c10_i32 = arith.constant 10 : i32
    %c0_173 = arith.constant 0 : index
    %c0_174 = arith.constant 0 : index
    %545 = vector.load %arg14[%c0_173, %c0_174] : memref<80x128xf32, #tpu.memory_space<vmem>>, vector<80x128xf32>
    %546 = arith.truncf %545 : vector<80x128xf32> to vector<80x128xbf16>
    %c0_175 = arith.constant 0 : index
    %c0_176 = arith.constant 0 : index
    %547 = vector.load %arg7[%c0_175, %c0_176] : memref<128x512xbf16, #tpu.memory_space<vmem>>, vector<128x512xbf16>
    %cst_177 = arith.constant dense<0.000000e+00> : vector<80x512xf32>
    %548 = tpu.matmul %546, %547, %cst_177 {dimension_numbers = #tpu.dot_dimension_numbers<[1], [0], [0], [1], [0, 0, 1, 1], [], []>} : vector<80x128xbf16>, vector<128x512xbf16>, vector<80x512xf32> -> vector<80x512xf32>
    %c0_178 = arith.constant 0 : index
    %c0_179 = arith.constant 0 : index
    %549 = vector.load %arg10[%c0_178, %c0_179] : memref<1x512xf32, #tpu.memory_space<vmem>>, vector<1x512xf32>
    %550 = vector.broadcast %549 : vector<1x512xf32> to vector<80x512xf32>
    %551 = arith.addf %548, %550 : vector<80x512xf32>
    %c0_180 = arith.constant 0 : index
    %c0_181 = arith.constant 0 : index
    %552 = vector.load %arg15[%c0_180, %c0_181] : memref<80x512xf32, #tpu.memory_space<vmem>>, vector<80x512xf32>
    tpu.vector_store %arg15[%c0_180, %c0_181], %551 {strides = array<i32>} : memref<80x512xf32, #tpu.memory_space<vmem>>, vector<80x512xf32>,
    %c0_182 = arith.constant 0 : index
    %c0_183 = arith.constant 0 : index
    %553 = vector.load %arg8[%c0_182, %c0_183] : memref<128x512xbf16, #tpu.memory_space<vmem>>, vector<128x512xbf16>
    %cst_184 = arith.constant dense<0.000000e+00> : vector<80x512xf32>
    %554 = tpu.matmul %546, %553, %cst_184 {dimension_numbers = #tpu.dot_dimension_numbers<[1], [0], [0], [1], [0, 0, 1, 1], [], []>} : vector<80x128xbf16>, vector<128x512xbf16>, vector<80x512xf32> -> vector<80x512xf32>
    %c0_185 = arith.constant 0 : index
    %c0_186 = arith.constant 0 : index
    %555 = vector.load %arg16[%c0_185, %c0_186] : memref<80x512xf32, #tpu.memory_space<vmem>>, vector<80x512xf32>
    tpu.vector_store %arg16[%c0_185, %c0_186], %554 {strides = array<i32>} : memref<80x512xf32, #tpu.memory_space<vmem>>, vector<80x512xf32>,
    %c0_i32_187 = arith.constant 0 : i32
    %c9_i32_188 = arith.constant 9 : i32
    %556 = arith.subi %c9_i32_188, %c0_i32_187 : i32
    %c8_i32_189 = arith.constant 8 : i32
    %557 = arith.muli %c0_i32_187, %c8_i32_189 : i32
    %558 = tpu.assume_multiple %557, 8 : i32
    %c8_i32_190 = arith.constant 8 : i32
    %559 = arith.muli %556, %c8_i32_190 : i32
    %560 = tpu.assume_multiple %559, 8 : i32
    %561 = arith.index_cast %558 : i32 to index
    %c0_191 = arith.constant 0 : index
    %562 = vector.load %arg15[%561, %c0_191] : memref<80x512xf32, #tpu.memory_space<vmem>>, vector<8x512xf32>
    %563 = arith.index_cast %560 : i32 to index
    %c0_192 = arith.constant 0 : index
    %564 = vector.load %arg16[%563, %c0_192] : memref<80x512xf32, #tpu.memory_space<vmem>>, vector<8x512xf32>
    %565 = arith.addf %562, %564 : vector<8x512xf32>
    %566 = arith.index_cast %c0_i32_187 : i32 to index
    %c0_193 = arith.constant 0 : index
    %c0_194 = arith.constant 0 : index
    %567 = vector.load %arg2[%566, %c0_193, %c0_194] : memref<10x8x1xf32, #tpu.memory_space<vmem>>, vector<1x8x1xf32>
    %568 = vector.shape_cast %567 : vector<1x8x1xf32> to vector<8x1xf32>
    %569 = arith.index_cast %556 : i32 to index
    %c0_195 = arith.constant 0 : index
    %c0_196 = arith.constant 0 : index
    %570 = vector.load %arg2[%569, %c0_195, %c0_196] : memref<10x8x1xf32, #tpu.memory_space<vmem>>, vector<1x8x1xf32>
    %571 = vector.shape_cast %570 : vector<1x8x1xf32> to vector<8x1xf32>
    %572 = vector.shape_cast %2 : vector<1x128xi1> to vector<1x128xi1>
    %573 = vector.broadcast %572 : vector<1x128xi1> to vector<8x128xi1>
    %574 = vector.shape_cast %568 : vector<8x1xf32> to vector<8x1xf32>
    %575 = vector.broadcast %574 : vector<8x1xf32> to vector<8x128xf32>
    %576 = vector.shape_cast %571 : vector<8x1xf32> to vector<8x1xf32>
    %577 = vector.broadcast %576 : vector<8x1xf32> to vector<8x128xf32>
    %578 = arith.select %573, %575, %577 : vector<8x128xi1>, vector<8x128xf32>
    %cst_197 = arith.constant 0.000000e+00 : f32
    %579 = vector.broadcast %cst_197 : f32 to vector<8x128xf32>
    %580 = arith.cmpf one, %578, %579 : vector<8x128xf32>
    %581 = arith.truncf %3 : vector<8x128xf32> to vector<8x128xbf16>
    %c0_198 = arith.constant 0 : index
    %c0_199 = arith.constant 0 : index
    %582 = vector.load %arg9[%c0_198, %c0_199] : memref<128x512xbf16, #tpu.memory_space<vmem>>, vector<128x512xbf16>
    %cst_200 = arith.constant dense<0.000000e+00> : vector<8x512xf32>
    %583 = tpu.matmul %581, %582, %cst_200 {dimension_numbers = #tpu.dot_dimension_numbers<[1], [0], [0], [1], [0, 0, 1, 1], [], []>} : vector<8x128xbf16>, vector<128x512xbf16>, vector<8x512xf32> -> vector<8x512xf32>
    %584 = arith.addf %565, %583 : vector<8x512xf32>
    %585 = vector.extract_strided_slice %584 {offsets = [0, 0], sizes = [8, 384], strides = [1, 1]} : vector<8x512xf32> to vector<8x384xf32>
    %586 = arith.negf %585 : vector<8x384xf32>
    %587 = math.exp %586 : vector<8x384xf32>
    %cst_201 = arith.constant 1.000000e+00 : f32
    %588 = vector.broadcast %cst_201 : f32 to vector<8x384xf32>
    %589 = arith.addf %588, %587 : vector<8x384xf32>
    %590 = arith.divf %588, %589 : vector<8x384xf32>
    %591 = vector.extract_strided_slice %584 {offsets = [0, 384], sizes = [8, 128], strides = [1, 1]} : vector<8x512xf32> to vector<8x128xf32>
    %592 = math.tanh %591 : vector<8x128xf32>
    %593 = vector.extract_strided_slice %590 {offsets = [0, 128], sizes = [8, 128], strides = [1, 1]} : vector<8x384xf32> to vector<8x128xf32>
    %594 = arith.mulf %593, %3 : vector<8x128xf32>
    %595 = vector.extract_strided_slice %590 {offsets = [0, 0], sizes = [8, 128], strides = [1, 1]} : vector<8x384xf32> to vector<8x128xf32>
    %596 = arith.mulf %595, %592 : vector<8x128xf32>
    %597 = arith.addf %594, %596 : vector<8x128xf32>
    %598 = vector.extract_strided_slice %590 {offsets = [0, 256], sizes = [8, 128], strides = [1, 1]} : vector<8x384xf32> to vector<8x128xf32>
    %599 = math.tanh %597 : vector<8x128xf32>
    %600 = arith.mulf %598, %599 : vector<8x128xf32>
    %601 = arith.select %580, %600, %3 : vector<8x128xi1>, vector<8x128xf32>
    %602 = arith.select %580, %597, %3 : vector<8x128xi1>, vector<8x128xf32>
    %c1_i32_202 = arith.constant 1 : i32
    %c9_i32_203 = arith.constant 9 : i32
    %603 = arith.subi %c9_i32_203, %c1_i32_202 : i32
    %c8_i32_204 = arith.constant 8 : i32
    %604 = arith.muli %c1_i32_202, %c8_i32_204 : i32
    %605 = tpu.assume_multiple %604, 8 : i32
    %c8_i32_205 = arith.constant 8 : i32
    %606 = arith.muli %603, %c8_i32_205 : i32
    %607 = tpu.assume_multiple %606, 8 : i32
    %608 = arith.index_cast %605 : i32 to index
    %c0_206 = arith.constant 0 : index
    %609 = vector.load %arg15[%608, %c0_206] : memref<80x512xf32, #tpu.memory_space<vmem>>, vector<8x512xf32>
    %610 = arith.index_cast %607 : i32 to index
    %c0_207 = arith.constant 0 : index
    %611 = vector.load %arg16[%610, %c0_207] : memref<80x512xf32, #tpu.memory_space<vmem>>, vector<8x512xf32>
    %612 = arith.addf %609, %611 : vector<8x512xf32>
    %613 = arith.index_cast %c1_i32_202 : i32 to index
    %c0_208 = arith.constant 0 : index
    %c0_209 = arith.constant 0 : index
    %614 = vector.load %arg2[%613, %c0_208, %c0_209] : memref<10x8x1xf32, #tpu.memory_space<vmem>>, vector<1x8x1xf32>
    %615 = vector.shape_cast %614 : vector<1x8x1xf32> to vector<8x1xf32>
    %616 = arith.index_cast %603 : i32 to index
    %c0_210 = arith.constant 0 : index
    %c0_211 = arith.constant 0 : index
    %617 = vector.load %arg2[%616, %c0_210, %c0_211] : memref<10x8x1xf32, #tpu.memory_space<vmem>>, vector<1x8x1xf32>
    %618 = vector.shape_cast %617 : vector<1x8x1xf32> to vector<8x1xf32>
    %619 = vector.shape_cast %2 : vector<1x128xi1> to vector<1x128xi1>
    %620 = vector.broadcast %619 : vector<1x128xi1> to vector<8x128xi1>
    %621 = vector.shape_cast %615 : vector<8x1xf32> to vector<8x1xf32>
    %622 = vector.broadcast %621 : vector<8x1xf32> to vector<8x128xf32>
    %623 = vector.shape_cast %618 : vector<8x1xf32> to vector<8x1xf32>
    %624 = vector.broadcast %623 : vector<8x1xf32> to vector<8x128xf32>
    %625 = arith.select %620, %622, %624 : vector<8x128xi1>, vector<8x128xf32>
    %cst_212 = arith.constant 0.000000e+00 : f32
    %626 = vector.broadcast %cst_212 : f32 to vector<8x128xf32>
    %627 = arith.cmpf one, %625, %626 : vector<8x128xf32>
    %628 = arith.truncf %601 : vector<8x128xf32> to vector<8x128xbf16>
    %c0_213 = arith.constant 0 : index
    %c0_214 = arith.constant 0 : index
    %629 = vector.load %arg9[%c0_213, %c0_214] : memref<128x512xbf16, #tpu.memory_space<vmem>>, vector<128x512xbf16>
    %cst_215 = arith.constant dense<0.000000e+00> : vector<8x512xf32>
    %630 = tpu.matmul %628, %629, %cst_215 {dimension_numbers = #tpu.dot_dimension_numbers<[1], [0], [0], [1], [0, 0, 1, 1], [], []>} : vector<8x128xbf16>, vector<128x512xbf16>, vector<8x512xf32> -> vector<8x512xf32>
    %631 = arith.addf %612, %630 : vector<8x512xf32>
    %632 = vector.extract_strided_slice %631 {offsets = [0, 0], sizes = [8, 384], strides = [1, 1]} : vector<8x512xf32> to vector<8x384xf32>
    %633 = arith.negf %632 : vector<8x384xf32>
    %634 = math.exp %633 : vector<8x384xf32>
    %cst_216 = arith.constant 1.000000e+00 : f32
    %635 = vector.broadcast %cst_216 : f32 to vector<8x384xf32>
    %636 = arith.addf %635, %634 : vector<8x384xf32>
    %637 = arith.divf %635, %636 : vector<8x384xf32>
    %638 = vector.extract_strided_slice %631 {offsets = [0, 384], sizes = [8, 128], strides = [1, 1]} : vector<8x512xf32> to vector<8x128xf32>
    %639 = math.tanh %638 : vector<8x128xf32>
    %640 = vector.extract_strided_slice %637 {offsets = [0, 128], sizes = [8, 128], strides = [1, 1]} : vector<8x384xf32> to vector<8x128xf32>
    %641 = arith.mulf %640, %602 : vector<8x128xf32>
    %642 = vector.extract_strided_slice %637 {offsets = [0, 0], sizes = [8, 128], strides = [1, 1]} : vector<8x384xf32> to vector<8x128xf32>
    %643 = arith.mulf %642, %639 : vector<8x128xf32>
    %644 = arith.addf %641, %643 : vector<8x128xf32>
    %645 = vector.extract_strided_slice %637 {offsets = [0, 256], sizes = [8, 128], strides = [1, 1]} : vector<8x384xf32> to vector<8x128xf32>
    %646 = math.tanh %644 : vector<8x128xf32>
    %647 = arith.mulf %645, %646 : vector<8x128xf32>
    %648 = arith.select %627, %647, %601 : vector<8x128xi1>, vector<8x128xf32>
    %649 = arith.select %627, %644, %602 : vector<8x128xi1>, vector<8x128xf32>
    %c2_i32_217 = arith.constant 2 : i32
    %c9_i32_218 = arith.constant 9 : i32
    %650 = arith.subi %c9_i32_218, %c2_i32_217 : i32
    %c8_i32_219 = arith.constant 8 : i32
    %651 = arith.muli %c2_i32_217, %c8_i32_219 : i32
    %652 = tpu.assume_multiple %651, 8 : i32
    %c8_i32_220 = arith.constant 8 : i32
    %653 = arith.muli %650, %c8_i32_220 : i32
    %654 = tpu.assume_multiple %653, 8 : i32
    %655 = arith.index_cast %652 : i32 to index
    %c0_221 = arith.constant 0 : index
    %656 = vector.load %arg15[%655, %c0_221] : memref<80x512xf32, #tpu.memory_space<vmem>>, vector<8x512xf32>
    %657 = arith.index_cast %654 : i32 to index
    %c0_222 = arith.constant 0 : index
    %658 = vector.load %arg16[%657, %c0_222] : memref<80x512xf32, #tpu.memory_space<vmem>>, vector<8x512xf32>
    %659 = arith.addf %656, %658 : vector<8x512xf32>
    %660 = arith.index_cast %c2_i32_217 : i32 to index
    %c0_223 = arith.constant 0 : index
    %c0_224 = arith.constant 0 : index
    %661 = vector.load %arg2[%660, %c0_223, %c0_224] : memref<10x8x1xf32, #tpu.memory_space<vmem>>, vector<1x8x1xf32>
    %662 = vector.shape_cast %661 : vector<1x8x1xf32> to vector<8x1xf32>
    %663 = arith.index_cast %650 : i32 to index
    %c0_225 = arith.constant 0 : index
    %c0_226 = arith.constant 0 : index
    %664 = vector.load %arg2[%663, %c0_225, %c0_226] : memref<10x8x1xf32, #tpu.memory_space<vmem>>, vector<1x8x1xf32>
    %665 = vector.shape_cast %664 : vector<1x8x1xf32> to vector<8x1xf32>
    %666 = vector.shape_cast %2 : vector<1x128xi1> to vector<1x128xi1>
    %667 = vector.broadcast %666 : vector<1x128xi1> to vector<8x128xi1>
    %668 = vector.shape_cast %662 : vector<8x1xf32> to vector<8x1xf32>
    %669 = vector.broadcast %668 : vector<8x1xf32> to vector<8x128xf32>
    %670 = vector.shape_cast %665 : vector<8x1xf32> to vector<8x1xf32>
    %671 = vector.broadcast %670 : vector<8x1xf32> to vector<8x128xf32>
    %672 = arith.select %667, %669, %671 : vector<8x128xi1>, vector<8x128xf32>
    %cst_227 = arith.constant 0.000000e+00 : f32
    %673 = vector.broadcast %cst_227 : f32 to vector<8x128xf32>
    %674 = arith.cmpf one, %672, %673 : vector<8x128xf32>
    %675 = arith.truncf %648 : vector<8x128xf32> to vector<8x128xbf16>
    %c0_228 = arith.constant 0 : index
    %c0_229 = arith.constant 0 : index
    %676 = vector.load %arg9[%c0_228, %c0_229] : memref<128x512xbf16, #tpu.memory_space<vmem>>, vector<128x512xbf16>
    %cst_230 = arith.constant dense<0.000000e+00> : vector<8x512xf32>
    %677 = tpu.matmul %675, %676, %cst_230 {dimension_numbers = #tpu.dot_dimension_numbers<[1], [0], [0], [1], [0, 0, 1, 1], [], []>} : vector<8x128xbf16>, vector<128x512xbf16>, vector<8x512xf32> -> vector<8x512xf32>
    %678 = arith.addf %659, %677 : vector<8x512xf32>
    %679 = vector.extract_strided_slice %678 {offsets = [0, 0], sizes = [8, 384], strides = [1, 1]} : vector<8x512xf32> to vector<8x384xf32>
    %680 = arith.negf %679 : vector<8x384xf32>
    %681 = math.exp %680 : vector<8x384xf32>
    %cst_231 = arith.constant 1.000000e+00 : f32
    %682 = vector.broadcast %cst_231 : f32 to vector<8x384xf32>
    %683 = arith.addf %682, %681 : vector<8x384xf32>
    %684 = arith.divf %682, %683 : vector<8x384xf32>
    %685 = vector.extract_strided_slice %678 {offsets = [0, 384], sizes = [8, 128], strides = [1, 1]} : vector<8x512xf32> to vector<8x128xf32>
    %686 = math.tanh %685 : vector<8x128xf32>
    %687 = vector.extract_strided_slice %684 {offsets = [0, 128], sizes = [8, 128], strides = [1, 1]} : vector<8x384xf32> to vector<8x128xf32>
    %688 = arith.mulf %687, %649 : vector<8x128xf32>
    %689 = vector.extract_strided_slice %684 {offsets = [0, 0], sizes = [8, 128], strides = [1, 1]} : vector<8x384xf32> to vector<8x128xf32>
    %690 = arith.mulf %689, %686 : vector<8x128xf32>
    %691 = arith.addf %688, %690 : vector<8x128xf32>
    %692 = vector.extract_strided_slice %684 {offsets = [0, 256], sizes = [8, 128], strides = [1, 1]} : vector<8x384xf32> to vector<8x128xf32>
    %693 = math.tanh %691 : vector<8x128xf32>
    %694 = arith.mulf %692, %693 : vector<8x128xf32>
    %695 = arith.select %674, %694, %648 : vector<8x128xi1>, vector<8x128xf32>
    %696 = arith.select %674, %691, %649 : vector<8x128xi1>, vector<8x128xf32>
    %c3_i32_232 = arith.constant 3 : i32
    %c9_i32_233 = arith.constant 9 : i32
    %697 = arith.subi %c9_i32_233, %c3_i32_232 : i32
    %c8_i32_234 = arith.constant 8 : i32
    %698 = arith.muli %c3_i32_232, %c8_i32_234 : i32
    %699 = tpu.assume_multiple %698, 8 : i32
    %c8_i32_235 = arith.constant 8 : i32
    %700 = arith.muli %697, %c8_i32_235 : i32
    %701 = tpu.assume_multiple %700, 8 : i32
    %702 = arith.index_cast %699 : i32 to index
    %c0_236 = arith.constant 0 : index
    %703 = vector.load %arg15[%702, %c0_236] : memref<80x512xf32, #tpu.memory_space<vmem>>, vector<8x512xf32>
    %704 = arith.index_cast %701 : i32 to index
    %c0_237 = arith.constant 0 : index
    %705 = vector.load %arg16[%704, %c0_237] : memref<80x512xf32, #tpu.memory_space<vmem>>, vector<8x512xf32>
    %706 = arith.addf %703, %705 : vector<8x512xf32>
    %707 = arith.index_cast %c3_i32_232 : i32 to index
    %c0_238 = arith.constant 0 : index
    %c0_239 = arith.constant 0 : index
    %708 = vector.load %arg2[%707, %c0_238, %c0_239] : memref<10x8x1xf32, #tpu.memory_space<vmem>>, vector<1x8x1xf32>
    %709 = vector.shape_cast %708 : vector<1x8x1xf32> to vector<8x1xf32>
    %710 = arith.index_cast %697 : i32 to index
    %c0_240 = arith.constant 0 : index
    %c0_241 = arith.constant 0 : index
    %711 = vector.load %arg2[%710, %c0_240, %c0_241] : memref<10x8x1xf32, #tpu.memory_space<vmem>>, vector<1x8x1xf32>
    %712 = vector.shape_cast %711 : vector<1x8x1xf32> to vector<8x1xf32>
    %713 = vector.shape_cast %2 : vector<1x128xi1> to vector<1x128xi1>
    %714 = vector.broadcast %713 : vector<1x128xi1> to vector<8x128xi1>
    %715 = vector.shape_cast %709 : vector<8x1xf32> to vector<8x1xf32>
    %716 = vector.broadcast %715 : vector<8x1xf32> to vector<8x128xf32>
    %717 = vector.shape_cast %712 : vector<8x1xf32> to vector<8x1xf32>
    %718 = vector.broadcast %717 : vector<8x1xf32> to vector<8x128xf32>
    %719 = arith.select %714, %716, %718 : vector<8x128xi1>, vector<8x128xf32>
    %cst_242 = arith.constant 0.000000e+00 : f32
    %720 = vector.broadcast %cst_242 : f32 to vector<8x128xf32>
    %721 = arith.cmpf one, %719, %720 : vector<8x128xf32>
    %722 = arith.truncf %695 : vector<8x128xf32> to vector<8x128xbf16>
    %c0_243 = arith.constant 0 : index
    %c0_244 = arith.constant 0 : index
    %723 = vector.load %arg9[%c0_243, %c0_244] : memref<128x512xbf16, #tpu.memory_space<vmem>>, vector<128x512xbf16>
    %cst_245 = arith.constant dense<0.000000e+00> : vector<8x512xf32>
    %724 = tpu.matmul %722, %723, %cst_245 {dimension_numbers = #tpu.dot_dimension_numbers<[1], [0], [0], [1], [0, 0, 1, 1], [], []>} : vector<8x128xbf16>, vector<128x512xbf16>, vector<8x512xf32> -> vector<8x512xf32>
    %725 = arith.addf %706, %724 : vector<8x512xf32>
    %726 = vector.extract_strided_slice %725 {offsets = [0, 0], sizes = [8, 384], strides = [1, 1]} : vector<8x512xf32> to vector<8x384xf32>
    %727 = arith.negf %726 : vector<8x384xf32>
    %728 = math.exp %727 : vector<8x384xf32>
    %cst_246 = arith.constant 1.000000e+00 : f32
    %729 = vector.broadcast %cst_246 : f32 to vector<8x384xf32>
    %730 = arith.addf %729, %728 : vector<8x384xf32>
    %731 = arith.divf %729, %730 : vector<8x384xf32>
    %732 = vector.extract_strided_slice %725 {offsets = [0, 384], sizes = [8, 128], strides = [1, 1]} : vector<8x512xf32> to vector<8x128xf32>
    %733 = math.tanh %732 : vector<8x128xf32>
    %734 = vector.extract_strided_slice %731 {offsets = [0, 128], sizes = [8, 128], strides = [1, 1]} : vector<8x384xf32> to vector<8x128xf32>
    %735 = arith.mulf %734, %696 : vector<8x128xf32>
    %736 = vector.extract_strided_slice %731 {offsets = [0, 0], sizes = [8, 128], strides = [1, 1]} : vector<8x384xf32> to vector<8x128xf32>
    %737 = arith.mulf %736, %733 : vector<8x128xf32>
    %738 = arith.addf %735, %737 : vector<8x128xf32>
    %739 = vector.extract_strided_slice %731 {offsets = [0, 256], sizes = [8, 128], strides = [1, 1]} : vector<8x384xf32> to vector<8x128xf32>
    %740 = math.tanh %738 : vector<8x128xf32>
    %741 = arith.mulf %739, %740 : vector<8x128xf32>
    %742 = arith.select %721, %741, %695 : vector<8x128xi1>, vector<8x128xf32>
    %743 = arith.select %721, %738, %696 : vector<8x128xi1>, vector<8x128xf32>
    %c4_i32_247 = arith.constant 4 : i32
    %c9_i32_248 = arith.constant 9 : i32
    %744 = arith.subi %c9_i32_248, %c4_i32_247 : i32
    %c8_i32_249 = arith.constant 8 : i32
    %745 = arith.muli %c4_i32_247, %c8_i32_249 : i32
    %746 = tpu.assume_multiple %745, 8 : i32
    %c8_i32_250 = arith.constant 8 : i32
    %747 = arith.muli %744, %c8_i32_250 : i32
    %748 = tpu.assume_multiple %747, 8 : i32
    %749 = arith.index_cast %746 : i32 to index
    %c0_251 = arith.constant 0 : index
    %750 = vector.load %arg15[%749, %c0_251] : memref<80x512xf32, #tpu.memory_space<vmem>>, vector<8x512xf32>
    %751 = arith.index_cast %748 : i32 to index
    %c0_252 = arith.constant 0 : index
    %752 = vector.load %arg16[%751, %c0_252] : memref<80x512xf32, #tpu.memory_space<vmem>>, vector<8x512xf32>
    %753 = arith.addf %750, %752 : vector<8x512xf32>
    %754 = arith.index_cast %c4_i32_247 : i32 to index
    %c0_253 = arith.constant 0 : index
    %c0_254 = arith.constant 0 : index
    %755 = vector.load %arg2[%754, %c0_253, %c0_254] : memref<10x8x1xf32, #tpu.memory_space<vmem>>, vector<1x8x1xf32>
    %756 = vector.shape_cast %755 : vector<1x8x1xf32> to vector<8x1xf32>
    %757 = arith.index_cast %744 : i32 to index
    %c0_255 = arith.constant 0 : index
    %c0_256 = arith.constant 0 : index
    %758 = vector.load %arg2[%757, %c0_255, %c0_256] : memref<10x8x1xf32, #tpu.memory_space<vmem>>, vector<1x8x1xf32>
    %759 = vector.shape_cast %758 : vector<1x8x1xf32> to vector<8x1xf32>
    %760 = vector.shape_cast %2 : vector<1x128xi1> to vector<1x128xi1>
    %761 = vector.broadcast %760 : vector<1x128xi1> to vector<8x128xi1>
    %762 = vector.shape_cast %756 : vector<8x1xf32> to vector<8x1xf32>
    %763 = vector.broadcast %762 : vector<8x1xf32> to vector<8x128xf32>
    %764 = vector.shape_cast %759 : vector<8x1xf32> to vector<8x1xf32>
    %765 = vector.broadcast %764 : vector<8x1xf32> to vector<8x128xf32>
    %766 = arith.select %761, %763, %765 : vector<8x128xi1>, vector<8x128xf32>
    %cst_257 = arith.constant 0.000000e+00 : f32
    %767 = vector.broadcast %cst_257 : f32 to vector<8x128xf32>
    %768 = arith.cmpf one, %766, %767 : vector<8x128xf32>
    %769 = arith.truncf %742 : vector<8x128xf32> to vector<8x128xbf16>
    %c0_258 = arith.constant 0 : index
    %c0_259 = arith.constant 0 : index
    %770 = vector.load %arg9[%c0_258, %c0_259] : memref<128x512xbf16, #tpu.memory_space<vmem>>, vector<128x512xbf16>
    %cst_260 = arith.constant dense<0.000000e+00> : vector<8x512xf32>
    %771 = tpu.matmul %769, %770, %cst_260 {dimension_numbers = #tpu.dot_dimension_numbers<[1], [0], [0], [1], [0, 0, 1, 1], [], []>} : vector<8x128xbf16>, vector<128x512xbf16>, vector<8x512xf32> -> vector<8x512xf32>
    %772 = arith.addf %753, %771 : vector<8x512xf32>
    %773 = vector.extract_strided_slice %772 {offsets = [0, 0], sizes = [8, 384], strides = [1, 1]} : vector<8x512xf32> to vector<8x384xf32>
    %774 = arith.negf %773 : vector<8x384xf32>
    %775 = math.exp %774 : vector<8x384xf32>
    %cst_261 = arith.constant 1.000000e+00 : f32
    %776 = vector.broadcast %cst_261 : f32 to vector<8x384xf32>
    %777 = arith.addf %776, %775 : vector<8x384xf32>
    %778 = arith.divf %776, %777 : vector<8x384xf32>
    %779 = vector.extract_strided_slice %772 {offsets = [0, 384], sizes = [8, 128], strides = [1, 1]} : vector<8x512xf32> to vector<8x128xf32>
    %780 = math.tanh %779 : vector<8x128xf32>
    %781 = vector.extract_strided_slice %778 {offsets = [0, 128], sizes = [8, 128], strides = [1, 1]} : vector<8x384xf32> to vector<8x128xf32>
    %782 = arith.mulf %781, %743 : vector<8x128xf32>
    %783 = vector.extract_strided_slice %778 {offsets = [0, 0], sizes = [8, 128], strides = [1, 1]} : vector<8x384xf32> to vector<8x128xf32>
    %784 = arith.mulf %783, %780 : vector<8x128xf32>
    %785 = arith.addf %782, %784 : vector<8x128xf32>
    %786 = vector.extract_strided_slice %778 {offsets = [0, 256], sizes = [8, 128], strides = [1, 1]} : vector<8x384xf32> to vector<8x128xf32>
    %787 = math.tanh %785 : vector<8x128xf32>
    %788 = arith.mulf %786, %787 : vector<8x128xf32>
    %789 = arith.select %768, %788, %742 : vector<8x128xi1>, vector<8x128xf32>
    %790 = arith.select %768, %785, %743 : vector<8x128xi1>, vector<8x128xf32>
    %c5_i32_262 = arith.constant 5 : i32
    %c9_i32_263 = arith.constant 9 : i32
    %791 = arith.subi %c9_i32_263, %c5_i32_262 : i32
    %c8_i32_264 = arith.constant 8 : i32
    %792 = arith.muli %c5_i32_262, %c8_i32_264 : i32
    %793 = tpu.assume_multiple %792, 8 : i32
    %c8_i32_265 = arith.constant 8 : i32
    %794 = arith.muli %791, %c8_i32_265 : i32
    %795 = tpu.assume_multiple %794, 8 : i32
    %796 = arith.index_cast %793 : i32 to index
    %c0_266 = arith.constant 0 : index
    %797 = vector.load %arg15[%796, %c0_266] : memref<80x512xf32, #tpu.memory_space<vmem>>, vector<8x512xf32>
    %798 = arith.index_cast %795 : i32 to index
    %c0_267 = arith.constant 0 : index
    %799 = vector.load %arg16[%798, %c0_267] : memref<80x512xf32, #tpu.memory_space<vmem>>, vector<8x512xf32>
    %800 = arith.addf %797, %799 : vector<8x512xf32>
    %801 = arith.index_cast %c5_i32_262 : i32 to index
    %c0_268 = arith.constant 0 : index
    %c0_269 = arith.constant 0 : index
    %802 = vector.load %arg2[%801, %c0_268, %c0_269] : memref<10x8x1xf32, #tpu.memory_space<vmem>>, vector<1x8x1xf32>
    %803 = vector.shape_cast %802 : vector<1x8x1xf32> to vector<8x1xf32>
    %804 = arith.index_cast %791 : i32 to index
    %c0_270 = arith.constant 0 : index
    %c0_271 = arith.constant 0 : index
    %805 = vector.load %arg2[%804, %c0_270, %c0_271] : memref<10x8x1xf32, #tpu.memory_space<vmem>>, vector<1x8x1xf32>
    %806 = vector.shape_cast %805 : vector<1x8x1xf32> to vector<8x1xf32>
    %807 = vector.shape_cast %2 : vector<1x128xi1> to vector<1x128xi1>
    %808 = vector.broadcast %807 : vector<1x128xi1> to vector<8x128xi1>
    %809 = vector.shape_cast %803 : vector<8x1xf32> to vector<8x1xf32>
    %810 = vector.broadcast %809 : vector<8x1xf32> to vector<8x128xf32>
    %811 = vector.shape_cast %806 : vector<8x1xf32> to vector<8x1xf32>
    %812 = vector.broadcast %811 : vector<8x1xf32> to vector<8x128xf32>
    %813 = arith.select %808, %810, %812 : vector<8x128xi1>, vector<8x128xf32>
    %cst_272 = arith.constant 0.000000e+00 : f32
    %814 = vector.broadcast %cst_272 : f32 to vector<8x128xf32>
    %815 = arith.cmpf one, %813, %814 : vector<8x128xf32>
    %816 = arith.truncf %789 : vector<8x128xf32> to vector<8x128xbf16>
    %c0_273 = arith.constant 0 : index
    %c0_274 = arith.constant 0 : index
    %817 = vector.load %arg9[%c0_273, %c0_274] : memref<128x512xbf16, #tpu.memory_space<vmem>>, vector<128x512xbf16>
    %cst_275 = arith.constant dense<0.000000e+00> : vector<8x512xf32>
    %818 = tpu.matmul %816, %817, %cst_275 {dimension_numbers = #tpu.dot_dimension_numbers<[1], [0], [0], [1], [0, 0, 1, 1], [], []>} : vector<8x128xbf16>, vector<128x512xbf16>, vector<8x512xf32> -> vector<8x512xf32>
    %819 = arith.addf %800, %818 : vector<8x512xf32>
    %820 = vector.extract_strided_slice %819 {offsets = [0, 0], sizes = [8, 384], strides = [1, 1]} : vector<8x512xf32> to vector<8x384xf32>
    %821 = arith.negf %820 : vector<8x384xf32>
    %822 = math.exp %821 : vector<8x384xf32>
    %cst_276 = arith.constant 1.000000e+00 : f32
    %823 = vector.broadcast %cst_276 : f32 to vector<8x384xf32>
    %824 = arith.addf %823, %822 : vector<8x384xf32>
    %825 = arith.divf %823, %824 : vector<8x384xf32>
    %826 = vector.extract_strided_slice %819 {offsets = [0, 384], sizes = [8, 128], strides = [1, 1]} : vector<8x512xf32> to vector<8x128xf32>
    %827 = math.tanh %826 : vector<8x128xf32>
    %828 = vector.extract_strided_slice %825 {offsets = [0, 128], sizes = [8, 128], strides = [1, 1]} : vector<8x384xf32> to vector<8x128xf32>
    %829 = arith.mulf %828, %790 : vector<8x128xf32>
    %830 = vector.extract_strided_slice %825 {offsets = [0, 0], sizes = [8, 128], strides = [1, 1]} : vector<8x384xf32> to vector<8x128xf32>
    %831 = arith.mulf %830, %827 : vector<8x128xf32>
    %832 = arith.addf %829, %831 : vector<8x128xf32>
    %833 = vector.extract_strided_slice %825 {offsets = [0, 256], sizes = [8, 128], strides = [1, 1]} : vector<8x384xf32> to vector<8x128xf32>
    %834 = math.tanh %832 : vector<8x128xf32>
    %835 = arith.mulf %833, %834 : vector<8x128xf32>
    %836 = arith.select %815, %835, %789 : vector<8x128xi1>, vector<8x128xf32>
    %837 = arith.select %815, %832, %790 : vector<8x128xi1>, vector<8x128xf32>
    %c6_i32_277 = arith.constant 6 : i32
    %c9_i32_278 = arith.constant 9 : i32
    %838 = arith.subi %c9_i32_278, %c6_i32_277 : i32
    %c8_i32_279 = arith.constant 8 : i32
    %839 = arith.muli %c6_i32_277, %c8_i32_279 : i32
    %840 = tpu.assume_multiple %839, 8 : i32
    %c8_i32_280 = arith.constant 8 : i32
    %841 = arith.muli %838, %c8_i32_280 : i32
    %842 = tpu.assume_multiple %841, 8 : i32
    %843 = arith.index_cast %840 : i32 to index
    %c0_281 = arith.constant 0 : index
    %844 = vector.load %arg15[%843, %c0_281] : memref<80x512xf32, #tpu.memory_space<vmem>>, vector<8x512xf32>
    %845 = arith.index_cast %842 : i32 to index
    %c0_282 = arith.constant 0 : index
    %846 = vector.load %arg16[%845, %c0_282] : memref<80x512xf32, #tpu.memory_space<vmem>>, vector<8x512xf32>
    %847 = arith.addf %844, %846 : vector<8x512xf32>
    %848 = arith.index_cast %c6_i32_277 : i32 to index
    %c0_283 = arith.constant 0 : index
    %c0_284 = arith.constant 0 : index
    %849 = vector.load %arg2[%848, %c0_283, %c0_284] : memref<10x8x1xf32, #tpu.memory_space<vmem>>, vector<1x8x1xf32>
    %850 = vector.shape_cast %849 : vector<1x8x1xf32> to vector<8x1xf32>
    %851 = arith.index_cast %838 : i32 to index
    %c0_285 = arith.constant 0 : index
    %c0_286 = arith.constant 0 : index
    %852 = vector.load %arg2[%851, %c0_285, %c0_286] : memref<10x8x1xf32, #tpu.memory_space<vmem>>, vector<1x8x1xf32>
    %853 = vector.shape_cast %852 : vector<1x8x1xf32> to vector<8x1xf32>
    %854 = vector.shape_cast %2 : vector<1x128xi1> to vector<1x128xi1>
    %855 = vector.broadcast %854 : vector<1x128xi1> to vector<8x128xi1>
    %856 = vector.shape_cast %850 : vector<8x1xf32> to vector<8x1xf32>
    %857 = vector.broadcast %856 : vector<8x1xf32> to vector<8x128xf32>
    %858 = vector.shape_cast %853 : vector<8x1xf32> to vector<8x1xf32>
    %859 = vector.broadcast %858 : vector<8x1xf32> to vector<8x128xf32>
    %860 = arith.select %855, %857, %859 : vector<8x128xi1>, vector<8x128xf32>
    %cst_287 = arith.constant 0.000000e+00 : f32
    %861 = vector.broadcast %cst_287 : f32 to vector<8x128xf32>
    %862 = arith.cmpf one, %860, %861 : vector<8x128xf32>
    %863 = arith.truncf %836 : vector<8x128xf32> to vector<8x128xbf16>
    %c0_288 = arith.constant 0 : index
    %c0_289 = arith.constant 0 : index
    %864 = vector.load %arg9[%c0_288, %c0_289] : memref<128x512xbf16, #tpu.memory_space<vmem>>, vector<128x512xbf16>
    %cst_290 = arith.constant dense<0.000000e+00> : vector<8x512xf32>
    %865 = tpu.matmul %863, %864, %cst_290 {dimension_numbers = #tpu.dot_dimension_numbers<[1], [0], [0], [1], [0, 0, 1, 1], [], []>} : vector<8x128xbf16>, vector<128x512xbf16>, vector<8x512xf32> -> vector<8x512xf32>
    %866 = arith.addf %847, %865 : vector<8x512xf32>
    %867 = vector.extract_strided_slice %866 {offsets = [0, 0], sizes = [8, 384], strides = [1, 1]} : vector<8x512xf32> to vector<8x384xf32>
    %868 = arith.negf %867 : vector<8x384xf32>
    %869 = math.exp %868 : vector<8x384xf32>
    %cst_291 = arith.constant 1.000000e+00 : f32
    %870 = vector.broadcast %cst_291 : f32 to vector<8x384xf32>
    %871 = arith.addf %870, %869 : vector<8x384xf32>
    %872 = arith.divf %870, %871 : vector<8x384xf32>
    %873 = vector.extract_strided_slice %866 {offsets = [0, 384], sizes = [8, 128], strides = [1, 1]} : vector<8x512xf32> to vector<8x128xf32>
    %874 = math.tanh %873 : vector<8x128xf32>
    %875 = vector.extract_strided_slice %872 {offsets = [0, 128], sizes = [8, 128], strides = [1, 1]} : vector<8x384xf32> to vector<8x128xf32>
    %876 = arith.mulf %875, %837 : vector<8x128xf32>
    %877 = vector.extract_strided_slice %872 {offsets = [0, 0], sizes = [8, 128], strides = [1, 1]} : vector<8x384xf32> to vector<8x128xf32>
    %878 = arith.mulf %877, %874 : vector<8x128xf32>
    %879 = arith.addf %876, %878 : vector<8x128xf32>
    %880 = vector.extract_strided_slice %872 {offsets = [0, 256], sizes = [8, 128], strides = [1, 1]} : vector<8x384xf32> to vector<8x128xf32>
    %881 = math.tanh %879 : vector<8x128xf32>
    %882 = arith.mulf %880, %881 : vector<8x128xf32>
    %883 = arith.select %862, %882, %836 : vector<8x128xi1>, vector<8x128xf32>
    %884 = arith.select %862, %879, %837 : vector<8x128xi1>, vector<8x128xf32>
    %c7_i32_292 = arith.constant 7 : i32
    %c9_i32_293 = arith.constant 9 : i32
    %885 = arith.subi %c9_i32_293, %c7_i32_292 : i32
    %c8_i32_294 = arith.constant 8 : i32
    %886 = arith.muli %c7_i32_292, %c8_i32_294 : i32
    %887 = tpu.assume_multiple %886, 8 : i32
    %c8_i32_295 = arith.constant 8 : i32
    %888 = arith.muli %885, %c8_i32_295 : i32
    %889 = tpu.assume_multiple %888, 8 : i32
    %890 = arith.index_cast %887 : i32 to index
    %c0_296 = arith.constant 0 : index
    %891 = vector.load %arg15[%890, %c0_296] : memref<80x512xf32, #tpu.memory_space<vmem>>, vector<8x512xf32>
    %892 = arith.index_cast %889 : i32 to index
    %c0_297 = arith.constant 0 : index
    %893 = vector.load %arg16[%892, %c0_297] : memref<80x512xf32, #tpu.memory_space<vmem>>, vector<8x512xf32>
    %894 = arith.addf %891, %893 : vector<8x512xf32>
    %895 = arith.index_cast %c7_i32_292 : i32 to index
    %c0_298 = arith.constant 0 : index
    %c0_299 = arith.constant 0 : index
    %896 = vector.load %arg2[%895, %c0_298, %c0_299] : memref<10x8x1xf32, #tpu.memory_space<vmem>>, vector<1x8x1xf32>
    %897 = vector.shape_cast %896 : vector<1x8x1xf32> to vector<8x1xf32>
    %898 = arith.index_cast %885 : i32 to index
    %c0_300 = arith.constant 0 : index
    %c0_301 = arith.constant 0 : index
    %899 = vector.load %arg2[%898, %c0_300, %c0_301] : memref<10x8x1xf32, #tpu.memory_space<vmem>>, vector<1x8x1xf32>
    %900 = vector.shape_cast %899 : vector<1x8x1xf32> to vector<8x1xf32>
    %901 = vector.shape_cast %2 : vector<1x128xi1> to vector<1x128xi1>
    %902 = vector.broadcast %901 : vector<1x128xi1> to vector<8x128xi1>
    %903 = vector.shape_cast %897 : vector<8x1xf32> to vector<8x1xf32>
    %904 = vector.broadcast %903 : vector<8x1xf32> to vector<8x128xf32>
    %905 = vector.shape_cast %900 : vector<8x1xf32> to vector<8x1xf32>
    %906 = vector.broadcast %905 : vector<8x1xf32> to vector<8x128xf32>
    %907 = arith.select %902, %904, %906 : vector<8x128xi1>, vector<8x128xf32>
    %cst_302 = arith.constant 0.000000e+00 : f32
    %908 = vector.broadcast %cst_302 : f32 to vector<8x128xf32>
    %909 = arith.cmpf one, %907, %908 : vector<8x128xf32>
    %910 = arith.truncf %883 : vector<8x128xf32> to vector<8x128xbf16>
    %c0_303 = arith.constant 0 : index
    %c0_304 = arith.constant 0 : index
    %911 = vector.load %arg9[%c0_303, %c0_304] : memref<128x512xbf16, #tpu.memory_space<vmem>>, vector<128x512xbf16>
    %cst_305 = arith.constant dense<0.000000e+00> : vector<8x512xf32>
    %912 = tpu.matmul %910, %911, %cst_305 {dimension_numbers = #tpu.dot_dimension_numbers<[1], [0], [0], [1], [0, 0, 1, 1], [], []>} : vector<8x128xbf16>, vector<128x512xbf16>, vector<8x512xf32> -> vector<8x512xf32>
    %913 = arith.addf %894, %912 : vector<8x512xf32>
    %914 = vector.extract_strided_slice %913 {offsets = [0, 0], sizes = [8, 384], strides = [1, 1]} : vector<8x512xf32> to vector<8x384xf32>
    %915 = arith.negf %914 : vector<8x384xf32>
    %916 = math.exp %915 : vector<8x384xf32>
    %cst_306 = arith.constant 1.000000e+00 : f32
    %917 = vector.broadcast %cst_306 : f32 to vector<8x384xf32>
    %918 = arith.addf %917, %916 : vector<8x384xf32>
    %919 = arith.divf %917, %918 : vector<8x384xf32>
    %920 = vector.extract_strided_slice %913 {offsets = [0, 384], sizes = [8, 128], strides = [1, 1]} : vector<8x512xf32> to vector<8x128xf32>
    %921 = math.tanh %920 : vector<8x128xf32>
    %922 = vector.extract_strided_slice %919 {offsets = [0, 128], sizes = [8, 128], strides = [1, 1]} : vector<8x384xf32> to vector<8x128xf32>
    %923 = arith.mulf %922, %884 : vector<8x128xf32>
    %924 = vector.extract_strided_slice %919 {offsets = [0, 0], sizes = [8, 128], strides = [1, 1]} : vector<8x384xf32> to vector<8x128xf32>
    %925 = arith.mulf %924, %921 : vector<8x128xf32>
    %926 = arith.addf %923, %925 : vector<8x128xf32>
    %927 = vector.extract_strided_slice %919 {offsets = [0, 256], sizes = [8, 128], strides = [1, 1]} : vector<8x384xf32> to vector<8x128xf32>
    %928 = math.tanh %926 : vector<8x128xf32>
    %929 = arith.mulf %927, %928 : vector<8x128xf32>
    %930 = arith.select %909, %929, %883 : vector<8x128xi1>, vector<8x128xf32>
    %931 = arith.select %909, %926, %884 : vector<8x128xi1>, vector<8x128xf32>
    %c8_i32_307 = arith.constant 8 : i32
    %c9_i32_308 = arith.constant 9 : i32
    %932 = arith.subi %c9_i32_308, %c8_i32_307 : i32
    %c8_i32_309 = arith.constant 8 : i32
    %933 = arith.muli %c8_i32_307, %c8_i32_309 : i32
    %934 = tpu.assume_multiple %933, 8 : i32
    %c8_i32_310 = arith.constant 8 : i32
    %935 = arith.muli %932, %c8_i32_310 : i32
    %936 = tpu.assume_multiple %935, 8 : i32
    %937 = arith.index_cast %934 : i32 to index
    %c0_311 = arith.constant 0 : index
    %938 = vector.load %arg15[%937, %c0_311] : memref<80x512xf32, #tpu.memory_space<vmem>>, vector<8x512xf32>
    %939 = arith.index_cast %936 : i32 to index
    %c0_312 = arith.constant 0 : index
    %940 = vector.load %arg16[%939, %c0_312] : memref<80x512xf32, #tpu.memory_space<vmem>>, vector<8x512xf32>
    %941 = arith.addf %938, %940 : vector<8x512xf32>
    %942 = arith.index_cast %c8_i32_307 : i32 to index
    %c0_313 = arith.constant 0 : index
    %c0_314 = arith.constant 0 : index
    %943 = vector.load %arg2[%942, %c0_313, %c0_314] : memref<10x8x1xf32, #tpu.memory_space<vmem>>, vector<1x8x1xf32>
    %944 = vector.shape_cast %943 : vector<1x8x1xf32> to vector<8x1xf32>
    %945 = arith.index_cast %932 : i32 to index
    %c0_315 = arith.constant 0 : index
    %c0_316 = arith.constant 0 : index
    %946 = vector.load %arg2[%945, %c0_315, %c0_316] : memref<10x8x1xf32, #tpu.memory_space<vmem>>, vector<1x8x1xf32>
    %947 = vector.shape_cast %946 : vector<1x8x1xf32> to vector<8x1xf32>
    %948 = vector.shape_cast %2 : vector<1x128xi1> to vector<1x128xi1>
    %949 = vector.broadcast %948 : vector<1x128xi1> to vector<8x128xi1>
    %950 = vector.shape_cast %944 : vector<8x1xf32> to vector<8x1xf32>
    %951 = vector.broadcast %950 : vector<8x1xf32> to vector<8x128xf32>
    %952 = vector.shape_cast %947 : vector<8x1xf32> to vector<8x1xf32>
    %953 = vector.broadcast %952 : vector<8x1xf32> to vector<8x128xf32>
    %954 = arith.select %949, %951, %953 : vector<8x128xi1>, vector<8x128xf32>
    %cst_317 = arith.constant 0.000000e+00 : f32
    %955 = vector.broadcast %cst_317 : f32 to vector<8x128xf32>
    %956 = arith.cmpf one, %954, %955 : vector<8x128xf32>
    %957 = arith.truncf %930 : vector<8x128xf32> to vector<8x128xbf16>
    %c0_318 = arith.constant 0 : index
    %c0_319 = arith.constant 0 : index
    %958 = vector.load %arg9[%c0_318, %c0_319] : memref<128x512xbf16, #tpu.memory_space<vmem>>, vector<128x512xbf16>
    %cst_320 = arith.constant dense<0.000000e+00> : vector<8x512xf32>
    %959 = tpu.matmul %957, %958, %cst_320 {dimension_numbers = #tpu.dot_dimension_numbers<[1], [0], [0], [1], [0, 0, 1, 1], [], []>} : vector<8x128xbf16>, vector<128x512xbf16>, vector<8x512xf32> -> vector<8x512xf32>
    %960 = arith.addf %941, %959 : vector<8x512xf32>
    %961 = vector.extract_strided_slice %960 {offsets = [0, 0], sizes = [8, 384], strides = [1, 1]} : vector<8x512xf32> to vector<8x384xf32>
    %962 = arith.negf %961 : vector<8x384xf32>
    %963 = math.exp %962 : vector<8x384xf32>
    %cst_321 = arith.constant 1.000000e+00 : f32
    %964 = vector.broadcast %cst_321 : f32 to vector<8x384xf32>
    %965 = arith.addf %964, %963 : vector<8x384xf32>
    %966 = arith.divf %964, %965 : vector<8x384xf32>
    %967 = vector.extract_strided_slice %960 {offsets = [0, 384], sizes = [8, 128], strides = [1, 1]} : vector<8x512xf32> to vector<8x128xf32>
    %968 = math.tanh %967 : vector<8x128xf32>
    %969 = vector.extract_strided_slice %966 {offsets = [0, 128], sizes = [8, 128], strides = [1, 1]} : vector<8x384xf32> to vector<8x128xf32>
    %970 = arith.mulf %969, %931 : vector<8x128xf32>
    %971 = vector.extract_strided_slice %966 {offsets = [0, 0], sizes = [8, 128], strides = [1, 1]} : vector<8x384xf32> to vector<8x128xf32>
    %972 = arith.mulf %971, %968 : vector<8x128xf32>
    %973 = arith.addf %970, %972 : vector<8x128xf32>
    %974 = vector.extract_strided_slice %966 {offsets = [0, 256], sizes = [8, 128], strides = [1, 1]} : vector<8x384xf32> to vector<8x128xf32>
    %975 = math.tanh %973 : vector<8x128xf32>
    %976 = arith.mulf %974, %975 : vector<8x128xf32>
    %977 = arith.select %956, %976, %930 : vector<8x128xi1>, vector<8x128xf32>
    %978 = arith.select %956, %973, %931 : vector<8x128xi1>, vector<8x128xf32>
    %c9_i32_322 = arith.constant 9 : i32
    %c9_i32_323 = arith.constant 9 : i32
    %979 = arith.subi %c9_i32_323, %c9_i32_322 : i32
    %c8_i32_324 = arith.constant 8 : i32
    %980 = arith.muli %c9_i32_322, %c8_i32_324 : i32
    %981 = tpu.assume_multiple %980, 8 : i32
    %c8_i32_325 = arith.constant 8 : i32
    %982 = arith.muli %979, %c8_i32_325 : i32
    %983 = tpu.assume_multiple %982, 8 : i32
    %984 = arith.index_cast %981 : i32 to index
    %c0_326 = arith.constant 0 : index
    %985 = vector.load %arg15[%984, %c0_326] : memref<80x512xf32, #tpu.memory_space<vmem>>, vector<8x512xf32>
    %986 = arith.index_cast %983 : i32 to index
    %c0_327 = arith.constant 0 : index
    %987 = vector.load %arg16[%986, %c0_327] : memref<80x512xf32, #tpu.memory_space<vmem>>, vector<8x512xf32>
    %988 = arith.addf %985, %987 : vector<8x512xf32>
    %989 = arith.index_cast %c9_i32_322 : i32 to index
    %c0_328 = arith.constant 0 : index
    %c0_329 = arith.constant 0 : index
    %990 = vector.load %arg2[%989, %c0_328, %c0_329] : memref<10x8x1xf32, #tpu.memory_space<vmem>>, vector<1x8x1xf32>
    %991 = vector.shape_cast %990 : vector<1x8x1xf32> to vector<8x1xf32>
    %992 = arith.index_cast %979 : i32 to index
    %c0_330 = arith.constant 0 : index
    %c0_331 = arith.constant 0 : index
    %993 = vector.load %arg2[%992, %c0_330, %c0_331] : memref<10x8x1xf32, #tpu.memory_space<vmem>>, vector<1x8x1xf32>
    %994 = vector.shape_cast %993 : vector<1x8x1xf32> to vector<8x1xf32>
    %995 = vector.shape_cast %2 : vector<1x128xi1> to vector<1x128xi1>
    %996 = vector.broadcast %995 : vector<1x128xi1> to vector<8x128xi1>
    %997 = vector.shape_cast %991 : vector<8x1xf32> to vector<8x1xf32>
    %998 = vector.broadcast %997 : vector<8x1xf32> to vector<8x128xf32>
    %999 = vector.shape_cast %994 : vector<8x1xf32> to vector<8x1xf32>
    %1000 = vector.broadcast %999 : vector<8x1xf32> to vector<8x128xf32>
    %1001 = arith.select %996, %998, %1000 : vector<8x128xi1>, vector<8x128xf32>
    %cst_332 = arith.constant 0.000000e+00 : f32
    %1002 = vector.broadcast %cst_332 : f32 to vector<8x128xf32>
    %1003 = arith.cmpf one, %1001, %1002 : vector<8x128xf32>
    %1004 = arith.truncf %977 : vector<8x128xf32> to vector<8x128xbf16>
    %c0_333 = arith.constant 0 : index
    %c0_334 = arith.constant 0 : index
    %1005 = vector.load %arg9[%c0_333, %c0_334] : memref<128x512xbf16, #tpu.memory_space<vmem>>, vector<128x512xbf16>
    %cst_335 = arith.constant dense<0.000000e+00> : vector<8x512xf32>
    %1006 = tpu.matmul %1004, %1005, %cst_335 {dimension_numbers = #tpu.dot_dimension_numbers<[1], [0], [0], [1], [0, 0, 1, 1], [], []>} : vector<8x128xbf16>, vector<128x512xbf16>, vector<8x512xf32> -> vector<8x512xf32>
    %1007 = arith.addf %988, %1006 : vector<8x512xf32>
    %1008 = vector.extract_strided_slice %1007 {offsets = [0, 0], sizes = [8, 384], strides = [1, 1]} : vector<8x512xf32> to vector<8x384xf32>
    %1009 = arith.negf %1008 : vector<8x384xf32>
    %1010 = math.exp %1009 : vector<8x384xf32>
    %cst_336 = arith.constant 1.000000e+00 : f32
    %1011 = vector.broadcast %cst_336 : f32 to vector<8x384xf32>
    %1012 = arith.addf %1011, %1010 : vector<8x384xf32>
    %1013 = arith.divf %1011, %1012 : vector<8x384xf32>
    %1014 = vector.extract_strided_slice %1007 {offsets = [0, 384], sizes = [8, 128], strides = [1, 1]} : vector<8x512xf32> to vector<8x128xf32>
    %1015 = math.tanh %1014 : vector<8x128xf32>
    %1016 = vector.extract_strided_slice %1013 {offsets = [0, 128], sizes = [8, 128], strides = [1, 1]} : vector<8x384xf32> to vector<8x128xf32>
    %1017 = arith.mulf %1016, %978 : vector<8x128xf32>
    %1018 = vector.extract_strided_slice %1013 {offsets = [0, 0], sizes = [8, 128], strides = [1, 1]} : vector<8x384xf32> to vector<8x128xf32>
    %1019 = arith.mulf %1018, %1015 : vector<8x128xf32>
    %1020 = arith.addf %1017, %1019 : vector<8x128xf32>
    %1021 = vector.extract_strided_slice %1013 {offsets = [0, 256], sizes = [8, 128], strides = [1, 1]} : vector<8x384xf32> to vector<8x128xf32>
    %1022 = math.tanh %1020 : vector<8x128xf32>
    %1023 = arith.mulf %1021, %1022 : vector<8x128xf32>
    %1024 = arith.select %1003, %1023, %977 : vector<8x128xi1>, vector<8x128xf32>
    %1025 = arith.select %1003, %1020, %978 : vector<8x128xi1>, vector<8x128xf32>
    %c10_i32_337 = arith.constant 10 : i32
    %c0_338 = arith.constant 0 : index
    %c0_339 = arith.constant 0 : index
    %1026 = vector.load %arg11[%c0_338, %c0_339] : memref<128x128xf32, #tpu.memory_space<vmem>>, vector<128x128xf32>
    %cst_340 = arith.constant dense<0.000000e+00> : vector<8x128xf32>
    %1027 = tpu.matmul %1024, %1026, %cst_340 {dimension_numbers = #tpu.dot_dimension_numbers<[1], [0], [0], [1], [0, 0, 1, 1], [], []>} : vector<8x128xf32>, vector<128x128xf32>, vector<8x128xf32> -> vector<8x128xf32>
    %c0_341 = arith.constant 0 : index
    %c0_342 = arith.constant 0 : index
    %1028 = vector.load %arg12[%c0_341, %c0_342] : memref<1x128xf32, #tpu.memory_space<vmem>>, vector<1x128xf32>
    %1029 = vector.broadcast %1028 : vector<1x128xf32> to vector<8x128xf32>
    %1030 = arith.addf %1027, %1029 : vector<8x128xf32>
    %c0_343 = arith.constant 0 : index
    %c0_344 = arith.constant 0 : index
    %1031 = vector.load %arg13[%c0_343, %c0_344] : memref<8x128xf32, #tpu.memory_space<vmem>>, vector<8x128xf32>
    tpu.vector_store %arg13[%c0_343, %c0_344], %1030 {strides = array<i32>} : memref<8x128xf32, #tpu.memory_space<vmem>>, vector<8x128xf32>,
    return
  }
  func.func @transform_0(%arg0: i32) -> (i32, i32, i32) {
    %c0_i32 = arith.constant 0 : i32
    %c0_i32_0 = arith.constant 0 : i32
    %c0_i32_1 = arith.constant 0 : i32
    return %arg0, %c0_i32, %c0_i32_0 : i32, i32, i32
  }
  func.func @transform_1(%arg0: i32) -> (i32, i32, i32) {
    %c0_i32 = arith.constant 0 : i32
    %c0_i32_0 = arith.constant 0 : i32
    %c0_i32_1 = arith.constant 0 : i32
    return %c0_i32, %arg0, %c0_i32_0 : i32, i32, i32
  }
  func.func @transform_2(%arg0: i32) -> (i32, i32) {
    %c0_i32 = arith.constant 0 : i32
    %c0_i32_0 = arith.constant 0 : i32
    %c0_i32_1 = arith.constant 0 : i32
    return %c0_i32, %c0_i32_0 : i32, i32
  }
  func.func @transform_3(%arg0: i32) -> (i32, i32) {
    %c0_i32 = arith.constant 0 : i32
    %c0_i32_0 = arith.constant 0 : i32
    %c0_i32_1 = arith.constant 0 : i32
    return %c0_i32, %c0_i32_0 : i32, i32
  }
  func.func @transform_4(%arg0: i32) -> (i32, i32) {
    %c0_i32 = arith.constant 0 : i32
    %c0_i32_0 = arith.constant 0 : i32
    %c0_i32_1 = arith.constant 0 : i32
    return %c0_i32, %c0_i32_0 : i32, i32
  }
  func.func @transform_5(%arg0: i32) -> (i32, i32) {
    %c0_i32 = arith.constant 0 : i32
    %c0_i32_0 = arith.constant 0 : i32
    %c0_i32_1 = arith.constant 0 : i32
    return %c0_i32, %c0_i32_0 : i32, i32
  }
  func.func @transform_6(%arg0: i32) -> (i32, i32) {
    %c0_i32 = arith.constant 0 : i32
    %c0_i32_0 = arith.constant 0 : i32
    %c0_i32_1 = arith.constant 0 : i32
    return %c0_i32, %c0_i32_0 : i32, i32
  }
  func.func @transform_7(%arg0: i32) -> (i32, i32) {
    %c0_i32 = arith.constant 0 : i32
    %c0_i32_0 = arith.constant 0 : i32
    %c0_i32_1 = arith.constant 0 : i32
    return %c0_i32, %c0_i32_0 : i32, i32
  }
  func.func @transform_8(%arg0: i32) -> (i32, i32) {
    %c0_i32 = arith.constant 0 : i32
    %c0_i32_0 = arith.constant 0 : i32
    %c0_i32_1 = arith.constant 0 : i32
    return %c0_i32, %c0_i32_0 : i32, i32
  }
  func.func @transform_9(%arg0: i32) -> (i32, i32) {
    %c0_i32 = arith.constant 0 : i32
    %c0_i32_0 = arith.constant 0 : i32
    %c0_i32_1 = arith.constant 0 : i32
    return %c0_i32, %c0_i32_0 : i32, i32
  }
  func.func @transform_10(%arg0: i32) -> (i32, i32) {
    %c0_i32 = arith.constant 0 : i32
    %c0_i32_0 = arith.constant 0 : i32
    %c0_i32_1 = arith.constant 0 : i32
    return %c0_i32, %c0_i32_0 : i32, i32
  }
  func.func @transform_11(%arg0: i32) -> (i32, i32) {
    %c0_i32 = arith.constant 0 : i32
    %c0_i32_0 = arith.constant 0 : i32
    %c0_i32_1 = arith.constant 0 : i32
    return %c0_i32, %c0_i32_0 : i32, i32
  }
  func.func @transform_12(%arg0: i32) -> (i32, i32) {
    %c0_i32 = arith.constant 0 : i32
    %c0_i32_0 = arith.constant 0 : i32
    return %arg0, %c0_i32 : i32, i32
  }
}

</mosaic_0001>

<llo_original>
// kernel: tpu_custom_call.1
$region0: #{tpu_custom_call.1}
  #allocation0 [shape = 'u32[]', space=smem, size = 0x4, offset = 0x4, fixed_abs, tag = 'smem constant byte address 0x4 - core index']
  #allocation1 [shape = 'u32[144,128]{1,0:T(1,128)}', space=vmem, size = 0x12000, scoped, tag = 'internal scratch']
  #allocation2 [shape = 'f32[80,128]{1,0:T(8,128)}', space=vmem, size = 0xa000, scoped, tag = 'scratch operand']
  #allocation3 [shape = 'f32[80,512]{1,0:T(8,128)}', space=vmem, size = 0x28000, scoped, tag = 'scratch operand']
  #allocation4 [shape = 'f32[80,512]{1,0:T(8,128)}', space=vmem, size = 0x28000, scoped, tag = 'scratch operand']
  %s0 = inlined_call_operand.vmem [shape: bf16[1,80,32], index: 0, kind: input, shape index: {}]
  %s1 = inlined_call_operand.vmem [shape: f32[10,8,1], index: 1, kind: input, shape index: {}]
  %s2 = inlined_call_operand.hbm [shape: bf16[32,512], index: 2, kind: input, shape index: {}]
  %s3 = inlined_call_operand.hbm [shape: bf16[32,512], index: 3, kind: input, shape index: {}]
  %s4 = inlined_call_operand.hbm [shape: bf16[128,512], index: 4, kind: input, shape index: {}]
  %s5 = inlined_call_operand.vmem [shape: f32[1,512], index: 5, kind: input, shape index: {}]
  %s6 = inlined_call_operand.hbm [shape: bf16[128,512], index: 6, kind: input, shape index: {}]
  %s7 = inlined_call_operand.hbm [shape: bf16[128,512], index: 7, kind: input, shape index: {}]
  %s8 = inlined_call_operand.hbm [shape: bf16[128,512], index: 8, kind: input, shape index: {}]
  %s9 = inlined_call_operand.vmem [shape: f32[1,512], index: 9, kind: input, shape index: {}]
  %s10 = inlined_call_operand.vmem [shape: f32[128,128], index: 10, kind: input, shape index: {}]
  %s11 = inlined_call_operand.vmem [shape: f32[1,128], index: 11, kind: input, shape index: {}]
  %s12 = inlined_call_operand.hbm [shape: f32[8,128], index: 12, kind: output, shape index: {}]
  %s13 = sld [smem:[#allocation0]]
  $region82: #{tpu_custom_call.1} parent=0
    _
  %s15 = ssub.s32 1, %s13
  %s16 = scalar_select 0, %s15, %s13
  $region1: #{tpu_custom_call.1} parent=0
    #allocation5 [shape = 'u8[32768]{0}', space=vmem, size = 0x8000, scoped, tag = 'input window, operand 2, single buffered']
    #allocation6 [shape = 's32[1]{0}', space=sflag, size = 0x4, scoped, tag = 'scoped memory for tpu_custom_call.1']
    #allocation7 [shape = 's32[1]{0}', space=sflag, size = 0x4, scoped, tag = 'scoped memory for tpu_custom_call.1']
    #allocation8 [shape = 'u8[32768]{0}', space=vmem, size = 0x8000, scoped, tag = 'input window, operand 3, single buffered']
    #allocation9 [shape = 's32[1]{0}', space=sflag, size = 0x4, scoped, tag = 'scoped memory for tpu_custom_call.1']
    #allocation10 [shape = 'u8[131072]{0}', space=vmem, size = 0x20000, scoped, tag = 'input window, operand 4, single buffered']
    #allocation11 [shape = 'u8[131072]{0}', space=vmem, size = 0x20000, scoped, tag = 'input window, operand 6, single buffered']
    #allocation12 [shape = 's32[1]{0}', space=sflag, size = 0x4, scoped, tag = 'scoped memory for tpu_custom_call.1']
    #allocation13 [shape = 'u8[131072]{0}', space=vmem, size = 0x20000, scoped, tag = 'input window, operand 7, single buffered']
    #allocation14 [shape = 'u8[131072]{0}', space=vmem, size = 0x20000, scoped, tag = 'input window, operand 8, single buffered']
    #allocation15 [shape = 's32[1]{0}', space=sflag, size = 0x4, scoped, tag = 'scoped memory for tpu_custom_call.1']
    #allocation16 [shape = 'u8[4096]{0}', space=vmem, size = 0x1000, scoped, tag = 'output window, operand 0, single buffered']
    %17 = vsyncpa [#allocation6], 0
    %18 = vsyncpa [#allocation9], 0
    %19 = vsyncpa [#allocation12], 0
    %20 = vsyncpa [#allocation15], 0
    %21 = vsyncpa [#allocation7], 0
    // Predicated region
    $region2: #{tpu_custom_call.1} parent=1 // pred_check
      _
    $region3: #{tpu_custom_call.1} parent=1 // pred_check_branch
      %23 = sbr.rel (0) target = $region5
    $region4: #{tpu_custom_call.1} parent=1 // pred_region
      _
    $region5: #{tpu_custom_call.1} parent=1 // pred_fallthru
      _
    // Predicated region
    $region6: #{tpu_custom_call.1} parent=1 // pred_check
      _
    $region7: #{tpu_custom_call.1} parent=1 // pred_check_branch
      %25 = sbr.rel (0) target = $region9
    $region8: #{tpu_custom_call.1} parent=1 // pred_region
      _
    $region9: #{tpu_custom_call.1} parent=1 // pred_fallthru
      _
    // Predicated region
    $region10: #{tpu_custom_call.1} parent=1 // pred_check
      _
    $region11: #{tpu_custom_call.1} parent=1 // pred_check_branch
      %27 = sbr.rel (0) target = $region13
    $region12: #{tpu_custom_call.1} parent=1 // pred_region
      %s29 = ssub.s32 1024, 1024
      %30 = vsyncadd [#allocation6], %s29
      %s31 = sshll.u32 [#allocation5], 4
      %s32 = int_to_ptr.vmem [resolvable:$true] %s31
      %37 = dma.hbm_to_vmem [thread:$0]  %s2, 1024, %s32, [#allocation6], 256, 256, 16
    $region13: #{tpu_custom_call.1} parent=1 // pred_fallthru
      _
    // Predicated region
    $region14: #{tpu_custom_call.1} parent=1 // pred_check
      _
    $region15: #{tpu_custom_call.1} parent=1 // pred_check_branch
      %39 = sbr.rel (0) target = $region17
    $region16: #{tpu_custom_call.1} parent=1 // pred_region
      %s41 = ssub.s32 1024, 1024
      %42 = vsyncadd [#allocation9], %s41
      %s43 = sshll.u32 [#allocation8], 4
      %s44 = int_to_ptr.vmem [resolvable:$true] %s43
      %49 = dma.hbm_to_vmem [thread:$0]  %s3, 1024, %s44, [#allocation9], 256, 256, 16
    $region17: #{tpu_custom_call.1} parent=1 // pred_fallthru
      _
    // Predicated region
    $region18: #{tpu_custom_call.1} parent=1 // pred_check
      _
    $region19: #{tpu_custom_call.1} parent=1 // pred_check_branch
      %51 = sbr.rel (0) target = $region21
    $region20: #{tpu_custom_call.1} parent=1 // pred_region
      %s53 = ssub.s32 4096, 4096
      %54 = vsyncadd [#allocation9], %s53
      %s55 = sshll.u32 [#allocation10], 4
      %s56 = int_to_ptr.vmem [resolvable:$true] %s55
      %61 = dma.hbm_to_vmem [thread:$0]  %s4, 4096, %s56, [#allocation9], 256, 256, 16
    $region21: #{tpu_custom_call.1} parent=1 // pred_fallthru
      _
    // Predicated region
    $region22: #{tpu_custom_call.1} parent=1 // pred_check
      _
    $region23: #{tpu_custom_call.1} parent=1 // pred_check_branch
      %63 = sbr.rel (0) target = $region25
    $region24: #{tpu_custom_call.1} parent=1 // pred_region
      _
    $region25: #{tpu_custom_call.1} parent=1 // pred_fallthru
      _
    // Predicated region
    $region26: #{tpu_custom_call.1} parent=1 // pred_check
      _
    $region27: #{tpu_custom_call.1} parent=1 // pred_check_branch
      %65 = sbr.rel (0) target = $region29
    $region28: #{tpu_custom_call.1} parent=1 // pred_region
      %s67 = ssub.s32 4096, 4096
      %68 = vsyncadd [#allocation12], %s67
      %s69 = sshll.u32 [#allocation11], 4
      %s70 = int_to_ptr.vmem [resolvable:$true] %s69
      %75 = dma.hbm_to_vmem [thread:$0]  %s6, 4096, %s70, [#allocation12], 256, 256, 16
    $region29: #{tpu_custom_call.1} parent=1 // pred_fallthru
      _
    // Predicated region
    $region30: #{tpu_custom_call.1} parent=1 // pred_check
      _
    $region31: #{tpu_custom_call.1} parent=1 // pred_check_branch
      %77 = sbr.rel (0) target = $region33
    $region32: #{tpu_custom_call.1} parent=1 // pred_region
      %s79 = ssub.s32 4096, 4096
      %80 = vsyncadd [#allocation12], %s79
      %s81 = sshll.u32 [#allocation13], 4
      %s82 = int_to_ptr.vmem [resolvable:$true] %s81
      %87 = dma.hbm_to_vmem [thread:$0]  %s7, 4096, %s82, [#allocation12], 256, 256, 16
    $region33: #{tpu_custom_call.1} parent=1 // pred_fallthru
      _
    // Predicated region
    $region34: #{tpu_custom_call.1} parent=1 // pred_check
      _
    $region35: #{tpu_custom_call.1} parent=1 // pred_check_branch
      %89 = sbr.rel (0) target = $region37
    $region36: #{tpu_custom_call.1} parent=1 // pred_region
      %s91 = ssub.s32 4096, 4096
      %92 = vsyncadd [#allocation15], %s91
      %s93 = sshll.u32 [#allocation14], 4
      %s94 = int_to_ptr.vmem [resolvable:$true] %s93
      %99 = dma.hbm_to_vmem [thread:$0]  %s8, 4096, %s94, [#allocation15], 256, 256, 16
    $region37: #{tpu_custom_call.1} parent=1 // pred_fallthru
      _
    // Predicated region
    $region38: #{tpu_custom_call.1} parent=1 // pred_check
      _
    $region39: #{tpu_custom_call.1} parent=1 // pred_check_branch
      %101 = sbr.rel (0) target = $region41
    $region40: #{tpu_custom_call.1} parent=1 // pred_region
      _
    $region41: #{tpu_custom_call.1} parent=1 // pred_fallthru
      _
    // Predicated region
    $region42: #{tpu_custom_call.1} parent=1 // pred_check
      _
    $region43: #{tpu_custom_call.1} parent=1 // pred_check_branch
      %103 = sbr.rel (0) target = $region45
    $region44: #{tpu_custom_call.1} parent=1 // pred_region
      _
    $region45: #{tpu_custom_call.1} parent=1 // pred_fallthru
      _
    // Predicated region
    $region46: #{tpu_custom_call.1} parent=1 // pred_check
      _
    $region47: #{tpu_custom_call.1} parent=1 // pred_check_branch
      %105 = sbr.rel (0) target = $region49
    $region48: #{tpu_custom_call.1} parent=1 // pred_region
      _
    $region49: #{tpu_custom_call.1} parent=1 // pred_fallthru
      _
    // Predicated region
    $region50: #{tpu_custom_call.1} parent=1 // pred_check
      _
    $region51: #{tpu_custom_call.1} parent=1 // pred_check_branch
      %107 = sbr.rel (0) target = $region53
    $region52: #{tpu_custom_call.1} parent=1 // pred_region
      %108 = dma.done [#allocation6], 1024
    $region53: #{tpu_custom_call.1} parent=1 // pred_fallthru
      _
    // Predicated region
    $region54: #{tpu_custom_call.1} parent=1 // pred_check
      _
    $region55: #{tpu_custom_call.1} parent=1 // pred_check_branch
      %110 = sbr.rel (0) target = $region57
    $region56: #{tpu_custom_call.1} parent=1 // pred_region
      %111 = dma.done [#allocation9], 1024
    $region57: #{tpu_custom_call.1} parent=1 // pred_fallthru
      _
    // Predicated region
    $region58: #{tpu_custom_call.1} parent=1 // pred_check
      _
    $region59: #{tpu_custom_call.1} parent=1 // pred_check_branch
      %113 = sbr.rel (0) target = $region61
    $region60: #{tpu_custom_call.1} parent=1 // pred_region
      %114 = dma.done [#allocation9], 4096
    $region61: #{tpu_custom_call.1} parent=1 // pred_fallthru
      _
    // Predicated region
    $region62: #{tpu_custom_call.1} parent=1 // pred_check
      _
    $region63: #{tpu_custom_call.1} parent=1 // pred_check_branch
      %116 = sbr.rel (0) target = $region65
    $region64: #{tpu_custom_call.1} parent=1 // pred_region
      %117 = dma.done [#allocation12], 4096
    $region65: #{tpu_custom_call.1} parent=1 // pred_fallthru
      _
    // Predicated region
    $region66: #{tpu_custom_call.1} parent=1 // pred_check
      _
    $region67: #{tpu_custom_call.1} parent=1 // pred_check_branch
      %119 = sbr.rel (0) target = $region69
    $region68: #{tpu_custom_call.1} parent=1 // pred_region
      %120 = dma.done [#allocation12], 4096
    $region69: #{tpu_custom_call.1} parent=1 // pred_fallthru
      _
    // Predicated region
    $region70: #{tpu_custom_call.1} parent=1 // pred_check
      _
    $region71: #{tpu_custom_call.1} parent=1 // pred_check_branch
      %122 = sbr.rel (0) target = $region73
    $region72: #{tpu_custom_call.1} parent=1 // pred_region
      %123 = dma.done [#allocation15], 4096
    $region73: #{tpu_custom_call.1} parent=1 // pred_fallthru
      _
    %v125 = vlaneseq
    %v126 = vand.u32 %v125, 127
    %vm127 = vcmp.lt.s32.totalorder %v126, 64
    %v128 = vld [vmem:[%s0] sm:$0xf]
    %v129 = vld [vmem:[%s0 + $0x4] sm:$0xf]
    %v130 = vld [vmem:[%s0 + $0x8] sm:$0xf]
    %v131 = vld [vmem:[%s0 + $0xc] sm:$0xf]
    %v132 = vld [vmem:[%s0 + $0x10] sm:$0xf]
    %v133 = vld [vmem:[%s0 + $0x14] sm:$0xf]
    %v134 = vld [vmem:[%s0 + $0x18] sm:$0xf]
    %v135 = vld [vmem:[%s0 + $0x1c] sm:$0xf]
    %v136 = vld [vmem:[%s0 + $0x20] sm:$0xf]
    %v137 = vld [vmem:[%s0 + $0x24] sm:$0xf]
    %v138 = vld [vmem:[#allocation5] sm:$0xff]
    %v139 = vld [vmem:[#allocation5 + $0x8] sm:$0xff]
    %v140 = vld [vmem:[#allocation5 + $0x10] sm:$0xff]
    %v141 = vld [vmem:[#allocation5 + $0x18] sm:$0xff]
    %v142 = vld [vmem:[#allocation5 + $0x20] sm:$0xff]
    %v143 = vld [vmem:[#allocation5 + $0x28] sm:$0xff]
    %v144 = vld [vmem:[#allocation5 + $0x30] sm:$0xff]
    %v145 = vld [vmem:[#allocation5 + $0x38] sm:$0xff]
    %v146 = vld [vmem:[%s5] sm:$0xf]
    %v148 = vlaneseq
    %v149 = vshrl.u32 %v148, 7
    %v150 = vsub.s32 0, %v149
    %v151 = vrot.slane %v146, %v150
    %v152 = vlaneseq
    %v153 = vshrl.u32 %v152, 7
    %v154 = vsub.s32 1, %v153
    %v155 = vrot.slane %v146, %v154
    %v156 = vlaneseq
    %v157 = vshrl.u32 %v156, 7
    %v158 = vsub.s32 2, %v157
    %v159 = vrot.slane %v146, %v158
    %v160 = vlaneseq
    %v161 = vshrl.u32 %v160, 7
    %v162 = vsub.s32 3, %v161
    %v163 = vrot.slane %v146, %v162
    %v178 = vunpack.c.l.b16 %v128
    %v179 = vunpack.c.l.b16 %v129
    %v180 = vunpack.c.l.b16 %v130
    %v181 = vunpack.c.l.b16 %v131
    %v182 = vunpack.c.l.b16 %v132
    %v183 = vunpack.c.l.b16 %v133
    %v184 = vunpack.c.l.b16 %v134
    %v185 = vunpack.c.l.b16 %v135
    %v186 = vunpack.c.l.b16 %v136
    %v187 = vunpack.c.l.b16 %v137
    %v188 = vpack.c.b16 %v179, %v178
    %v189 = vpack.c.b16 %v181, %v180
    %v190 = vpack.c.b16 %v183, %v182
    %v191 = vpack.c.b16 %v185, %v184
    %v192 = vpack.c.b16 %v187, %v186
    %v201 = vunpack.c.l.b16 %v138
    %v202 = vunpack.c.h.b16 %v138
    %v203 = vunpack.c.l.b16 %v139
    %v204 = vunpack.c.h.b16 %v139
    %v205 = vunpack.c.l.b16 %v140
    %v206 = vunpack.c.h.b16 %v140
    %v207 = vunpack.c.l.b16 %v141
    %v208 = vunpack.c.h.b16 %v141
    %v209 = vunpack.c.l.b16 %v142
    %v210 = vunpack.c.h.b16 %v142
    %v211 = vunpack.c.l.b16 %v143
    %v212 = vunpack.c.h.b16 %v143
    %v213 = vunpack.c.l.b16 %v144
    %v214 = vunpack.c.h.b16 %v144
    %v215 = vunpack.c.l.b16 %v145
    %v216 = vunpack.c.h.b16 %v145
    %v217 = vpack.c.b16 %v205, %v201
    %v218 = vpack.c.b16 %v206, %v202
    %v219 = vpack.c.b16 %v207, %v203
    %v220 = vpack.c.b16 %v208, %v204
    %v221 = vpack.c.b16 %v213, %v209
    %v222 = vpack.c.b16 %v214, %v210
    %v223 = vpack.c.b16 %v215, %v211
    %v224 = vpack.c.b16 %v216, %v212
    %vm233 = vcmask 261120
    %v235 = vsel %vm233, %v188, 0
    %v238 = vsel %vm233, %v189, 0
    %v241 = vsel %vm233, %v190, 0
    %v244 = vsel %vm233, %v191, 0
    %v247 = vsel %vm233, %v192, 0
    %249 = vmatprep.subr.bf16.mxu0 %v218
    %250 = vmatpush1.bf16.msra.mxu0 %v217
    %251 = vmatprep.subr.bf16.mxu0 %v222
    %252 = vmatpush1.bf16.msra.mxu0 %v221
    %253 = vmatprep.subr.bf16.mxu0 0
    %254 = vmatpush1.bf16.msra.mxu0 0
    %255 = vmatprep.subr.bf16.mxu0 0
    %256 = vmatpush1.bf16.msra.mxu0 0
    %257 = vmatprep.subr.bf16.mxu0 0
    %258 = vmatpush1.bf16.msra.mxu0 0
    %259 = vmatprep.subr.bf16.mxu0 0
    %260 = vmatpush1.bf16.msra.mxu0 0
    %261 = vmatprep.subr.bf16.mxu0 0
    %262 = vmatpush1.bf16.msra.mxu0 0
    %263 = vmatprep.subr.bf16.mxu0 0
    %264 = vmatpush1.bf16.msra.mxu0 0
    %265 = vmatprep.subr.bf16.mxu0 0
    %266 = vmatpush1.bf16.msra.mxu0 0
    %267 = vmatprep.subr.bf16.mxu0 0
    %268 = vmatpush1.bf16.msra.mxu0 0
    %269 = vmatprep.subr.bf16.mxu0 0
    %270 = vmatpush1.bf16.msra.mxu0 0
    %271 = vmatprep.subr.bf16.mxu0 0
    %272 = vmatpush1.bf16.msra.mxu0 0
    %273 = vmatprep.subr.bf16.mxu0 0
    %274 = vmatpush1.bf16.msra.mxu0 0
    %275 = vmatprep.subr.bf16.mxu0 0
    %276 = vmatpush1.bf16.msra.mxu0 0
    %277 = vmatprep.subr.bf16.mxu0 0
    %278 = vmatpush1.bf16.msra.mxu0 0
    %279 = vmatprep.subr.bf16.mxu0 0
    %280 = vmatpush1.bf16.msra.mxu0 0
    %281 = vmatprep.mubr.bf16.mxu0 0
    %282 = vmatmul.mubr.bf16.gmra.mrb[0].mxu0 %v235
    %v283 = vpop.f32.mrb[0].mxu0
    %v284 = vadd.f32 %v151, %v283
    %v285 = vpop.f32.mrb[0].mxu0
    %v286 = vadd.f32 %v155, %v285
    %v287 = vpop.f32.mrb[0].mxu0
    %v288 = vadd.f32 %v151, %v287
    %v289 = vpop.f32.mrb[0].mxu0
    %v290 = vadd.f32 %v155, %v289
    %291 = vmatprep.mubr.bf16.mxu0 0
    %292 = vmatmul.mubr.bf16.gmra.mrb[0].mxu0 %v238
    %v293 = vpop.f32.mrb[0].mxu0
    %v294 = vadd.f32 %v151, %v293
    %v295 = vpop.f32.mrb[0].mxu0
    %v296 = vadd.f32 %v155, %v295
    %v297 = vpop.f32.mrb[0].mxu0
    %v298 = vadd.f32 %v151, %v297
    %v299 = vpop.f32.mrb[0].mxu0
    %v300 = vadd.f32 %v155, %v299
    %301 = vmatprep.mubr.bf16.mxu0 0
    %302 = vmatmul.mubr.bf16.gmra.mrb[0].mxu0 %v241
    %v303 = vpop.f32.mrb[0].mxu0
    %v304 = vadd.f32 %v151, %v303
    %v305 = vpop.f32.mrb[0].mxu0
    %v306 = vadd.f32 %v155, %v305
    %v307 = vpop.f32.mrb[0].mxu0
    %v308 = vadd.f32 %v151, %v307
    %v309 = vpop.f32.mrb[0].mxu0
    %v310 = vadd.f32 %v155, %v309
    %311 = vmatprep.mubr.bf16.mxu0 0
    %312 = vmatmul.mubr.bf16.gmra.mrb[0].mxu0 %v244
    %v313 = vpop.f32.mrb[0].mxu0
    %v314 = vadd.f32 %v151, %v313
    %v315 = vpop.f32.mrb[0].mxu0
    %v316 = vadd.f32 %v155, %v315
    %v317 = vpop.f32.mrb[0].mxu0
    %v318 = vadd.f32 %v151, %v317
    %v319 = vpop.f32.mrb[0].mxu0
    %v320 = vadd.f32 %v155, %v319
    %321 = vmatprep.mubr.bf16.mxu0 0
    %322 = vmatmul.mubr.bf16.gmra.mrb[0].mxu0 %v247
    %v323 = vpop.f32.mrb[0].mxu0
    %v324 = vadd.f32 %v151, %v323
    %v325 = vpop.f32.mrb[0].mxu0
    %v326 = vadd.f32 %v155, %v325
    %v327 = vpop.f32.mrb[0].mxu0
    %v328 = vadd.f32 %v151, %v327
    %v329 = vpop.f32.mrb[0].mxu0
    %v330 = vadd.f32 %v155, %v329
    %331 = vdwg.mxu0
    %332 = vmatprep.subr.bf16.mxu0 %v220
    %333 = vmatpush1.bf16.msra.mxu0 %v219
    %334 = vmatprep.subr.bf16.mxu0 %v224
    %335 = vmatpush1.bf16.msra.mxu0 %v223
    %336 = vmatprep.subr.bf16.mxu0 0
    %337 = vmatpush1.bf16.msra.mxu0 0
    %338 = vmatprep.subr.bf16.mxu0 0
    %339 = vmatpush1.bf16.msra.mxu0 0
    %340 = vmatprep.subr.bf16.mxu0 0
    %341 = vmatpush1.bf16.msra.mxu0 0
    %342 = vmatprep.subr.bf16.mxu0 0
    %343 = vmatpush1.bf16.msra.mxu0 0
    %344 = vmatprep.subr.bf16.mxu0 0
    %345 = vmatpush1.bf16.msra.mxu0 0
    %346 = vmatprep.subr.bf16.mxu0 0
    %347 = vmatpush1.bf16.msra.mxu0 0
    %348 = vmatprep.subr.bf16.mxu0 0
    %349 = vmatpush1.bf16.msra.mxu0 0
    %350 = vmatprep.subr.bf16.mxu0 0
    %351 = vmatpush1.bf16.msra.mxu0 0
    %352 = vmatprep.subr.bf16.mxu0 0
    %353 = vmatpush1.bf16.msra.mxu0 0
    %354 = vmatprep.subr.bf16.mxu0 0
    %355 = vmatpush1.bf16.msra.mxu0 0
    %356 = vmatprep.subr.bf16.mxu0 0
    %357 = vmatpush1.bf16.msra.mxu0 0
    %358 = vmatprep.subr.bf16.mxu0 0
    %359 = vmatpush1.bf16.msra.mxu0 0
    %360 = vmatprep.subr.bf16.mxu0 0
    %361 = vmatpush1.bf16.msra.mxu0 0
    %362 = vmatprep.subr.bf16.mxu0 0
    %363 = vmatpush1.bf16.msra.mxu0 0
    %364 = vmatprep.mubr.bf16.mxu0 0
    %365 = vmatmul.mubr.bf16.gmra.mrb[0].mxu0 %v235
    %v366 = vpop.f32.mrb[0].mxu0
    %v367 = vadd.f32 %v159, %v366
    %v368 = vpop.f32.mrb[0].mxu0
    %v369 = vadd.f32 %v163, %v368
    %v370 = vpop.f32.mrb[0].mxu0
    %v371 = vadd.f32 %v159, %v370
    %v372 = vpop.f32.mrb[0].mxu0
    %v373 = vadd.f32 %v163, %v372
    %374 = vmatprep.mubr.bf16.mxu0 0
    %375 = vmatmul.mubr.bf16.gmra.mrb[0].mxu0 %v238
    %v376 = vpop.f32.mrb[0].mxu0
    %v377 = vadd.f32 %v159, %v376
    %v378 = vpop.f32.mrb[0].mxu0
    %v379 = vadd.f32 %v163, %v378
    %v380 = vpop.f32.mrb[0].mxu0
    %v381 = vadd.f32 %v159, %v380
    %v382 = vpop.f32.mrb[0].mxu0
    %v383 = vadd.f32 %v163, %v382
    %384 = vmatprep.mubr.bf16.mxu0 0
    %385 = vmatmul.mubr.bf16.gmra.mrb[0].mxu0 %v241
    %v386 = vpop.f32.mrb[0].mxu0
    %v387 = vadd.f32 %v159, %v386
    %v388 = vpop.f32.mrb[0].mxu0
    %v389 = vadd.f32 %v163, %v388
    %v390 = vpop.f32.mrb[0].mxu0
    %v391 = vadd.f32 %v159, %v390
    %v392 = vpop.f32.mrb[0].mxu0
    %v393 = vadd.f32 %v163, %v392
    %394 = vmatprep.mubr.bf16.mxu0 0
    %395 = vmatmul.mubr.bf16.gmra.mrb[0].mxu0 %v244
    %v396 = vpop.f32.mrb[0].mxu0
    %v397 = vadd.f32 %v159, %v396
    %v398 = vpop.f32.mrb[0].mxu0
    %v399 = vadd.f32 %v163, %v398
    %v400 = vpop.f32.mrb[0].mxu0
    %v401 = vadd.f32 %v159, %v400
    %v402 = vpop.f32.mrb[0].mxu0
    %v403 = vadd.f32 %v163, %v402
    %404 = vmatprep.mubr.bf16.mxu0 0
    %405 = vmatmul.mubr.bf16.gmra.mrb[0].mxu0 %v247
    %v406 = vpop.f32.mrb[0].mxu0
    %v407 = vadd.f32 %v159, %v406
    %v408 = vpop.f32.mrb[0].mxu0
    %v409 = vadd.f32 %v163, %v408
    %v410 = vpop.f32.mrb[0].mxu0
    %v411 = vadd.f32 %v159, %v410
    %v412 = vpop.f32.mrb[0].mxu0
    %v413 = vadd.f32 %v163, %v412
    %414 = vdwg.mxu0
    %415 = vst [vmem:[#allocation3] sm:$0xff] %v284
    %416 = vst [vmem:[#allocation3 + $0x8] sm:$0xff] %v286
    %417 = vst [vmem:[#allocation3 + $0x10] sm:$0xff] %v367
    %418 = vst [vmem:[#allocation3 + $0x18] sm:$0xff] %v369
    %419 = vst [vmem:[#allocation3 + $0x20] sm:$0xff] %v288
    %420 = vst [vmem:[#allocation3 + $0x28] sm:$0xff] %v290
    %421 = vst [vmem:[#allocation3 + $0x30] sm:$0xff] %v371
    %422 = vst [vmem:[#allocation3 + $0x38] sm:$0xff] %v373
    %423 = vst [vmem:[#allocation3 + $0x40] sm:$0xff] %v294
    %424 = vst [vmem:[#allocation3 + $0x48] sm:$0xff] %v296
    %425 = vst [vmem:[#allocation3 + $0x50] sm:$0xff] %v377
    %426 = vst [vmem:[#allocation3 + $0x58] sm:$0xff] %v379
    %427 = vst [vmem:[#allocation3 + $0x60] sm:$0xff] %v298
    %428 = vst [vmem:[#allocation3 + $0x68] sm:$0xff] %v300
    %429 = vst [vmem:[#allocation3 + $0x70] sm:$0xff] %v381
    %430 = vst [vmem:[#allocation3 + $0x78] sm:$0xff] %v383
    %431 = vst [vmem:[#allocation3 + $0x80] sm:$0xff] %v304
    %432 = vst [vmem:[#allocation3 + $0x88] sm:$0xff] %v306
    %433 = vst [vmem:[#allocation3 + $0x90] sm:$0xff] %v387
    %434 = vst [vmem:[#allocation3 + $0x98] sm:$0xff] %v389
    %435 = vst [vmem:[#allocation3 + $0xa0] sm:$0xff] %v308
    %436 = vst [vmem:[#allocation3 + $0xa8] sm:$0xff] %v310
    %437 = vst [vmem:[#allocation3 + $0xb0] sm:$0xff] %v391
    %438 = vst [vmem:[#allocation3 + $0xb8] sm:$0xff] %v393
    %439 = vst [vmem:[#allocation3 + $0xc0] sm:$0xff] %v314
    %440 = vst [vmem:[#allocation3 + $0xc8] sm:$0xff] %v316
    %441 = vst [vmem:[#allocation3 + $0xd0] sm:$0xff] %v397
    %442 = vst [vmem:[#allocation3 + $0xd8] sm:$0xff] %v399
    %443 = vst [vmem:[#allocation3 + $0xe0] sm:$0xff] %v318
    %444 = vst [vmem:[#allocation3 + $0xe8] sm:$0xff] %v320
    %445 = vst [vmem:[#allocation3 + $0xf0] sm:$0xff] %v401
    %446 = vst [vmem:[#allocation3 + $0xf8] sm:$0xff] %v403
    %447 = vst [vmem:[#allocation3 + $0x100] sm:$0xff] %v324
    %448 = vst [vmem:[#allocation3 + $0x108] sm:$0xff] %v326
    %449 = vst [vmem:[#allocation3 + $0x110] sm:$0xff] %v407
    %450 = vst [vmem:[#allocation3 + $0x118] sm:$0xff] %v409
    %451 = vst [vmem:[#allocation3 + $0x120] sm:$0xff] %v328
    %452 = vst [vmem:[#allocation3 + $0x128] sm:$0xff] %v330
    %453 = vst [vmem:[#allocation3 + $0x130] sm:$0xff] %v411
    %454 = vst [vmem:[#allocation3 + $0x138] sm:$0xff] %v413
    %v455 = vld [vmem:[#allocation8] sm:$0xff]
    %v456 = vld [vmem:[#allocation8 + $0x8] sm:$0xff]
    %v457 = vld [vmem:[#allocation8 + $0x10] sm:$0xff]
    %v458 = vld [vmem:[#allocation8 + $0x18] sm:$0xff]
    %v459 = vld [vmem:[#allocation8 + $0x20] sm:$0xff]
    %v460 = vld [vmem:[#allocation8 + $0x28] sm:$0xff]
    %v461 = vld [vmem:[#allocation8 + $0x30] sm:$0xff]
    %v462 = vld [vmem:[#allocation8 + $0x38] sm:$0xff]
    %v471 = vunpack.c.l.b16 %v455
    %v472 = vunpack.c.h.b16 %v455
    %v473 = vunpack.c.l.b16 %v456
    %v474 = vunpack.c.h.b16 %v456
    %v475 = vunpack.c.l.b16 %v457
    %v476 = vunpack.c.h.b16 %v457
    %v477 = vunpack.c.l.b16 %v458
    %v478 = vunpack.c.h.b16 %v458
    %v479 = vunpack.c.l.b16 %v459
    %v480 = vunpack.c.h.b16 %v459
    %v481 = vunpack.c.l.b16 %v460
    %v482 = vunpack.c.h.b16 %v460
    %v483 = vunpack.c.l.b16 %v461
    %v484 = vunpack.c.h.b16 %v461
    %v485 = vunpack.c.l.b16 %v462
    %v486 = vunpack.c.h.b16 %v462
    %v487 = vpack.c.b16 %v475, %v471
    %v488 = vpack.c.b16 %v476, %v472
    %v489 = vpack.c.b16 %v477, %v473
    %v490 = vpack.c.b16 %v478, %v474
    %v491 = vpack.c.b16 %v483, %v479
    %v492 = vpack.c.b16 %v484, %v480
    %v493 = vpack.c.b16 %v485, %v481
    %v494 = vpack.c.b16 %v486, %v482
    %503 = vmatprep.subr.bf16.mxu0 %v488
    %504 = vmatpush1.bf16.msra.mxu0 %v487
    %505 = vmatprep.subr.bf16.mxu0 %v492
    %506 = vmatpush1.bf16.msra.mxu0 %v491
    %507 = vmatprep.subr.bf16.mxu0 0
    %508 = vmatpush1.bf16.msra.mxu0 0
    %509 = vmatprep.subr.bf16.mxu0 0
    %510 = vmatpush1.bf16.msra.mxu0 0
    %511 = vmatprep.subr.bf16.mxu0 0
    %512 = vmatpush1.bf16.msra.mxu0 0
    %513 = vmatprep.subr.bf16.mxu0 0
    %514 = vmatpush1.bf16.msra.mxu0 0
    %515 = vmatprep.subr.bf16.mxu0 0
    %516 = vmatpush1.bf16.msra.mxu0 0
    %517 = vmatprep.subr.bf16.mxu0 0
    %518 = vmatpush1.bf16.msra.mxu0 0
    %519 = vmatprep.subr.bf16.mxu0 0
    %520 = vmatpush1.bf16.msra.mxu0 0
    %521 = vmatprep.subr.bf16.mxu0 0
    %522 = vmatpush1.bf16.msra.mxu0 0
    %523 = vmatprep.subr.bf16.mxu0 0
    %524 = vmatpush1.bf16.msra.mxu0 0
    %525 = vmatprep.subr.bf16.mxu0 0
    %526 = vmatpush1.bf16.msra.mxu0 0
    %527 = vmatprep.subr.bf16.mxu0 0
    %528 = vmatpush1.bf16.msra.mxu0 0
    %529 = vmatprep.subr.bf16.mxu0 0
    %530 = vmatpush1.bf16.msra.mxu0 0
    %531 = vmatprep.subr.bf16.mxu0 0
    %532 = vmatpush1.bf16.msra.mxu0 0
    %533 = vmatprep.subr.bf16.mxu0 0
    %534 = vmatpush1.bf16.msra.mxu0 0
    %535 = vmatprep.mubr.bf16.mxu0 0
    %536 = vmatmul.mubr.bf16.gmra.mrb[0].mxu0 %v235
    %v537 = vpop.f32.mrb[0].mxu0
    %v538 = vadd.f32 0.0, %v537
    %v539 = vpop.f32.mrb[0].mxu0
    %v540 = vadd.f32 0.0, %v539
    %v541 = vpop.f32.mrb[0].mxu0
    %v542 = vadd.f32 0.0, %v541
    %v543 = vpop.f32.mrb[0].mxu0
    %v544 = vadd.f32 0.0, %v543
    %545 = vmatprep.mubr.bf16.mxu0 0
    %546 = vmatmul.mubr.bf16.gmra.mrb[0].mxu0 %v238
    %v547 = vpop.f32.mrb[0].mxu0
    %v548 = vadd.f32 0.0, %v547
    %v549 = vpop.f32.mrb[0].mxu0
    %v550 = vadd.f32 0.0, %v549
    %v551 = vpop.f32.mrb[0].mxu0
    %v552 = vadd.f32 0.0, %v551
    %v553 = vpop.f32.mrb[0].mxu0
    %v554 = vadd.f32 0.0, %v553
    %555 = vmatprep.mubr.bf16.mxu0 0
    %556 = vmatmul.mubr.bf16.gmra.mrb[0].mxu0 %v241
    %v557 = vpop.f32.mrb[0].mxu0
    %v558 = vadd.f32 0.0, %v557
    %v559 = vpop.f32.mrb[0].mxu0
    %v560 = vadd.f32 0.0, %v559
    %v561 = vpop.f32.mrb[0].mxu0
    %v562 = vadd.f32 0.0, %v561
    %v563 = vpop.f32.mrb[0].mxu0
    %v564 = vadd.f32 0.0, %v563
    %565 = vmatprep.mubr.bf16.mxu0 0
    %566 = vmatmul.mubr.bf16.gmra.mrb[0].mxu0 %v244
    %v567 = vpop.f32.mrb[0].mxu0
    %v568 = vadd.f32 0.0, %v567
    %v569 = vpop.f32.mrb[0].mxu0
    %v570 = vadd.f32 0.0, %v569
    %v571 = vpop.f32.mrb[0].mxu0
    %v572 = vadd.f32 0.0, %v571
    %v573 = vpop.f32.mrb[0].mxu0
    %v574 = vadd.f32 0.0, %v573
    %575 = vmatprep.mubr.bf16.mxu0 0
    %576 = vmatmul.mubr.bf16.gmra.mrb[0].mxu0 %v247
    %v577 = vpop.f32.mrb[0].mxu0
    %v578 = vadd.f32 0.0, %v577
    %v579 = vpop.f32.mrb[0].mxu0
    %v580 = vadd.f32 0.0, %v579
    %v581 = vpop.f32.mrb[0].mxu0
    %v582 = vadd.f32 0.0, %v581
    %v583 = vpop.f32.mrb[0].mxu0
    %v584 = vadd.f32 0.0, %v583
    %585 = vdwg.mxu0
    %586 = vmatprep.subr.bf16.mxu0 %v490
    %587 = vmatpush1.bf16.msra.mxu0 %v489
    %588 = vmatprep.subr.bf16.mxu0 %v494
    %589 = vmatpush1.bf16.msra.mxu0 %v493
    %590 = vmatprep.subr.bf16.mxu0 0
    %591 = vmatpush1.bf16.msra.mxu0 0
    %592 = vmatprep.subr.bf16.mxu0 0
    %593 = vmatpush1.bf16.msra.mxu0 0
    %594 = vmatprep.subr.bf16.mxu0 0
    %595 = vmatpush1.bf16.msra.mxu0 0
    %596 = vmatprep.subr.bf16.mxu0 0
    %597 = vmatpush1.bf16.msra.mxu0 0
    %598 = vmatprep.subr.bf16.mxu0 0
    %599 = vmatpush1.bf16.msra.mxu0 0
    %600 = vmatprep.subr.bf16.mxu0 0
    %601 = vmatpush1.bf16.msra.mxu0 0
    %602 = vmatprep.subr.bf16.mxu0 0
    %603 = vmatpush1.bf16.msra.mxu0 0
    %604 = vmatprep.subr.bf16.mxu0 0
    %605 = vmatpush1.bf16.msra.mxu0 0
    %606 = vmatprep.subr.bf16.mxu0 0
    %607 = vmatpush1.bf16.msra.mxu0 0
    %608 = vmatprep.subr.bf16.mxu0 0
    %609 = vmatpush1.bf16.msra.mxu0 0
    %610 = vmatprep.subr.bf16.mxu0 0
    %611 = vmatpush1.bf16.msra.mxu0 0
    %612 = vmatprep.subr.bf16.mxu0 0
    %613 = vmatpush1.bf16.msra.mxu0 0
    %614 = vmatprep.subr.bf16.mxu0 0
    %615 = vmatpush1.bf16.msra.mxu0 0
    %616 = vmatprep.subr.bf16.mxu0 0
    %617 = vmatpush1.bf16.msra.mxu0 0
    %618 = vmatprep.mubr.bf16.mxu0 0
    %619 = vmatmul.mubr.bf16.gmra.mrb[0].mxu0 %v235
    %v620 = vpop.f32.mrb[0].mxu0
    %v621 = vadd.f32 0.0, %v620
    %v622 = vpop.f32.mrb[0].mxu0
    %v623 = vadd.f32 0.0, %v622
    %v624 = vpop.f32.mrb[0].mxu0
    %v625 = vadd.f32 0.0, %v624
    %v626 = vpop.f32.mrb[0].mxu0
    %v627 = vadd.f32 0.0, %v626
    %628 = vmatprep.mubr.bf16.mxu0 0
    %629 = vmatmul.mubr.bf16.gmra.mrb[0].mxu0 %v238
    %v630 = vpop.f32.mrb[0].mxu0
    %v631 = vadd.f32 0.0, %v630
    %v632 = vpop.f32.mrb[0].mxu0
    %v633 = vadd.f32 0.0, %v632
    %v634 = vpop.f32.mrb[0].mxu0
    %v635 = vadd.f32 0.0, %v634
    %v636 = vpop.f32.mrb[0].mxu0
    %v637 = vadd.f32 0.0, %v636
    %638 = vmatprep.mubr.bf16.mxu0 0
    %639 = vmatmul.mubr.bf16.gmra.mrb[0].mxu0 %v241
    %v640 = vpop.f32.mrb[0].mxu0
    %v641 = vadd.f32 0.0, %v640
    %v642 = vpop.f32.mrb[0].mxu0
    %v643 = vadd.f32 0.0, %v642
    %v644 = vpop.f32.mrb[0].mxu0
    %v645 = vadd.f32 0.0, %v644
    %v646 = vpop.f32.mrb[0].mxu0
    %v647 = vadd.f32 0.0, %v646
    %648 = vmatprep.mubr.bf16.mxu0 0
    %649 = vmatmul.mubr.bf16.gmra.mrb[0].mxu0 %v244
    %v650 = vpop.f32.mrb[0].mxu0
    %v651 = vadd.f32 0.0, %v650
    %v652 = vpop.f32.mrb[0].mxu0
    %v653 = vadd.f32 0.0, %v652
    %v654 = vpop.f32.mrb[0].mxu0
    %v655 = vadd.f32 0.0, %v654
    %v656 = vpop.f32.mrb[0].mxu0
    %v657 = vadd.f32 0.0, %v656
    %658 = vmatprep.mubr.bf16.mxu0 0
    %659 = vmatmul.mubr.bf16.gmra.mrb[0].mxu0 %v247
    %v660 = vpop.f32.mrb[0].mxu0
    %v661 = vadd.f32 0.0, %v660
    %v662 = vpop.f32.mrb[0].mxu0
    %v663 = vadd.f32 0.0, %v662
    %v664 = vpop.f32.mrb[0].mxu0
    %v665 = vadd.f32 0.0, %v664
    %v666 = vpop.f32.mrb[0].mxu0
    %v667 = vadd.f32 0.0, %v666
    %668 = vdwg.mxu0
    %669 = vst [vmem:[#allocation4] sm:$0xff] %v538
    %670 = vst [vmem:[#allocation4 + $0x8] sm:$0xff] %v540
    %671 = vst [vmem:[#allocation4 + $0x10] sm:$0xff] %v621
    %672 = vst [vmem:[#allocation4 + $0x18] sm:$0xff] %v623
    %673 = vst [vmem:[#allocation4 + $0x20] sm:$0xff] %v542
    %674 = vst [vmem:[#allocation4 + $0x28] sm:$0xff] %v544
    %675 = vst [vmem:[#allocation4 + $0x30] sm:$0xff] %v625
    %676 = vst [vmem:[#allocation4 + $0x38] sm:$0xff] %v627
    %677 = vst [vmem:[#allocation4 + $0x40] sm:$0xff] %v548
    %678 = vst [vmem:[#allocation4 + $0x48] sm:$0xff] %v550
    %679 = vst [vmem:[#allocation4 + $0x50] sm:$0xff] %v631
    %680 = vst [vmem:[#allocation4 + $0x58] sm:$0xff] %v633
    %681 = vst [vmem:[#allocation4 + $0x60] sm:$0xff] %v552
    %682 = vst [vmem:[#allocation4 + $0x68] sm:$0xff] %v554
    %683 = vst [vmem:[#allocation4 + $0x70] sm:$0xff] %v635
    %684 = vst [vmem:[#allocation4 + $0x78] sm:$0xff] %v637
    %685 = vst [vmem:[#allocation4 + $0x80] sm:$0xff] %v558
    %686 = vst [vmem:[#allocation4 + $0x88] sm:$0xff] %v560
    %687 = vst [vmem:[#allocation4 + $0x90] sm:$0xff] %v641
    %688 = vst [vmem:[#allocation4 + $0x98] sm:$0xff] %v643
    %689 = vst [vmem:[#allocation4 + $0xa0] sm:$0xff] %v562
    %690 = vst [vmem:[#allocation4 + $0xa8] sm:$0xff] %v564
    %691 = vst [vmem:[#allocation4 + $0xb0] sm:$0xff] %v645
    %692 = vst [vmem:[#allocation4 + $0xb8] sm:$0xff] %v647
    %693 = vst [vmem:[#allocation4 + $0xc0] sm:$0xff] %v568
    %694 = vst [vmem:[#allocation4 + $0xc8] sm:$0xff] %v570
    %695 = vst [vmem:[#allocation4 + $0xd0] sm:$0xff] %v651
    %696 = vst [vmem:[#allocation4 + $0xd8] sm:$0xff] %v653
    %697 = vst [vmem:[#allocation4 + $0xe0] sm:$0xff] %v572
    %698 = vst [vmem:[#allocation4 + $0xe8] sm:$0xff] %v574
    %699 = vst [vmem:[#allocation4 + $0xf0] sm:$0xff] %v655
    %700 = vst [vmem:[#allocation4 + $0xf8] sm:$0xff] %v657
    %701 = vst [vmem:[#allocation4 + $0x100] sm:$0xff] %v578
    %702 = vst [vmem:[#allocation4 + $0x108] sm:$0xff] %v580
    %703 = vst [vmem:[#allocation4 + $0x110] sm:$0xff] %v661
    %704 = vst [vmem:[#allocation4 + $0x118] sm:$0xff] %v663
    %705 = vst [vmem:[#allocation4 + $0x120] sm:$0xff] %v582
    %706 = vst [vmem:[#allocation4 + $0x128] sm:$0xff] %v584
    %707 = vst [vmem:[#allocation4 + $0x130] sm:$0xff] %v665
    %708 = vst [vmem:[#allocation4 + $0x138] sm:$0xff] %v667
    %s709 = smul.u32 0, 4
    %s710 = smul.addr %s709, 8
    %s711 = scalar_lea.vmem [#allocation3], %s710
    %v712 = vld [vmem:[%s711] sm:$0xff]
    %v713 = vld [vmem:[%s711 + $0x8] sm:$0xff]
    %v714 = vld [vmem:[%s711 + $0x10] sm:$0xff]
    %v715 = vld [vmem:[%s711 + $0x18] sm:$0xff]
    %s716 = smul.u32 9, 4
    %s717 = smul.addr %s716, 8
    %s718 = scalar_lea.vmem [#allocation4], %s717
    %v719 = vld [vmem:[%s718] sm:$0xff]
    %v720 = vld [vmem:[%s718 + $0x8] sm:$0xff]
    %v721 = vld [vmem:[%s718 + $0x10] sm:$0xff]
    %v722 = vld [vmem:[%s718 + $0x18] sm:$0xff]
    %v723 = vadd.f32 %v712, %v719
    %v724 = vadd.f32 %v713, %v720
    %v725 = vadd.f32 %v714, %v721
    %v726 = vadd.f32 %v715, %v722
    %v727 = vld [vmem:[%s1] sm:$0xff]
    %s728 = scalar_lea.vmem %s1, 72
    %v729 = vld [vmem:[%s728] sm:$0xff]
    %v730 = vsel %vm127, 1, 0
    %vm731 = vcmp.eq.s32.totalorder %v730, 1
    %733 = vset.pattern.permute.xlu0 0
    %734 = vperm.xlu0 %733, %v727
    %v735 = vpop.permute.xlu0 %734
    %738 = vset.pattern.permute.xlu0 0
    %739 = vperm.xlu0 %738, %v729
    %v740 = vpop.permute.xlu0 %739
    %v742 = vsel %vm731, %v735, %v740
    %vm743 = vcmp.ne.f32.partialorder %v742, 0.0
    %v744 = vld [vmem:[#allocation10] sm:$0xff]
    %v745 = vld [vmem:[#allocation10 + $0x8] sm:$0xff]
    %v746 = vld [vmem:[#allocation10 + $0x10] sm:$0xff]
    %v747 = vld [vmem:[#allocation10 + $0x18] sm:$0xff]
    %v748 = vld [vmem:[#allocation10 + $0x20] sm:$0xff]
    %v749 = vld [vmem:[#allocation10 + $0x28] sm:$0xff]
    %v750 = vld [vmem:[#allocation10 + $0x30] sm:$0xff]
    %v751 = vld [vmem:[#allocation10 + $0x38] sm:$0xff]
    %v752 = vld [vmem:[#allocation10 + $0x40] sm:$0xff]
    %v753 = vld [vmem:[#allocation10 + $0x48] sm:$0xff]
    %v754 = vld [vmem:[#allocation10 + $0x50] sm:$0xff]
    %v755 = vld [vmem:[#allocation10 + $0x58] sm:$0xff]
    %v756 = vld [vmem:[#allocation10 + $0x60] sm:$0xff]
    %v757 = vld [vmem:[#allocation10 + $0x68] sm:$0xff]
    %v758 = vld [vmem:[#allocation10 + $0x70] sm:$0xff]
    %v759 = vld [vmem:[#allocation10 + $0x78] sm:$0xff]
    %v760 = vld [vmem:[#allocation10 + $0x80] sm:$0xff]
    %v761 = vld [vmem:[#allocation10 + $0x88] sm:$0xff]
    %v762 = vld [vmem:[#allocation10 + $0x90] sm:$0xff]
    %v763 = vld [vmem:[#allocation10 + $0x98] sm:$0xff]
    %v764 = vld [vmem:[#allocation10 + $0xa0] sm:$0xff]
    %v765 = vld [vmem:[#allocation10 + $0xa8] sm:$0xff]
    %v766 = vld [vmem:[#allocation10 + $0xb0] sm:$0xff]
    %v767 = vld [vmem:[#allocation10 + $0xb8] sm:$0xff]
    %v768 = vld [vmem:[#allocation10 + $0xc0] sm:$0xff]
    %v769 = vld [vmem:[#allocation10 + $0xc8] sm:$0xff]
    %v770 = vld [vmem:[#allocation10 + $0xd0] sm:$0xff]
    %v771 = vld [vmem:[#allocation10 + $0xd8] sm:$0xff]
    %v772 = vld [vmem:[#allocation10 + $0xe0] sm:$0xff]
    %v773 = vld [vmem:[#allocation10 + $0xe8] sm:$0xff]
    %v774 = vld [vmem:[#allocation10 + $0xf0] sm:$0xff]
    %v775 = vld [vmem:[#allocation10 + $0xf8] sm:$0xff]
    %v808 = vunpack.c.l.b16 %v744
    %v809 = vunpack.c.h.b16 %v744
    %v810 = vunpack.c.l.b16 %v745
    %v811 = vunpack.c.h.b16 %v745
    %v812 = vunpack.c.l.b16 %v746
    %v813 = vunpack.c.h.b16 %v746
    %v814 = vunpack.c.l.b16 %v747
    %v815 = vunpack.c.h.b16 %v747
    %v816 = vunpack.c.l.b16 %v748
    %v817 = vunpack.c.h.b16 %v748
    %v818 = vunpack.c.l.b16 %v749
    %v819 = vunpack.c.h.b16 %v749
    %v820 = vunpack.c.l.b16 %v750
    %v821 = vunpack.c.h.b16 %v750
    %v822 = vunpack.c.l.b16 %v751
    %v823 = vunpack.c.h.b16 %v751
    %v824 = vunpack.c.l.b16 %v752
    %v825 = vunpack.c.h.b16 %v752
    %v826 = vunpack.c.l.b16 %v753
    %v827 = vunpack.c.h.b16 %v753
    %v828 = vunpack.c.l.b16 %v754
    %v829 = vunpack.c.h.b16 %v754
    %v830 = vunpack.c.l.b16 %v755
    %v831 = vunpack.c.h.b16 %v755
    %v832 = vunpack.c.l.b16 %v756
    %v833 = vunpack.c.h.b16 %v756
    %v834 = vunpack.c.l.b16 %v757
    %v835 = vunpack.c.h.b16 %v757
    %v836 = vunpack.c.l.b16 %v758
    %v837 = vunpack.c.h.b16 %v758
    %v838 = vunpack.c.l.b16 %v759
    %v839 = vunpack.c.h.b16 %v759
    %v840 = vunpack.c.l.b16 %v760
    %v841 = vunpack.c.h.b16 %v760
    %v842 = vunpack.c.l.b16 %v761
    %v843 = vunpack.c.h.b16 %v761
    %v844 = vunpack.c.l.b16 %v762
    %v845 = vunpack.c.h.b16 %v762
    %v846 = vunpack.c.l.b16 %v763
    %v847 = vunpack.c.h.b16 %v763
    %v848 = vunpack.c.l.b16 %v764
    %v849 = vunpack.c.h.b16 %v764
    %v850 = vunpack.c.l.b16 %v765
    %v851 = vunpack.c.h.b16 %v765
    %v852 = vunpack.c.l.b16 %v766
    %v853 = vunpack.c.h.b16 %v766
    %v854 = vunpack.c.l.b16 %v767
    %v855 = vunpack.c.h.b16 %v767
    %v856 = vunpack.c.l.b16 %v768
    %v857 = vunpack.c.h.b16 %v768
    %v858 = vunpack.c.l.b16 %v769
    %v859 = vunpack.c.h.b16 %v769
    %v860 = vunpack.c.l.b16 %v770
    %v861 = vunpack.c.h.b16 %v770
    %v862 = vunpack.c.l.b16 %v771
    %v863 = vunpack.c.h.b16 %v771
    %v864 = vunpack.c.l.b16 %v772
    %v865 = vunpack.c.h.b16 %v772
    %v866 = vunpack.c.l.b16 %v773
    %v867 = vunpack.c.h.b16 %v773
    %v868 = vunpack.c.l.b16 %v774
    %v869 = vunpack.c.h.b16 %v774
    %v870 = vunpack.c.l.b16 %v775
    %v871 = vunpack.c.h.b16 %v775
    %v872 = vpack.c.b16 %v812, %v808
    %v873 = vpack.c.b16 %v813, %v809
    %v874 = vpack.c.b16 %v814, %v810
    %v875 = vpack.c.b16 %v815, %v811
    %v876 = vpack.c.b16 %v820, %v816
    %v877 = vpack.c.b16 %v821, %v817
    %v878 = vpack.c.b16 %v822, %v818
    %v879 = vpack.c.b16 %v823, %v819
    %v880 = vpack.c.b16 %v828, %v824
    %v881 = vpack.c.b16 %v829, %v825
    %v882 = vpack.c.b16 %v830, %v826
    %v883 = vpack.c.b16 %v831, %v827
    %v884 = vpack.c.b16 %v836, %v832
    %v885 = vpack.c.b16 %v837, %v833
    %v886 = vpack.c.b16 %v838, %v834
    %v887 = vpack.c.b16 %v839, %v835
    %v888 = vpack.c.b16 %v844, %v840
    %v889 = vpack.c.b16 %v845, %v841
    %v890 = vpack.c.b16 %v846, %v842
    %v891 = vpack.c.b16 %v847, %v843
    %v892 = vpack.c.b16 %v852, %v848
    %v893 = vpack.c.b16 %v853, %v849
    %v894 = vpack.c.b16 %v854, %v850
    %v895 = vpack.c.b16 %v855, %v851
    %v896 = vpack.c.b16 %v860, %v856
    %v897 = vpack.c.b16 %v861, %v857
    %v898 = vpack.c.b16 %v862, %v858
    %v899 = vpack.c.b16 %v863, %v859
    %v900 = vpack.c.b16 %v868, %v864
    %v901 = vpack.c.b16 %v869, %v865
    %v902 = vpack.c.b16 %v870, %v866
    %v903 = vpack.c.b16 %v871, %v867
    %936 = vmatprep.subr.bf16.mxu0 %v873
    %937 = vmatpush1.bf16.msra.mxu0 %v872
    %938 = vmatprep.subr.bf16.mxu0 %v877
    %939 = vmatpush1.bf16.msra.mxu0 %v876
    %940 = vmatprep.subr.bf16.mxu0 %v881
    %941 = vmatpush1.bf16.msra.mxu0 %v880
    %942 = vmatprep.subr.bf16.mxu0 %v885
    %943 = vmatpush1.bf16.msra.mxu0 %v884
    %944 = vmatprep.subr.bf16.mxu0 %v889
    %945 = vmatpush1.bf16.msra.mxu0 %v888
    %946 = vmatprep.subr.bf16.mxu0 %v893
    %947 = vmatpush1.bf16.msra.mxu0 %v892
    %948 = vmatprep.subr.bf16.mxu0 %v897
    %949 = vmatpush1.bf16.msra.mxu0 %v896
    %950 = vmatprep.subr.bf16.mxu0 %v901
    %951 = vmatpush1.bf16.msra.mxu0 %v900
    %952 = vmatprep.subr.bf16.mxu0 0
    %953 = vmatpush1.bf16.msra.mxu0 0
    %954 = vmatprep.subr.bf16.mxu0 0
    %955 = vmatpush1.bf16.msra.mxu0 0
    %956 = vmatprep.subr.bf16.mxu0 0
    %957 = vmatpush1.bf16.msra.mxu0 0
    %958 = vmatprep.subr.bf16.mxu0 0
    %959 = vmatpush1.bf16.msra.mxu0 0
    %960 = vmatprep.subr.bf16.mxu0 0
    %961 = vmatpush1.bf16.msra.mxu0 0
    %962 = vmatprep.subr.bf16.mxu0 0
    %963 = vmatpush1.bf16.msra.mxu0 0
    %964 = vmatprep.subr.bf16.mxu0 0
    %965 = vmatpush1.bf16.msra.mxu0 0
    %966 = vmatprep.subr.bf16.mxu0 0
    %967 = vmatpush1.bf16.msra.mxu0 0
    %968 = vmatprep.mubr.bf16.mxu0 0
    %969 = vmatmul.mubr.bf16.gmra.mrb[0].mxu0 0
    %v970 = vpop.f32.mrb[0].mxu0
    %v971 = vadd.f32 0.0, %v970
    %v972 = vpop.f32.mrb[0].mxu0
    %v973 = vadd.f32 0.0, %v972
    %v974 = vpop.f32.mrb[0].mxu0
    %v975 = vpop.f32.mrb[0].mxu0
    %976 = vdwg.mxu0
    %977 = vmatprep.subr.bf16.mxu0 %v875
    %978 = vmatpush1.bf16.msra.mxu0 %v874
    %979 = vmatprep.subr.bf16.mxu0 %v879
    %980 = vmatpush1.bf16.msra.mxu0 %v878
    %981 = vmatprep.subr.bf16.mxu0 %v883
    %982 = vmatpush1.bf16.msra.mxu0 %v882
    %983 = vmatprep.subr.bf16.mxu0 %v887
    %984 = vmatpush1.bf16.msra.mxu0 %v886
    %985 = vmatprep.subr.bf16.mxu0 %v891
    %986 = vmatpush1.bf16.msra.mxu0 %v890
    %987 = vmatprep.subr.bf16.mxu0 %v895
    %988 = vmatpush1.bf16.msra.mxu0 %v894
    %989 = vmatprep.subr.bf16.mxu0 %v899
    %990 = vmatpush1.bf16.msra.mxu0 %v898
    %991 = vmatprep.subr.bf16.mxu0 %v903
    %992 = vmatpush1.bf16.msra.mxu0 %v902
    %993 = vmatprep.subr.bf16.mxu0 0
    %994 = vmatpush1.bf16.msra.mxu0 0
    %995 = vmatprep.subr.bf16.mxu0 0
    %996 = vmatpush1.bf16.msra.mxu0 0
    %997 = vmatprep.subr.bf16.mxu0 0
    %998 = vmatpush1.bf16.msra.mxu0 0
    %999 = vmatprep.subr.bf16.mxu0 0
    %1000 = vmatpush1.bf16.msra.mxu0 0
    %1001 = vmatprep.subr.bf16.mxu0 0
    %1002 = vmatpush1.bf16.msra.mxu0 0
    %1003 = vmatprep.subr.bf16.mxu0 0
    %1004 = vmatpush1.bf16.msra.mxu0 0
    %1005 = vmatprep.subr.bf16.mxu0 0
    %1006 = vmatpush1.bf16.msra.mxu0 0
    %1007 = vmatprep.subr.bf16.mxu0 0
    %1008 = vmatpush1.bf16.msra.mxu0 0
    %1009 = vmatprep.mubr.bf16.mxu0 0
    %1010 = vmatmul.mubr.bf16.gmra.mrb[0].mxu0 0
    %v1011 = vpop.f32.mrb[0].mxu0
    %v1012 = vadd.f32 0.0, %v1011
    %v1013 = vpop.f32.mrb[0].mxu0
    %v1014 = vadd.f32 0.0, %v1013
    %v1015 = vpop.f32.mrb[0].mxu0
    %v1016 = vpop.f32.mrb[0].mxu0
    %1017 = vdwg.mxu0
    %v1018 = vadd.f32 %v723, %v971
    %v1019 = vadd.f32 %v724, %v973
    %v1020 = vadd.f32 %v725, %v1012
    %v1021 = vadd.f32 %v726, %v1014
    %v1022 = vxor.u32 %v1018, 2147483648
    %v1023 = vxor.u32 %v1019, 2147483648
    %v1024 = vxor.u32 %v1020, 2147483648
    %v1025 = vmul.f32 %v1022, 1.442695
    %v1026 = vpow.pop %v1025
    %v1027 = vmul.f32 %v1023, 1.442695
    %v1028 = vpow.pop %v1027
    %v1029 = vmul.f32 %v1024, 1.442695
    %v1030 = vpow.pop %v1029
    %v1031 = vadd.f32 %v1026, 1.0
    %v1032 = vadd.f32 %v1028, 1.0
    %v1033 = vadd.f32 %v1030, 1.0
    %v1034 = vrcp.pop %v1031
    %v1035 = vmul.f32 1.0, %v1034
    %v1036 = vrcp.pop %v1032
    %v1037 = vmul.f32 1.0, %v1036
    %v1038 = vrcp.pop %v1033
    %v1039 = vmul.f32 1.0, %v1038
    %v1040 = vtanh.pop %v1021
    %v1041 = vmul.f32 %v1037, 0.0
    %v1042 = vmul.f32 %v1035, %v1040
    %v1043 = vadd.f32 %v1041, %v1042
    %v1044 = vtanh.pop %v1043
    %v1045 = vmul.f32 %v1039, %v1044
    %v1046 = vsel %vm743, %v1045, 0.0
    %v1047 = vsel %vm743, %v1043, 0.0
    %vm1048 = vcmask 523264
    %1049 = vst.msk [vmem:[#allocation2] sm:$0xff] %vm1048, %v1046
    %s1050 = scalar_lea.vmem [#allocation2], 72
    %vm1051 = vcmask 1048064
    %1052 = vst.msk [vmem:[%s1050] sm:$0xff] %vm1051, %v1046
    %s1053 = smul.u32 1, 4
    %s1054 = smul.addr %s1053, 8
    %s1055 = scalar_lea.vmem [#allocation3], %s1054
    %v1056 = vld [vmem:[%s1055] sm:$0xff]
    %v1057 = vld [vmem:[%s1055 + $0x8] sm:$0xff]
    %v1058 = vld [vmem:[%s1055 + $0x10] sm:$0xff]
    %v1059 = vld [vmem:[%s1055 + $0x18] sm:$0xff]
    %s1060 = smul.u32 8, 4
    %s1061 = smul.addr %s1060, 8
    %s1062 = scalar_lea.vmem [#allocation4], %s1061
    %v1063 = vld [vmem:[%s1062] sm:$0xff]
    %v1064 = vld [vmem:[%s1062 + $0x8] sm:$0xff]
    %v1065 = vld [vmem:[%s1062 + $0x10] sm:$0xff]
    %v1066 = vld [vmem:[%s1062 + $0x18] sm:$0xff]
    %v1067 = vadd.f32 %v1056, %v1063
    %v1068 = vadd.f32 %v1057, %v1064
    %v1069 = vadd.f32 %v1058, %v1065
    %v1070 = vadd.f32 %v1059, %v1066
    %s1071 = scalar_lea.vmem %s1, 8
    %v1072 = vld [vmem:[%s1071] sm:$0xff]
    %s1073 = scalar_lea.vmem %s1, 64
    %v1074 = vld [vmem:[%s1073] sm:$0xff]
    %1076 = vset.pattern.permute.xlu0 0
    %1077 = vperm.xlu0 %1076, %v1072
    %v1078 = vpop.permute.xlu0 %1077
    %1081 = vset.pattern.permute.xlu0 0
    %1082 = vperm.xlu0 %1081, %v1074
    %v1083 = vpop.permute.xlu0 %1082
    %v1085 = vsel %vm731, %v1078, %v1083
    %vm1086 = vcmp.ne.f32.partialorder %v1085, 0.0
    %v1087 = vpack.c.bf16 %v1046, %v1046
    %v1088 = vld [vmem:[#allocation10] sm:$0xff]
    %v1089 = vld [vmem:[#allocation10 + $0x8] sm:$0xff]
    %v1090 = vld [vmem:[#allocation10 + $0x10] sm:$0xff]
    %v1091 = vld [vmem:[#allocation10 + $0x18] sm:$0xff]
    %v1092 = vld [vmem:[#allocation10 + $0x20] sm:$0xff]
    %v1093 = vld [vmem:[#allocation10 + $0x28] sm:$0xff]
    %v1094 = vld [vmem:[#allocation10 + $0x30] sm:$0xff]
    %v1095 = vld [vmem:[#allocation10 + $0x38] sm:$0xff]
    %v1096 = vld [vmem:[#allocation10 + $0x40] sm:$0xff]
    %v1097 = vld [vmem:[#allocation10 + $0x48] sm:$0xff]
    %v1098 = vld [vmem:[#allocation10 + $0x50] sm:$0xff]
    %v1099 = vld [vmem:[#allocation10 + $0x58] sm:$0xff]
    %v1100 = vld [vmem:[#allocation10 + $0x60] sm:$0xff]
    %v1101 = vld [vmem:[#allocation10 + $0x68] sm:$0xff]
    %v1102 = vld [vmem:[#allocation10 + $0x70] sm:$0xff]
    %v1103 = vld [vmem:[#allocation10 + $0x78] sm:$0xff]
    %v1104 = vld [vmem:[#allocation10 + $0x80] sm:$0xff]
    %v1105 = vld [vmem:[#allocation10 + $0x88] sm:$0xff]
    %v1106 = vld [vmem:[#allocation10 + $0x90] sm:$0xff]
    %v1107 = vld [vmem:[#allocation10 + $0x98] sm:$0xff]
    %v1108 = vld [vmem:[#allocation10 + $0xa0] sm:$0xff]
    %v1109 = vld [vmem:[#allocation10 + $0xa8] sm:$0xff]
    %v1110 = vld [vmem:[#allocation10 + $0xb0] sm:$0xff]
    %v1111 = vld [vmem:[#allocation10 + $0xb8] sm:$0xff]
    %v1112 = vld [vmem:[#allocation10 + $0xc0] sm:$0xff]
    %v1113 = vld [vmem:[#allocation10 + $0xc8] sm:$0xff]
    %v1114 = vld [vmem:[#allocation10 + $0xd0] sm:$0xff]
    %v1115 = vld [vmem:[#allocation10 + $0xd8] sm:$0xff]
    %v1116 = vld [vmem:[#allocation10 + $0xe0] sm:$0xff]
    %v1117 = vld [vmem:[#allocation10 + $0xe8] sm:$0xff]
    %v1118 = vld [vmem:[#allocation10 + $0xf0] sm:$0xff]
    %v1119 = vld [vmem:[#allocation10 + $0xf8] sm:$0xff]
    %v1152 = vunpack.c.l.b16 %v1088
    %v1153 = vunpack.c.h.b16 %v1088
    %v1154 = vunpack.c.l.b16 %v1089
    %v1155 = vunpack.c.h.b16 %v1089
    %v1156 = vunpack.c.l.b16 %v1090
    %v1157 = vunpack.c.h.b16 %v1090
    %v1158 = vunpack.c.l.b16 %v1091
    %v1159 = vunpack.c.h.b16 %v1091
    %v1160 = vunpack.c.l.b16 %v1092
    %v1161 = vunpack.c.h.b16 %v1092
    %v1162 = vunpack.c.l.b16 %v1093
    %v1163 = vunpack.c.h.b16 %v1093
    %v1164 = vunpack.c.l.b16 %v1094
    %v1165 = vunpack.c.h.b16 %v1094
    %v1166 = vunpack.c.l.b16 %v1095
    %v1167 = vunpack.c.h.b16 %v1095
    %v1168 = vunpack.c.l.b16 %v1096
    %v1169 = vunpack.c.h.b16 %v1096
    %v1170 = vunpack.c.l.b16 %v1097
    %v1171 = vunpack.c.h.b16 %v1097
    %v1172 = vunpack.c.l.b16 %v1098
    %v1173 = vunpack.c.h.b16 %v1098
    %v1174 = vunpack.c.l.b16 %v1099
    %v1175 = vunpack.c.h.b16 %v1099
    %v1176 = vunpack.c.l.b16 %v1100
    %v1177 = vunpack.c.h.b16 %v1100
    %v1178 = vunpack.c.l.b16 %v1101
    %v1179 = vunpack.c.h.b16 %v1101
    %v1180 = vunpack.c.l.b16 %v1102
    %v1181 = vunpack.c.h.b16 %v1102
    %v1182 = vunpack.c.l.b16 %v1103
    %v1183 = vunpack.c.h.b16 %v1103
    %v1184 = vunpack.c.l.b16 %v1104
    %v1185 = vunpack.c.h.b16 %v1104
    %v1186 = vunpack.c.l.b16 %v1105
    %v1187 = vunpack.c.h.b16 %v1105
    %v1188 = vunpack.c.l.b16 %v1106
    %v1189 = vunpack.c.h.b16 %v1106
    %v1190 = vunpack.c.l.b16 %v1107
    %v1191 = vunpack.c.h.b16 %v1107
    %v1192 = vunpack.c.l.b16 %v1108
    %v1193 = vunpack.c.h.b16 %v1108
    %v1194 = vunpack.c.l.b16 %v1109
    %v1195 = vunpack.c.h.b16 %v1109
    %v1196 = vunpack.c.l.b16 %v1110
    %v1197 = vunpack.c.h.b16 %v1110
    %v1198 = vunpack.c.l.b16 %v1111
    %v1199 = vunpack.c.h.b16 %v1111
    %v1200 = vunpack.c.l.b16 %v1112
    %v1201 = vunpack.c.h.b16 %v1112
    %v1202 = vunpack.c.l.b16 %v1113
    %v1203 = vunpack.c.h.b16 %v1113
    %v1204 = vunpack.c.l.b16 %v1114
    %v1205 = vunpack.c.h.b16 %v1114
    %v1206 = vunpack.c.l.b16 %v1115
    %v1207 = vunpack.c.h.b16 %v1115
    %v1208 = vunpack.c.l.b16 %v1116
    %v1209 = vunpack.c.h.b16 %v1116
    %v1210 = vunpack.c.l.b16 %v1117
    %v1211 = vunpack.c.h.b16 %v1117
    %v1212 = vunpack.c.l.b16 %v1118
    %v1213 = vunpack.c.h.b16 %v1118
    %v1214 = vunpack.c.l.b16 %v1119
    %v1215 = vunpack.c.h.b16 %v1119
    %v1216 = vpack.c.b16 %v1156, %v1152
    %v1217 = vpack.c.b16 %v1157, %v1153
    %v1218 = vpack.c.b16 %v1158, %v1154
    %v1219 = vpack.c.b16 %v1159, %v1155
    %v1220 = vpack.c.b16 %v1164, %v1160
    %v1221 = vpack.c.b16 %v1165, %v1161
    %v1222 = vpack.c.b16 %v1166, %v1162
    %v1223 = vpack.c.b16 %v1167, %v1163
    %v1224 = vpack.c.b16 %v1172, %v1168
    %v1225 = vpack.c.b16 %v1173, %v1169
    %v1226 = vpack.c.b16 %v1174, %v1170
    %v1227 = vpack.c.b16 %v1175, %v1171
    %v1228 = vpack.c.b16 %v1180, %v1176
    %v1229 = vpack.c.b16 %v1181, %v1177
    %v1230 = vpack.c.b16 %v1182, %v1178
    %v1231 = vpack.c.b16 %v1183, %v1179
    %v1232 = vpack.c.b16 %v1188, %v1184
    %v1233 = vpack.c.b16 %v1189, %v1185
    %v1234 = vpack.c.b16 %v1190, %v1186
    %v1235 = vpack.c.b16 %v1191, %v1187
    %v1236 = vpack.c.b16 %v1196, %v1192
    %v1237 = vpack.c.b16 %v1197, %v1193
    %v1238 = vpack.c.b16 %v1198, %v1194
    %v1239 = vpack.c.b16 %v1199, %v1195
    %v1240 = vpack.c.b16 %v1204, %v1200
    %v1241 = vpack.c.b16 %v1205, %v1201
    %v1242 = vpack.c.b16 %v1206, %v1202
    %v1243 = vpack.c.b16 %v1207, %v1203
    %v1244 = vpack.c.b16 %v1212, %v1208
    %v1245 = vpack.c.b16 %v1213, %v1209
    %v1246 = vpack.c.b16 %v1214, %v1210
    %v1247 = vpack.c.b16 %v1215, %v1211
    %1280 = vmatprep.subr.bf16.mxu0 %v1217
    %1281 = vmatpush1.bf16.msra.mxu0 %v1216
    %1282 = vmatprep.subr.bf16.mxu0 %v1221
    %1283 = vmatpush1.bf16.msra.mxu0 %v1220
    %1284 = vmatprep.subr.bf16.mxu0 %v1225
    %1285 = vmatpush1.bf16.msra.mxu0 %v1224
    %1286 = vmatprep.subr.bf16.mxu0 %v1229
    %1287 = vmatpush1.bf16.msra.mxu0 %v1228
    %1288 = vmatprep.subr.bf16.mxu0 %v1233
    %1289 = vmatpush1.bf16.msra.mxu0 %v1232
    %1290 = vmatprep.subr.bf16.mxu0 %v1237
    %1291 = vmatpush1.bf16.msra.mxu0 %v1236
    %1292 = vmatprep.subr.bf16.mxu0 %v1241
    %1293 = vmatpush1.bf16.msra.mxu0 %v1240
    %1294 = vmatprep.subr.bf16.mxu0 %v1245
    %1295 = vmatpush1.bf16.msra.mxu0 %v1244
    %1296 = vmatprep.subr.bf16.mxu0 0
    %1297 = vmatpush1.bf16.msra.mxu0 0
    %1298 = vmatprep.subr.bf16.mxu0 0
    %1299 = vmatpush1.bf16.msra.mxu0 0
    %1300 = vmatprep.subr.bf16.mxu0 0
    %1301 = vmatpush1.bf16.msra.mxu0 0
    %1302 = vmatprep.subr.bf16.mxu0 0
    %1303 = vmatpush1.bf16.msra.mxu0 0
    %1304 = vmatprep.subr.bf16.mxu0 0
    %1305 = vmatpush1.bf16.msra.mxu0 0
    %1306 = vmatprep.subr.bf16.mxu0 0
    %1307 = vmatpush1.bf16.msra.mxu0 0
    %1308 = vmatprep.subr.bf16.mxu0 0
    %1309 = vmatpush1.bf16.msra.mxu0 0
    %1310 = vmatprep.subr.bf16.mxu0 0
    %1311 = vmatpush1.bf16.msra.mxu0 0
    %1312 = vmatprep.mubr.bf16.mxu0 0
    %1313 = vmatmul.mubr.bf16.gmra.mrb[0].mxu0 %v1087
    %v1314 = vpop.f32.mrb[0].mxu0
    %v1315 = vadd.f32 0.0, %v1314
    %v1316 = vpop.f32.mrb[0].mxu0
    %v1317 = vadd.f32 0.0, %v1316
    %v1318 = vpop.f32.mrb[0].mxu0
    %v1319 = vpop.f32.mrb[0].mxu0
    %1320 = vdwg.mxu0
    %1321 = vmatprep.subr.bf16.mxu0 %v1219
    %1322 = vmatpush1.bf16.msra.mxu0 %v1218
    %1323 = vmatprep.subr.bf16.mxu0 %v1223
    %1324 = vmatpush1.bf16.msra.mxu0 %v1222
    %1325 = vmatprep.subr.bf16.mxu0 %v1227
    %1326 = vmatpush1.bf16.msra.mxu0 %v1226
    %1327 = vmatprep.subr.bf16.mxu0 %v1231
    %1328 = vmatpush1.bf16.msra.mxu0 %v1230
    %1329 = vmatprep.subr.bf16.mxu0 %v1235
    %1330 = vmatpush1.bf16.msra.mxu0 %v1234
    %1331 = vmatprep.subr.bf16.mxu0 %v1239
    %1332 = vmatpush1.bf16.msra.mxu0 %v1238
    %1333 = vmatprep.subr.bf16.mxu0 %v1243
    %1334 = vmatpush1.bf16.msra.mxu0 %v1242
    %1335 = vmatprep.subr.bf16.mxu0 %v1247
    %1336 = vmatpush1.bf16.msra.mxu0 %v1246
    %1337 = vmatprep.subr.bf16.mxu0 0
    %1338 = vmatpush1.bf16.msra.mxu0 0
    %1339 = vmatprep.subr.bf16.mxu0 0
    %1340 = vmatpush1.bf16.msra.mxu0 0
    %1341 = vmatprep.subr.bf16.mxu0 0
    %1342 = vmatpush1.bf16.msra.mxu0 0
    %1343 = vmatprep.subr.bf16.mxu0 0
    %1344 = vmatpush1.bf16.msra.mxu0 0
    %1345 = vmatprep.subr.bf16.mxu0 0
    %1346 = vmatpush1.bf16.msra.mxu0 0
    %1347 = vmatprep.subr.bf16.mxu0 0
    %1348 = vmatpush1.bf16.msra.mxu0 0
    %1349 = vmatprep.subr.bf16.mxu0 0
    %1350 = vmatpush1.bf16.msra.mxu0 0
    %1351 = vmatprep.subr.bf16.mxu0 0
    %1352 = vmatpush1.bf16.msra.mxu0 0
    %1353 = vmatprep.mubr.bf16.mxu0 0
    %1354 = vmatmul.mubr.bf16.gmra.mrb[0].mxu0 %v1087
    %v1355 = vpop.f32.mrb[0].mxu0
    %v1356 = vadd.f32 0.0, %v1355
    %v1357 = vpop.f32.mrb[0].mxu0
    %v1358 = vadd.f32 0.0, %v1357
    %v1359 = vpop.f32.mrb[0].mxu0
    %v1360 = vpop.f32.mrb[0].mxu0
    %1361 = vdwg.mxu0
    %v1362 = vadd.f32 %v1067, %v1315
    %v1363 = vadd.f32 %v1068, %v1317
    %v1364 = vadd.f32 %v1069, %v1356
    %v1365 = vadd.f32 %v1070, %v1358
    %v1366 = vxor.u32 %v1362, 2147483648
    %v1367 = vxor.u32 %v1363, 2147483648
    %v1368 = vxor.u32 %v1364, 2147483648
    %v1369 = vmul.f32 %v1366, 1.442695
    %v1370 = vpow.pop %v1369
    %v1371 = vmul.f32 %v1367, 1.442695
    %v1372 = vpow.pop %v1371
    %v1373 = vmul.f32 %v1368, 1.442695
    %v1374 = vpow.pop %v1373
    %v1375 = vadd.f32 %v1370, 1.0
    %v1376 = vadd.f32 %v1372, 1.0
    %v1377 = vadd.f32 %v1374, 1.0
    %v1378 = vrcp.pop %v1375
    %v1379 = vmul.f32 1.0, %v1378
    %v1380 = vrcp.pop %v1376
    %v1381 = vmul.f32 1.0, %v1380
    %v1382 = vrcp.pop %v1377
    %v1383 = vmul.f32 1.0, %v1382
    %v1384 = vtanh.pop %v1365
    %v1385 = vmul.f32 %v1381, %v1047
    %v1386 = vmul.f32 %v1379, %v1384
    %v1387 = vadd.f32 %v1385, %v1386
    %v1388 = vtanh.pop %v1387
    %v1389 = vmul.f32 %v1383, %v1388
    %v1390 = vsel %vm1086, %v1389, %v1046
    %v1391 = vsel %vm1086, %v1387, %v1047
    %s1392 = scalar_lea.vmem [#allocation2], 8
    %1393 = vst.msk [vmem:[%s1392] sm:$0xff] %vm1048, %v1390
    %s1394 = scalar_lea.vmem [#allocation2], 64
    %1395 = vst.msk [vmem:[%s1394] sm:$0xff] %vm1051, %v1390
    %s1396 = smul.u32 2, 4
    %s1397 = smul.addr %s1396, 8
    %s1398 = scalar_lea.vmem [#allocation3], %s1397
    %v1399 = vld [vmem:[%s1398] sm:$0xff]
    %v1400 = vld [vmem:[%s1398 + $0x8] sm:$0xff]
    %v1401 = vld [vmem:[%s1398 + $0x10] sm:$0xff]
    %v1402 = vld [vmem:[%s1398 + $0x18] sm:$0xff]
    %s1403 = smul.u32 7, 4
    %s1404 = smul.addr %s1403, 8
    %s1405 = scalar_lea.vmem [#allocation4], %s1404
    %v1406 = vld [vmem:[%s1405] sm:$0xff]
    %v1407 = vld [vmem:[%s1405 + $0x8] sm:$0xff]
    %v1408 = vld [vmem:[%s1405 + $0x10] sm:$0xff]
    %v1409 = vld [vmem:[%s1405 + $0x18] sm:$0xff]
    %v1410 = vadd.f32 %v1399, %v1406
    %v1411 = vadd.f32 %v1400, %v1407
    %v1412 = vadd.f32 %v1401, %v1408
    %v1413 = vadd.f32 %v1402, %v1409
    %s1414 = scalar_lea.vmem %s1, 16
    %v1415 = vld [vmem:[%s1414] sm:$0xff]
    %s1416 = scalar_lea.vmem %s1, 56
    %v1417 = vld [vmem:[%s1416] sm:$0xff]
    %1419 = vset.pattern.permute.xlu0 0
    %1420 = vperm.xlu0 %1419, %v1415
    %v1421 = vpop.permute.xlu0 %1420
    %1424 = vset.pattern.permute.xlu0 0
    %1425 = vperm.xlu0 %1424, %v1417
    %v1426 = vpop.permute.xlu0 %1425
    %v1428 = vsel %vm731, %v1421, %v1426
    %vm1429 = vcmp.ne.f32.partialorder %v1428, 0.0
    %v1430 = vpack.c.bf16 %v1390, %v1390
    %v1431 = vld [vmem:[#allocation10] sm:$0xff]
    %v1432 = vld [vmem:[#allocation10 + $0x8] sm:$0xff]
    %v1433 = vld [vmem:[#allocation10 + $0x10] sm:$0xff]
    %v1434 = vld [vmem:[#allocation10 + $0x18] sm:$0xff]
    %v1435 = vld [vmem:[#allocation10 + $0x20] sm:$0xff]
    %v1436 = vld [vmem:[#allocation10 + $0x28] sm:$0xff]
    %v1437 = vld [vmem:[#allocation10 + $0x30] sm:$0xff]
    %v1438 = vld [vmem:[#allocation10 + $0x38] sm:$0xff]
    %v1439 = vld [vmem:[#allocation10 + $0x40] sm:$0xff]
    %v1440 = vld [vmem:[#allocation10 + $0x48] sm:$0xff]
    %v1441 = vld [vmem:[#allocation10 + $0x50] sm:$0xff]
    %v1442 = vld [vmem:[#allocation10 + $0x58] sm:$0xff]
    %v1443 = vld [vmem:[#allocation10 + $0x60] sm:$0xff]
    %v1444 = vld [vmem:[#allocation10 + $0x68] sm:$0xff]
    %v1445 = vld [vmem:[#allocation10 + $0x70] sm:$0xff]
    %v1446 = vld [vmem:[#allocation10 + $0x78] sm:$0xff]
    %v1447 = vld [vmem:[#allocation10 + $0x80] sm:$0xff]
    %v1448 = vld [vmem:[#allocation10 + $0x88] sm:$0xff]
    %v1449 = vld [vmem:[#allocation10 + $0x90] sm:$0xff]
    %v1450 = vld [vmem:[#allocation10 + $0x98] sm:$0xff]
    %v1451 = vld [vmem:[#allocation10 + $0xa0] sm:$0xff]
    %v1452 = vld [vmem:[#allocation10 + $0xa8] sm:$0xff]
    %v1453 = vld [vmem:[#allocation10 + $0xb0] sm:$0xff]
    %v1454 = vld [vmem:[#allocation10 + $0xb8] sm:$0xff]
    %v1455 = vld [vmem:[#allocation10 + $0xc0] sm:$0xff]
    %v1456 = vld [vmem:[#allocation10 + $0xc8] sm:$0xff]
    %v1457 = vld [vmem:[#allocation10 + $0xd0] sm:$0xff]
    %v1458 = vld [vmem:[#allocation10 + $0xd8] sm:$0xff]
    %v1459 = vld [vmem:[#allocation10 + $0xe0] sm:$0xff]
    %v1460 = vld [vmem:[#allocation10 + $0xe8] sm:$0xff]
    %v1461 = vld [vmem:[#allocation10 + $0xf0] sm:$0xff]
    %v1462 = vld [vmem:[#allocation10 + $0xf8] sm:$0xff]
    %v1495 = vunpack.c.l.b16 %v1431
    %v1496 = vunpack.c.h.b16 %v1431
    %v1497 = vunpack.c.l.b16 %v1432
    %v1498 = vunpack.c.h.b16 %v1432
    %v1499 = vunpack.c.l.b16 %v1433
    %v1500 = vunpack.c.h.b16 %v1433
    %v1501 = vunpack.c.l.b16 %v1434
    %v1502 = vunpack.c.h.b16 %v1434
    %v1503 = vunpack.c.l.b16 %v1435
    %v1504 = vunpack.c.h.b16 %v1435
    %v1505 = vunpack.c.l.b16 %v1436
    %v1506 = vunpack.c.h.b16 %v1436
    %v1507 = vunpack.c.l.b16 %v1437
    %v1508 = vunpack.c.h.b16 %v1437
    %v1509 = vunpack.c.l.b16 %v1438
    %v1510 = vunpack.c.h.b16 %v1438
    %v1511 = vunpack.c.l.b16 %v1439
    %v1512 = vunpack.c.h.b16 %v1439
    %v1513 = vunpack.c.l.b16 %v1440
    %v1514 = vunpack.c.h.b16 %v1440
    %v1515 = vunpack.c.l.b16 %v1441
    %v1516 = vunpack.c.h.b16 %v1441
    %v1517 = vunpack.c.l.b16 %v1442
    %v1518 = vunpack.c.h.b16 %v1442
    %v1519 = vunpack.c.l.b16 %v1443
    %v1520 = vunpack.c.h.b16 %v1443
    %v1521 = vunpack.c.l.b16 %v1444
    %v1522 = vunpack.c.h.b16 %v1444
    %v1523 = vunpack.c.l.b16 %v1445
    %v1524 = vunpack.c.h.b16 %v1445
    %v1525 = vunpack.c.l.b16 %v1446
    %v1526 = vunpack.c.h.b16 %v1446
    %v1527 = vunpack.c.l.b16 %v1447
    %v1528 = vunpack.c.h.b16 %v1447
    %v1529 = vunpack.c.l.b16 %v1448
    %v1530 = vunpack.c.h.b16 %v1448
    %v1531 = vunpack.c.l.b16 %v1449
    %v1532 = vunpack.c.h.b16 %v1449
    %v1533 = vunpack.c.l.b16 %v1450
    %v1534 = vunpack.c.h.b16 %v1450
    %v1535 = vunpack.c.l.b16 %v1451
    %v1536 = vunpack.c.h.b16 %v1451
    %v1537 = vunpack.c.l.b16 %v1452
    %v1538 = vunpack.c.h.b16 %v1452
    %v1539 = vunpack.c.l.b16 %v1453
    %v1540 = vunpack.c.h.b16 %v1453
    %v1541 = vunpack.c.l.b16 %v1454
    %v1542 = vunpack.c.h.b16 %v1454
    %v1543 = vunpack.c.l.b16 %v1455
    %v1544 = vunpack.c.h.b16 %v1455
    %v1545 = vunpack.c.l.b16 %v1456
    %v1546 = vunpack.c.h.b16 %v1456
    %v1547 = vunpack.c.l.b16 %v1457
    %v1548 = vunpack.c.h.b16 %v1457
    %v1549 = vunpack.c.l.b16 %v1458
    %v1550 = vunpack.c.h.b16 %v1458
    %v1551 = vunpack.c.l.b16 %v1459
    %v1552 = vunpack.c.h.b16 %v1459
    %v1553 = vunpack.c.l.b16 %v1460
    %v1554 = vunpack.c.h.b16 %v1460
    %v1555 = vunpack.c.l.b16 %v1461
    %v1556 = vunpack.c.h.b16 %v1461
    %v1557 = vunpack.c.l.b16 %v1462
    %v1558 = vunpack.c.h.b16 %v1462
    %v1559 = vpack.c.b16 %v1499, %v1495
    %v1560 = vpack.c.b16 %v1500, %v1496
    %v1561 = vpack.c.b16 %v1501, %v1497
    %v1562 = vpack.c.b16 %v1502, %v1498
    %v1563 = vpack.c.b16 %v1507, %v1503
    %v1564 = vpack.c.b16 %v1508, %v1504
    %v1565 = vpack.c.b16 %v1509, %v1505
    %v1566 = vpack.c.b16 %v1510, %v1506
    %v1567 = vpack.c.b16 %v1515, %v1511
    %v1568 = vpack.c.b16 %v1516, %v1512
    %v1569 = vpack.c.b16 %v1517, %v1513
    %v1570 = vpack.c.b16 %v1518, %v1514
    %v1571 = vpack.c.b16 %v1523, %v1519
    %v1572 = vpack.c.b16 %v1524, %v1520
    %v1573 = vpack.c.b16 %v1525, %v1521
    %v1574 = vpack.c.b16 %v1526, %v1522
    %v1575 = vpack.c.b16 %v1531, %v1527
    %v1576 = vpack.c.b16 %v1532, %v1528
    %v1577 = vpack.c.b16 %v1533, %v1529
    %v1578 = vpack.c.b16 %v1534, %v1530
    %v1579 = vpack.c.b16 %v1539, %v1535
    %v1580 = vpack.c.b16 %v1540, %v1536
    %v1581 = vpack.c.b16 %v1541, %v1537
    %v1582 = vpack.c.b16 %v1542, %v1538
    %v1583 = vpack.c.b16 %v1547, %v1543
    %v1584 = vpack.c.b16 %v1548, %v1544
    %v1585 = vpack.c.b16 %v1549, %v1545
    %v1586 = vpack.c.b16 %v1550, %v1546
    %v1587 = vpack.c.b16 %v1555, %v1551
    %v1588 = vpack.c.b16 %v1556, %v1552
    %v1589 = vpack.c.b16 %v1557, %v1553
    %v1590 = vpack.c.b16 %v1558, %v1554
    %1623 = vmatprep.subr.bf16.mxu0 %v1560
    %1624 = vmatpush1.bf16.msra.mxu0 %v1559
    %1625 = vmatprep.subr.bf16.mxu0 %v1564
    %1626 = vmatpush1.bf16.msra.mxu0 %v1563
    %1627 = vmatprep.subr.bf16.mxu0 %v1568
    %1628 = vmatpush1.bf16.msra.mxu0 %v1567
    %1629 = vmatprep.subr.bf16.mxu0 %v1572
    %1630 = vmatpush1.bf16.msra.mxu0 %v1571
    %1631 = vmatprep.subr.bf16.mxu0 %v1576
    %1632 = vmatpush1.bf16.msra.mxu0 %v1575
    %1633 = vmatprep.subr.bf16.mxu0 %v1580
    %1634 = vmatpush1.bf16.msra.mxu0 %v1579
    %1635 = vmatprep.subr.bf16.mxu0 %v1584
    %1636 = vmatpush1.bf16.msra.mxu0 %v1583
    %1637 = vmatprep.subr.bf16.mxu0 %v1588
    %1638 = vmatpush1.bf16.msra.mxu0 %v1587
    %1639 = vmatprep.subr.bf16.mxu0 0
    %1640 = vmatpush1.bf16.msra.mxu0 0
    %1641 = vmatprep.subr.bf16.mxu0 0
    %1642 = vmatpush1.bf16.msra.mxu0 0
    %1643 = vmatprep.subr.bf16.mxu0 0
    %1644 = vmatpush1.bf16.msra.mxu0 0
    %1645 = vmatprep.subr.bf16.mxu0 0
    %1646 = vmatpush1.bf16.msra.mxu0 0
    %1647 = vmatprep.subr.bf16.mxu0 0
    %1648 = vmatpush1.bf16.msra.mxu0 0
    %1649 = vmatprep.subr.bf16.mxu0 0
    %1650 = vmatpush1.bf16.msra.mxu0 0
    %1651 = vmatprep.subr.bf16.mxu0 0
    %1652 = vmatpush1.bf16.msra.mxu0 0
    %1653 = vmatprep.subr.bf16.mxu0 0
    %1654 = vmatpush1.bf16.msra.mxu0 0
    %1655 = vmatprep.mubr.bf16.mxu0 0
    %1656 = vmatmul.mubr.bf16.gmra.mrb[0].mxu0 %v1430
    %v1657 = vpop.f32.mrb[0].mxu0
    %v1658 = vadd.f32 0.0, %v1657
    %v1659 = vpop.f32.mrb[0].mxu0
    %v1660 = vadd.f32 0.0, %v1659
    %v1661 = vpop.f32.mrb[0].mxu0
    %v1662 = vpop.f32.mrb[0].mxu0
    %1663 = vdwg.mxu0
    %1664 = vmatprep.subr.bf16.mxu0 %v1562
    %1665 = vmatpush1.bf16.msra.mxu0 %v1561
    %1666 = vmatprep.subr.bf16.mxu0 %v1566
    %1667 = vmatpush1.bf16.msra.mxu0 %v1565
    %1668 = vmatprep.subr.bf16.mxu0 %v1570
    %1669 = vmatpush1.bf16.msra.mxu0 %v1569
    %1670 = vmatprep.subr.bf16.mxu0 %v1574
    %1671 = vmatpush1.bf16.msra.mxu0 %v1573
    %1672 = vmatprep.subr.bf16.mxu0 %v1578
    %1673 = vmatpush1.bf16.msra.mxu0 %v1577
    %1674 = vmatprep.subr.bf16.mxu0 %v1582
    %1675 = vmatpush1.bf16.msra.mxu0 %v1581
    %1676 = vmatprep.subr.bf16.mxu0 %v1586
    %1677 = vmatpush1.bf16.msra.mxu0 %v1585
    %1678 = vmatprep.subr.bf16.mxu0 %v1590
    %1679 = vmatpush1.bf16.msra.mxu0 %v1589
    %1680 = vmatprep.subr.bf16.mxu0 0
    %1681 = vmatpush1.bf16.msra.mxu0 0
    %1682 = vmatprep.subr.bf16.mxu0 0
    %1683 = vmatpush1.bf16.msra.mxu0 0
    %1684 = vmatprep.subr.bf16.mxu0 0
    %1685 = vmatpush1.bf16.msra.mxu0 0
    %1686 = vmatprep.subr.bf16.mxu0 0
    %1687 = vmatpush1.bf16.msra.mxu0 0
    %1688 = vmatprep.subr.bf16.mxu0 0
    %1689 = vmatpush1.bf16.msra.mxu0 0
    %1690 = vmatprep.subr.bf16.mxu0 0
    %1691 = vmatpush1.bf16.msra.mxu0 0
    %1692 = vmatprep.subr.bf16.mxu0 0
    %1693 = vmatpush1.bf16.msra.mxu0 0
    %1694 = vmatprep.subr.bf16.mxu0 0
    %1695 = vmatpush1.bf16.msra.mxu0 0
    %1696 = vmatprep.mubr.bf16.mxu0 0
    %1697 = vmatmul.mubr.bf16.gmra.mrb[0].mxu0 %v1430
    %v1698 = vpop.f32.mrb[0].mxu0
    %v1699 = vadd.f32 0.0, %v1698
    %v1700 = vpop.f32.mrb[0].mxu0
    %v1701 = vadd.f32 0.0, %v1700
    %v1702 = vpop.f32.mrb[0].mxu0
    %v1703 = vpop.f32.mrb[0].mxu0
    %1704 = vdwg.mxu0
    %v1705 = vadd.f32 %v1410, %v1658
    %v1706 = vadd.f32 %v1411, %v1660
    %v1707 = vadd.f32 %v1412, %v1699
    %v1708 = vadd.f32 %v1413, %v1701
    %v1709 = vxor.u32 %v1705, 2147483648
    %v1710 = vxor.u32 %v1706, 2147483648
    %v1711 = vxor.u32 %v1707, 2147483648
    %v1712 = vmul.f32 %v1709, 1.442695
    %v1713 = vpow.pop %v1712
    %v1714 = vmul.f32 %v1710, 1.442695
    %v1715 = vpow.pop %v1714
    %v1716 = vmul.f32 %v1711, 1.442695
    %v1717 = vpow.pop %v1716
    %v1718 = vadd.f32 %v1713, 1.0
    %v1719 = vadd.f32 %v1715, 1.0
    %v1720 = vadd.f32 %v1717, 1.0
    %v1721 = vrcp.pop %v1718
    %v1722 = vmul.f32 1.0, %v1721
    %v1723 = vrcp.pop %v1719
    %v1724 = vmul.f32 1.0, %v1723
    %v1725 = vrcp.pop %v1720
    %v1726 = vmul.f32 1.0, %v1725
    %v1727 = vtanh.pop %v1708
    %v1728 = vmul.f32 %v1724, %v1391
    %v1729 = vmul.f32 %v1722, %v1727
    %v1730 = vadd.f32 %v1728, %v1729
    %v1731 = vtanh.pop %v1730
    %v1732 = vmul.f32 %v1726, %v1731
    %v1733 = vsel %vm1429, %v1732, %v1390
    %v1734 = vsel %vm1429, %v1730, %v1391
    %s1735 = scalar_lea.vmem [#allocation2], 16
    %1736 = vst.msk [vmem:[%s1735] sm:$0xff] %vm1048, %v1733
    %s1737 = scalar_lea.vmem [#allocation2], 56
    %1738 = vst.msk [vmem:[%s1737] sm:$0xff] %vm1051, %v1733
    %s1739 = smul.u32 3, 4
    %s1740 = smul.addr %s1739, 8
    %s1741 = scalar_lea.vmem [#allocation3], %s1740
    %v1742 = vld [vmem:[%s1741] sm:$0xff]
    %v1743 = vld [vmem:[%s1741 + $0x8] sm:$0xff]
    %v1744 = vld [vmem:[%s1741 + $0x10] sm:$0xff]
    %v1745 = vld [vmem:[%s1741 + $0x18] sm:$0xff]
    %s1746 = smul.u32 6, 4
    %s1747 = smul.addr %s1746, 8
    %s1748 = scalar_lea.vmem [#allocation4], %s1747
    %v1749 = vld [vmem:[%s1748] sm:$0xff]
    %v1750 = vld [vmem:[%s1748 + $0x8] sm:$0xff]
    %v1751 = vld [vmem:[%s1748 + $0x10] sm:$0xff]
    %v1752 = vld [vmem:[%s1748 + $0x18] sm:$0xff]
    %v1753 = vadd.f32 %v1742, %v1749
    %v1754 = vadd.f32 %v1743, %v1750
    %v1755 = vadd.f32 %v1744, %v1751
    %v1756 = vadd.f32 %v1745, %v1752
    %s1757 = scalar_lea.vmem %s1, 24
    %v1758 = vld [vmem:[%s1757] sm:$0xff]
    %s1759 = scalar_lea.vmem %s1, 48
    %v1760 = vld [vmem:[%s1759] sm:$0xff]
    %1762 = vset.pattern.permute.xlu0 0
    %1763 = vperm.xlu0 %1762, %v1758
    %v1764 = vpop.permute.xlu0 %1763
    %1767 = vset.pattern.permute.xlu0 0
    %1768 = vperm.xlu0 %1767, %v1760
    %v1769 = vpop.permute.xlu0 %1768
    %v1771 = vsel %vm731, %v1764, %v1769
    %vm1772 = vcmp.ne.f32.partialorder %v1771, 0.0
    %v1773 = vpack.c.bf16 %v1733, %v1733
    %v1774 = vld [vmem:[#allocation10] sm:$0xff]
    %v1775 = vld [vmem:[#allocation10 + $0x8] sm:$0xff]
    %v1776 = vld [vmem:[#allocation10 + $0x10] sm:$0xff]
    %v1777 = vld [vmem:[#allocation10 + $0x18] sm:$0xff]
    %v1778 = vld [vmem:[#allocation10 + $0x20] sm:$0xff]
    %v1779 = vld [vmem:[#allocation10 + $0x28] sm:$0xff]
    %v1780 = vld [vmem:[#allocation10 + $0x30] sm:$0xff]
    %v1781 = vld [vmem:[#allocation10 + $0x38] sm:$0xff]
    %v1782 = vld [vmem:[#allocation10 + $0x40] sm:$0xff]
    %v1783 = vld [vmem:[#allocation10 + $0x48] sm:$0xff]
    %v1784 = vld [vmem:[#allocation10 + $0x50] sm:$0xff]
    %v1785 = vld [vmem:[#allocation10 + $0x58] sm:$0xff]
    %v1786 = vld [vmem:[#allocation10 + $0x60] sm:$0xff]
    %v1787 = vld [vmem:[#allocation10 + $0x68] sm:$0xff]
    %v1788 = vld [vmem:[#allocation10 + $0x70] sm:$0xff]
    %v1789 = vld [vmem:[#allocation10 + $0x78] sm:$0xff]
    %v1790 = vld [vmem:[#allocation10 + $0x80] sm:$0xff]
    %v1791 = vld [vmem:[#allocation10 + $0x88] sm:$0xff]
    %v1792 = vld [vmem:[#allocation10 + $0x90] sm:$0xff]
    %v1793 = vld [vmem:[#allocation10 + $0x98] sm:$0xff]
    %v1794 = vld [vmem:[#allocation10 + $0xa0] sm:$0xff]
    %v1795 = vld [vmem:[#allocation10 + $0xa8] sm:$0xff]
    %v1796 = vld [vmem:[#allocation10 + $0xb0] sm:$0xff]
    %v1797 = vld [vmem:[#allocation10 + $0xb8] sm:$0xff]
    %v1798 = vld [vmem:[#allocation10 + $0xc0] sm:$0xff]
    %v1799 = vld [vmem:[#allocation10 + $0xc8] sm:$0xff]
    %v1800 = vld [vmem:[#allocation10 + $0xd0] sm:$0xff]
    %v1801 = vld [vmem:[#allocation10 + $0xd8] sm:$0xff]
    %v1802 = vld [vmem:[#allocation10 + $0xe0] sm:$0xff]
    %v1803 = vld [vmem:[#allocation10 + $0xe8] sm:$0xff]
    %v1804 = vld [vmem:[#allocation10 + $0xf0] sm:$0xff]
    %v1805 = vld [vmem:[#allocation10 + $0xf8] sm:$0xff]
    %v1838 = vunpack.c.l.b16 %v1774
    %v1839 = vunpack.c.h.b16 %v1774
    %v1840 = vunpack.c.l.b16 %v1775
    %v1841 = vunpack.c.h.b16 %v1775
    %v1842 = vunpack.c.l.b16 %v1776
    %v1843 = vunpack.c.h.b16 %v1776
    %v1844 = vunpack.c.l.b16 %v1777
    %v1845 = vunpack.c.h.b16 %v1777
    %v1846 = vunpack.c.l.b16 %v1778
    %v1847 = vunpack.c.h.b16 %v1778
    %v1848 = vunpack.c.l.b16 %v1779
    %v1849 = vunpack.c.h.b16 %v1779
    %v1850 = vunpack.c.l.b16 %v1780
    %v1851 = vunpack.c.h.b16 %v1780
    %v1852 = vunpack.c.l.b16 %v1781
    %v1853 = vunpack.c.h.b16 %v1781
    %v1854 = vunpack.c.l.b16 %v1782
    %v1855 = vunpack.c.h.b16 %v1782
    %v1856 = vunpack.c.l.b16 %v1783
    %v1857 = vunpack.c.h.b16 %v1783
    %v1858 = vunpack.c.l.b16 %v1784
    %v1859 = vunpack.c.h.b16 %v1784
    %v1860 = vunpack.c.l.b16 %v1785
    %v1861 = vunpack.c.h.b16 %v1785
    %v1862 = vunpack.c.l.b16 %v1786
    %v1863 = vunpack.c.h.b16 %v1786
    %v1864 = vunpack.c.l.b16 %v1787
    %v1865 = vunpack.c.h.b16 %v1787
    %v1866 = vunpack.c.l.b16 %v1788
    %v1867 = vunpack.c.h.b16 %v1788
    %v1868 = vunpack.c.l.b16 %v1789
    %v1869 = vunpack.c.h.b16 %v1789
    %v1870 = vunpack.c.l.b16 %v1790
    %v1871 = vunpack.c.h.b16 %v1790
    %v1872 = vunpack.c.l.b16 %v1791
    %v1873 = vunpack.c.h.b16 %v1791
    %v1874 = vunpack.c.l.b16 %v1792
    %v1875 = vunpack.c.h.b16 %v1792
    %v1876 = vunpack.c.l.b16 %v1793
    %v1877 = vunpack.c.h.b16 %v1793
    %v1878 = vunpack.c.l.b16 %v1794
    %v1879 = vunpack.c.h.b16 %v1794
    %v1880 = vunpack.c.l.b16 %v1795
    %v1881 = vunpack.c.h.b16 %v1795
    %v1882 = vunpack.c.l.b16 %v1796
    %v1883 = vunpack.c.h.b16 %v1796
    %v1884 = vunpack.c.l.b16 %v1797
    %v1885 = vunpack.c.h.b16 %v1797
    %v1886 = vunpack.c.l.b16 %v1798
    %v1887 = vunpack.c.h.b16 %v1798
    %v1888 = vunpack.c.l.b16 %v1799
    %v1889 = vunpack.c.h.b16 %v1799
    %v1890 = vunpack.c.l.b16 %v1800
    %v1891 = vunpack.c.h.b16 %v1800
    %v1892 = vunpack.c.l.b16 %v1801
    %v1893 = vunpack.c.h.b16 %v1801
    %v1894 = vunpack.c.l.b16 %v1802
    %v1895 = vunpack.c.h.b16 %v1802
    %v1896 = vunpack.c.l.b16 %v1803
    %v1897 = vunpack.c.h.b16 %v1803
    %v1898 = vunpack.c.l.b16 %v1804
    %v1899 = vunpack.c.h.b16 %v1804
    %v1900 = vunpack.c.l.b16 %v1805
    %v1901 = vunpack.c.h.b16 %v1805
    %v1902 = vpack.c.b16 %v1842, %v1838
    %v1903 = vpack.c.b16 %v1843, %v1839
    %v1904 = vpack.c.b16 %v1844, %v1840
    %v1905 = vpack.c.b16 %v1845, %v1841
    %v1906 = vpack.c.b16 %v1850, %v1846
    %v1907 = vpack.c.b16 %v1851, %v1847
    %v1908 = vpack.c.b16 %v1852, %v1848
    %v1909 = vpack.c.b16 %v1853, %v1849
    %v1910 = vpack.c.b16 %v1858, %v1854
    %v1911 = vpack.c.b16 %v1859, %v1855
    %v1912 = vpack.c.b16 %v1860, %v1856
    %v1913 = vpack.c.b16 %v1861, %v1857
    %v1914 = vpack.c.b16 %v1866, %v1862
    %v1915 = vpack.c.b16 %v1867, %v1863
    %v1916 = vpack.c.b16 %v1868, %v1864
    %v1917 = vpack.c.b16 %v1869, %v1865
    %v1918 = vpack.c.b16 %v1874, %v1870
    %v1919 = vpack.c.b16 %v1875, %v1871
    %v1920 = vpack.c.b16 %v1876, %v1872
    %v1921 = vpack.c.b16 %v1877, %v1873
    %v1922 = vpack.c.b16 %v1882, %v1878
    %v1923 = vpack.c.b16 %v1883, %v1879
    %v1924 = vpack.c.b16 %v1884, %v1880
    %v1925 = vpack.c.b16 %v1885, %v1881
    %v1926 = vpack.c.b16 %v1890, %v1886
    %v1927 = vpack.c.b16 %v1891, %v1887
    %v1928 = vpack.c.b16 %v1892, %v1888
    %v1929 = vpack.c.b16 %v1893, %v1889
    %v1930 = vpack.c.b16 %v1898, %v1894
    %v1931 = vpack.c.b16 %v1899, %v1895
    %v1932 = vpack.c.b16 %v1900, %v1896
    %v1933 = vpack.c.b16 %v1901, %v1897
    %1966 = vmatprep.subr.bf16.mxu0 %v1903
    %1967 = vmatpush1.bf16.msra.mxu0 %v1902
    %1968 = vmatprep.subr.bf16.mxu0 %v1907
    %1969 = vmatpush1.bf16.msra.mxu0 %v1906
    %1970 = vmatprep.subr.bf16.mxu0 %v1911
    %1971 = vmatpush1.bf16.msra.mxu0 %v1910
    %1972 = vmatprep.subr.bf16.mxu0 %v1915
    %1973 = vmatpush1.bf16.msra.mxu0 %v1914
    %1974 = vmatprep.subr.bf16.mxu0 %v1919
    %1975 = vmatpush1.bf16.msra.mxu0 %v1918
    %1976 = vmatprep.subr.bf16.mxu0 %v1923
    %1977 = vmatpush1.bf16.msra.mxu0 %v1922
    %1978 = vmatprep.subr.bf16.mxu0 %v1927
    %1979 = vmatpush1.bf16.msra.mxu0 %v1926
    %1980 = vmatprep.subr.bf16.mxu0 %v1931
    %1981 = vmatpush1.bf16.msra.mxu0 %v1930
    %1982 = vmatprep.subr.bf16.mxu0 0
    %1983 = vmatpush1.bf16.msra.mxu0 0
    %1984 = vmatprep.subr.bf16.mxu0 0
    %1985 = vmatpush1.bf16.msra.mxu0 0
    %1986 = vmatprep.subr.bf16.mxu0 0
    %1987 = vmatpush1.bf16.msra.mxu0 0
    %1988 = vmatprep.subr.bf16.mxu0 0
    %1989 = vmatpush1.bf16.msra.mxu0 0
    %1990 = vmatprep.subr.bf16.mxu0 0
    %1991 = vmatpush1.bf16.msra.mxu0 0
    %1992 = vmatprep.subr.bf16.mxu0 0
    %1993 = vmatpush1.bf16.msra.mxu0 0
    %1994 = vmatprep.subr.bf16.mxu0 0
    %1995 = vmatpush1.bf16.msra.mxu0 0
    %1996 = vmatprep.subr.bf16.mxu0 0
    %1997 = vmatpush1.bf16.msra.mxu0 0
    %1998 = vmatprep.mubr.bf16.mxu0 0
    %1999 = vmatmul.mubr.bf16.gmra.mrb[0].mxu0 %v1773
    %v2000 = vpop.f32.mrb[0].mxu0
    %v2001 = vadd.f32 0.0, %v2000
    %v2002 = vpop.f32.mrb[0].mxu0
    %v2003 = vadd.f32 0.0, %v2002
    %v2004 = vpop.f32.mrb[0].mxu0
    %v2005 = vpop.f32.mrb[0].mxu0
    %2006 = vdwg.mxu0
    %2007 = vmatprep.subr.bf16.mxu0 %v1905
    %2008 = vmatpush1.bf16.msra.mxu0 %v1904
    %2009 = vmatprep.subr.bf16.mxu0 %v1909
    %2010 = vmatpush1.bf16.msra.mxu0 %v1908
    %2011 = vmatprep.subr.bf16.mxu0 %v1913
    %2012 = vmatpush1.bf16.msra.mxu0 %v1912
    %2013 = vmatprep.subr.bf16.mxu0 %v1917
    %2014 = vmatpush1.bf16.msra.mxu0 %v1916
    %2015 = vmatprep.subr.bf16.mxu0 %v1921
    %2016 = vmatpush1.bf16.msra.mxu0 %v1920
    %2017 = vmatprep.subr.bf16.mxu0 %v1925
    %2018 = vmatpush1.bf16.msra.mxu0 %v1924
    %2019 = vmatprep.subr.bf16.mxu0 %v1929
    %2020 = vmatpush1.bf16.msra.mxu0 %v1928
    %2021 = vmatprep.subr.bf16.mxu0 %v1933
    %2022 = vmatpush1.bf16.msra.mxu0 %v1932
    %2023 = vmatprep.subr.bf16.mxu0 0
    %2024 = vmatpush1.bf16.msra.mxu0 0
    %2025 = vmatprep.subr.bf16.mxu0 0
    %2026 = vmatpush1.bf16.msra.mxu0 0
    %2027 = vmatprep.subr.bf16.mxu0 0
    %2028 = vmatpush1.bf16.msra.mxu0 0
    %2029 = vmatprep.subr.bf16.mxu0 0
    %2030 = vmatpush1.bf16.msra.mxu0 0
    %2031 = vmatprep.subr.bf16.mxu0 0
    %2032 = vmatpush1.bf16.msra.mxu0 0
    %2033 = vmatprep.subr.bf16.mxu0 0
    %2034 = vmatpush1.bf16.msra.mxu0 0
    %2035 = vmatprep.subr.bf16.mxu0 0
    %2036 = vmatpush1.bf16.msra.mxu0 0
    %2037 = vmatprep.subr.bf16.mxu0 0
    %2038 = vmatpush1.bf16.msra.mxu0 0
    %2039 = vmatprep.mubr.bf16.mxu0 0
    %2040 = vmatmul.mubr.bf16.gmra.mrb[0].mxu0 %v1773
    %v2041 = vpop.f32.mrb[0].mxu0
    %v2042 = vadd.f32 0.0, %v2041
    %v2043 = vpop.f32.mrb[0].mxu0
    %v2044 = vadd.f32 0.0, %v2043
    %v2045 = vpop.f32.mrb[0].mxu0
    %v2046 = vpop.f32.mrb[0].mxu0
    %2047 = vdwg.mxu0
    %v2048 = vadd.f32 %v1753, %v2001
    %v2049 = vadd.f32 %v1754, %v2003
    %v2050 = vadd.f32 %v1755, %v2042
    %v2051 = vadd.f32 %v1756, %v2044
    %v2052 = vxor.u32 %v2048, 2147483648
    %v2053 = vxor.u32 %v2049, 2147483648
    %v2054 = vxor.u32 %v2050, 2147483648
    %v2055 = vmul.f32 %v2052, 1.442695
    %v2056 = vpow.pop %v2055
    %v2057 = vmul.f32 %v2053, 1.442695
    %v2058 = vpow.pop %v2057
    %v2059 = vmul.f32 %v2054, 1.442695
    %v2060 = vpow.pop %v2059
    %v2061 = vadd.f32 %v2056, 1.0
    %v2062 = vadd.f32 %v2058, 1.0
    %v2063 = vadd.f32 %v2060, 1.0
    %v2064 = vrcp.pop %v2061
    %v2065 = vmul.f32 1.0, %v2064
    %v2066 = vrcp.pop %v2062
    %v2067 = vmul.f32 1.0, %v2066
    %v2068 = vrcp.pop %v2063
    %v2069 = vmul.f32 1.0, %v2068
    %v2070 = vtanh.pop %v2051
    %v2071 = vmul.f32 %v2067, %v1734
    %v2072 = vmul.f32 %v2065, %v2070
    %v2073 = vadd.f32 %v2071, %v2072
    %v2074 = vtanh.pop %v2073
    %v2075 = vmul.f32 %v2069, %v2074
    %v2076 = vsel %vm1772, %v2075, %v1733
    %v2077 = vsel %vm1772, %v2073, %v1734
    %s2078 = scalar_lea.vmem [#allocation2], 24
    %2079 = vst.msk [vmem:[%s2078] sm:$0xff] %vm1048, %v2076
    %s2080 = scalar_lea.vmem [#allocation2], 48
    %2081 = vst.msk [vmem:[%s2080] sm:$0xff] %vm1051, %v2076
    %s2082 = smul.u32 4, 4
    %s2083 = smul.addr %s2082, 8
    %s2084 = scalar_lea.vmem [#allocation3], %s2083
    %v2085 = vld [vmem:[%s2084] sm:$0xff]
    %v2086 = vld [vmem:[%s2084 + $0x8] sm:$0xff]
    %v2087 = vld [vmem:[%s2084 + $0x10] sm:$0xff]
    %v2088 = vld [vmem:[%s2084 + $0x18] sm:$0xff]
    %s2089 = smul.u32 5, 4
    %s2090 = smul.addr %s2089, 8
    %s2091 = scalar_lea.vmem [#allocation4], %s2090
    %v2092 = vld [vmem:[%s2091] sm:$0xff]
    %v2093 = vld [vmem:[%s2091 + $0x8] sm:$0xff]
    %v2094 = vld [vmem:[%s2091 + $0x10] sm:$0xff]
    %v2095 = vld [vmem:[%s2091 + $0x18] sm:$0xff]
    %v2096 = vadd.f32 %v2085, %v2092
    %v2097 = vadd.f32 %v2086, %v2093
    %v2098 = vadd.f32 %v2087, %v2094
    %v2099 = vadd.f32 %v2088, %v2095
    %s2100 = scalar_lea.vmem %s1, 32
    %v2101 = vld [vmem:[%s2100] sm:$0xff]
    %s2102 = scalar_lea.vmem %s1, 40
    %v2103 = vld [vmem:[%s2102] sm:$0xff]
    %2105 = vset.pattern.permute.xlu0 0
    %2106 = vperm.xlu0 %2105, %v2101
    %v2107 = vpop.permute.xlu0 %2106
    %2110 = vset.pattern.permute.xlu0 0
    %2111 = vperm.xlu0 %2110, %v2103
    %v2112 = vpop.permute.xlu0 %2111
    %v2114 = vsel %vm731, %v2107, %v2112
    %vm2115 = vcmp.ne.f32.partialorder %v2114, 0.0
    %v2116 = vpack.c.bf16 %v2076, %v2076
    %v2117 = vld [vmem:[#allocation10] sm:$0xff]
    %v2118 = vld [vmem:[#allocation10 + $0x8] sm:$0xff]
    %v2119 = vld [vmem:[#allocation10 + $0x10] sm:$0xff]
    %v2120 = vld [vmem:[#allocation10 + $0x18] sm:$0xff]
    %v2121 = vld [vmem:[#allocation10 + $0x20] sm:$0xff]
    %v2122 = vld [vmem:[#allocation10 + $0x28] sm:$0xff]
    %v2123 = vld [vmem:[#allocation10 + $0x30] sm:$0xff]
    %v2124 = vld [vmem:[#allocation10 + $0x38] sm:$0xff]
    %v2125 = vld [vmem:[#allocation10 + $0x40] sm:$0xff]
    %v2126 = vld [vmem:[#allocation10 + $0x48] sm:$0xff]
    %v2127 = vld [vmem:[#allocation10 + $0x50] sm:$0xff]
    %v2128 = vld [vmem:[#allocation10 + $0x58] sm:$0xff]
    %v2129 = vld [vmem:[#allocation10 + $0x60] sm:$0xff]
    %v2130 = vld [vmem:[#allocation10 + $0x68] sm:$0xff]
    %v2131 = vld [vmem:[#allocation10 + $0x70] sm:$0xff]
    %v2132 = vld [vmem:[#allocation10 + $0x78] sm:$0xff]
    %v2133 = vld [vmem:[#allocation10 + $0x80] sm:$0xff]
    %v2134 = vld [vmem:[#allocation10 + $0x88] sm:$0xff]
    %v2135 = vld [vmem:[#allocation10 + $0x90] sm:$0xff]
    %v2136 = vld [vmem:[#allocation10 + $0x98] sm:$0xff]
    %v2137 = vld [vmem:[#allocation10 + $0xa0] sm:$0xff]
    %v2138 = vld [vmem:[#allocation10 + $0xa8] sm:$0xff]
    %v2139 = vld [vmem:[#allocation10 + $0xb0] sm:$0xff]
    %v2140 = vld [vmem:[#allocation10 + $0xb8] sm:$0xff]
    %v2141 = vld [vmem:[#allocation10 + $0xc0] sm:$0xff]
    %v2142 = vld [vmem:[#allocation10 + $0xc8] sm:$0xff]
    %v2143 = vld [vmem:[#allocation10 + $0xd0] sm:$0xff]
    %v2144 = vld [vmem:[#allocation10 + $0xd8] sm:$0xff]
    %v2145 = vld [vmem:[#allocation10 + $0xe0] sm:$0xff]
    %v2146 = vld [vmem:[#allocation10 + $0xe8] sm:$0xff]
    %v2147 = vld [vmem:[#allocation10 + $0xf0] sm:$0xff]
    %v2148 = vld [vmem:[#allocation10 + $0xf8] sm:$0xff]
    %v2181 = vunpack.c.l.b16 %v2117
    %v2182 = vunpack.c.h.b16 %v2117
    %v2183 = vunpack.c.l.b16 %v2118
    %v2184 = vunpack.c.h.b16 %v2118
    %v2185 = vunpack.c.l.b16 %v2119
    %v2186 = vunpack.c.h.b16 %v2119
    %v2187 = vunpack.c.l.b16 %v2120
    %v2188 = vunpack.c.h.b16 %v2120
    %v2189 = vunpack.c.l.b16 %v2121
    %v2190 = vunpack.c.h.b16 %v2121
    %v2191 = vunpack.c.l.b16 %v2122
    %v2192 = vunpack.c.h.b16 %v2122
    %v2193 = vunpack.c.l.b16 %v2123
    %v2194 = vunpack.c.h.b16 %v2123
    %v2195 = vunpack.c.l.b16 %v2124
    %v2196 = vunpack.c.h.b16 %v2124
    %v2197 = vunpack.c.l.b16 %v2125
    %v2198 = vunpack.c.h.b16 %v2125
    %v2199 = vunpack.c.l.b16 %v2126
    %v2200 = vunpack.c.h.b16 %v2126
    %v2201 = vunpack.c.l.b16 %v2127
    %v2202 = vunpack.c.h.b16 %v2127
    %v2203 = vunpack.c.l.b16 %v2128
    %v2204 = vunpack.c.h.b16 %v2128
    %v2205 = vunpack.c.l.b16 %v2129
    %v2206 = vunpack.c.h.b16 %v2129
    %v2207 = vunpack.c.l.b16 %v2130
    %v2208 = vunpack.c.h.b16 %v2130
    %v2209 = vunpack.c.l.b16 %v2131
    %v2210 = vunpack.c.h.b16 %v2131
    %v2211 = vunpack.c.l.b16 %v2132
    %v2212 = vunpack.c.h.b16 %v2132
    %v2213 = vunpack.c.l.b16 %v2133
    %v2214 = vunpack.c.h.b16 %v2133
    %v2215 = vunpack.c.l.b16 %v2134
    %v2216 = vunpack.c.h.b16 %v2134
    %v2217 = vunpack.c.l.b16 %v2135
    %v2218 = vunpack.c.h.b16 %v2135
    %v2219 = vunpack.c.l.b16 %v2136
    %v2220 = vunpack.c.h.b16 %v2136
    %v2221 = vunpack.c.l.b16 %v2137
    %v2222 = vunpack.c.h.b16 %v2137
    %v2223 = vunpack.c.l.b16 %v2138
    %v2224 = vunpack.c.h.b16 %v2138
    %v2225 = vunpack.c.l.b16 %v2139
    %v2226 = vunpack.c.h.b16 %v2139
    %v2227 = vunpack.c.l.b16 %v2140
    %v2228 = vunpack.c.h.b16 %v2140
    %v2229 = vunpack.c.l.b16 %v2141
    %v2230 = vunpack.c.h.b16 %v2141
    %v2231 = vunpack.c.l.b16 %v2142
    %v2232 = vunpack.c.h.b16 %v2142
    %v2233 = vunpack.c.l.b16 %v2143
    %v2234 = vunpack.c.h.b16 %v2143
    %v2235 = vunpack.c.l.b16 %v2144
    %v2236 = vunpack.c.h.b16 %v2144
    %v2237 = vunpack.c.l.b16 %v2145
    %v2238 = vunpack.c.h.b16 %v2145
    %v2239 = vunpack.c.l.b16 %v2146
    %v2240 = vunpack.c.h.b16 %v2146
    %v2241 = vunpack.c.l.b16 %v2147
    %v2242 = vunpack.c.h.b16 %v2147
    %v2243 = vunpack.c.l.b16 %v2148
    %v2244 = vunpack.c.h.b16 %v2148
    %v2245 = vpack.c.b16 %v2185, %v2181
    %v2246 = vpack.c.b16 %v2186, %v2182
    %v2247 = vpack.c.b16 %v2187, %v2183
    %v2248 = vpack.c.b16 %v2188, %v2184
    %v2249 = vpack.c.b16 %v2193, %v2189
    %v2250 = vpack.c.b16 %v2194, %v2190
    %v2251 = vpack.c.b16 %v2195, %v2191
    %v2252 = vpack.c.b16 %v2196, %v2192
    %v2253 = vpack.c.b16 %v2201, %v2197
    %v2254 = vpack.c.b16 %v2202, %v2198
    %v2255 = vpack.c.b16 %v2203, %v2199
    %v2256 = vpack.c.b16 %v2204, %v2200
    %v2257 = vpack.c.b16 %v2209, %v2205
    %v2258 = vpack.c.b16 %v2210, %v2206
    %v2259 = vpack.c.b16 %v2211, %v2207
    %v2260 = vpack.c.b16 %v2212, %v2208
    %v2261 = vpack.c.b16 %v2217, %v2213
    %v2262 = vpack.c.b16 %v2218, %v2214
    %v2263 = vpack.c.b16 %v2219, %v2215
    %v2264 = vpack.c.b16 %v2220, %v2216
    %v2265 = vpack.c.b16 %v2225, %v2221
    %v2266 = vpack.c.b16 %v2226, %v2222
    %v2267 = vpack.c.b16 %v2227, %v2223
    %v2268 = vpack.c.b16 %v2228, %v2224
    %v2269 = vpack.c.b16 %v2233, %v2229
    %v2270 = vpack.c.b16 %v2234, %v2230
    %v2271 = vpack.c.b16 %v2235, %v2231
    %v2272 = vpack.c.b16 %v2236, %v2232
    %v2273 = vpack.c.b16 %v2241, %v2237
    %v2274 = vpack.c.b16 %v2242, %v2238
    %v2275 = vpack.c.b16 %v2243, %v2239
    %v2276 = vpack.c.b16 %v2244, %v2240
    %2309 = vmatprep.subr.bf16.mxu0 %v2246
    %2310 = vmatpush1.bf16.msra.mxu0 %v2245
    %2311 = vmatprep.subr.bf16.mxu0 %v2250
    %2312 = vmatpush1.bf16.msra.mxu0 %v2249
    %2313 = vmatprep.subr.bf16.mxu0 %v2254
    %2314 = vmatpush1.bf16.msra.mxu0 %v2253
    %2315 = vmatprep.subr.bf16.mxu0 %v2258
    %2316 = vmatpush1.bf16.msra.mxu0 %v2257
    %2317 = vmatprep.subr.bf16.mxu0 %v2262
    %2318 = vmatpush1.bf16.msra.mxu0 %v2261
    %2319 = vmatprep.subr.bf16.mxu0 %v2266
    %2320 = vmatpush1.bf16.msra.mxu0 %v2265
    %2321 = vmatprep.subr.bf16.mxu0 %v2270
    %2322 = vmatpush1.bf16.msra.mxu0 %v2269
    %2323 = vmatprep.subr.bf16.mxu0 %v2274
    %2324 = vmatpush1.bf16.msra.mxu0 %v2273
    %2325 = vmatprep.subr.bf16.mxu0 0
    %2326 = vmatpush1.bf16.msra.mxu0 0
    %2327 = vmatprep.subr.bf16.mxu0 0
    %2328 = vmatpush1.bf16.msra.mxu0 0
    %2329 = vmatprep.subr.bf16.mxu0 0
    %2330 = vmatpush1.bf16.msra.mxu0 0
    %2331 = vmatprep.subr.bf16.mxu0 0
    %2332 = vmatpush1.bf16.msra.mxu0 0
    %2333 = vmatprep.subr.bf16.mxu0 0
    %2334 = vmatpush1.bf16.msra.mxu0 0
    %2335 = vmatprep.subr.bf16.mxu0 0
    %2336 = vmatpush1.bf16.msra.mxu0 0
    %2337 = vmatprep.subr.bf16.mxu0 0
    %2338 = vmatpush1.bf16.msra.mxu0 0
    %2339 = vmatprep.subr.bf16.mxu0 0
    %2340 = vmatpush1.bf16.msra.mxu0 0
    %2341 = vmatprep.mubr.bf16.mxu0 0
    %2342 = vmatmul.mubr.bf16.gmra.mrb[0].mxu0 %v2116
    %v2343 = vpop.f32.mrb[0].mxu0
    %v2344 = vadd.f32 0.0, %v2343
    %v2345 = vpop.f32.mrb[0].mxu0
    %v2346 = vadd.f32 0.0, %v2345
    %v2347 = vpop.f32.mrb[0].mxu0
    %v2348 = vpop.f32.mrb[0].mxu0
    %2349 = vdwg.mxu0
    %2350 = vmatprep.subr.bf16.mxu0 %v2248
    %2351 = vmatpush1.bf16.msra.mxu0 %v2247
    %2352 = vmatprep.subr.bf16.mxu0 %v2252
    %2353 = vmatpush1.bf16.msra.mxu0 %v2251
    %2354 = vmatprep.subr.bf16.mxu0 %v2256
    %2355 = vmatpush1.bf16.msra.mxu0 %v2255
    %2356 = vmatprep.subr.bf16.mxu0 %v2260
    %2357 = vmatpush1.bf16.msra.mxu0 %v2259
    %2358 = vmatprep.subr.bf16.mxu0 %v2264
    %2359 = vmatpush1.bf16.msra.mxu0 %v2263
    %2360 = vmatprep.subr.bf16.mxu0 %v2268
    %2361 = vmatpush1.bf16.msra.mxu0 %v2267
    %2362 = vmatprep.subr.bf16.mxu0 %v2272
    %2363 = vmatpush1.bf16.msra.mxu0 %v2271
    %2364 = vmatprep.subr.bf16.mxu0 %v2276
    %2365 = vmatpush1.bf16.msra.mxu0 %v2275
    %2366 = vmatprep.subr.bf16.mxu0 0
    %2367 = vmatpush1.bf16.msra.mxu0 0
    %2368 = vmatprep.subr.bf16.mxu0 0
    %2369 = vmatpush1.bf16.msra.mxu0 0
    %2370 = vmatprep.subr.bf16.mxu0 0
    %2371 = vmatpush1.bf16.msra.mxu0 0
    %2372 = vmatprep.subr.bf16.mxu0 0
    %2373 = vmatpush1.bf16.msra.mxu0 0
    %2374 = vmatprep.subr.bf16.mxu0 0
    %2375 = vmatpush1.bf16.msra.mxu0 0
    %2376 = vmatprep.subr.bf16.mxu0 0
    %2377 = vmatpush1.bf16.msra.mxu0 0
    %2378 = vmatprep.subr.bf16.mxu0 0
    %2379 = vmatpush1.bf16.msra.mxu0 0
    %2380 = vmatprep.subr.bf16.mxu0 0
    %2381 = vmatpush1.bf16.msra.mxu0 0
    %2382 = vmatprep.mubr.bf16.mxu0 0
    %2383 = vmatmul.mubr.bf16.gmra.mrb[0].mxu0 %v2116
    %v2384 = vpop.f32.mrb[0].mxu0
    %v2385 = vadd.f32 0.0, %v2384
    %v2386 = vpop.f32.mrb[0].mxu0
    %v2387 = vadd.f32 0.0, %v2386
    %v2388 = vpop.f32.mrb[0].mxu0
    %v2389 = vpop.f32.mrb[0].mxu0
    %2390 = vdwg.mxu0
    %v2391 = vadd.f32 %v2096, %v2344
    %v2392 = vadd.f32 %v2097, %v2346
    %v2393 = vadd.f32 %v2098, %v2385
    %v2394 = vadd.f32 %v2099, %v2387
    %v2395 = vxor.u32 %v2391, 2147483648
    %v2396 = vxor.u32 %v2392, 2147483648
    %v2397 = vxor.u32 %v2393, 2147483648
    %v2398 = vmul.f32 %v2395, 1.442695
    %v2399 = vpow.pop %v2398
    %v2400 = vmul.f32 %v2396, 1.442695
    %v2401 = vpow.pop %v2400
    %v2402 = vmul.f32 %v2397, 1.442695
    %v2403 = vpow.pop %v2402
    %v2404 = vadd.f32 %v2399, 1.0
    %v2405 = vadd.f32 %v2401, 1.0
    %v2406 = vadd.f32 %v2403, 1.0
    %v2407 = vrcp.pop %v2404
    %v2408 = vmul.f32 1.0, %v2407
    %v2409 = vrcp.pop %v2405
    %v2410 = vmul.f32 1.0, %v2409
    %v2411 = vrcp.pop %v2406
    %v2412 = vmul.f32 1.0, %v2411
    %v2413 = vtanh.pop %v2394
    %v2414 = vmul.f32 %v2410, %v2077
    %v2415 = vmul.f32 %v2408, %v2413
    %v2416 = vadd.f32 %v2414, %v2415
    %v2417 = vtanh.pop %v2416
    %v2418 = vmul.f32 %v2412, %v2417
    %v2419 = vsel %vm2115, %v2418, %v2076
    %v2420 = vsel %vm2115, %v2416, %v2077
    %s2421 = scalar_lea.vmem [#allocation2], 32
    %2422 = vst.msk [vmem:[%s2421] sm:$0xff] %vm1048, %v2419
    %s2423 = scalar_lea.vmem [#allocation2], 40
    %2424 = vst.msk [vmem:[%s2423] sm:$0xff] %vm1051, %v2419
    %s2425 = smul.addr %s2089, 8
    %s2426 = scalar_lea.vmem [#allocation3], %s2425
    %v2427 = vld [vmem:[%s2426] sm:$0xff]
    %v2428 = vld [vmem:[%s2426 + $0x8] sm:$0xff]
    %v2429 = vld [vmem:[%s2426 + $0x10] sm:$0xff]
    %v2430 = vld [vmem:[%s2426 + $0x18] sm:$0xff]
    %s2431 = smul.addr %s2082, 8
    %s2432 = scalar_lea.vmem [#allocation4], %s2431
    %v2433 = vld [vmem:[%s2432] sm:$0xff]
    %v2434 = vld [vmem:[%s2432 + $0x8] sm:$0xff]
    %v2435 = vld [vmem:[%s2432 + $0x10] sm:$0xff]
    %v2436 = vld [vmem:[%s2432 + $0x18] sm:$0xff]
    %v2437 = vadd.f32 %v2427, %v2433
    %v2438 = vadd.f32 %v2428, %v2434
    %v2439 = vadd.f32 %v2429, %v2435
    %v2440 = vadd.f32 %v2430, %v2436
    %v2441 = vld [vmem:[%s2102] sm:$0xff]
    %v2442 = vld [vmem:[%s2100] sm:$0xff]
    %2444 = vset.pattern.permute.xlu0 0
    %2445 = vperm.xlu0 %2444, %v2441
    %v2446 = vpop.permute.xlu0 %2445
    %2449 = vset.pattern.permute.xlu0 0
    %2450 = vperm.xlu0 %2449, %v2442
    %v2451 = vpop.permute.xlu0 %2450
    %v2453 = vsel %vm731, %v2446, %v2451
    %vm2454 = vcmp.ne.f32.partialorder %v2453, 0.0
    %v2455 = vpack.c.bf16 %v2419, %v2419
    %v2456 = vld [vmem:[#allocation10] sm:$0xff]
    %v2457 = vld [vmem:[#allocation10 + $0x8] sm:$0xff]
    %v2458 = vld [vmem:[#allocation10 + $0x10] sm:$0xff]
    %v2459 = vld [vmem:[#allocation10 + $0x18] sm:$0xff]
    %v2460 = vld [vmem:[#allocation10 + $0x20] sm:$0xff]
    %v2461 = vld [vmem:[#allocation10 + $0x28] sm:$0xff]
    %v2462 = vld [vmem:[#allocation10 + $0x30] sm:$0xff]
    %v2463 = vld [vmem:[#allocation10 + $0x38] sm:$0xff]
    %v2464 = vld [vmem:[#allocation10 + $0x40] sm:$0xff]
    %v2465 = vld [vmem:[#allocation10 + $0x48] sm:$0xff]
    %v2466 = vld [vmem:[#allocation10 + $0x50] sm:$0xff]
    %v2467 = vld [vmem:[#allocation10 + $0x58] sm:$0xff]
    %v2468 = vld [vmem:[#allocation10 + $0x60] sm:$0xff]
    %v2469 = vld [vmem:[#allocation10 + $0x68] sm:$0xff]
    %v2470 = vld [vmem:[#allocation10 + $0x70] sm:$0xff]
    %v2471 = vld [vmem:[#allocation10 + $0x78] sm:$0xff]
    %v2472 = vld [vmem:[#allocation10 + $0x80] sm:$0xff]
    %v2473 = vld [vmem:[#allocation10 + $0x88] sm:$0xff]
    %v2474 = vld [vmem:[#allocation10 + $0x90] sm:$0xff]
    %v2475 = vld [vmem:[#allocation10 + $0x98] sm:$0xff]
    %v2476 = vld [vmem:[#allocation10 + $0xa0] sm:$0xff]
    %v2477 = vld [vmem:[#allocation10 + $0xa8] sm:$0xff]
    %v2478 = vld [vmem:[#allocation10 + $0xb0] sm:$0xff]
    %v2479 = vld [vmem:[#allocation10 + $0xb8] sm:$0xff]
    %v2480 = vld [vmem:[#allocation10 + $0xc0] sm:$0xff]
    %v2481 = vld [vmem:[#allocation10 + $0xc8] sm:$0xff]
    %v2482 = vld [vmem:[#allocation10 + $0xd0] sm:$0xff]
    %v2483 = vld [vmem:[#allocation10 + $0xd8] sm:$0xff]
    %v2484 = vld [vmem:[#allocation10 + $0xe0] sm:$0xff]
    %v2485 = vld [vmem:[#allocation10 + $0xe8] sm:$0xff]
    %v2486 = vld [vmem:[#allocation10 + $0xf0] sm:$0xff]
    %v2487 = vld [vmem:[#allocation10 + $0xf8] sm:$0xff]
    %v2520 = vunpack.c.l.b16 %v2456
    %v2521 = vunpack.c.h.b16 %v2456
    %v2522 = vunpack.c.l.b16 %v2457
    %v2523 = vunpack.c.h.b16 %v2457
    %v2524 = vunpack.c.l.b16 %v2458
    %v2525 = vunpack.c.h.b16 %v2458
    %v2526 = vunpack.c.l.b16 %v2459
    %v2527 = vunpack.c.h.b16 %v2459
    %v2528 = vunpack.c.l.b16 %v2460
    %v2529 = vunpack.c.h.b16 %v2460
    %v2530 = vunpack.c.l.b16 %v2461
    %v2531 = vunpack.c.h.b16 %v2461
    %v2532 = vunpack.c.l.b16 %v2462
    %v2533 = vunpack.c.h.b16 %v2462
    %v2534 = vunpack.c.l.b16 %v2463
    %v2535 = vunpack.c.h.b16 %v2463
    %v2536 = vunpack.c.l.b16 %v2464
    %v2537 = vunpack.c.h.b16 %v2464
    %v2538 = vunpack.c.l.b16 %v2465
    %v2539 = vunpack.c.h.b16 %v2465
    %v2540 = vunpack.c.l.b16 %v2466
    %v2541 = vunpack.c.h.b16 %v2466
    %v2542 = vunpack.c.l.b16 %v2467
    %v2543 = vunpack.c.h.b16 %v2467
    %v2544 = vunpack.c.l.b16 %v2468
    %v2545 = vunpack.c.h.b16 %v2468
    %v2546 = vunpack.c.l.b16 %v2469
    %v2547 = vunpack.c.h.b16 %v2469
    %v2548 = vunpack.c.l.b16 %v2470
    %v2549 = vunpack.c.h.b16 %v2470
    %v2550 = vunpack.c.l.b16 %v2471
    %v2551 = vunpack.c.h.b16 %v2471
    %v2552 = vunpack.c.l.b16 %v2472
    %v2553 = vunpack.c.h.b16 %v2472
    %v2554 = vunpack.c.l.b16 %v2473
    %v2555 = vunpack.c.h.b16 %v2473
    %v2556 = vunpack.c.l.b16 %v2474
    %v2557 = vunpack.c.h.b16 %v2474
    %v2558 = vunpack.c.l.b16 %v2475
    %v2559 = vunpack.c.h.b16 %v2475
    %v2560 = vunpack.c.l.b16 %v2476
    %v2561 = vunpack.c.h.b16 %v2476
    %v2562 = vunpack.c.l.b16 %v2477
    %v2563 = vunpack.c.h.b16 %v2477
    %v2564 = vunpack.c.l.b16 %v2478
    %v2565 = vunpack.c.h.b16 %v2478
    %v2566 = vunpack.c.l.b16 %v2479
    %v2567 = vunpack.c.h.b16 %v2479
    %v2568 = vunpack.c.l.b16 %v2480
    %v2569 = vunpack.c.h.b16 %v2480
    %v2570 = vunpack.c.l.b16 %v2481
    %v2571 = vunpack.c.h.b16 %v2481
    %v2572 = vunpack.c.l.b16 %v2482
    %v2573 = vunpack.c.h.b16 %v2482
    %v2574 = vunpack.c.l.b16 %v2483
    %v2575 = vunpack.c.h.b16 %v2483
    %v2576 = vunpack.c.l.b16 %v2484
    %v2577 = vunpack.c.h.b16 %v2484
    %v2578 = vunpack.c.l.b16 %v2485
    %v2579 = vunpack.c.h.b16 %v2485
    %v2580 = vunpack.c.l.b16 %v2486
    %v2581 = vunpack.c.h.b16 %v2486
    %v2582 = vunpack.c.l.b16 %v2487
    %v2583 = vunpack.c.h.b16 %v2487
    %v2584 = vpack.c.b16 %v2524, %v2520
    %v2585 = vpack.c.b16 %v2525, %v2521
    %v2586 = vpack.c.b16 %v2526, %v2522
    %v2587 = vpack.c.b16 %v2527, %v2523
    %v2588 = vpack.c.b16 %v2532, %v2528
    %v2589 = vpack.c.b16 %v2533, %v2529
    %v2590 = vpack.c.b16 %v2534, %v2530
    %v2591 = vpack.c.b16 %v2535, %v2531
    %v2592 = vpack.c.b16 %v2540, %v2536
    %v2593 = vpack.c.b16 %v2541, %v2537
    %v2594 = vpack.c.b16 %v2542, %v2538
    %v2595 = vpack.c.b16 %v2543, %v2539
    %v2596 = vpack.c.b16 %v2548, %v2544
    %v2597 = vpack.c.b16 %v2549, %v2545
    %v2598 = vpack.c.b16 %v2550, %v2546
    %v2599 = vpack.c.b16 %v2551, %v2547
    %v2600 = vpack.c.b16 %v2556, %v2552
    %v2601 = vpack.c.b16 %v2557, %v2553
    %v2602 = vpack.c.b16 %v2558, %v2554
    %v2603 = vpack.c.b16 %v2559, %v2555
    %v2604 = vpack.c.b16 %v2564, %v2560
    %v2605 = vpack.c.b16 %v2565, %v2561
    %v2606 = vpack.c.b16 %v2566, %v2562
    %v2607 = vpack.c.b16 %v2567, %v2563
    %v2608 = vpack.c.b16 %v2572, %v2568
    %v2609 = vpack.c.b16 %v2573, %v2569
    %v2610 = vpack.c.b16 %v2574, %v2570
    %v2611 = vpack.c.b16 %v2575, %v2571
    %v2612 = vpack.c.b16 %v2580, %v2576
    %v2613 = vpack.c.b16 %v2581, %v2577
    %v2614 = vpack.c.b16 %v2582, %v2578
    %v2615 = vpack.c.b16 %v2583, %v2579
    %2648 = vmatprep.subr.bf16.mxu0 %v2585
    %2649 = vmatpush1.bf16.msra.mxu0 %v2584
    %2650 = vmatprep.subr.bf16.mxu0 %v2589
    %2651 = vmatpush1.bf16.msra.mxu0 %v2588
    %2652 = vmatprep.subr.bf16.mxu0 %v2593
    %2653 = vmatpush1.bf16.msra.mxu0 %v2592
    %2654 = vmatprep.subr.bf16.mxu0 %v2597
    %2655 = vmatpush1.bf16.msra.mxu0 %v2596
    %2656 = vmatprep.subr.bf16.mxu0 %v2601
    %2657 = vmatpush1.bf16.msra.mxu0 %v2600
    %2658 = vmatprep.subr.bf16.mxu0 %v2605
    %2659 = vmatpush1.bf16.msra.mxu0 %v2604
    %2660 = vmatprep.subr.bf16.mxu0 %v2609
    %2661 = vmatpush1.bf16.msra.mxu0 %v2608
    %2662 = vmatprep.subr.bf16.mxu0 %v2613
    %2663 = vmatpush1.bf16.msra.mxu0 %v2612
    %2664 = vmatprep.subr.bf16.mxu0 0
    %2665 = vmatpush1.bf16.msra.mxu0 0
    %2666 = vmatprep.subr.bf16.mxu0 0
    %2667 = vmatpush1.bf16.msra.mxu0 0
    %2668 = vmatprep.subr.bf16.mxu0 0
    %2669 = vmatpush1.bf16.msra.mxu0 0
    %2670 = vmatprep.subr.bf16.mxu0 0
    %2671 = vmatpush1.bf16.msra.mxu0 0
    %2672 = vmatprep.subr.bf16.mxu0 0
    %2673 = vmatpush1.bf16.msra.mxu0 0
    %2674 = vmatprep.subr.bf16.mxu0 0
    %2675 = vmatpush1.bf16.msra.mxu0 0
    %2676 = vmatprep.subr.bf16.mxu0 0
    %2677 = vmatpush1.bf16.msra.mxu0 0
    %2678 = vmatprep.subr.bf16.mxu0 0
    %2679 = vmatpush1.bf16.msra.mxu0 0
    %2680 = vmatprep.mubr.bf16.mxu0 0
    %2681 = vmatmul.mubr.bf16.gmra.mrb[0].mxu0 %v2455
    %v2682 = vpop.f32.mrb[0].mxu0
    %v2683 = vadd.f32 0.0, %v2682
    %v2684 = vpop.f32.mrb[0].mxu0
    %v2685 = vadd.f32 0.0, %v2684
    %v2686 = vpop.f32.mrb[0].mxu0
    %v2687 = vpop.f32.mrb[0].mxu0
    %2688 = vdwg.mxu0
    %2689 = vmatprep.subr.bf16.mxu0 %v2587
    %2690 = vmatpush1.bf16.msra.mxu0 %v2586
    %2691 = vmatprep.subr.bf16.mxu0 %v2591
    %2692 = vmatpush1.bf16.msra.mxu0 %v2590
    %2693 = vmatprep.subr.bf16.mxu0 %v2595
    %2694 = vmatpush1.bf16.msra.mxu0 %v2594
    %2695 = vmatprep.subr.bf16.mxu0 %v2599
    %2696 = vmatpush1.bf16.msra.mxu0 %v2598
    %2697 = vmatprep.subr.bf16.mxu0 %v2603
    %2698 = vmatpush1.bf16.msra.mxu0 %v2602
    %2699 = vmatprep.subr.bf16.mxu0 %v2607
    %2700 = vmatpush1.bf16.msra.mxu0 %v2606
    %2701 = vmatprep.subr.bf16.mxu0 %v2611
    %2702 = vmatpush1.bf16.msra.mxu0 %v2610
    %2703 = vmatprep.subr.bf16.mxu0 %v2615
    %2704 = vmatpush1.bf16.msra.mxu0 %v2614
    %2705 = vmatprep.subr.bf16.mxu0 0
    %2706 = vmatpush1.bf16.msra.mxu0 0
    %2707 = vmatprep.subr.bf16.mxu0 0
    %2708 = vmatpush1.bf16.msra.mxu0 0
    %2709 = vmatprep.subr.bf16.mxu0 0
    %2710 = vmatpush1.bf16.msra.mxu0 0
    %2711 = vmatprep.subr.bf16.mxu0 0
    %2712 = vmatpush1.bf16.msra.mxu0 0
    %2713 = vmatprep.subr.bf16.mxu0 0
    %2714 = vmatpush1.bf16.msra.mxu0 0
    %2715 = vmatprep.subr.bf16.mxu0 0
    %2716 = vmatpush1.bf16.msra.mxu0 0
    %2717 = vmatprep.subr.bf16.mxu0 0
    %2718 = vmatpush1.bf16.msra.mxu0 0
    %2719 = vmatprep.subr.bf16.mxu0 0
    %2720 = vmatpush1.bf16.msra.mxu0 0
    %2721 = vmatprep.mubr.bf16.mxu0 0
    %2722 = vmatmul.mubr.bf16.gmra.mrb[0].mxu0 %v2455
    %v2723 = vpop.f32.mrb[0].mxu0
    %v2724 = vadd.f32 0.0, %v2723
    %v2725 = vpop.f32.mrb[0].mxu0
    %v2726 = vadd.f32 0.0, %v2725
    %v2727 = vpop.f32.mrb[0].mxu0
    %v2728 = vpop.f32.mrb[0].mxu0
    %2729 = vdwg.mxu0
    %v2730 = vadd.f32 %v2437, %v2683
    %v2731 = vadd.f32 %v2438, %v2685
    %v2732 = vadd.f32 %v2439, %v2724
    %v2733 = vadd.f32 %v2440, %v2726
    %v2734 = vxor.u32 %v2730, 2147483648
    %v2735 = vxor.u32 %v2731, 2147483648
    %v2736 = vxor.u32 %v2732, 2147483648
    %v2737 = vmul.f32 %v2734, 1.442695
    %v2738 = vpow.pop %v2737
    %v2739 = vmul.f32 %v2735, 1.442695
    %v2740 = vpow.pop %v2739
    %v2741 = vmul.f32 %v2736, 1.442695
    %v2742 = vpow.pop %v2741
    %v2743 = vadd.f32 %v2738, 1.0
    %v2744 = vadd.f32 %v2740, 1.0
    %v2745 = vadd.f32 %v2742, 1.0
    %v2746 = vrcp.pop %v2743
    %v2747 = vmul.f32 1.0, %v2746
    %v2748 = vrcp.pop %v2744
    %v2749 = vmul.f32 1.0, %v2748
    %v2750 = vrcp.pop %v2745
    %v2751 = vmul.f32 1.0, %v2750
    %v2752 = vtanh.pop %v2733
    %v2753 = vmul.f32 %v2749, %v2420
    %v2754 = vmul.f32 %v2747, %v2752
    %v2755 = vadd.f32 %v2753, %v2754
    %v2756 = vtanh.pop %v2755
    %v2757 = vmul.f32 %v2751, %v2756
    %v2758 = vsel %vm2454, %v2757, %v2419
    %v2759 = vsel %vm2454, %v2755, %v2420
    %2760 = vst.msk [vmem:[%s2423] sm:$0xff] %vm1048, %v2758
    %2761 = vst.msk [vmem:[%s2421] sm:$0xff] %vm1051, %v2758
    %s2762 = smul.addr %s1746, 8
    %s2763 = scalar_lea.vmem [#allocation3], %s2762
    %v2764 = vld [vmem:[%s2763] sm:$0xff]
    %v2765 = vld [vmem:[%s2763 + $0x8] sm:$0xff]
    %v2766 = vld [vmem:[%s2763 + $0x10] sm:$0xff]
    %v2767 = vld [vmem:[%s2763 + $0x18] sm:$0xff]
    %s2768 = smul.addr %s1739, 8
    %s2769 = scalar_lea.vmem [#allocation4], %s2768
    %v2770 = vld [vmem:[%s2769] sm:$0xff]
    %v2771 = vld [vmem:[%s2769 + $0x8] sm:$0xff]
    %v2772 = vld [vmem:[%s2769 + $0x10] sm:$0xff]
    %v2773 = vld [vmem:[%s2769 + $0x18] sm:$0xff]
    %v2774 = vadd.f32 %v2764, %v2770
    %v2775 = vadd.f32 %v2765, %v2771
    %v2776 = vadd.f32 %v2766, %v2772
    %v2777 = vadd.f32 %v2767, %v2773
    %v2778 = vld [vmem:[%s1759] sm:$0xff]
    %v2779 = vld [vmem:[%s1757] sm:$0xff]
    %2781 = vset.pattern.permute.xlu0 0
    %2782 = vperm.xlu0 %2781, %v2778
    %v2783 = vpop.permute.xlu0 %2782
    %2786 = vset.pattern.permute.xlu0 0
    %2787 = vperm.xlu0 %2786, %v2779
    %v2788 = vpop.permute.xlu0 %2787
    %v2790 = vsel %vm731, %v2783, %v2788
    %vm2791 = vcmp.ne.f32.partialorder %v2790, 0.0
    %v2792 = vpack.c.bf16 %v2758, %v2758
    %v2793 = vld [vmem:[#allocation10] sm:$0xff]
    %v2794 = vld [vmem:[#allocation10 + $0x8] sm:$0xff]
    %v2795 = vld [vmem:[#allocation10 + $0x10] sm:$0xff]
    %v2796 = vld [vmem:[#allocation10 + $0x18] sm:$0xff]
    %v2797 = vld [vmem:[#allocation10 + $0x20] sm:$0xff]
    %v2798 = vld [vmem:[#allocation10 + $0x28] sm:$0xff]
    %v2799 = vld [vmem:[#allocation10 + $0x30] sm:$0xff]
    %v2800 = vld [vmem:[#allocation10 + $0x38] sm:$0xff]
    %v2801 = vld [vmem:[#allocation10 + $0x40] sm:$0xff]
    %v2802 = vld [vmem:[#allocation10 + $0x48] sm:$0xff]
    %v2803 = vld [vmem:[#allocation10 + $0x50] sm:$0xff]
    %v2804 = vld [vmem:[#allocation10 + $0x58] sm:$0xff]
    %v2805 = vld [vmem:[#allocation10 + $0x60] sm:$0xff]
    %v2806 = vld [vmem:[#allocation10 + $0x68] sm:$0xff]
    %v2807 = vld [vmem:[#allocation10 + $0x70] sm:$0xff]
    %v2808 = vld [vmem:[#allocation10 + $0x78] sm:$0xff]
    %v2809 = vld [vmem:[#allocation10 + $0x80] sm:$0xff]
    %v2810 = vld [vmem:[#allocation10 + $0x88] sm:$0xff]
    %v2811 = vld [vmem:[#allocation10 + $0x90] sm:$0xff]
    %v2812 = vld [vmem:[#allocation10 + $0x98] sm:$0xff]
    %v2813 = vld [vmem:[#allocation10 + $0xa0] sm:$0xff]
    %v2814 = vld [vmem:[#allocation10 + $0xa8] sm:$0xff]
    %v2815 = vld [vmem:[#allocation10 + $0xb0] sm:$0xff]
    %v2816 = vld [vmem:[#allocation10 + $0xb8] sm:$0xff]
    %v2817 = vld [vmem:[#allocation10 + $0xc0] sm:$0xff]
    %v2818 = vld [vmem:[#allocation10 + $0xc8] sm:$0xff]
    %v2819 = vld [vmem:[#allocation10 + $0xd0] sm:$0xff]
    %v2820 = vld [vmem:[#allocation10 + $0xd8] sm:$0xff]
    %v2821 = vld [vmem:[#allocation10 + $0xe0] sm:$0xff]
    %v2822 = vld [vmem:[#allocation10 + $0xe8] sm:$0xff]
    %v2823 = vld [vmem:[#allocation10 + $0xf0] sm:$0xff]
    %v2824 = vld [vmem:[#allocation10 + $0xf8] sm:$0xff]
    %v2857 = vunpack.c.l.b16 %v2793
    %v2858 = vunpack.c.h.b16 %v2793
    %v2859 = vunpack.c.l.b16 %v2794
    %v2860 = vunpack.c.h.b16 %v2794
    %v2861 = vunpack.c.l.b16 %v2795
    %v2862 = vunpack.c.h.b16 %v2795
    %v2863 = vunpack.c.l.b16 %v2796
    %v2864 = vunpack.c.h.b16 %v2796
    %v2865 = vunpack.c.l.b16 %v2797
    %v2866 = vunpack.c.h.b16 %v2797
    %v2867 = vunpack.c.l.b16 %v2798
    %v2868 = vunpack.c.h.b16 %v2798
    %v2869 = vunpack.c.l.b16 %v2799
    %v2870 = vunpack.c.h.b16 %v2799
    %v2871 = vunpack.c.l.b16 %v2800
    %v2872 = vunpack.c.h.b16 %v2800
    %v2873 = vunpack.c.l.b16 %v2801
    %v2874 = vunpack.c.h.b16 %v2801
    %v2875 = vunpack.c.l.b16 %v2802
    %v2876 = vunpack.c.h.b16 %v2802
    %v2877 = vunpack.c.l.b16 %v2803
    %v2878 = vunpack.c.h.b16 %v2803
    %v2879 = vunpack.c.l.b16 %v2804
    %v2880 = vunpack.c.h.b16 %v2804
    %v2881 = vunpack.c.l.b16 %v2805
    %v2882 = vunpack.c.h.b16 %v2805
    %v2883 = vunpack.c.l.b16 %v2806
    %v2884 = vunpack.c.h.b16 %v2806
    %v2885 = vunpack.c.l.b16 %v2807
    %v2886 = vunpack.c.h.b16 %v2807
    %v2887 = vunpack.c.l.b16 %v2808
    %v2888 = vunpack.c.h.b16 %v2808
    %v2889 = vunpack.c.l.b16 %v2809
    %v2890 = vunpack.c.h.b16 %v2809
    %v2891 = vunpack.c.l.b16 %v2810
    %v2892 = vunpack.c.h.b16 %v2810
    %v2893 = vunpack.c.l.b16 %v2811
    %v2894 = vunpack.c.h.b16 %v2811
    %v2895 = vunpack.c.l.b16 %v2812
    %v2896 = vunpack.c.h.b16 %v2812
    %v2897 = vunpack.c.l.b16 %v2813
    %v2898 = vunpack.c.h.b16 %v2813
    %v2899 = vunpack.c.l.b16 %v2814
    %v2900 = vunpack.c.h.b16 %v2814
    %v2901 = vunpack.c.l.b16 %v2815
    %v2902 = vunpack.c.h.b16 %v2815
    %v2903 = vunpack.c.l.b16 %v2816
    %v2904 = vunpack.c.h.b16 %v2816
    %v2905 = vunpack.c.l.b16 %v2817
    %v2906 = vunpack.c.h.b16 %v2817
    %v2907 = vunpack.c.l.b16 %v2818
    %v2908 = vunpack.c.h.b16 %v2818
    %v2909 = vunpack.c.l.b16 %v2819
    %v2910 = vunpack.c.h.b16 %v2819
    %v2911 = vunpack.c.l.b16 %v2820
    %v2912 = vunpack.c.h.b16 %v2820
    %v2913 = vunpack.c.l.b16 %v2821
    %v2914 = vunpack.c.h.b16 %v2821
    %v2915 = vunpack.c.l.b16 %v2822
    %v2916 = vunpack.c.h.b16 %v2822
    %v2917 = vunpack.c.l.b16 %v2823
    %v2918 = vunpack.c.h.b16 %v2823
    %v2919 = vunpack.c.l.b16 %v2824
    %v2920 = vunpack.c.h.b16 %v2824
    %v2921 = vpack.c.b16 %v2861, %v2857
    %v2922 = vpack.c.b16 %v2862, %v2858
    %v2923 = vpack.c.b16 %v2863, %v2859
    %v2924 = vpack.c.b16 %v2864, %v2860
    %v2925 = vpack.c.b16 %v2869, %v2865
    %v2926 = vpack.c.b16 %v2870, %v2866
    %v2927 = vpack.c.b16 %v2871, %v2867
    %v2928 = vpack.c.b16 %v2872, %v2868
    %v2929 = vpack.c.b16 %v2877, %v2873
    %v2930 = vpack.c.b16 %v2878, %v2874
    %v2931 = vpack.c.b16 %v2879, %v2875
    %v2932 = vpack.c.b16 %v2880, %v2876
    %v2933 = vpack.c.b16 %v2885, %v2881
    %v2934 = vpack.c.b16 %v2886, %v2882
    %v2935 = vpack.c.b16 %v2887, %v2883
    %v2936 = vpack.c.b16 %v2888, %v2884
    %v2937 = vpack.c.b16 %v2893, %v2889
    %v2938 = vpack.c.b16 %v2894, %v2890
    %v2939 = vpack.c.b16 %v2895, %v2891
    %v2940 = vpack.c.b16 %v2896, %v2892
    %v2941 = vpack.c.b16 %v2901, %v2897
    %v2942 = vpack.c.b16 %v2902, %v2898
    %v2943 = vpack.c.b16 %v2903, %v2899
    %v2944 = vpack.c.b16 %v2904, %v2900
    %v2945 = vpack.c.b16 %v2909, %v2905
    %v2946 = vpack.c.b16 %v2910, %v2906
    %v2947 = vpack.c.b16 %v2911, %v2907
    %v2948 = vpack.c.b16 %v2912, %v2908
    %v2949 = vpack.c.b16 %v2917, %v2913
    %v2950 = vpack.c.b16 %v2918, %v2914
    %v2951 = vpack.c.b16 %v2919, %v2915
    %v2952 = vpack.c.b16 %v2920, %v2916
    %2985 = vmatprep.subr.bf16.mxu0 %v2922
    %2986 = vmatpush1.bf16.msra.mxu0 %v2921
    %2987 = vmatprep.subr.bf16.mxu0 %v2926
    %2988 = vmatpush1.bf16.msra.mxu0 %v2925
    %2989 = vmatprep.subr.bf16.mxu0 %v2930
    %2990 = vmatpush1.bf16.msra.mxu0 %v2929
    %2991 = vmatprep.subr.bf16.mxu0 %v2934
    %2992 = vmatpush1.bf16.msra.mxu0 %v2933
    %2993 = vmatprep.subr.bf16.mxu0 %v2938
    %2994 = vmatpush1.bf16.msra.mxu0 %v2937
    %2995 = vmatprep.subr.bf16.mxu0 %v2942
    %2996 = vmatpush1.bf16.msra.mxu0 %v2941
    %2997 = vmatprep.subr.bf16.mxu0 %v2946
    %2998 = vmatpush1.bf16.msra.mxu0 %v2945
    %2999 = vmatprep.subr.bf16.mxu0 %v2950
    %3000 = vmatpush1.bf16.msra.mxu0 %v2949
    %3001 = vmatprep.subr.bf16.mxu0 0
    %3002 = vmatpush1.bf16.msra.mxu0 0
    %3003 = vmatprep.subr.bf16.mxu0 0
    %3004 = vmatpush1.bf16.msra.mxu0 0
    %3005 = vmatprep.subr.bf16.mxu0 0
    %3006 = vmatpush1.bf16.msra.mxu0 0
    %3007 = vmatprep.subr.bf16.mxu0 0
    %3008 = vmatpush1.bf16.msra.mxu0 0
    %3009 = vmatprep.subr.bf16.mxu0 0
    %3010 = vmatpush1.bf16.msra.mxu0 0
    %3011 = vmatprep.subr.bf16.mxu0 0
    %3012 = vmatpush1.bf16.msra.mxu0 0
    %3013 = vmatprep.subr.bf16.mxu0 0
    %3014 = vmatpush1.bf16.msra.mxu0 0
    %3015 = vmatprep.subr.bf16.mxu0 0
    %3016 = vmatpush1.bf16.msra.mxu0 0
    %3017 = vmatprep.mubr.bf16.mxu0 0
    %3018 = vmatmul.mubr.bf16.gmra.mrb[0].mxu0 %v2792
    %v3019 = vpop.f32.mrb[0].mxu0
    %v3020 = vadd.f32 0.0, %v3019
    %v3021 = vpop.f32.mrb[0].mxu0
    %v3022 = vadd.f32 0.0, %v3021
    %v3023 = vpop.f32.mrb[0].mxu0
    %v3024 = vpop.f32.mrb[0].mxu0
    %3025 = vdwg.mxu0
    %3026 = vmatprep.subr.bf16.mxu0 %v2924
    %3027 = vmatpush1.bf16.msra.mxu0 %v2923
    %3028 = vmatprep.subr.bf16.mxu0 %v2928
    %3029 = vmatpush1.bf16.msra.mxu0 %v2927
    %3030 = vmatprep.subr.bf16.mxu0 %v2932
    %3031 = vmatpush1.bf16.msra.mxu0 %v2931
    %3032 = vmatprep.subr.bf16.mxu0 %v2936
    %3033 = vmatpush1.bf16.msra.mxu0 %v2935
    %3034 = vmatprep.subr.bf16.mxu0 %v2940
    %3035 = vmatpush1.bf16.msra.mxu0 %v2939
    %3036 = vmatprep.subr.bf16.mxu0 %v2944
    %3037 = vmatpush1.bf16.msra.mxu0 %v2943
    %3038 = vmatprep.subr.bf16.mxu0 %v2948
    %3039 = vmatpush1.bf16.msra.mxu0 %v2947
    %3040 = vmatprep.subr.bf16.mxu0 %v2952
    %3041 = vmatpush1.bf16.msra.mxu0 %v2951
    %3042 = vmatprep.subr.bf16.mxu0 0
    %3043 = vmatpush1.bf16.msra.mxu0 0
    %3044 = vmatprep.subr.bf16.mxu0 0
    %3045 = vmatpush1.bf16.msra.mxu0 0
    %3046 = vmatprep.subr.bf16.mxu0 0
    %3047 = vmatpush1.bf16.msra.mxu0 0
    %3048 = vmatprep.subr.bf16.mxu0 0
    %3049 = vmatpush1.bf16.msra.mxu0 0
    %3050 = vmatprep.subr.bf16.mxu0 0
    %3051 = vmatpush1.bf16.msra.mxu0 0
    %3052 = vmatprep.subr.bf16.mxu0 0
    %3053 = vmatpush1.bf16.msra.mxu0 0
    %3054 = vmatprep.subr.bf16.mxu0 0
    %3055 = vmatpush1.bf16.msra.mxu0 0
    %3056 = vmatprep.subr.bf16.mxu0 0
    %3057 = vmatpush1.bf16.msra.mxu0 0
    %3058 = vmatprep.mubr.bf16.mxu0 0
    %3059 = vmatmul.mubr.bf16.gmra.mrb[0].mxu0 %v2792
    %v3060 = vpop.f32.mrb[0].mxu0
    %v3061 = vadd.f32 0.0, %v3060
    %v3062 = vpop.f32.mrb[0].mxu0
    %v3063 = vadd.f32 0.0, %v3062
    %v3064 = vpop.f32.mrb[0].mxu0
    %v3065 = vpop.f32.mrb[0].mxu0
    %3066 = vdwg.mxu0
    %v3067 = vadd.f32 %v2774, %v3020
    %v3068 = vadd.f32 %v2775, %v3022
    %v3069 = vadd.f32 %v2776, %v3061
    %v3070 = vadd.f32 %v2777, %v3063
    %v3071 = vxor.u32 %v3067, 2147483648
    %v3072 = vxor.u32 %v3068, 2147483648
    %v3073 = vxor.u32 %v3069, 2147483648
    %v3074 = vmul.f32 %v3071, 1.442695
    %v3075 = vpow.pop %v3074
    %v3076 = vmul.f32 %v3072, 1.442695
    %v3077 = vpow.pop %v3076
    %v3078 = vmul.f32 %v3073, 1.442695
    %v3079 = vpow.pop %v3078
    %v3080 = vadd.f32 %v3075, 1.0
    %v3081 = vadd.f32 %v3077, 1.0
    %v3082 = vadd.f32 %v3079, 1.0
    %v3083 = vrcp.pop %v3080
    %v3084 = vmul.f32 1.0, %v3083
    %v3085 = vrcp.pop %v3081
    %v3086 = vmul.f32 1.0, %v3085
    %v3087 = vrcp.pop %v3082
    %v3088 = vmul.f32 1.0, %v3087
    %v3089 = vtanh.pop %v3070
    %v3090 = vmul.f32 %v3086, %v2759
    %v3091 = vmul.f32 %v3084, %v3089
    %v3092 = vadd.f32 %v3090, %v3091
    %v3093 = vtanh.pop %v3092
    %v3094 = vmul.f32 %v3088, %v3093
    %v3095 = vsel %vm2791, %v3094, %v2758
    %v3096 = vsel %vm2791, %v3092, %v2759
    %3097 = vst.msk [vmem:[%s2080] sm:$0xff] %vm1048, %v3095
    %3098 = vst.msk [vmem:[%s2078] sm:$0xff] %vm1051, %v3095
    %s3099 = smul.addr %s1403, 8
    %s3100 = scalar_lea.vmem [#allocation3], %s3099
    %v3101 = vld [vmem:[%s3100] sm:$0xff]
    %v3102 = vld [vmem:[%s3100 + $0x8] sm:$0xff]
    %v3103 = vld [vmem:[%s3100 + $0x10] sm:$0xff]
    %v3104 = vld [vmem:[%s3100 + $0x18] sm:$0xff]
    %s3105 = smul.addr %s1396, 8
    %s3106 = scalar_lea.vmem [#allocation4], %s3105
    %v3107 = vld [vmem:[%s3106] sm:$0xff]
    %v3108 = vld [vmem:[%s3106 + $0x8] sm:$0xff]
    %v3109 = vld [vmem:[%s3106 + $0x10] sm:$0xff]
    %v3110 = vld [vmem:[%s3106 + $0x18] sm:$0xff]
    %v3111 = vadd.f32 %v3101, %v3107
    %v3112 = vadd.f32 %v3102, %v3108
    %v3113 = vadd.f32 %v3103, %v3109
    %v3114 = vadd.f32 %v3104, %v3110
    %v3115 = vld [vmem:[%s1416] sm:$0xff]
    %v3116 = vld [vmem:[%s1414] sm:$0xff]
    %3118 = vset.pattern.permute.xlu0 0
    %3119 = vperm.xlu0 %3118, %v3115
    %v3120 = vpop.permute.xlu0 %3119
    %3123 = vset.pattern.permute.xlu0 0
    %3124 = vperm.xlu0 %3123, %v3116
    %v3125 = vpop.permute.xlu0 %3124
    %v3127 = vsel %vm731, %v3120, %v3125
    %vm3128 = vcmp.ne.f32.partialorder %v3127, 0.0
    %v3129 = vpack.c.bf16 %v3095, %v3095
    %v3130 = vld [vmem:[#allocation10] sm:$0xff]
    %v3131 = vld [vmem:[#allocation10 + $0x8] sm:$0xff]
    %v3132 = vld [vmem:[#allocation10 + $0x10] sm:$0xff]
    %v3133 = vld [vmem:[#allocation10 + $0x18] sm:$0xff]
    %v3134 = vld [vmem:[#allocation10 + $0x20] sm:$0xff]
    %v3135 = vld [vmem:[#allocation10 + $0x28] sm:$0xff]
    %v3136 = vld [vmem:[#allocation10 + $0x30] sm:$0xff]
    %v3137 = vld [vmem:[#allocation10 + $0x38] sm:$0xff]
    %v3138 = vld [vmem:[#allocation10 + $0x40] sm:$0xff]
    %v3139 = vld [vmem:[#allocation10 + $0x48] sm:$0xff]
    %v3140 = vld [vmem:[#allocation10 + $0x50] sm:$0xff]
    %v3141 = vld [vmem:[#allocation10 + $0x58] sm:$0xff]
    %v3142 = vld [vmem:[#allocation10 + $0x60] sm:$0xff]
    %v3143 = vld [vmem:[#allocation10 + $0x68] sm:$0xff]
    %v3144 = vld [vmem:[#allocation10 + $0x70] sm:$0xff]
    %v3145 = vld [vmem:[#allocation10 + $0x78] sm:$0xff]
    %v3146 = vld [vmem:[#allocation10 + $0x80] sm:$0xff]
    %v3147 = vld [vmem:[#allocation10 + $0x88] sm:$0xff]
    %v3148 = vld [vmem:[#allocation10 + $0x90] sm:$0xff]
    %v3149 = vld [vmem:[#allocation10 + $0x98] sm:$0xff]
    %v3150 = vld [vmem:[#allocation10 + $0xa0] sm:$0xff]
    %v3151 = vld [vmem:[#allocation10 + $0xa8] sm:$0xff]
    %v3152 = vld [vmem:[#allocation10 + $0xb0] sm:$0xff]
    %v3153 = vld [vmem:[#allocation10 + $0xb8] sm:$0xff]
    %v3154 = vld [vmem:[#allocation10 + $0xc0] sm:$0xff]
    %v3155 = vld [vmem:[#allocation10 + $0xc8] sm:$0xff]
    %v3156 = vld [vmem:[#allocation10 + $0xd0] sm:$0xff]
    %v3157 = vld [vmem:[#allocation10 + $0xd8] sm:$0xff]
    %v3158 = vld [vmem:[#allocation10 + $0xe0] sm:$0xff]
    %v3159 = vld [vmem:[#allocation10 + $0xe8] sm:$0xff]
    %v3160 = vld [vmem:[#allocation10 + $0xf0] sm:$0xff]
    %v3161 = vld [vmem:[#allocation10 + $0xf8] sm:$0xff]
    %v3194 = vunpack.c.l.b16 %v3130
    %v3195 = vunpack.c.h.b16 %v3130
    %v3196 = vunpack.c.l.b16 %v3131
    %v3197 = vunpack.c.h.b16 %v3131
    %v3198 = vunpack.c.l.b16 %v3132
    %v3199 = vunpack.c.h.b16 %v3132
    %v3200 = vunpack.c.l.b16 %v3133
    %v3201 = vunpack.c.h.b16 %v3133
    %v3202 = vunpack.c.l.b16 %v3134
    %v3203 = vunpack.c.h.b16 %v3134
    %v3204 = vunpack.c.l.b16 %v3135
    %v3205 = vunpack.c.h.b16 %v3135
    %v3206 = vunpack.c.l.b16 %v3136
    %v3207 = vunpack.c.h.b16 %v3136
    %v3208 = vunpack.c.l.b16 %v3137
    %v3209 = vunpack.c.h.b16 %v3137
    %v3210 = vunpack.c.l.b16 %v3138
    %v3211 = vunpack.c.h.b16 %v3138
    %v3212 = vunpack.c.l.b16 %v3139
    %v3213 = vunpack.c.h.b16 %v3139
    %v3214 = vunpack.c.l.b16 %v3140
    %v3215 = vunpack.c.h.b16 %v3140
    %v3216 = vunpack.c.l.b16 %v3141
    %v3217 = vunpack.c.h.b16 %v3141
    %v3218 = vunpack.c.l.b16 %v3142
    %v3219 = vunpack.c.h.b16 %v3142
    %v3220 = vunpack.c.l.b16 %v3143
    %v3221 = vunpack.c.h.b16 %v3143
    %v3222 = vunpack.c.l.b16 %v3144
    %v3223 = vunpack.c.h.b16 %v3144
    %v3224 = vunpack.c.l.b16 %v3145
    %v3225 = vunpack.c.h.b16 %v3145
    %v3226 = vunpack.c.l.b16 %v3146
    %v3227 = vunpack.c.h.b16 %v3146
    %v3228 = vunpack.c.l.b16 %v3147
    %v3229 = vunpack.c.h.b16 %v3147
    %v3230 = vunpack.c.l.b16 %v3148
    %v3231 = vunpack.c.h.b16 %v3148
    %v3232 = vunpack.c.l.b16 %v3149
    %v3233 = vunpack.c.h.b16 %v3149
    %v3234 = vunpack.c.l.b16 %v3150
    %v3235 = vunpack.c.h.b16 %v3150
    %v3236 = vunpack.c.l.b16 %v3151
    %v3237 = vunpack.c.h.b16 %v3151
    %v3238 = vunpack.c.l.b16 %v3152
    %v3239 = vunpack.c.h.b16 %v3152
    %v3240 = vunpack.c.l.b16 %v3153
    %v3241 = vunpack.c.h.b16 %v3153
    %v3242 = vunpack.c.l.b16 %v3154
    %v3243 = vunpack.c.h.b16 %v3154
    %v3244 = vunpack.c.l.b16 %v3155
    %v3245 = vunpack.c.h.b16 %v3155
    %v3246 = vunpack.c.l.b16 %v3156
    %v3247 = vunpack.c.h.b16 %v3156
    %v3248 = vunpack.c.l.b16 %v3157
    %v3249 = vunpack.c.h.b16 %v3157
    %v3250 = vunpack.c.l.b16 %v3158
    %v3251 = vunpack.c.h.b16 %v3158
    %v3252 = vunpack.c.l.b16 %v3159
    %v3253 = vunpack.c.h.b16 %v3159
    %v3254 = vunpack.c.l.b16 %v3160
    %v3255 = vunpack.c.h.b16 %v3160
    %v3256 = vunpack.c.l.b16 %v3161
    %v3257 = vunpack.c.h.b16 %v3161
    %v3258 = vpack.c.b16 %v3198, %v3194
    %v3259 = vpack.c.b16 %v3199, %v3195
    %v3260 = vpack.c.b16 %v3200, %v3196
    %v3261 = vpack.c.b16 %v3201, %v3197
    %v3262 = vpack.c.b16 %v3206, %v3202
    %v3263 = vpack.c.b16 %v3207, %v3203
    %v3264 = vpack.c.b16 %v3208, %v3204
    %v3265 = vpack.c.b16 %v3209, %v3205
    %v3266 = vpack.c.b16 %v3214, %v3210
    %v3267 = vpack.c.b16 %v3215, %v3211
    %v3268 = vpack.c.b16 %v3216, %v3212
    %v3269 = vpack.c.b16 %v3217, %v3213
    %v3270 = vpack.c.b16 %v3222, %v3218
    %v3271 = vpack.c.b16 %v3223, %v3219
    %v3272 = vpack.c.b16 %v3224, %v3220
    %v3273 = vpack.c.b16 %v3225, %v3221
    %v3274 = vpack.c.b16 %v3230, %v3226
    %v3275 = vpack.c.b16 %v3231, %v3227
    %v3276 = vpack.c.b16 %v3232, %v3228
    %v3277 = vpack.c.b16 %v3233, %v3229
    %v3278 = vpack.c.b16 %v3238, %v3234
    %v3279 = vpack.c.b16 %v3239, %v3235
    %v3280 = vpack.c.b16 %v3240, %v3236
    %v3281 = vpack.c.b16 %v3241, %v3237
    %v3282 = vpack.c.b16 %v3246, %v3242
    %v3283 = vpack.c.b16 %v3247, %v3243
    %v3284 = vpack.c.b16 %v3248, %v3244
    %v3285 = vpack.c.b16 %v3249, %v3245
    %v3286 = vpack.c.b16 %v3254, %v3250
    %v3287 = vpack.c.b16 %v3255, %v3251
    %v3288 = vpack.c.b16 %v3256, %v3252
    %v3289 = vpack.c.b16 %v3257, %v3253
    %3322 = vmatprep.subr.bf16.mxu0 %v3259
    %3323 = vmatpush1.bf16.msra.mxu0 %v3258
    %3324 = vmatprep.subr.bf16.mxu0 %v3263
    %3325 = vmatpush1.bf16.msra.mxu0 %v3262
    %3326 = vmatprep.subr.bf16.mxu0 %v3267
    %3327 = vmatpush1.bf16.msra.mxu0 %v3266
    %3328 = vmatprep.subr.bf16.mxu0 %v3271
    %3329 = vmatpush1.bf16.msra.mxu0 %v3270
    %3330 = vmatprep.subr.bf16.mxu0 %v3275
    %3331 = vmatpush1.bf16.msra.mxu0 %v3274
    %3332 = vmatprep.subr.bf16.mxu0 %v3279
    %3333 = vmatpush1.bf16.msra.mxu0 %v3278
    %3334 = vmatprep.subr.bf16.mxu0 %v3283
    %3335 = vmatpush1.bf16.msra.mxu0 %v3282
    %3336 = vmatprep.subr.bf16.mxu0 %v3287
    %3337 = vmatpush1.bf16.msra.mxu0 %v3286
    %3338 = vmatprep.subr.bf16.mxu0 0
    %3339 = vmatpush1.bf16.msra.mxu0 0
    %3340 = vmatprep.subr.bf16.mxu0 0
    %3341 = vmatpush1.bf16.msra.mxu0 0
    %3342 = vmatprep.subr.bf16.mxu0 0
    %3343 = vmatpush1.bf16.msra.mxu0 0
    %3344 = vmatprep.subr.bf16.mxu0 0
    %3345 = vmatpush1.bf16.msra.mxu0 0
    %3346 = vmatprep.subr.bf16.mxu0 0
    %3347 = vmatpush1.bf16.msra.mxu0 0
    %3348 = vmatprep.subr.bf16.mxu0 0
    %3349 = vmatpush1.bf16.msra.mxu0 0
    %3350 = vmatprep.subr.bf16.mxu0 0
    %3351 = vmatpush1.bf16.msra.mxu0 0
    %3352 = vmatprep.subr.bf16.mxu0 0
    %3353 = vmatpush1.bf16.msra.mxu0 0
    %3354 = vmatprep.mubr.bf16.mxu0 0
    %3355 = vmatmul.mubr.bf16.gmra.mrb[0].mxu0 %v3129
    %v3356 = vpop.f32.mrb[0].mxu0
    %v3357 = vadd.f32 0.0, %v3356
    %v3358 = vpop.f32.mrb[0].mxu0
    %v3359 = vadd.f32 0.0, %v3358
    %v3360 = vpop.f32.mrb[0].mxu0
    %v3361 = vpop.f32.mrb[0].mxu0
    %3362 = vdwg.mxu0
    %3363 = vmatprep.subr.bf16.mxu0 %v3261
    %3364 = vmatpush1.bf16.msra.mxu0 %v3260
    %3365 = vmatprep.subr.bf16.mxu0 %v3265
    %3366 = vmatpush1.bf16.msra.mxu0 %v3264
    %3367 = vmatprep.subr.bf16.mxu0 %v3269
    %3368 = vmatpush1.bf16.msra.mxu0 %v3268
    %3369 = vmatprep.subr.bf16.mxu0 %v3273
    %3370 = vmatpush1.bf16.msra.mxu0 %v3272
    %3371 = vmatprep.subr.bf16.mxu0 %v3277
    %3372 = vmatpush1.bf16.msra.mxu0 %v3276
    %3373 = vmatprep.subr.bf16.mxu0 %v3281
    %3374 = vmatpush1.bf16.msra.mxu0 %v3280
    %3375 = vmatprep.subr.bf16.mxu0 %v3285
    %3376 = vmatpush1.bf16.msra.mxu0 %v3284
    %3377 = vmatprep.subr.bf16.mxu0 %v3289
    %3378 = vmatpush1.bf16.msra.mxu0 %v3288
    %3379 = vmatprep.subr.bf16.mxu0 0
    %3380 = vmatpush1.bf16.msra.mxu0 0
    %3381 = vmatprep.subr.bf16.mxu0 0
    %3382 = vmatpush1.bf16.msra.mxu0 0
    %3383 = vmatprep.subr.bf16.mxu0 0
    %3384 = vmatpush1.bf16.msra.mxu0 0
    %3385 = vmatprep.subr.bf16.mxu0 0
    %3386 = vmatpush1.bf16.msra.mxu0 0
    %3387 = vmatprep.subr.bf16.mxu0 0
    %3388 = vmatpush1.bf16.msra.mxu0 0
    %3389 = vmatprep.subr.bf16.mxu0 0
    %3390 = vmatpush1.bf16.msra.mxu0 0
    %3391 = vmatprep.subr.bf16.mxu0 0
    %3392 = vmatpush1.bf16.msra.mxu0 0
    %3393 = vmatprep.subr.bf16.mxu0 0
    %3394 = vmatpush1.bf16.msra.mxu0 0
    %3395 = vmatprep.mubr.bf16.mxu0 0
    %3396 = vmatmul.mubr.bf16.gmra.mrb[0].mxu0 %v3129
    %v3397 = vpop.f32.mrb[0].mxu0
    %v3398 = vadd.f32 0.0, %v3397
    %v3399 = vpop.f32.mrb[0].mxu0
    %v3400 = vadd.f32 0.0, %v3399
    %v3401 = vpop.f32.mrb[0].mxu0
    %v3402 = vpop.f32.mrb[0].mxu0
    %3403 = vdwg.mxu0
    %v3404 = vadd.f32 %v3111, %v3357
    %v3405 = vadd.f32 %v3112, %v3359
    %v3406 = vadd.f32 %v3113, %v3398
    %v3407 = vadd.f32 %v3114, %v3400
    %v3408 = vxor.u32 %v3404, 2147483648
    %v3409 = vxor.u32 %v3405, 2147483648
    %v3410 = vxor.u32 %v3406, 2147483648
    %v3411 = vmul.f32 %v3408, 1.442695
    %v3412 = vpow.pop %v3411
    %v3413 = vmul.f32 %v3409, 1.442695
    %v3414 = vpow.pop %v3413
    %v3415 = vmul.f32 %v3410, 1.442695
    %v3416 = vpow.pop %v3415
    %v3417 = vadd.f32 %v3412, 1.0
    %v3418 = vadd.f32 %v3414, 1.0
    %v3419 = vadd.f32 %v3416, 1.0
    %v3420 = vrcp.pop %v3417
    %v3421 = vmul.f32 1.0, %v3420
    %v3422 = vrcp.pop %v3418
    %v3423 = vmul.f32 1.0, %v3422
    %v3424 = vrcp.pop %v3419
    %v3425 = vmul.f32 1.0, %v3424
    %v3426 = vtanh.pop %v3407
    %v3427 = vmul.f32 %v3423, %v3096
    %v3428 = vmul.f32 %v3421, %v3426
    %v3429 = vadd.f32 %v3427, %v3428
    %v3430 = vtanh.pop %v3429
    %v3431 = vmul.f32 %v3425, %v3430
    %v3432 = vsel %vm3128, %v3431, %v3095
    %v3433 = vsel %vm3128, %v3429, %v3096
    %3434 = vst.msk [vmem:[%s1737] sm:$0xff] %vm1048, %v3432
    %3435 = vst.msk [vmem:[%s1735] sm:$0xff] %vm1051, %v3432
    %s3436 = smul.addr %s1060, 8
    %s3437 = scalar_lea.vmem [#allocation3], %s3436
    %v3438 = vld [vmem:[%s3437] sm:$0xff]
    %v3439 = vld [vmem:[%s3437 + $0x8] sm:$0xff]
    %v3440 = vld [vmem:[%s3437 + $0x10] sm:$0xff]
    %v3441 = vld [vmem:[%s3437 + $0x18] sm:$0xff]
    %s3442 = smul.addr %s1053, 8
    %s3443 = scalar_lea.vmem [#allocation4], %s3442
    %v3444 = vld [vmem:[%s3443] sm:$0xff]
    %v3445 = vld [vmem:[%s3443 + $0x8] sm:$0xff]
    %v3446 = vld [vmem:[%s3443 + $0x10] sm:$0xff]
    %v3447 = vld [vmem:[%s3443 + $0x18] sm:$0xff]
    %v3448 = vadd.f32 %v3438, %v3444
    %v3449 = vadd.f32 %v3439, %v3445
    %v3450 = vadd.f32 %v3440, %v3446
    %v3451 = vadd.f32 %v3441, %v3447
    %v3452 = vld [vmem:[%s1073] sm:$0xff]
    %v3453 = vld [vmem:[%s1071] sm:$0xff]
    %3455 = vset.pattern.permute.xlu0 0
    %3456 = vperm.xlu0 %3455, %v3452
    %v3457 = vpop.permute.xlu0 %3456
    %3460 = vset.pattern.permute.xlu0 0
    %3461 = vperm.xlu0 %3460, %v3453
    %v3462 = vpop.permute.xlu0 %3461
    %v3464 = vsel %vm731, %v3457, %v3462
    %vm3465 = vcmp.ne.f32.partialorder %v3464, 0.0
    %v3466 = vpack.c.bf16 %v3432, %v3432
    %v3467 = vld [vmem:[#allocation10] sm:$0xff]
    %v3468 = vld [vmem:[#allocation10 + $0x8] sm:$0xff]
    %v3469 = vld [vmem:[#allocation10 + $0x10] sm:$0xff]
    %v3470 = vld [vmem:[#allocation10 + $0x18] sm:$0xff]
    %v3471 = vld [vmem:[#allocation10 + $0x20] sm:$0xff]
    %v3472 = vld [vmem:[#allocation10 + $0x28] sm:$0xff]
    %v3473 = vld [vmem:[#allocation10 + $0x30] sm:$0xff]
    %v3474 = vld [vmem:[#allocation10 + $0x38] sm:$0xff]
    %v3475 = vld [vmem:[#allocation10 + $0x40] sm:$0xff]
    %v3476 = vld [vmem:[#allocation10 + $0x48] sm:$0xff]
    %v3477 = vld [vmem:[#allocation10 + $0x50] sm:$0xff]
    %v3478 = vld [vmem:[#allocation10 + $0x58] sm:$0xff]
    %v3479 = vld [vmem:[#allocation10 + $0x60] sm:$0xff]
    %v3480 = vld [vmem:[#allocation10 + $0x68] sm:$0xff]
    %v3481 = vld [vmem:[#allocation10 + $0x70] sm:$0xff]
    %v3482 = vld [vmem:[#allocation10 + $0x78] sm:$0xff]
    %v3483 = vld [vmem:[#allocation10 + $0x80] sm:$0xff]
    %v3484 = vld [vmem:[#allocation10 + $0x88] sm:$0xff]
    %v3485 = vld [vmem:[#allocation10 + $0x90] sm:$0xff]
    %v3486 = vld [vmem:[#allocation10 + $0x98] sm:$0xff]
    %v3487 = vld [vmem:[#allocation10 + $0xa0] sm:$0xff]
    %v3488 = vld [vmem:[#allocation10 + $0xa8] sm:$0xff]
    %v3489 = vld [vmem:[#allocation10 + $0xb0] sm:$0xff]
    %v3490 = vld [vmem:[#allocation10 + $0xb8] sm:$0xff]
    %v3491 = vld [vmem:[#allocation10 + $0xc0] sm:$0xff]
    %v3492 = vld [vmem:[#allocation10 + $0xc8] sm:$0xff]
    %v3493 = vld [vmem:[#allocation10 + $0xd0] sm:$0xff]
    %v3494 = vld [vmem:[#allocation10 + $0xd8] sm:$0xff]
    %v3495 = vld [vmem:[#allocation10 + $0xe0] sm:$0xff]
    %v3496 = vld [vmem:[#allocation10 + $0xe8] sm:$0xff]
    %v3497 = vld [vmem:[#allocation10 + $0xf0] sm:$0xff]
    %v3498 = vld [vmem:[#allocation10 + $0xf8] sm:$0xff]
    %v3531 = vunpack.c.l.b16 %v3467
    %v3532 = vunpack.c.h.b16 %v3467
    %v3533 = vunpack.c.l.b16 %v3468
    %v3534 = vunpack.c.h.b16 %v3468
    %v3535 = vunpack.c.l.b16 %v3469
    %v3536 = vunpack.c.h.b16 %v3469
    %v3537 = vunpack.c.l.b16 %v3470
    %v3538 = vunpack.c.h.b16 %v3470
    %v3539 = vunpack.c.l.b16 %v3471
    %v3540 = vunpack.c.h.b16 %v3471
    %v3541 = vunpack.c.l.b16 %v3472
    %v3542 = vunpack.c.h.b16 %v3472
    %v3543 = vunpack.c.l.b16 %v3473
    %v3544 = vunpack.c.h.b16 %v3473
    %v3545 = vunpack.c.l.b16 %v3474
    %v3546 = vunpack.c.h.b16 %v3474
    %v3547 = vunpack.c.l.b16 %v3475
    %v3548 = vunpack.c.h.b16 %v3475
    %v3549 = vunpack.c.l.b16 %v3476
    %v3550 = vunpack.c.h.b16 %v3476
    %v3551 = vunpack.c.l.b16 %v3477
    %v3552 = vunpack.c.h.b16 %v3477
    %v3553 = vunpack.c.l.b16 %v3478
    %v3554 = vunpack.c.h.b16 %v3478
    %v3555 = vunpack.c.l.b16 %v3479
    %v3556 = vunpack.c.h.b16 %v3479
    %v3557 = vunpack.c.l.b16 %v3480
    %v3558 = vunpack.c.h.b16 %v3480
    %v3559 = vunpack.c.l.b16 %v3481
    %v3560 = vunpack.c.h.b16 %v3481
    %v3561 = vunpack.c.l.b16 %v3482
    %v3562 = vunpack.c.h.b16 %v3482
    %v3563 = vunpack.c.l.b16 %v3483
    %v3564 = vunpack.c.h.b16 %v3483
    %v3565 = vunpack.c.l.b16 %v3484
    %v3566 = vunpack.c.h.b16 %v3484
    %v3567 = vunpack.c.l.b16 %v3485
    %v3568 = vunpack.c.h.b16 %v3485
    %v3569 = vunpack.c.l.b16 %v3486
    %v3570 = vunpack.c.h.b16 %v3486
    %v3571 = vunpack.c.l.b16 %v3487
    %v3572 = vunpack.c.h.b16 %v3487
    %v3573 = vunpack.c.l.b16 %v3488
    %v3574 = vunpack.c.h.b16 %v3488
    %v3575 = vunpack.c.l.b16 %v3489
    %v3576 = vunpack.c.h.b16 %v3489
    %v3577 = vunpack.c.l.b16 %v3490
    %v3578 = vunpack.c.h.b16 %v3490
    %v3579 = vunpack.c.l.b16 %v3491
    %v3580 = vunpack.c.h.b16 %v3491
    %v3581 = vunpack.c.l.b16 %v3492
    %v3582 = vunpack.c.h.b16 %v3492
    %v3583 = vunpack.c.l.b16 %v3493
    %v3584 = vunpack.c.h.b16 %v3493
    %v3585 = vunpack.c.l.b16 %v3494
    %v3586 = vunpack.c.h.b16 %v3494
    %v3587 = vunpack.c.l.b16 %v3495
    %v3588 = vunpack.c.h.b16 %v3495
    %v3589 = vunpack.c.l.b16 %v3496
    %v3590 = vunpack.c.h.b16 %v3496
    %v3591 = vunpack.c.l.b16 %v3497
    %v3592 = vunpack.c.h.b16 %v3497
    %v3593 = vunpack.c.l.b16 %v3498
    %v3594 = vunpack.c.h.b16 %v3498
    %v3595 = vpack.c.b16 %v3535, %v3531
    %v3596 = vpack.c.b16 %v3536, %v3532
    %v3597 = vpack.c.b16 %v3537, %v3533
    %v3598 = vpack.c.b16 %v3538, %v3534
    %v3599 = vpack.c.b16 %v3543, %v3539
    %v3600 = vpack.c.b16 %v3544, %v3540
    %v3601 = vpack.c.b16 %v3545, %v3541
    %v3602 = vpack.c.b16 %v3546, %v3542
    %v3603 = vpack.c.b16 %v3551, %v3547
    %v3604 = vpack.c.b16 %v3552, %v3548
    %v3605 = vpack.c.b16 %v3553, %v3549
    %v3606 = vpack.c.b16 %v3554, %v3550
    %v3607 = vpack.c.b16 %v3559, %v3555
    %v3608 = vpack.c.b16 %v3560, %v3556
    %v3609 = vpack.c.b16 %v3561, %v3557
    %v3610 = vpack.c.b16 %v3562, %v3558
    %v3611 = vpack.c.b16 %v3567, %v3563
    %v3612 = vpack.c.b16 %v3568, %v3564
    %v3613 = vpack.c.b16 %v3569, %v3565
    %v3614 = vpack.c.b16 %v3570, %v3566
    %v3615 = vpack.c.b16 %v3575, %v3571
    %v3616 = vpack.c.b16 %v3576, %v3572
    %v3617 = vpack.c.b16 %v3577, %v3573
    %v3618 = vpack.c.b16 %v3578, %v3574
    %v3619 = vpack.c.b16 %v3583, %v3579
    %v3620 = vpack.c.b16 %v3584, %v3580
    %v3621 = vpack.c.b16 %v3585, %v3581
    %v3622 = vpack.c.b16 %v3586, %v3582
    %v3623 = vpack.c.b16 %v3591, %v3587
    %v3624 = vpack.c.b16 %v3592, %v3588
    %v3625 = vpack.c.b16 %v3593, %v3589
    %v3626 = vpack.c.b16 %v3594, %v3590
    %3659 = vmatprep.subr.bf16.mxu0 %v3596
    %3660 = vmatpush1.bf16.msra.mxu0 %v3595
    %3661 = vmatprep.subr.bf16.mxu0 %v3600
    %3662 = vmatpush1.bf16.msra.mxu0 %v3599
    %3663 = vmatprep.subr.bf16.mxu0 %v3604
    %3664 = vmatpush1.bf16.msra.mxu0 %v3603
    %3665 = vmatprep.subr.bf16.mxu0 %v3608
    %3666 = vmatpush1.bf16.msra.mxu0 %v3607
    %3667 = vmatprep.subr.bf16.mxu0 %v3612
    %3668 = vmatpush1.bf16.msra.mxu0 %v3611
    %3669 = vmatprep.subr.bf16.mxu0 %v3616
    %3670 = vmatpush1.bf16.msra.mxu0 %v3615
    %3671 = vmatprep.subr.bf16.mxu0 %v3620
    %3672 = vmatpush1.bf16.msra.mxu0 %v3619
    %3673 = vmatprep.subr.bf16.mxu0 %v3624
    %3674 = vmatpush1.bf16.msra.mxu0 %v3623
    %3675 = vmatprep.subr.bf16.mxu0 0
    %3676 = vmatpush1.bf16.msra.mxu0 0
    %3677 = vmatprep.subr.bf16.mxu0 0
    %3678 = vmatpush1.bf16.msra.mxu0 0
    %3679 = vmatprep.subr.bf16.mxu0 0
    %3680 = vmatpush1.bf16.msra.mxu0 0
    %3681 = vmatprep.subr.bf16.mxu0 0
    %3682 = vmatpush1.bf16.msra.mxu0 0
    %3683 = vmatprep.subr.bf16.mxu0 0
    %3684 = vmatpush1.bf16.msra.mxu0 0
    %3685 = vmatprep.subr.bf16.mxu0 0
    %3686 = vmatpush1.bf16.msra.mxu0 0
    %3687 = vmatprep.subr.bf16.mxu0 0
    %3688 = vmatpush1.bf16.msra.mxu0 0
    %3689 = vmatprep.subr.bf16.mxu0 0
    %3690 = vmatpush1.bf16.msra.mxu0 0
    %3691 = vmatprep.mubr.bf16.mxu0 0
    %3692 = vmatmul.mubr.bf16.gmra.mrb[0].mxu0 %v3466
    %v3693 = vpop.f32.mrb[0].mxu0
    %v3694 = vadd.f32 0.0, %v3693
    %v3695 = vpop.f32.mrb[0].mxu0
    %v3696 = vadd.f32 0.0, %v3695
    %v3697 = vpop.f32.mrb[0].mxu0
    %v3698 = vpop.f32.mrb[0].mxu0
    %3699 = vdwg.mxu0
    %3700 = vmatprep.subr.bf16.mxu0 %v3598
    %3701 = vmatpush1.bf16.msra.mxu0 %v3597
    %3702 = vmatprep.subr.bf16.mxu0 %v3602
    %3703 = vmatpush1.bf16.msra.mxu0 %v3601
    %3704 = vmatprep.subr.bf16.mxu0 %v3606
    %3705 = vmatpush1.bf16.msra.mxu0 %v3605
    %3706 = vmatprep.subr.bf16.mxu0 %v3610
    %3707 = vmatpush1.bf16.msra.mxu0 %v3609
    %3708 = vmatprep.subr.bf16.mxu0 %v3614
    %3709 = vmatpush1.bf16.msra.mxu0 %v3613
    %3710 = vmatprep.subr.bf16.mxu0 %v3618
    %3711 = vmatpush1.bf16.msra.mxu0 %v3617
    %3712 = vmatprep.subr.bf16.mxu0 %v3622
    %3713 = vmatpush1.bf16.msra.mxu0 %v3621
    %3714 = vmatprep.subr.bf16.mxu0 %v3626
    %3715 = vmatpush1.bf16.msra.mxu0 %v3625
    %3716 = vmatprep.subr.bf16.mxu0 0
    %3717 = vmatpush1.bf16.msra.mxu0 0
    %3718 = vmatprep.subr.bf16.mxu0 0
    %3719 = vmatpush1.bf16.msra.mxu0 0
    %3720 = vmatprep.subr.bf16.mxu0 0
    %3721 = vmatpush1.bf16.msra.mxu0 0
    %3722 = vmatprep.subr.bf16.mxu0 0
    %3723 = vmatpush1.bf16.msra.mxu0 0
    %3724 = vmatprep.subr.bf16.mxu0 0
    %3725 = vmatpush1.bf16.msra.mxu0 0
    %3726 = vmatprep.subr.bf16.mxu0 0
    %3727 = vmatpush1.bf16.msra.mxu0 0
    %3728 = vmatprep.subr.bf16.mxu0 0
    %3729 = vmatpush1.bf16.msra.mxu0 0
    %3730 = vmatprep.subr.bf16.mxu0 0
    %3731 = vmatpush1.bf16.msra.mxu0 0
    %3732 = vmatprep.mubr.bf16.mxu0 0
    %3733 = vmatmul.mubr.bf16.gmra.mrb[0].mxu0 %v3466
    %v3734 = vpop.f32.mrb[0].mxu0
    %v3735 = vadd.f32 0.0, %v3734
    %v3736 = vpop.f32.mrb[0].mxu0
    %v3737 = vadd.f32 0.0, %v3736
    %v3738 = vpop.f32.mrb[0].mxu0
    %v3739 = vpop.f32.mrb[0].mxu0
    %3740 = vdwg.mxu0
    %v3741 = vadd.f32 %v3448, %v3694
    %v3742 = vadd.f32 %v3449, %v3696
    %v3743 = vadd.f32 %v3450, %v3735
    %v3744 = vadd.f32 %v3451, %v3737
    %v3745 = vxor.u32 %v3741, 2147483648
    %v3746 = vxor.u32 %v3742, 2147483648
    %v3747 = vxor.u32 %v3743, 2147483648
    %v3748 = vmul.f32 %v3745, 1.442695
    %v3749 = vpow.pop %v3748
    %v3750 = vmul.f32 %v3746, 1.442695
    %v3751 = vpow.pop %v3750
    %v3752 = vmul.f32 %v3747, 1.442695
    %v3753 = vpow.pop %v3752
    %v3754 = vadd.f32 %v3749, 1.0
    %v3755 = vadd.f32 %v3751, 1.0
    %v3756 = vadd.f32 %v3753, 1.0
    %v3757 = vrcp.pop %v3754
    %v3758 = vmul.f32 1.0, %v3757
    %v3759 = vrcp.pop %v3755
    %v3760 = vmul.f32 1.0, %v3759
    %v3761 = vrcp.pop %v3756
    %v3762 = vmul.f32 1.0, %v3761
    %v3763 = vtanh.pop %v3744
    %v3764 = vmul.f32 %v3760, %v3433
    %v3765 = vmul.f32 %v3758, %v3763
    %v3766 = vadd.f32 %v3764, %v3765
    %v3767 = vtanh.pop %v3766
    %v3768 = vmul.f32 %v3762, %v3767
    %v3769 = vsel %vm3465, %v3768, %v3432
    %v3770 = vsel %vm3465, %v3766, %v3433
    %3771 = vst.msk [vmem:[%s1394] sm:$0xff] %vm1048, %v3769
    %3772 = vst.msk [vmem:[%s1392] sm:$0xff] %vm1051, %v3769
    %s3773 = smul.addr %s716, 8
    %s3774 = scalar_lea.vmem [#allocation3], %s3773
    %v3775 = vld [vmem:[%s3774] sm:$0xff]
    %v3776 = vld [vmem:[%s3774 + $0x8] sm:$0xff]
    %v3777 = vld [vmem:[%s3774 + $0x10] sm:$0xff]
    %v3778 = vld [vmem:[%s3774 + $0x18] sm:$0xff]
    %s3779 = smul.addr %s709, 8
    %s3780 = scalar_lea.vmem [#allocation4], %s3779
    %v3781 = vld [vmem:[%s3780] sm:$0xff]
    %v3782 = vld [vmem:[%s3780 + $0x8] sm:$0xff]
    %v3783 = vld [vmem:[%s3780 + $0x10] sm:$0xff]
    %v3784 = vld [vmem:[%s3780 + $0x18] sm:$0xff]
    %v3785 = vadd.f32 %v3775, %v3781
    %v3786 = vadd.f32 %v3776, %v3782
    %v3787 = vadd.f32 %v3777, %v3783
    %v3788 = vadd.f32 %v3778, %v3784
    %v3789 = vld [vmem:[%s728] sm:$0xff]
    %v3790 = vld [vmem:[%s1] sm:$0xff]
    %3792 = vset.pattern.permute.xlu0 0
    %3793 = vperm.xlu0 %3792, %v3789
    %v3794 = vpop.permute.xlu0 %3793
    %3797 = vset.pattern.permute.xlu0 0
    %3798 = vperm.xlu0 %3797, %v3790
    %v3799 = vpop.permute.xlu0 %3798
    %v3801 = vsel %vm731, %v3794, %v3799
    %vm3802 = vcmp.ne.f32.partialorder %v3801, 0.0
    %v3803 = vpack.c.bf16 %v3769, %v3769
    %v3804 = vld [vmem:[#allocation10] sm:$0xff]
    %v3805 = vld [vmem:[#allocation10 + $0x8] sm:$0xff]
    %v3806 = vld [vmem:[#allocation10 + $0x10] sm:$0xff]
    %v3807 = vld [vmem:[#allocation10 + $0x18] sm:$0xff]
    %v3808 = vld [vmem:[#allocation10 + $0x20] sm:$0xff]
    %v3809 = vld [vmem:[#allocation10 + $0x28] sm:$0xff]
    %v3810 = vld [vmem:[#allocation10 + $0x30] sm:$0xff]
    %v3811 = vld [vmem:[#allocation10 + $0x38] sm:$0xff]
    %v3812 = vld [vmem:[#allocation10 + $0x40] sm:$0xff]
    %v3813 = vld [vmem:[#allocation10 + $0x48] sm:$0xff]
    %v3814 = vld [vmem:[#allocation10 + $0x50] sm:$0xff]
    %v3815 = vld [vmem:[#allocation10 + $0x58] sm:$0xff]
    %v3816 = vld [vmem:[#allocation10 + $0x60] sm:$0xff]
    %v3817 = vld [vmem:[#allocation10 + $0x68] sm:$0xff]
    %v3818 = vld [vmem:[#allocation10 + $0x70] sm:$0xff]
    %v3819 = vld [vmem:[#allocation10 + $0x78] sm:$0xff]
    %v3820 = vld [vmem:[#allocation10 + $0x80] sm:$0xff]
    %v3821 = vld [vmem:[#allocation10 + $0x88] sm:$0xff]
    %v3822 = vld [vmem:[#allocation10 + $0x90] sm:$0xff]
    %v3823 = vld [vmem:[#allocation10 + $0x98] sm:$0xff]
    %v3824 = vld [vmem:[#allocation10 + $0xa0] sm:$0xff]
    %v3825 = vld [vmem:[#allocation10 + $0xa8] sm:$0xff]
    %v3826 = vld [vmem:[#allocation10 + $0xb0] sm:$0xff]
    %v3827 = vld [vmem:[#allocation10 + $0xb8] sm:$0xff]
    %v3828 = vld [vmem:[#allocation10 + $0xc0] sm:$0xff]
    %v3829 = vld [vmem:[#allocation10 + $0xc8] sm:$0xff]
    %v3830 = vld [vmem:[#allocation10 + $0xd0] sm:$0xff]
    %v3831 = vld [vmem:[#allocation10 + $0xd8] sm:$0xff]
    %v3832 = vld [vmem:[#allocation10 + $0xe0] sm:$0xff]
    %v3833 = vld [vmem:[#allocation10 + $0xe8] sm:$0xff]
    %v3834 = vld [vmem:[#allocation10 + $0xf0] sm:$0xff]
    %v3835 = vld [vmem:[#allocation10 + $0xf8] sm:$0xff]
    %v3868 = vunpack.c.l.b16 %v3804
    %v3869 = vunpack.c.h.b16 %v3804
    %v3870 = vunpack.c.l.b16 %v3805
    %v3871 = vunpack.c.h.b16 %v3805
    %v3872 = vunpack.c.l.b16 %v3806
    %v3873 = vunpack.c.h.b16 %v3806
    %v3874 = vunpack.c.l.b16 %v3807
    %v3875 = vunpack.c.h.b16 %v3807
    %v3876 = vunpack.c.l.b16 %v3808
    %v3877 = vunpack.c.h.b16 %v3808
    %v3878 = vunpack.c.l.b16 %v3809
    %v3879 = vunpack.c.h.b16 %v3809
    %v3880 = vunpack.c.l.b16 %v3810
    %v3881 = vunpack.c.h.b16 %v3810
    %v3882 = vunpack.c.l.b16 %v3811
    %v3883 = vunpack.c.h.b16 %v3811
    %v3884 = vunpack.c.l.b16 %v3812
    %v3885 = vunpack.c.h.b16 %v3812
    %v3886 = vunpack.c.l.b16 %v3813
    %v3887 = vunpack.c.h.b16 %v3813
    %v3888 = vunpack.c.l.b16 %v3814
    %v3889 = vunpack.c.h.b16 %v3814
    %v3890 = vunpack.c.l.b16 %v3815
    %v3891 = vunpack.c.h.b16 %v3815
    %v3892 = vunpack.c.l.b16 %v3816
    %v3893 = vunpack.c.h.b16 %v3816
    %v3894 = vunpack.c.l.b16 %v3817
    %v3895 = vunpack.c.h.b16 %v3817
    %v3896 = vunpack.c.l.b16 %v3818
    %v3897 = vunpack.c.h.b16 %v3818
    %v3898 = vunpack.c.l.b16 %v3819
    %v3899 = vunpack.c.h.b16 %v3819
    %v3900 = vunpack.c.l.b16 %v3820
    %v3901 = vunpack.c.h.b16 %v3820
    %v3902 = vunpack.c.l.b16 %v3821
    %v3903 = vunpack.c.h.b16 %v3821
    %v3904 = vunpack.c.l.b16 %v3822
    %v3905 = vunpack.c.h.b16 %v3822
    %v3906 = vunpack.c.l.b16 %v3823
    %v3907 = vunpack.c.h.b16 %v3823
    %v3908 = vunpack.c.l.b16 %v3824
    %v3909 = vunpack.c.h.b16 %v3824
    %v3910 = vunpack.c.l.b16 %v3825
    %v3911 = vunpack.c.h.b16 %v3825
    %v3912 = vunpack.c.l.b16 %v3826
    %v3913 = vunpack.c.h.b16 %v3826
    %v3914 = vunpack.c.l.b16 %v3827
    %v3915 = vunpack.c.h.b16 %v3827
    %v3916 = vunpack.c.l.b16 %v3828
    %v3917 = vunpack.c.h.b16 %v3828
    %v3918 = vunpack.c.l.b16 %v3829
    %v3919 = vunpack.c.h.b16 %v3829
    %v3920 = vunpack.c.l.b16 %v3830
    %v3921 = vunpack.c.h.b16 %v3830
    %v3922 = vunpack.c.l.b16 %v3831
    %v3923 = vunpack.c.h.b16 %v3831
    %v3924 = vunpack.c.l.b16 %v3832
    %v3925 = vunpack.c.h.b16 %v3832
    %v3926 = vunpack.c.l.b16 %v3833
    %v3927 = vunpack.c.h.b16 %v3833
    %v3928 = vunpack.c.l.b16 %v3834
    %v3929 = vunpack.c.h.b16 %v3834
    %v3930 = vunpack.c.l.b16 %v3835
    %v3931 = vunpack.c.h.b16 %v3835
    %v3932 = vpack.c.b16 %v3872, %v3868
    %v3933 = vpack.c.b16 %v3873, %v3869
    %v3934 = vpack.c.b16 %v3874, %v3870
    %v3935 = vpack.c.b16 %v3875, %v3871
    %v3936 = vpack.c.b16 %v3880, %v3876
    %v3937 = vpack.c.b16 %v3881, %v3877
    %v3938 = vpack.c.b16 %v3882, %v3878
    %v3939 = vpack.c.b16 %v3883, %v3879
    %v3940 = vpack.c.b16 %v3888, %v3884
    %v3941 = vpack.c.b16 %v3889, %v3885
    %v3942 = vpack.c.b16 %v3890, %v3886
    %v3943 = vpack.c.b16 %v3891, %v3887
    %v3944 = vpack.c.b16 %v3896, %v3892
    %v3945 = vpack.c.b16 %v3897, %v3893
    %v3946 = vpack.c.b16 %v3898, %v3894
    %v3947 = vpack.c.b16 %v3899, %v3895
    %v3948 = vpack.c.b16 %v3904, %v3900
    %v3949 = vpack.c.b16 %v3905, %v3901
    %v3950 = vpack.c.b16 %v3906, %v3902
    %v3951 = vpack.c.b16 %v3907, %v3903
    %v3952 = vpack.c.b16 %v3912, %v3908
    %v3953 = vpack.c.b16 %v3913, %v3909
    %v3954 = vpack.c.b16 %v3914, %v3910
    %v3955 = vpack.c.b16 %v3915, %v3911
    %v3956 = vpack.c.b16 %v3920, %v3916
    %v3957 = vpack.c.b16 %v3921, %v3917
    %v3958 = vpack.c.b16 %v3922, %v3918
    %v3959 = vpack.c.b16 %v3923, %v3919
    %v3960 = vpack.c.b16 %v3928, %v3924
    %v3961 = vpack.c.b16 %v3929, %v3925
    %v3962 = vpack.c.b16 %v3930, %v3926
    %v3963 = vpack.c.b16 %v3931, %v3927
    %3996 = vmatprep.subr.bf16.mxu0 %v3933
    %3997 = vmatpush1.bf16.msra.mxu0 %v3932
    %3998 = vmatprep.subr.bf16.mxu0 %v3937
    %3999 = vmatpush1.bf16.msra.mxu0 %v3936
    %4000 = vmatprep.subr.bf16.mxu0 %v3941
    %4001 = vmatpush1.bf16.msra.mxu0 %v3940
    %4002 = vmatprep.subr.bf16.mxu0 %v3945
    %4003 = vmatpush1.bf16.msra.mxu0 %v3944
    %4004 = vmatprep.subr.bf16.mxu0 %v3949
    %4005 = vmatpush1.bf16.msra.mxu0 %v3948
    %4006 = vmatprep.subr.bf16.mxu0 %v3953
    %4007 = vmatpush1.bf16.msra.mxu0 %v3952
    %4008 = vmatprep.subr.bf16.mxu0 %v3957
    %4009 = vmatpush1.bf16.msra.mxu0 %v3956
    %4010 = vmatprep.subr.bf16.mxu0 %v3961
    %4011 = vmatpush1.bf16.msra.mxu0 %v3960
    %4012 = vmatprep.subr.bf16.mxu0 0
    %4013 = vmatpush1.bf16.msra.mxu0 0
    %4014 = vmatprep.subr.bf16.mxu0 0
    %4015 = vmatpush1.bf16.msra.mxu0 0
    %4016 = vmatprep.subr.bf16.mxu0 0
    %4017 = vmatpush1.bf16.msra.mxu0 0
    %4018 = vmatprep.subr.bf16.mxu0 0
    %4019 = vmatpush1.bf16.msra.mxu0 0
    %4020 = vmatprep.subr.bf16.mxu0 0
    %4021 = vmatpush1.bf16.msra.mxu0 0
    %4022 = vmatprep.subr.bf16.mxu0 0
    %4023 = vmatpush1.bf16.msra.mxu0 0
    %4024 = vmatprep.subr.bf16.mxu0 0
    %4025 = vmatpush1.bf16.msra.mxu0 0
    %4026 = vmatprep.subr.bf16.mxu0 0
    %4027 = vmatpush1.bf16.msra.mxu0 0
    %4028 = vmatprep.mubr.bf16.mxu0 0
    %4029 = vmatmul.mubr.bf16.gmra.mrb[0].mxu0 %v3803
    %v4030 = vpop.f32.mrb[0].mxu0
    %v4031 = vadd.f32 0.0, %v4030
    %v4032 = vpop.f32.mrb[0].mxu0
    %v4033 = vadd.f32 0.0, %v4032
    %v4034 = vpop.f32.mrb[0].mxu0
    %v4035 = vpop.f32.mrb[0].mxu0
    %4036 = vdwg.mxu0
    %4037 = vmatprep.subr.bf16.mxu0 %v3935
    %4038 = vmatpush1.bf16.msra.mxu0 %v3934
    %4039 = vmatprep.subr.bf16.mxu0 %v3939
    %4040 = vmatpush1.bf16.msra.mxu0 %v3938
    %4041 = vmatprep.subr.bf16.mxu0 %v3943
    %4042 = vmatpush1.bf16.msra.mxu0 %v3942
    %4043 = vmatprep.subr.bf16.mxu0 %v3947
    %4044 = vmatpush1.bf16.msra.mxu0 %v3946
    %4045 = vmatprep.subr.bf16.mxu0 %v3951
    %4046 = vmatpush1.bf16.msra.mxu0 %v3950
    %4047 = vmatprep.subr.bf16.mxu0 %v3955
    %4048 = vmatpush1.bf16.msra.mxu0 %v3954
    %4049 = vmatprep.subr.bf16.mxu0 %v3959
    %4050 = vmatpush1.bf16.msra.mxu0 %v3958
    %4051 = vmatprep.subr.bf16.mxu0 %v3963
    %4052 = vmatpush1.bf16.msra.mxu0 %v3962
    %4053 = vmatprep.subr.bf16.mxu0 0
    %4054 = vmatpush1.bf16.msra.mxu0 0
    %4055 = vmatprep.subr.bf16.mxu0 0
    %4056 = vmatpush1.bf16.msra.mxu0 0
    %4057 = vmatprep.subr.bf16.mxu0 0
    %4058 = vmatpush1.bf16.msra.mxu0 0
    %4059 = vmatprep.subr.bf16.mxu0 0
    %4060 = vmatpush1.bf16.msra.mxu0 0
    %4061 = vmatprep.subr.bf16.mxu0 0
    %4062 = vmatpush1.bf16.msra.mxu0 0
    %4063 = vmatprep.subr.bf16.mxu0 0
    %4064 = vmatpush1.bf16.msra.mxu0 0
    %4065 = vmatprep.subr.bf16.mxu0 0
    %4066 = vmatpush1.bf16.msra.mxu0 0
    %4067 = vmatprep.subr.bf16.mxu0 0
    %4068 = vmatpush1.bf16.msra.mxu0 0
    %4069 = vmatprep.mubr.bf16.mxu0 0
    %4070 = vmatmul.mubr.bf16.gmra.mrb[0].mxu0 %v3803
    %v4071 = vpop.f32.mrb[0].mxu0
    %v4072 = vadd.f32 0.0, %v4071
    %v4073 = vpop.f32.mrb[0].mxu0
    %v4074 = vadd.f32 0.0, %v4073
    %v4075 = vpop.f32.mrb[0].mxu0
    %v4076 = vpop.f32.mrb[0].mxu0
    %4077 = vdwg.mxu0
    %v4078 = vadd.f32 %v3785, %v4031
    %v4079 = vadd.f32 %v3786, %v4033
    %v4080 = vadd.f32 %v3787, %v4072
    %v4081 = vadd.f32 %v3788, %v4074
    %v4082 = vxor.u32 %v4078, 2147483648
    %v4083 = vxor.u32 %v4079, 2147483648
    %v4084 = vxor.u32 %v4080, 2147483648
    %v4085 = vmul.f32 %v4082, 1.442695
    %v4086 = vpow.pop %v4085
    %v4087 = vmul.f32 %v4083, 1.442695
    %v4088 = vpow.pop %v4087
    %v4089 = vmul.f32 %v4084, 1.442695
    %v4090 = vpow.pop %v4089
    %v4091 = vadd.f32 %v4086, 1.0
    %v4092 = vadd.f32 %v4088, 1.0
    %v4093 = vadd.f32 %v4090, 1.0
    %v4094 = vrcp.pop %v4091
    %v4095 = vmul.f32 1.0, %v4094
    %v4096 = vrcp.pop %v4092
    %v4097 = vmul.f32 1.0, %v4096
    %v4098 = vrcp.pop %v4093
    %v4099 = vmul.f32 1.0, %v4098
    %v4100 = vtanh.pop %v4081
    %v4101 = vmul.f32 %v4097, %v3770
    %v4102 = vmul.f32 %v4095, %v4100
    %v4103 = vadd.f32 %v4101, %v4102
    %v4104 = vtanh.pop %v4103
    %v4105 = vmul.f32 %v4099, %v4104
    %v4106 = vsel %vm3802, %v4105, %v3769
    %4107 = vst.msk [vmem:[%s1050] sm:$0xff] %vm1048, %v4106
    %4108 = vst.msk [vmem:[#allocation2] sm:$0xff] %vm1051, %v4106
    %v4109 = vld [vmem:[#allocation2] sm:$0xff]
    %v4110 = vld [vmem:[#allocation2 + $0x8] sm:$0xff]
    %v4111 = vld [vmem:[#allocation2 + $0x10] sm:$0xff]
    %v4112 = vld [vmem:[#allocation2 + $0x18] sm:$0xff]
    %v4113 = vld [vmem:[#allocation2 + $0x20] sm:$0xff]
    %v4114 = vld [vmem:[#allocation2 + $0x28] sm:$0xff]
    %v4115 = vld [vmem:[#allocation2 + $0x30] sm:$0xff]
    %v4116 = vld [vmem:[#allocation2 + $0x38] sm:$0xff]
    %v4117 = vld [vmem:[#allocation2 + $0x40] sm:$0xff]
    %v4118 = vld [vmem:[#allocation2 + $0x48] sm:$0xff]
    %v4119 = vpack.c.bf16 %v4110, %v4109
    %v4120 = vpack.c.bf16 %v4112, %v4111
    %v4121 = vpack.c.bf16 %v4114, %v4113
    %v4122 = vpack.c.bf16 %v4116, %v4115
    %v4123 = vpack.c.bf16 %v4118, %v4117
    %v4124 = vld [vmem:[#allocation11] sm:$0xff]
    %v4125 = vld [vmem:[#allocation11 + $0x8] sm:$0xff]
    %v4126 = vld [vmem:[#allocation11 + $0x10] sm:$0xff]
    %v4127 = vld [vmem:[#allocation11 + $0x18] sm:$0xff]
    %v4128 = vld [vmem:[#allocation11 + $0x20] sm:$0xff]
    %v4129 = vld [vmem:[#allocation11 + $0x28] sm:$0xff]
    %v4130 = vld [vmem:[#allocation11 + $0x30] sm:$0xff]
    %v4131 = vld [vmem:[#allocation11 + $0x38] sm:$0xff]
    %v4132 = vld [vmem:[#allocation11 + $0x40] sm:$0xff]
    %v4133 = vld [vmem:[#allocation11 + $0x48] sm:$0xff]
    %v4134 = vld [vmem:[#allocation11 + $0x50] sm:$0xff]
    %v4135 = vld [vmem:[#allocation11 + $0x58] sm:$0xff]
    %v4136 = vld [vmem:[#allocation11 + $0x60] sm:$0xff]
    %v4137 = vld [vmem:[#allocation11 + $0x68] sm:$0xff]
    %v4138 = vld [vmem:[#allocation11 + $0x70] sm:$0xff]
    %v4139 = vld [vmem:[#allocation11 + $0x78] sm:$0xff]
    %v4140 = vld [vmem:[#allocation11 + $0x80] sm:$0xff]
    %v4141 = vld [vmem:[#allocation11 + $0x88] sm:$0xff]
    %v4142 = vld [vmem:[#allocation11 + $0x90] sm:$0xff]
    %v4143 = vld [vmem:[#allocation11 + $0x98] sm:$0xff]
    %v4144 = vld [vmem:[#allocation11 + $0xa0] sm:$0xff]
    %v4145 = vld [vmem:[#allocation11 + $0xa8] sm:$0xff]
    %v4146 = vld [vmem:[#allocation11 + $0xb0] sm:$0xff]
    %v4147 = vld [vmem:[#allocation11 + $0xb8] sm:$0xff]
    %v4148 = vld [vmem:[#allocation11 + $0xc0] sm:$0xff]
    %v4149 = vld [vmem:[#allocation11 + $0xc8] sm:$0xff]
    %v4150 = vld [vmem:[#allocation11 + $0xd0] sm:$0xff]
    %v4151 = vld [vmem:[#allocation11 + $0xd8] sm:$0xff]
    %v4152 = vld [vmem:[#allocation11 + $0xe0] sm:$0xff]
    %v4153 = vld [vmem:[#allocation11 + $0xe8] sm:$0xff]
    %v4154 = vld [vmem:[#allocation11 + $0xf0] sm:$0xff]
    %v4155 = vld [vmem:[#allocation11 + $0xf8] sm:$0xff]
    %v4156 = vld [vmem:[%s9] sm:$0xf]
    %v4158 = vlaneseq
    %v4159 = vshrl.u32 %v4158, 7
    %v4160 = vsub.s32 0, %v4159
    %v4161 = vrot.slane %v4156, %v4160
    %v4162 = vlaneseq
    %v4163 = vshrl.u32 %v4162, 7
    %v4164 = vsub.s32 1, %v4163
    %v4165 = vrot.slane %v4156, %v4164
    %v4166 = vlaneseq
    %v4167 = vshrl.u32 %v4166, 7
    %v4168 = vsub.s32 2, %v4167
    %v4169 = vrot.slane %v4156, %v4168
    %v4170 = vlaneseq
    %v4171 = vshrl.u32 %v4170, 7
    %v4172 = vsub.s32 3, %v4171
    %v4173 = vrot.slane %v4156, %v4172
    %v4210 = vunpack.c.l.b16 %v4124
    %v4211 = vunpack.c.h.b16 %v4124
    %v4212 = vunpack.c.l.b16 %v4125
    %v4213 = vunpack.c.h.b16 %v4125
    %v4214 = vunpack.c.l.b16 %v4126
    %v4215 = vunpack.c.h.b16 %v4126
    %v4216 = vunpack.c.l.b16 %v4127
    %v4217 = vunpack.c.h.b16 %v4127
    %v4218 = vunpack.c.l.b16 %v4128
    %v4219 = vunpack.c.h.b16 %v4128
    %v4220 = vunpack.c.l.b16 %v4129
    %v4221 = vunpack.c.h.b16 %v4129
    %v4222 = vunpack.c.l.b16 %v4130
    %v4223 = vunpack.c.h.b16 %v4130
    %v4224 = vunpack.c.l.b16 %v4131
    %v4225 = vunpack.c.h.b16 %v4131
    %v4226 = vunpack.c.l.b16 %v4132
    %v4227 = vunpack.c.h.b16 %v4132
    %v4228 = vunpack.c.l.b16 %v4133
    %v4229 = vunpack.c.h.b16 %v4133
    %v4230 = vunpack.c.l.b16 %v4134
    %v4231 = vunpack.c.h.b16 %v4134
    %v4232 = vunpack.c.l.b16 %v4135
    %v4233 = vunpack.c.h.b16 %v4135
    %v4234 = vunpack.c.l.b16 %v4136
    %v4235 = vunpack.c.h.b16 %v4136
    %v4236 = vunpack.c.l.b16 %v4137
    %v4237 = vunpack.c.h.b16 %v4137
    %v4238 = vunpack.c.l.b16 %v4138
    %v4239 = vunpack.c.h.b16 %v4138
    %v4240 = vunpack.c.l.b16 %v4139
    %v4241 = vunpack.c.h.b16 %v4139
    %v4242 = vunpack.c.l.b16 %v4140
    %v4243 = vunpack.c.h.b16 %v4140
    %v4244 = vunpack.c.l.b16 %v4141
    %v4245 = vunpack.c.h.b16 %v4141
    %v4246 = vunpack.c.l.b16 %v4142
    %v4247 = vunpack.c.h.b16 %v4142
    %v4248 = vunpack.c.l.b16 %v4143
    %v4249 = vunpack.c.h.b16 %v4143
    %v4250 = vunpack.c.l.b16 %v4144
    %v4251 = vunpack.c.h.b16 %v4144
    %v4252 = vunpack.c.l.b16 %v4145
    %v4253 = vunpack.c.h.b16 %v4145
    %v4254 = vunpack.c.l.b16 %v4146
    %v4255 = vunpack.c.h.b16 %v4146
    %v4256 = vunpack.c.l.b16 %v4147
    %v4257 = vunpack.c.h.b16 %v4147
    %v4258 = vunpack.c.l.b16 %v4148
    %v4259 = vunpack.c.h.b16 %v4148
    %v4260 = vunpack.c.l.b16 %v4149
    %v4261 = vunpack.c.h.b16 %v4149
    %v4262 = vunpack.c.l.b16 %v4150
    %v4263 = vunpack.c.h.b16 %v4150
    %v4264 = vunpack.c.l.b16 %v4151
    %v4265 = vunpack.c.h.b16 %v4151
    %v4266 = vunpack.c.l.b16 %v4152
    %v4267 = vunpack.c.h.b16 %v4152
    %v4268 = vunpack.c.l.b16 %v4153
    %v4269 = vunpack.c.h.b16 %v4153
    %v4270 = vunpack.c.l.b16 %v4154
    %v4271 = vunpack.c.h.b16 %v4154
    %v4272 = vunpack.c.l.b16 %v4155
    %v4273 = vunpack.c.h.b16 %v4155
    %v4274 = vpack.c.b16 %v4214, %v4210
    %v4275 = vpack.c.b16 %v4215, %v4211
    %v4276 = vpack.c.b16 %v4216, %v4212
    %v4277 = vpack.c.b16 %v4217, %v4213
    %v4278 = vpack.c.b16 %v4222, %v4218
    %v4279 = vpack.c.b16 %v4223, %v4219
    %v4280 = vpack.c.b16 %v4224, %v4220
    %v4281 = vpack.c.b16 %v4225, %v4221
    %v4282 = vpack.c.b16 %v4230, %v4226
    %v4283 = vpack.c.b16 %v4231, %v4227
    %v4284 = vpack.c.b16 %v4232, %v4228
    %v4285 = vpack.c.b16 %v4233, %v4229
    %v4286 = vpack.c.b16 %v4238, %v4234
    %v4287 = vpack.c.b16 %v4239, %v4235
    %v4288 = vpack.c.b16 %v4240, %v4236
    %v4289 = vpack.c.b16 %v4241, %v4237
    %v4290 = vpack.c.b16 %v4246, %v4242
    %v4291 = vpack.c.b16 %v4247, %v4243
    %v4292 = vpack.c.b16 %v4248, %v4244
    %v4293 = vpack.c.b16 %v4249, %v4245
    %v4294 = vpack.c.b16 %v4254, %v4250
    %v4295 = vpack.c.b16 %v4255, %v4251
    %v4296 = vpack.c.b16 %v4256, %v4252
    %v4297 = vpack.c.b16 %v4257, %v4253
    %v4298 = vpack.c.b16 %v4262, %v4258
    %v4299 = vpack.c.b16 %v4263, %v4259
    %v4300 = vpack.c.b16 %v4264, %v4260
    %v4301 = vpack.c.b16 %v4265, %v4261
    %v4302 = vpack.c.b16 %v4270, %v4266
    %v4303 = vpack.c.b16 %v4271, %v4267
    %v4304 = vpack.c.b16 %v4272, %v4268
    %v4305 = vpack.c.b16 %v4273, %v4269
    %4338 = vmatprep.subr.bf16.mxu0 %v4275
    %4339 = vmatpush1.bf16.msra.mxu0 %v4274
    %4340 = vmatprep.subr.bf16.mxu0 %v4279
    %4341 = vmatpush1.bf16.msra.mxu0 %v4278
    %4342 = vmatprep.subr.bf16.mxu0 %v4283
    %4343 = vmatpush1.bf16.msra.mxu0 %v4282
    %4344 = vmatprep.subr.bf16.mxu0 %v4287
    %4345 = vmatpush1.bf16.msra.mxu0 %v4286
    %4346 = vmatprep.subr.bf16.mxu0 %v4291
    %4347 = vmatpush1.bf16.msra.mxu0 %v4290
    %4348 = vmatprep.subr.bf16.mxu0 %v4295
    %4349 = vmatpush1.bf16.msra.mxu0 %v4294
    %4350 = vmatprep.subr.bf16.mxu0 %v4299
    %4351 = vmatpush1.bf16.msra.mxu0 %v4298
    %4352 = vmatprep.subr.bf16.mxu0 %v4303
    %4353 = vmatpush1.bf16.msra.mxu0 %v4302
    %4354 = vmatprep.subr.bf16.mxu0 0
    %4355 = vmatpush1.bf16.msra.mxu0 0
    %4356 = vmatprep.subr.bf16.mxu0 0
    %4357 = vmatpush1.bf16.msra.mxu0 0
    %4358 = vmatprep.subr.bf16.mxu0 0
    %4359 = vmatpush1.bf16.msra.mxu0 0
    %4360 = vmatprep.subr.bf16.mxu0 0
    %4361 = vmatpush1.bf16.msra.mxu0 0
    %4362 = vmatprep.subr.bf16.mxu0 0
    %4363 = vmatpush1.bf16.msra.mxu0 0
    %4364 = vmatprep.subr.bf16.mxu0 0
    %4365 = vmatpush1.bf16.msra.mxu0 0
    %4366 = vmatprep.subr.bf16.mxu0 0
    %4367 = vmatpush1.bf16.msra.mxu0 0
    %4368 = vmatprep.subr.bf16.mxu0 0
    %4369 = vmatpush1.bf16.msra.mxu0 0
    %4370 = vmatprep.mubr.bf16.mxu0 0
    %4371 = vmatmul.mubr.bf16.gmra.mrb[0].mxu0 %v4119
    %v4372 = vpop.f32.mrb[0].mxu0
    %v4373 = vadd.f32 %v4161, %v4372
    %v4374 = vpop.f32.mrb[0].mxu0
    %v4375 = vadd.f32 %v4165, %v4374
    %v4376 = vpop.f32.mrb[0].mxu0
    %v4377 = vadd.f32 %v4161, %v4376
    %v4378 = vpop.f32.mrb[0].mxu0
    %v4379 = vadd.f32 %v4165, %v4378
    %4380 = vmatprep.mubr.bf16.mxu0 0
    %4381 = vmatmul.mubr.bf16.gmra.mrb[0].mxu0 %v4120
    %v4382 = vpop.f32.mrb[0].mxu0
    %v4383 = vadd.f32 %v4161, %v4382
    %v4384 = vpop.f32.mrb[0].mxu0
    %v4385 = vadd.f32 %v4165, %v4384
    %v4386 = vpop.f32.mrb[0].mxu0
    %v4387 = vadd.f32 %v4161, %v4386
    %v4388 = vpop.f32.mrb[0].mxu0
    %v4389 = vadd.f32 %v4165, %v4388
    %4390 = vmatprep.mubr.bf16.mxu0 0
    %4391 = vmatmul.mubr.bf16.gmra.mrb[0].mxu0 %v4121
    %v4392 = vpop.f32.mrb[0].mxu0
    %v4393 = vadd.f32 %v4161, %v4392
    %v4394 = vpop.f32.mrb[0].mxu0
    %v4395 = vadd.f32 %v4165, %v4394
    %v4396 = vpop.f32.mrb[0].mxu0
    %v4397 = vadd.f32 %v4161, %v4396
    %v4398 = vpop.f32.mrb[0].mxu0
    %v4399 = vadd.f32 %v4165, %v4398
    %4400 = vmatprep.mubr.bf16.mxu0 0
    %4401 = vmatmul.mubr.bf16.gmra.mrb[0].mxu0 %v4122
    %v4402 = vpop.f32.mrb[0].mxu0
    %v4403 = vadd.f32 %v4161, %v4402
    %v4404 = vpop.f32.mrb[0].mxu0
    %v4405 = vadd.f32 %v4165, %v4404
    %v4406 = vpop.f32.mrb[0].mxu0
    %v4407 = vadd.f32 %v4161, %v4406
    %v4408 = vpop.f32.mrb[0].mxu0
    %v4409 = vadd.f32 %v4165, %v4408
    %4410 = vmatprep.mubr.bf16.mxu0 0
    %4411 = vmatmul.mubr.bf16.gmra.mrb[0].mxu0 %v4123
    %v4412 = vpop.f32.mrb[0].mxu0
    %v4413 = vadd.f32 %v4161, %v4412
    %v4414 = vpop.f32.mrb[0].mxu0
    %v4415 = vadd.f32 %v4165, %v4414
    %v4416 = vpop.f32.mrb[0].mxu0
    %v4417 = vadd.f32 %v4161, %v4416
    %v4418 = vpop.f32.mrb[0].mxu0
    %v4419 = vadd.f32 %v4165, %v4418
    %4420 = vdwg.mxu0
    %4421 = vmatprep.subr.bf16.mxu0 %v4277
    %4422 = vmatpush1.bf16.msra.mxu0 %v4276
    %4423 = vmatprep.subr.bf16.mxu0 %v4281
    %4424 = vmatpush1.bf16.msra.mxu0 %v4280
    %4425 = vmatprep.subr.bf16.mxu0 %v4285
    %4426 = vmatpush1.bf16.msra.mxu0 %v4284
    %4427 = vmatprep.subr.bf16.mxu0 %v4289
    %4428 = vmatpush1.bf16.msra.mxu0 %v4288
    %4429 = vmatprep.subr.bf16.mxu0 %v4293
    %4430 = vmatpush1.bf16.msra.mxu0 %v4292
    %4431 = vmatprep.subr.bf16.mxu0 %v4297
    %4432 = vmatpush1.bf16.msra.mxu0 %v4296
    %4433 = vmatprep.subr.bf16.mxu0 %v4301
    %4434 = vmatpush1.bf16.msra.mxu0 %v4300
    %4435 = vmatprep.subr.bf16.mxu0 %v4305
    %4436 = vmatpush1.bf16.msra.mxu0 %v4304
    %4437 = vmatprep.subr.bf16.mxu0 0
    %4438 = vmatpush1.bf16.msra.mxu0 0
    %4439 = vmatprep.subr.bf16.mxu0 0
    %4440 = vmatpush1.bf16.msra.mxu0 0
    %4441 = vmatprep.subr.bf16.mxu0 0
    %4442 = vmatpush1.bf16.msra.mxu0 0
    %4443 = vmatprep.subr.bf16.mxu0 0
    %4444 = vmatpush1.bf16.msra.mxu0 0
    %4445 = vmatprep.subr.bf16.mxu0 0
    %4446 = vmatpush1.bf16.msra.mxu0 0
    %4447 = vmatprep.subr.bf16.mxu0 0
    %4448 = vmatpush1.bf16.msra.mxu0 0
    %4449 = vmatprep.subr.bf16.mxu0 0
    %4450 = vmatpush1.bf16.msra.mxu0 0
    %4451 = vmatprep.subr.bf16.mxu0 0
    %4452 = vmatpush1.bf16.msra.mxu0 0
    %4453 = vmatprep.mubr.bf16.mxu0 0
    %4454 = vmatmul.mubr.bf16.gmra.mrb[0].mxu0 %v4119
    %v4455 = vpop.f32.mrb[0].mxu0
    %v4456 = vadd.f32 %v4169, %v4455
    %v4457 = vpop.f32.mrb[0].mxu0
    %v4458 = vadd.f32 %v4173, %v4457
    %v4459 = vpop.f32.mrb[0].mxu0
    %v4460 = vadd.f32 %v4169, %v4459
    %v4461 = vpop.f32.mrb[0].mxu0
    %v4462 = vadd.f32 %v4173, %v4461
    %4463 = vmatprep.mubr.bf16.mxu0 0
    %4464 = vmatmul.mubr.bf16.gmra.mrb[0].mxu0 %v4120
    %v4465 = vpop.f32.mrb[0].mxu0
    %v4466 = vadd.f32 %v4169, %v4465
    %v4467 = vpop.f32.mrb[0].mxu0
    %v4468 = vadd.f32 %v4173, %v4467
    %v4469 = vpop.f32.mrb[0].mxu0
    %v4470 = vadd.f32 %v4169, %v4469
    %v4471 = vpop.f32.mrb[0].mxu0
    %v4472 = vadd.f32 %v4173, %v4471
    %4473 = vmatprep.mubr.bf16.mxu0 0
    %4474 = vmatmul.mubr.bf16.gmra.mrb[0].mxu0 %v4121
    %v4475 = vpop.f32.mrb[0].mxu0
    %v4476 = vadd.f32 %v4169, %v4475
    %v4477 = vpop.f32.mrb[0].mxu0
    %v4478 = vadd.f32 %v4173, %v4477
    %v4479 = vpop.f32.mrb[0].mxu0
    %v4480 = vadd.f32 %v4169, %v4479
    %v4481 = vpop.f32.mrb[0].mxu0
    %v4482 = vadd.f32 %v4173, %v4481
    %4483 = vmatprep.mubr.bf16.mxu0 0
    %4484 = vmatmul.mubr.bf16.gmra.mrb[0].mxu0 %v4122
    %v4485 = vpop.f32.mrb[0].mxu0
    %v4486 = vadd.f32 %v4169, %v4485
    %v4487 = vpop.f32.mrb[0].mxu0
    %v4488 = vadd.f32 %v4173, %v4487
    %v4489 = vpop.f32.mrb[0].mxu0
    %v4490 = vadd.f32 %v4169, %v4489
    %v4491 = vpop.f32.mrb[0].mxu0
    %v4492 = vadd.f32 %v4173, %v4491
    %4493 = vmatprep.mubr.bf16.mxu0 0
    %4494 = vmatmul.mubr.bf16.gmra.mrb[0].mxu0 %v4123
    %v4495 = vpop.f32.mrb[0].mxu0
    %v4496 = vadd.f32 %v4169, %v4495
    %v4497 = vpop.f32.mrb[0].mxu0
    %v4498 = vadd.f32 %v4173, %v4497
    %v4499 = vpop.f32.mrb[0].mxu0
    %v4500 = vadd.f32 %v4169, %v4499
    %v4501 = vpop.f32.mrb[0].mxu0
    %v4502 = vadd.f32 %v4173, %v4501
    %4503 = vdwg.mxu0
    %4504 = vst [vmem:[#allocation3] sm:$0xff] %v4373
    %4505 = vst [vmem:[#allocation3 + $0x8] sm:$0xff] %v4375
    %4506 = vst [vmem:[#allocation3 + $0x10] sm:$0xff] %v4456
    %4507 = vst [vmem:[#allocation3 + $0x18] sm:$0xff] %v4458
    %4508 = vst [vmem:[#allocation3 + $0x20] sm:$0xff] %v4377
    %4509 = vst [vmem:[#allocation3 + $0x28] sm:$0xff] %v4379
    %4510 = vst [vmem:[#allocation3 + $0x30] sm:$0xff] %v4460
    %4511 = vst [vmem:[#allocation3 + $0x38] sm:$0xff] %v4462
    %4512 = vst [vmem:[#allocation3 + $0x40] sm:$0xff] %v4383
    %4513 = vst [vmem:[#allocation3 + $0x48] sm:$0xff] %v4385
    %4514 = vst [vmem:[#allocation3 + $0x50] sm:$0xff] %v4466
    %4515 = vst [vmem:[#allocation3 + $0x58] sm:$0xff] %v4468
    %4516 = vst [vmem:[#allocation3 + $0x60] sm:$0xff] %v4387
    %4517 = vst [vmem:[#allocation3 + $0x68] sm:$0xff] %v4389
    %4518 = vst [vmem:[#allocation3 + $0x70] sm:$0xff] %v4470
    %4519 = vst [vmem:[#allocation3 + $0x78] sm:$0xff] %v4472
    %4520 = vst [vmem:[#allocation3 + $0x80] sm:$0xff] %v4393
    %4521 = vst [vmem:[#allocation3 + $0x88] sm:$0xff] %v4395
    %4522 = vst [vmem:[#allocation3 + $0x90] sm:$0xff] %v4476
    %4523 = vst [vmem:[#allocation3 + $0x98] sm:$0xff] %v4478
    %4524 = vst [vmem:[#allocation3 + $0xa0] sm:$0xff] %v4397
    %4525 = vst [vmem:[#allocation3 + $0xa8] sm:$0xff] %v4399
    %4526 = vst [vmem:[#allocation3 + $0xb0] sm:$0xff] %v4480
    %4527 = vst [vmem:[#allocation3 + $0xb8] sm:$0xff] %v4482
    %4528 = vst [vmem:[#allocation3 + $0xc0] sm:$0xff] %v4403
    %4529 = vst [vmem:[#allocation3 + $0xc8] sm:$0xff] %v4405
    %4530 = vst [vmem:[#allocation3 + $0xd0] sm:$0xff] %v4486
    %4531 = vst [vmem:[#allocation3 + $0xd8] sm:$0xff] %v4488
    %4532 = vst [vmem:[#allocation3 + $0xe0] sm:$0xff] %v4407
    %4533 = vst [vmem:[#allocation3 + $0xe8] sm:$0xff] %v4409
    %4534 = vst [vmem:[#allocation3 + $0xf0] sm:$0xff] %v4490
    %4535 = vst [vmem:[#allocation3 + $0xf8] sm:$0xff] %v4492
    %4536 = vst [vmem:[#allocation3 + $0x100] sm:$0xff] %v4413
    %4537 = vst [vmem:[#allocation3 + $0x108] sm:$0xff] %v4415
    %4538 = vst [vmem:[#allocation3 + $0x110] sm:$0xff] %v4496
    %4539 = vst [vmem:[#allocation3 + $0x118] sm:$0xff] %v4498
    %4540 = vst [vmem:[#allocation3 + $0x120] sm:$0xff] %v4417
    %4541 = vst [vmem:[#allocation3 + $0x128] sm:$0xff] %v4419
    %4542 = vst [vmem:[#allocation3 + $0x130] sm:$0xff] %v4500
    %4543 = vst [vmem:[#allocation3 + $0x138] sm:$0xff] %v4502
    %v4544 = vld [vmem:[#allocation13] sm:$0xff]
    %v4545 = vld [vmem:[#allocation13 + $0x8] sm:$0xff]
    %v4546 = vld [vmem:[#allocation13 + $0x10] sm:$0xff]
    %v4547 = vld [vmem:[#allocation13 + $0x18] sm:$0xff]
    %v4548 = vld [vmem:[#allocation13 + $0x20] sm:$0xff]
    %v4549 = vld [vmem:[#allocation13 + $0x28] sm:$0xff]
    %v4550 = vld [vmem:[#allocation13 + $0x30] sm:$0xff]
    %v4551 = vld [vmem:[#allocation13 + $0x38] sm:$0xff]
    %v4552 = vld [vmem:[#allocation13 + $0x40] sm:$0xff]
    %v4553 = vld [vmem:[#allocation13 + $0x48] sm:$0xff]
    %v4554 = vld [vmem:[#allocation13 + $0x50] sm:$0xff]
    %v4555 = vld [vmem:[#allocation13 + $0x58] sm:$0xff]
    %v4556 = vld [vmem:[#allocation13 + $0x60] sm:$0xff]
    %v4557 = vld [vmem:[#allocation13 + $0x68] sm:$0xff]
    %v4558 = vld [vmem:[#allocation13 + $0x70] sm:$0xff]
    %v4559 = vld [vmem:[#allocation13 + $0x78] sm:$0xff]
    %v4560 = vld [vmem:[#allocation13 + $0x80] sm:$0xff]
    %v4561 = vld [vmem:[#allocation13 + $0x88] sm:$0xff]
    %v4562 = vld [vmem:[#allocation13 + $0x90] sm:$0xff]
    %v4563 = vld [vmem:[#allocation13 + $0x98] sm:$0xff]
    %v4564 = vld [vmem:[#allocation13 + $0xa0] sm:$0xff]
    %v4565 = vld [vmem:[#allocation13 + $0xa8] sm:$0xff]
    %v4566 = vld [vmem:[#allocation13 + $0xb0] sm:$0xff]
    %v4567 = vld [vmem:[#allocation13 + $0xb8] sm:$0xff]
    %v4568 = vld [vmem:[#allocation13 + $0xc0] sm:$0xff]
    %v4569 = vld [vmem:[#allocation13 + $0xc8] sm:$0xff]
    %v4570 = vld [vmem:[#allocation13 + $0xd0] sm:$0xff]
    %v4571 = vld [vmem:[#allocation13 + $0xd8] sm:$0xff]
    %v4572 = vld [vmem:[#allocation13 + $0xe0] sm:$0xff]
    %v4573 = vld [vmem:[#allocation13 + $0xe8] sm:$0xff]
    %v4574 = vld [vmem:[#allocation13 + $0xf0] sm:$0xff]
    %v4575 = vld [vmem:[#allocation13 + $0xf8] sm:$0xff]
    %v4608 = vunpack.c.l.b16 %v4544
    %v4609 = vunpack.c.h.b16 %v4544
    %v4610 = vunpack.c.l.b16 %v4545
    %v4611 = vunpack.c.h.b16 %v4545
    %v4612 = vunpack.c.l.b16 %v4546
    %v4613 = vunpack.c.h.b16 %v4546
    %v4614 = vunpack.c.l.b16 %v4547
    %v4615 = vunpack.c.h.b16 %v4547
    %v4616 = vunpack.c.l.b16 %v4548
    %v4617 = vunpack.c.h.b16 %v4548
    %v4618 = vunpack.c.l.b16 %v4549
    %v4619 = vunpack.c.h.b16 %v4549
    %v4620 = vunpack.c.l.b16 %v4550
    %v4621 = vunpack.c.h.b16 %v4550
    %v4622 = vunpack.c.l.b16 %v4551
    %v4623 = vunpack.c.h.b16 %v4551
    %v4624 = vunpack.c.l.b16 %v4552
    %v4625 = vunpack.c.h.b16 %v4552
    %v4626 = vunpack.c.l.b16 %v4553
    %v4627 = vunpack.c.h.b16 %v4553
    %v4628 = vunpack.c.l.b16 %v4554
    %v4629 = vunpack.c.h.b16 %v4554
    %v4630 = vunpack.c.l.b16 %v4555
    %v4631 = vunpack.c.h.b16 %v4555
    %v4632 = vunpack.c.l.b16 %v4556
    %v4633 = vunpack.c.h.b16 %v4556
    %v4634 = vunpack.c.l.b16 %v4557
    %v4635 = vunpack.c.h.b16 %v4557
    %v4636 = vunpack.c.l.b16 %v4558
    %v4637 = vunpack.c.h.b16 %v4558
    %v4638 = vunpack.c.l.b16 %v4559
    %v4639 = vunpack.c.h.b16 %v4559
    %v4640 = vunpack.c.l.b16 %v4560
    %v4641 = vunpack.c.h.b16 %v4560
    %v4642 = vunpack.c.l.b16 %v4561
    %v4643 = vunpack.c.h.b16 %v4561
    %v4644 = vunpack.c.l.b16 %v4562
    %v4645 = vunpack.c.h.b16 %v4562
    %v4646 = vunpack.c.l.b16 %v4563
    %v4647 = vunpack.c.h.b16 %v4563
    %v4648 = vunpack.c.l.b16 %v4564
    %v4649 = vunpack.c.h.b16 %v4564
    %v4650 = vunpack.c.l.b16 %v4565
    %v4651 = vunpack.c.h.b16 %v4565
    %v4652 = vunpack.c.l.b16 %v4566
    %v4653 = vunpack.c.h.b16 %v4566
    %v4654 = vunpack.c.l.b16 %v4567
    %v4655 = vunpack.c.h.b16 %v4567
    %v4656 = vunpack.c.l.b16 %v4568
    %v4657 = vunpack.c.h.b16 %v4568
    %v4658 = vunpack.c.l.b16 %v4569
    %v4659 = vunpack.c.h.b16 %v4569
    %v4660 = vunpack.c.l.b16 %v4570
    %v4661 = vunpack.c.h.b16 %v4570
    %v4662 = vunpack.c.l.b16 %v4571
    %v4663 = vunpack.c.h.b16 %v4571
    %v4664 = vunpack.c.l.b16 %v4572
    %v4665 = vunpack.c.h.b16 %v4572
    %v4666 = vunpack.c.l.b16 %v4573
    %v4667 = vunpack.c.h.b16 %v4573
    %v4668 = vunpack.c.l.b16 %v4574
    %v4669 = vunpack.c.h.b16 %v4574
    %v4670 = vunpack.c.l.b16 %v4575
    %v4671 = vunpack.c.h.b16 %v4575
    %v4672 = vpack.c.b16 %v4612, %v4608
    %v4673 = vpack.c.b16 %v4613, %v4609
    %v4674 = vpack.c.b16 %v4614, %v4610
    %v4675 = vpack.c.b16 %v4615, %v4611
    %v4676 = vpack.c.b16 %v4620, %v4616
    %v4677 = vpack.c.b16 %v4621, %v4617
    %v4678 = vpack.c.b16 %v4622, %v4618
    %v4679 = vpack.c.b16 %v4623, %v4619
    %v4680 = vpack.c.b16 %v4628, %v4624
    %v4681 = vpack.c.b16 %v4629, %v4625
    %v4682 = vpack.c.b16 %v4630, %v4626
    %v4683 = vpack.c.b16 %v4631, %v4627
    %v4684 = vpack.c.b16 %v4636, %v4632
    %v4685 = vpack.c.b16 %v4637, %v4633
    %v4686 = vpack.c.b16 %v4638, %v4634
    %v4687 = vpack.c.b16 %v4639, %v4635
    %v4688 = vpack.c.b16 %v4644, %v4640
    %v4689 = vpack.c.b16 %v4645, %v4641
    %v4690 = vpack.c.b16 %v4646, %v4642
    %v4691 = vpack.c.b16 %v4647, %v4643
    %v4692 = vpack.c.b16 %v4652, %v4648
    %v4693 = vpack.c.b16 %v4653, %v4649
    %v4694 = vpack.c.b16 %v4654, %v4650
    %v4695 = vpack.c.b16 %v4655, %v4651
    %v4696 = vpack.c.b16 %v4660, %v4656
    %v4697 = vpack.c.b16 %v4661, %v4657
    %v4698 = vpack.c.b16 %v4662, %v4658
    %v4699 = vpack.c.b16 %v4663, %v4659
    %v4700 = vpack.c.b16 %v4668, %v4664
    %v4701 = vpack.c.b16 %v4669, %v4665
    %v4702 = vpack.c.b16 %v4670, %v4666
    %v4703 = vpack.c.b16 %v4671, %v4667
    %4736 = vmatprep.subr.bf16.mxu0 %v4673
    %4737 = vmatpush1.bf16.msra.mxu0 %v4672
    %4738 = vmatprep.subr.bf16.mxu0 %v4677
    %4739 = vmatpush1.bf16.msra.mxu0 %v4676
    %4740 = vmatprep.subr.bf16.mxu0 %v4681
    %4741 = vmatpush1.bf16.msra.mxu0 %v4680
    %4742 = vmatprep.subr.bf16.mxu0 %v4685
    %4743 = vmatpush1.bf16.msra.mxu0 %v4684
    %4744 = vmatprep.subr.bf16.mxu0 %v4689
    %4745 = vmatpush1.bf16.msra.mxu0 %v4688
    %4746 = vmatprep.subr.bf16.mxu0 %v4693
    %4747 = vmatpush1.bf16.msra.mxu0 %v4692
    %4748 = vmatprep.subr.bf16.mxu0 %v4697
    %4749 = vmatpush1.bf16.msra.mxu0 %v4696
    %4750 = vmatprep.subr.bf16.mxu0 %v4701
    %4751 = vmatpush1.bf16.msra.mxu0 %v4700
    %4752 = vmatprep.subr.bf16.mxu0 0
    %4753 = vmatpush1.bf16.msra.mxu0 0
    %4754 = vmatprep.subr.bf16.mxu0 0
    %4755 = vmatpush1.bf16.msra.mxu0 0
    %4756 = vmatprep.subr.bf16.mxu0 0
    %4757 = vmatpush1.bf16.msra.mxu0 0
    %4758 = vmatprep.subr.bf16.mxu0 0
    %4759 = vmatpush1.bf16.msra.mxu0 0
    %4760 = vmatprep.subr.bf16.mxu0 0
    %4761 = vmatpush1.bf16.msra.mxu0 0
    %4762 = vmatprep.subr.bf16.mxu0 0
    %4763 = vmatpush1.bf16.msra.mxu0 0
    %4764 = vmatprep.subr.bf16.mxu0 0
    %4765 = vmatpush1.bf16.msra.mxu0 0
    %4766 = vmatprep.subr.bf16.mxu0 0
    %4767 = vmatpush1.bf16.msra.mxu0 0
    %4768 = vmatprep.mubr.bf16.mxu0 0
    %4769 = vmatmul.mubr.bf16.gmra.mrb[0].mxu0 %v4119
    %v4770 = vpop.f32.mrb[0].mxu0
    %v4771 = vadd.f32 0.0, %v4770
    %v4772 = vpop.f32.mrb[0].mxu0
    %v4773 = vadd.f32 0.0, %v4772
    %v4774 = vpop.f32.mrb[0].mxu0
    %v4775 = vadd.f32 0.0, %v4774
    %v4776 = vpop.f32.mrb[0].mxu0
    %v4777 = vadd.f32 0.0, %v4776
    %4778 = vmatprep.mubr.bf16.mxu0 0
    %4779 = vmatmul.mubr.bf16.gmra.mrb[0].mxu0 %v4120
    %v4780 = vpop.f32.mrb[0].mxu0
    %v4781 = vadd.f32 0.0, %v4780
    %v4782 = vpop.f32.mrb[0].mxu0
    %v4783 = vadd.f32 0.0, %v4782
    %v4784 = vpop.f32.mrb[0].mxu0
    %v4785 = vadd.f32 0.0, %v4784
    %v4786 = vpop.f32.mrb[0].mxu0
    %v4787 = vadd.f32 0.0, %v4786
    %4788 = vmatprep.mubr.bf16.mxu0 0
    %4789 = vmatmul.mubr.bf16.gmra.mrb[0].mxu0 %v4121
    %v4790 = vpop.f32.mrb[0].mxu0
    %v4791 = vadd.f32 0.0, %v4790
    %v4792 = vpop.f32.mrb[0].mxu0
    %v4793 = vadd.f32 0.0, %v4792
    %v4794 = vpop.f32.mrb[0].mxu0
    %v4795 = vadd.f32 0.0, %v4794
    %v4796 = vpop.f32.mrb[0].mxu0
    %v4797 = vadd.f32 0.0, %v4796
    %4798 = vmatprep.mubr.bf16.mxu0 0
    %4799 = vmatmul.mubr.bf16.gmra.mrb[0].mxu0 %v4122
    %v4800 = vpop.f32.mrb[0].mxu0
    %v4801 = vadd.f32 0.0, %v4800
    %v4802 = vpop.f32.mrb[0].mxu0
    %v4803 = vadd.f32 0.0, %v4802
    %v4804 = vpop.f32.mrb[0].mxu0
    %v4805 = vadd.f32 0.0, %v4804
    %v4806 = vpop.f32.mrb[0].mxu0
    %v4807 = vadd.f32 0.0, %v4806
    %4808 = vmatprep.mubr.bf16.mxu0 0
    %4809 = vmatmul.mubr.bf16.gmra.mrb[0].mxu0 %v4123
    %v4810 = vpop.f32.mrb[0].mxu0
    %v4811 = vadd.f32 0.0, %v4810
    %v4812 = vpop.f32.mrb[0].mxu0
    %v4813 = vadd.f32 0.0, %v4812
    %v4814 = vpop.f32.mrb[0].mxu0
    %v4815 = vadd.f32 0.0, %v4814
    %v4816 = vpop.f32.mrb[0].mxu0
    %v4817 = vadd.f32 0.0, %v4816
    %4818 = vdwg.mxu0
    %4819 = vmatprep.subr.bf16.mxu0 %v4675
    %4820 = vmatpush1.bf16.msra.mxu0 %v4674
    %4821 = vmatprep.subr.bf16.mxu0 %v4679
    %4822 = vmatpush1.bf16.msra.mxu0 %v4678
    %4823 = vmatprep.subr.bf16.mxu0 %v4683
    %4824 = vmatpush1.bf16.msra.mxu0 %v4682
    %4825 = vmatprep.subr.bf16.mxu0 %v4687
    %4826 = vmatpush1.bf16.msra.mxu0 %v4686
    %4827 = vmatprep.subr.bf16.mxu0 %v4691
    %4828 = vmatpush1.bf16.msra.mxu0 %v4690
    %4829 = vmatprep.subr.bf16.mxu0 %v4695
    %4830 = vmatpush1.bf16.msra.mxu0 %v4694
    %4831 = vmatprep.subr.bf16.mxu0 %v4699
    %4832 = vmatpush1.bf16.msra.mxu0 %v4698
    %4833 = vmatprep.subr.bf16.mxu0 %v4703
    %4834 = vmatpush1.bf16.msra.mxu0 %v4702
    %4835 = vmatprep.subr.bf16.mxu0 0
    %4836 = vmatpush1.bf16.msra.mxu0 0
    %4837 = vmatprep.subr.bf16.mxu0 0
    %4838 = vmatpush1.bf16.msra.mxu0 0
    %4839 = vmatprep.subr.bf16.mxu0 0
    %4840 = vmatpush1.bf16.msra.mxu0 0
    %4841 = vmatprep.subr.bf16.mxu0 0
    %4842 = vmatpush1.bf16.msra.mxu0 0
    %4843 = vmatprep.subr.bf16.mxu0 0
    %4844 = vmatpush1.bf16.msra.mxu0 0
    %4845 = vmatprep.subr.bf16.mxu0 0
    %4846 = vmatpush1.bf16.msra.mxu0 0
    %4847 = vmatprep.subr.bf16.mxu0 0
    %4848 = vmatpush1.bf16.msra.mxu0 0
    %4849 = vmatprep.subr.bf16.mxu0 0
    %4850 = vmatpush1.bf16.msra.mxu0 0
    %4851 = vmatprep.mubr.bf16.mxu0 0
    %4852 = vmatmul.mubr.bf16.gmra.mrb[0].mxu0 %v4119
    %v4853 = vpop.f32.mrb[0].mxu0
    %v4854 = vadd.f32 0.0, %v4853
    %v4855 = vpop.f32.mrb[0].mxu0
    %v4856 = vadd.f32 0.0, %v4855
    %v4857 = vpop.f32.mrb[0].mxu0
    %v4858 = vadd.f32 0.0, %v4857
    %v4859 = vpop.f32.mrb[0].mxu0
    %v4860 = vadd.f32 0.0, %v4859
    %4861 = vmatprep.mubr.bf16.mxu0 0
    %4862 = vmatmul.mubr.bf16.gmra.mrb[0].mxu0 %v4120
    %v4863 = vpop.f32.mrb[0].mxu0
    %v4864 = vadd.f32 0.0, %v4863
    %v4865 = vpop.f32.mrb[0].mxu0
    %v4866 = vadd.f32 0.0, %v4865
    %v4867 = vpop.f32.mrb[0].mxu0
    %v4868 = vadd.f32 0.0, %v4867
    %v4869 = vpop.f32.mrb[0].mxu0
    %v4870 = vadd.f32 0.0, %v4869
    %4871 = vmatprep.mubr.bf16.mxu0 0
    %4872 = vmatmul.mubr.bf16.gmra.mrb[0].mxu0 %v4121
    %v4873 = vpop.f32.mrb[0].mxu0
    %v4874 = vadd.f32 0.0, %v4873
    %v4875 = vpop.f32.mrb[0].mxu0
    %v4876 = vadd.f32 0.0, %v4875
    %v4877 = vpop.f32.mrb[0].mxu0
    %v4878 = vadd.f32 0.0, %v4877
    %v4879 = vpop.f32.mrb[0].mxu0
    %v4880 = vadd.f32 0.0, %v4879
    %4881 = vmatprep.mubr.bf16.mxu0 0
    %4882 = vmatmul.mubr.bf16.gmra.mrb[0].mxu0 %v4122
    %v4883 = vpop.f32.mrb[0].mxu0
    %v4884 = vadd.f32 0.0, %v4883
    %v4885 = vpop.f32.mrb[0].mxu0
    %v4886 = vadd.f32 0.0, %v4885
    %v4887 = vpop.f32.mrb[0].mxu0
    %v4888 = vadd.f32 0.0, %v4887
    %v4889 = vpop.f32.mrb[0].mxu0
    %v4890 = vadd.f32 0.0, %v4889
    %4891 = vmatprep.mubr.bf16.mxu0 0
    %4892 = vmatmul.mubr.bf16.gmra.mrb[0].mxu0 %v4123
    %v4893 = vpop.f32.mrb[0].mxu0
    %v4894 = vadd.f32 0.0, %v4893
    %v4895 = vpop.f32.mrb[0].mxu0
    %v4896 = vadd.f32 0.0, %v4895
    %v4897 = vpop.f32.mrb[0].mxu0
    %v4898 = vadd.f32 0.0, %v4897
    %v4899 = vpop.f32.mrb[0].mxu0
    %v4900 = vadd.f32 0.0, %v4899
    %4901 = vdwg.mxu0
    %4902 = vst [vmem:[#allocation4] sm:$0xff] %v4771
    %4903 = vst [vmem:[#allocation4 + $0x8] sm:$0xff] %v4773
    %4904 = vst [vmem:[#allocation4 + $0x10] sm:$0xff] %v4854
    %4905 = vst [vmem:[#allocation4 + $0x18] sm:$0xff] %v4856
    %4906 = vst [vmem:[#allocation4 + $0x20] sm:$0xff] %v4775
    %4907 = vst [vmem:[#allocation4 + $0x28] sm:$0xff] %v4777
    %4908 = vst [vmem:[#allocation4 + $0x30] sm:$0xff] %v4858
    %4909 = vst [vmem:[#allocation4 + $0x38] sm:$0xff] %v4860
    %4910 = vst [vmem:[#allocation4 + $0x40] sm:$0xff] %v4781
    %4911 = vst [vmem:[#allocation4 + $0x48] sm:$0xff] %v4783
    %4912 = vst [vmem:[#allocation4 + $0x50] sm:$0xff] %v4864
    %4913 = vst [vmem:[#allocation4 + $0x58] sm:$0xff] %v4866
    %4914 = vst [vmem:[#allocation4 + $0x60] sm:$0xff] %v4785
    %4915 = vst [vmem:[#allocation4 + $0x68] sm:$0xff] %v4787
    %4916 = vst [vmem:[#allocation4 + $0x70] sm:$0xff] %v4868
    %4917 = vst [vmem:[#allocation4 + $0x78] sm:$0xff] %v4870
    %4918 = vst [vmem:[#allocation4 + $0x80] sm:$0xff] %v4791
    %4919 = vst [vmem:[#allocation4 + $0x88] sm:$0xff] %v4793
    %4920 = vst [vmem:[#allocation4 + $0x90] sm:$0xff] %v4874
    %4921 = vst [vmem:[#allocation4 + $0x98] sm:$0xff] %v4876
    %4922 = vst [vmem:[#allocation4 + $0xa0] sm:$0xff] %v4795
    %4923 = vst [vmem:[#allocation4 + $0xa8] sm:$0xff] %v4797
    %4924 = vst [vmem:[#allocation4 + $0xb0] sm:$0xff] %v4878
    %4925 = vst [vmem:[#allocation4 + $0xb8] sm:$0xff] %v4880
    %4926 = vst [vmem:[#allocation4 + $0xc0] sm:$0xff] %v4801
    %4927 = vst [vmem:[#allocation4 + $0xc8] sm:$0xff] %v4803
    %4928 = vst [vmem:[#allocation4 + $0xd0] sm:$0xff] %v4884
    %4929 = vst [vmem:[#allocation4 + $0xd8] sm:$0xff] %v4886
    %4930 = vst [vmem:[#allocation4 + $0xe0] sm:$0xff] %v4805
    %4931 = vst [vmem:[#allocation4 + $0xe8] sm:$0xff] %v4807
    %4932 = vst [vmem:[#allocation4 + $0xf0] sm:$0xff] %v4888
    %4933 = vst [vmem:[#allocation4 + $0xf8] sm:$0xff] %v4890
    %4934 = vst [vmem:[#allocation4 + $0x100] sm:$0xff] %v4811
    %4935 = vst [vmem:[#allocation4 + $0x108] sm:$0xff] %v4813
    %4936 = vst [vmem:[#allocation4 + $0x110] sm:$0xff] %v4894
    %4937 = vst [vmem:[#allocation4 + $0x118] sm:$0xff] %v4896
    %4938 = vst [vmem:[#allocation4 + $0x120] sm:$0xff] %v4815
    %4939 = vst [vmem:[#allocation4 + $0x128] sm:$0xff] %v4817
    %4940 = vst [vmem:[#allocation4 + $0x130] sm:$0xff] %v4898
    %4941 = vst [vmem:[#allocation4 + $0x138] sm:$0xff] %v4900
    %v4942 = vld [vmem:[%s711] sm:$0xff]
    %v4943 = vld [vmem:[%s711 + $0x8] sm:$0xff]
    %v4944 = vld [vmem:[%s711 + $0x10] sm:$0xff]
    %v4945 = vld [vmem:[%s711 + $0x18] sm:$0xff]
    %v4946 = vld [vmem:[%s718] sm:$0xff]
    %v4947 = vld [vmem:[%s718 + $0x8] sm:$0xff]
    %v4948 = vld [vmem:[%s718 + $0x10] sm:$0xff]
    %v4949 = vld [vmem:[%s718 + $0x18] sm:$0xff]
    %v4950 = vadd.f32 %v4942, %v4946
    %v4951 = vadd.f32 %v4943, %v4947
    %v4952 = vadd.f32 %v4944, %v4948
    %v4953 = vadd.f32 %v4945, %v4949
    %v4954 = vld [vmem:[%s1] sm:$0xff]
    %v4955 = vld [vmem:[%s728] sm:$0xff]
    %4957 = vset.pattern.permute.xlu0 0
    %4958 = vperm.xlu0 %4957, %v4954
    %v4959 = vpop.permute.xlu0 %4958
    %4962 = vset.pattern.permute.xlu0 0
    %4963 = vperm.xlu0 %4962, %v4955
    %v4964 = vpop.permute.xlu0 %4963
    %v4966 = vsel %vm731, %v4959, %v4964
    %vm4967 = vcmp.ne.f32.partialorder %v4966, 0.0
    %v4968 = vld [vmem:[#allocation14] sm:$0xff]
    %v4969 = vld [vmem:[#allocation14 + $0x8] sm:$0xff]
    %v4970 = vld [vmem:[#allocation14 + $0x10] sm:$0xff]
    %v4971 = vld [vmem:[#allocation14 + $0x18] sm:$0xff]
    %v4972 = vld [vmem:[#allocation14 + $0x20] sm:$0xff]
    %v4973 = vld [vmem:[#allocation14 + $0x28] sm:$0xff]
    %v4974 = vld [vmem:[#allocation14 + $0x30] sm:$0xff]
    %v4975 = vld [vmem:[#allocation14 + $0x38] sm:$0xff]
    %v4976 = vld [vmem:[#allocation14 + $0x40] sm:$0xff]
    %v4977 = vld [vmem:[#allocation14 + $0x48] sm:$0xff]
    %v4978 = vld [vmem:[#allocation14 + $0x50] sm:$0xff]
    %v4979 = vld [vmem:[#allocation14 + $0x58] sm:$0xff]
    %v4980 = vld [vmem:[#allocation14 + $0x60] sm:$0xff]
    %v4981 = vld [vmem:[#allocation14 + $0x68] sm:$0xff]
    %v4982 = vld [vmem:[#allocation14 + $0x70] sm:$0xff]
    %v4983 = vld [vmem:[#allocation14 + $0x78] sm:$0xff]
    %v4984 = vld [vmem:[#allocation14 + $0x80] sm:$0xff]
    %v4985 = vld [vmem:[#allocation14 + $0x88] sm:$0xff]
    %v4986 = vld [vmem:[#allocation14 + $0x90] sm:$0xff]
    %v4987 = vld [vmem:[#allocation14 + $0x98] sm:$0xff]
    %v4988 = vld [vmem:[#allocation14 + $0xa0] sm:$0xff]
    %v4989 = vld [vmem:[#allocation14 + $0xa8] sm:$0xff]
    %v4990 = vld [vmem:[#allocation14 + $0xb0] sm:$0xff]
    %v4991 = vld [vmem:[#allocation14 + $0xb8] sm:$0xff]
    %v4992 = vld [vmem:[#allocation14 + $0xc0] sm:$0xff]
    %v4993 = vld [vmem:[#allocation14 + $0xc8] sm:$0xff]
    %v4994 = vld [vmem:[#allocation14 + $0xd0] sm:$0xff]
    %v4995 = vld [vmem:[#allocation14 + $0xd8] sm:$0xff]
    %v4996 = vld [vmem:[#allocation14 + $0xe0] sm:$0xff]
    %v4997 = vld [vmem:[#allocation14 + $0xe8] sm:$0xff]
    %v4998 = vld [vmem:[#allocation14 + $0xf0] sm:$0xff]
    %v4999 = vld [vmem:[#allocation14 + $0xf8] sm:$0xff]
    %v5032 = vunpack.c.l.b16 %v4968
    %v5033 = vunpack.c.h.b16 %v4968
    %v5034 = vunpack.c.l.b16 %v4969
    %v5035 = vunpack.c.h.b16 %v4969
    %v5036 = vunpack.c.l.b16 %v4970
    %v5037 = vunpack.c.h.b16 %v4970
    %v5038 = vunpack.c.l.b16 %v4971
    %v5039 = vunpack.c.h.b16 %v4971
    %v5040 = vunpack.c.l.b16 %v4972
    %v5041 = vunpack.c.h.b16 %v4972
    %v5042 = vunpack.c.l.b16 %v4973
    %v5043 = vunpack.c.h.b16 %v4973
    %v5044 = vunpack.c.l.b16 %v4974
    %v5045 = vunpack.c.h.b16 %v4974
    %v5046 = vunpack.c.l.b16 %v4975
    %v5047 = vunpack.c.h.b16 %v4975
    %v5048 = vunpack.c.l.b16 %v4976
    %v5049 = vunpack.c.h.b16 %v4976
    %v5050 = vunpack.c.l.b16 %v4977
    %v5051 = vunpack.c.h.b16 %v4977
    %v5052 = vunpack.c.l.b16 %v4978
    %v5053 = vunpack.c.h.b16 %v4978
    %v5054 = vunpack.c.l.b16 %v4979
    %v5055 = vunpack.c.h.b16 %v4979
    %v5056 = vunpack.c.l.b16 %v4980
    %v5057 = vunpack.c.h.b16 %v4980
    %v5058 = vunpack.c.l.b16 %v4981
    %v5059 = vunpack.c.h.b16 %v4981
    %v5060 = vunpack.c.l.b16 %v4982
    %v5061 = vunpack.c.h.b16 %v4982
    %v5062 = vunpack.c.l.b16 %v4983
    %v5063 = vunpack.c.h.b16 %v4983
    %v5064 = vunpack.c.l.b16 %v4984
    %v5065 = vunpack.c.h.b16 %v4984
    %v5066 = vunpack.c.l.b16 %v4985
    %v5067 = vunpack.c.h.b16 %v4985
    %v5068 = vunpack.c.l.b16 %v4986
    %v5069 = vunpack.c.h.b16 %v4986
    %v5070 = vunpack.c.l.b16 %v4987
    %v5071 = vunpack.c.h.b16 %v4987
    %v5072 = vunpack.c.l.b16 %v4988
    %v5073 = vunpack.c.h.b16 %v4988
    %v5074 = vunpack.c.l.b16 %v4989
    %v5075 = vunpack.c.h.b16 %v4989
    %v5076 = vunpack.c.l.b16 %v4990
    %v5077 = vunpack.c.h.b16 %v4990
    %v5078 = vunpack.c.l.b16 %v4991
    %v5079 = vunpack.c.h.b16 %v4991
    %v5080 = vunpack.c.l.b16 %v4992
    %v5081 = vunpack.c.h.b16 %v4992
    %v5082 = vunpack.c.l.b16 %v4993
    %v5083 = vunpack.c.h.b16 %v4993
    %v5084 = vunpack.c.l.b16 %v4994
    %v5085 = vunpack.c.h.b16 %v4994
    %v5086 = vunpack.c.l.b16 %v4995
    %v5087 = vunpack.c.h.b16 %v4995
    %v5088 = vunpack.c.l.b16 %v4996
    %v5089 = vunpack.c.h.b16 %v4996
    %v5090 = vunpack.c.l.b16 %v4997
    %v5091 = vunpack.c.h.b16 %v4997
    %v5092 = vunpack.c.l.b16 %v4998
    %v5093 = vunpack.c.h.b16 %v4998
    %v5094 = vunpack.c.l.b16 %v4999
    %v5095 = vunpack.c.h.b16 %v4999
    %v5096 = vpack.c.b16 %v5036, %v5032
    %v5097 = vpack.c.b16 %v5037, %v5033
    %v5098 = vpack.c.b16 %v5038, %v5034
    %v5099 = vpack.c.b16 %v5039, %v5035
    %v5100 = vpack.c.b16 %v5044, %v5040
    %v5101 = vpack.c.b16 %v5045, %v5041
    %v5102 = vpack.c.b16 %v5046, %v5042
    %v5103 = vpack.c.b16 %v5047, %v5043
    %v5104 = vpack.c.b16 %v5052, %v5048
    %v5105 = vpack.c.b16 %v5053, %v5049
    %v5106 = vpack.c.b16 %v5054, %v5050
    %v5107 = vpack.c.b16 %v5055, %v5051
    %v5108 = vpack.c.b16 %v5060, %v5056
    %v5109 = vpack.c.b16 %v5061, %v5057
    %v5110 = vpack.c.b16 %v5062, %v5058
    %v5111 = vpack.c.b16 %v5063, %v5059
    %v5112 = vpack.c.b16 %v5068, %v5064
    %v5113 = vpack.c.b16 %v5069, %v5065
    %v5114 = vpack.c.b16 %v5070, %v5066
    %v5115 = vpack.c.b16 %v5071, %v5067
    %v5116 = vpack.c.b16 %v5076, %v5072
    %v5117 = vpack.c.b16 %v5077, %v5073
    %v5118 = vpack.c.b16 %v5078, %v5074
    %v5119 = vpack.c.b16 %v5079, %v5075
    %v5120 = vpack.c.b16 %v5084, %v5080
    %v5121 = vpack.c.b16 %v5085, %v5081
    %v5122 = vpack.c.b16 %v5086, %v5082
    %v5123 = vpack.c.b16 %v5087, %v5083
    %v5124 = vpack.c.b16 %v5092, %v5088
    %v5125 = vpack.c.b16 %v5093, %v5089
    %v5126 = vpack.c.b16 %v5094, %v5090
    %v5127 = vpack.c.b16 %v5095, %v5091
    %5160 = vmatprep.subr.bf16.mxu0 %v5097
    %5161 = vmatpush1.bf16.msra.mxu0 %v5096
    %5162 = vmatprep.subr.bf16.mxu0 %v5101
    %5163 = vmatpush1.bf16.msra.mxu0 %v5100
    %5164 = vmatprep.subr.bf16.mxu0 %v5105
    %5165 = vmatpush1.bf16.msra.mxu0 %v5104
    %5166 = vmatprep.subr.bf16.mxu0 %v5109
    %5167 = vmatpush1.bf16.msra.mxu0 %v5108
    %5168 = vmatprep.subr.bf16.mxu0 %v5113
    %5169 = vmatpush1.bf16.msra.mxu0 %v5112
    %5170 = vmatprep.subr.bf16.mxu0 %v5117
    %5171 = vmatpush1.bf16.msra.mxu0 %v5116
    %5172 = vmatprep.subr.bf16.mxu0 %v5121
    %5173 = vmatpush1.bf16.msra.mxu0 %v5120
    %5174 = vmatprep.subr.bf16.mxu0 %v5125
    %5175 = vmatpush1.bf16.msra.mxu0 %v5124
    %5176 = vmatprep.subr.bf16.mxu0 0
    %5177 = vmatpush1.bf16.msra.mxu0 0
    %5178 = vmatprep.subr.bf16.mxu0 0
    %5179 = vmatpush1.bf16.msra.mxu0 0
    %5180 = vmatprep.subr.bf16.mxu0 0
    %5181 = vmatpush1.bf16.msra.mxu0 0
    %5182 = vmatprep.subr.bf16.mxu0 0
    %5183 = vmatpush1.bf16.msra.mxu0 0
    %5184 = vmatprep.subr.bf16.mxu0 0
    %5185 = vmatpush1.bf16.msra.mxu0 0
    %5186 = vmatprep.subr.bf16.mxu0 0
    %5187 = vmatpush1.bf16.msra.mxu0 0
    %5188 = vmatprep.subr.bf16.mxu0 0
    %5189 = vmatpush1.bf16.msra.mxu0 0
    %5190 = vmatprep.subr.bf16.mxu0 0
    %5191 = vmatpush1.bf16.msra.mxu0 0
    %5192 = vmatprep.mubr.bf16.mxu0 0
    %5193 = vmatmul.mubr.bf16.gmra.mrb[0].mxu0 0
    %v5194 = vpop.f32.mrb[0].mxu0
    %v5195 = vadd.f32 0.0, %v5194
    %v5196 = vpop.f32.mrb[0].mxu0
    %v5197 = vadd.f32 0.0, %v5196
    %v5198 = vpop.f32.mrb[0].mxu0
    %v5199 = vpop.f32.mrb[0].mxu0
    %5200 = vdwg.mxu0
    %5201 = vmatprep.subr.bf16.mxu0 %v5099
    %5202 = vmatpush1.bf16.msra.mxu0 %v5098
    %5203 = vmatprep.subr.bf16.mxu0 %v5103
    %5204 = vmatpush1.bf16.msra.mxu0 %v5102
    %5205 = vmatprep.subr.bf16.mxu0 %v5107
    %5206 = vmatpush1.bf16.msra.mxu0 %v5106
    %5207 = vmatprep.subr.bf16.mxu0 %v5111
    %5208 = vmatpush1.bf16.msra.mxu0 %v5110
    %5209 = vmatprep.subr.bf16.mxu0 %v5115
    %5210 = vmatpush1.bf16.msra.mxu0 %v5114
    %5211 = vmatprep.subr.bf16.mxu0 %v5119
    %5212 = vmatpush1.bf16.msra.mxu0 %v5118
    %5213 = vmatprep.subr.bf16.mxu0 %v5123
    %5214 = vmatpush1.bf16.msra.mxu0 %v5122
    %5215 = vmatprep.subr.bf16.mxu0 %v5127
    %5216 = vmatpush1.bf16.msra.mxu0 %v5126
    %5217 = vmatprep.subr.bf16.mxu0 0
    %5218 = vmatpush1.bf16.msra.mxu0 0
    %5219 = vmatprep.subr.bf16.mxu0 0
    %5220 = vmatpush1.bf16.msra.mxu0 0
    %5221 = vmatprep.subr.bf16.mxu0 0
    %5222 = vmatpush1.bf16.msra.mxu0 0
    %5223 = vmatprep.subr.bf16.mxu0 0
    %5224 = vmatpush1.bf16.msra.mxu0 0
    %5225 = vmatprep.subr.bf16.mxu0 0
    %5226 = vmatpush1.bf16.msra.mxu0 0
    %5227 = vmatprep.subr.bf16.mxu0 0
    %5228 = vmatpush1.bf16.msra.mxu0 0
    %5229 = vmatprep.subr.bf16.mxu0 0
    %5230 = vmatpush1.bf16.msra.mxu0 0
    %5231 = vmatprep.subr.bf16.mxu0 0
    %5232 = vmatpush1.bf16.msra.mxu0 0
    %5233 = vmatprep.mubr.bf16.mxu0 0
    %5234 = vmatmul.mubr.bf16.gmra.mrb[0].mxu0 0
    %v5235 = vpop.f32.mrb[0].mxu0
    %v5236 = vadd.f32 0.0, %v5235
    %v5237 = vpop.f32.mrb[0].mxu0
    %v5238 = vadd.f32 0.0, %v5237
    %v5239 = vpop.f32.mrb[0].mxu0
    %v5240 = vpop.f32.mrb[0].mxu0
    %5241 = vdwg.mxu0
    %v5242 = vadd.f32 %v4950, %v5195
    %v5243 = vadd.f32 %v4951, %v5197
    %v5244 = vadd.f32 %v4952, %v5236
    %v5245 = vadd.f32 %v4953, %v5238
    %v5246 = vxor.u32 %v5242, 2147483648
    %v5247 = vxor.u32 %v5243, 2147483648
    %v5248 = vxor.u32 %v5244, 2147483648
    %v5249 = vmul.f32 %v5246, 1.442695
    %v5250 = vpow.pop %v5249
    %v5251 = vmul.f32 %v5247, 1.442695
    %v5252 = vpow.pop %v5251
    %v5253 = vmul.f32 %v5248, 1.442695
    %v5254 = vpow.pop %v5253
    %v5255 = vadd.f32 %v5250, 1.0
    %v5256 = vadd.f32 %v5252, 1.0
    %v5257 = vadd.f32 %v5254, 1.0
    %v5258 = vrcp.pop %v5255
    %v5259 = vmul.f32 1.0, %v5258
    %v5260 = vrcp.pop %v5256
    %v5261 = vmul.f32 1.0, %v5260
    %v5262 = vrcp.pop %v5257
    %v5263 = vmul.f32 1.0, %v5262
    %v5264 = vtanh.pop %v5245
    %v5265 = vmul.f32 %v5261, 0.0
    %v5266 = vmul.f32 %v5259, %v5264
    %v5267 = vadd.f32 %v5265, %v5266
    %v5268 = vtanh.pop %v5267
    %v5269 = vmul.f32 %v5263, %v5268
    %v5270 = vsel %vm4967, %v5269, 0.0
    %v5271 = vsel %vm4967, %v5267, 0.0
    %v5272 = vld [vmem:[%s1055] sm:$0xff]
    %v5273 = vld [vmem:[%s1055 + $0x8] sm:$0xff]
    %v5274 = vld [vmem:[%s1055 + $0x10] sm:$0xff]
    %v5275 = vld [vmem:[%s1055 + $0x18] sm:$0xff]
    %v5276 = vld [vmem:[%s1062] sm:$0xff]
    %v5277 = vld [vmem:[%s1062 + $0x8] sm:$0xff]
    %v5278 = vld [vmem:[%s1062 + $0x10] sm:$0xff]
    %v5279 = vld [vmem:[%s1062 + $0x18] sm:$0xff]
    %v5280 = vadd.f32 %v5272, %v5276
    %v5281 = vadd.f32 %v5273, %v5277
    %v5282 = vadd.f32 %v5274, %v5278
    %v5283 = vadd.f32 %v5275, %v5279
    %v5284 = vld [vmem:[%s1071] sm:$0xff]
    %v5285 = vld [vmem:[%s1073] sm:$0xff]
    %5287 = vset.pattern.permute.xlu0 0
    %5288 = vperm.xlu0 %5287, %v5284
    %v5289 = vpop.permute.xlu0 %5288
    %5292 = vset.pattern.permute.xlu0 0
    %5293 = vperm.xlu0 %5292, %v5285
    %v5294 = vpop.permute.xlu0 %5293
    %v5296 = vsel %vm731, %v5289, %v5294
    %vm5297 = vcmp.ne.f32.partialorder %v5296, 0.0
    %v5298 = vpack.c.bf16 %v5270, %v5270
    %5299 = vmatprep.subr.bf16.mxu0 %v5097
    %5300 = vmatpush1.bf16.msra.mxu0 %v5096
    %5301 = vmatprep.subr.bf16.mxu0 %v5101
    %5302 = vmatpush1.bf16.msra.mxu0 %v5100
    %5303 = vmatprep.subr.bf16.mxu0 %v5105
    %5304 = vmatpush1.bf16.msra.mxu0 %v5104
    %5305 = vmatprep.subr.bf16.mxu0 %v5109
    %5306 = vmatpush1.bf16.msra.mxu0 %v5108
    %5307 = vmatprep.subr.bf16.mxu0 %v5113
    %5308 = vmatpush1.bf16.msra.mxu0 %v5112
    %5309 = vmatprep.subr.bf16.mxu0 %v5117
    %5310 = vmatpush1.bf16.msra.mxu0 %v5116
    %5311 = vmatprep.subr.bf16.mxu0 %v5121
    %5312 = vmatpush1.bf16.msra.mxu0 %v5120
    %5313 = vmatprep.subr.bf16.mxu0 %v5125
    %5314 = vmatpush1.bf16.msra.mxu0 %v5124
    %5315 = vmatprep.subr.bf16.mxu0 0
    %5316 = vmatpush1.bf16.msra.mxu0 0
    %5317 = vmatprep.subr.bf16.mxu0 0
    %5318 = vmatpush1.bf16.msra.mxu0 0
    %5319 = vmatprep.subr.bf16.mxu0 0
    %5320 = vmatpush1.bf16.msra.mxu0 0
    %5321 = vmatprep.subr.bf16.mxu0 0
    %5322 = vmatpush1.bf16.msra.mxu0 0
    %5323 = vmatprep.subr.bf16.mxu0 0
    %5324 = vmatpush1.bf16.msra.mxu0 0
    %5325 = vmatprep.subr.bf16.mxu0 0
    %5326 = vmatpush1.bf16.msra.mxu0 0
    %5327 = vmatprep.subr.bf16.mxu0 0
    %5328 = vmatpush1.bf16.msra.mxu0 0
    %5329 = vmatprep.subr.bf16.mxu0 0
    %5330 = vmatpush1.bf16.msra.mxu0 0
    %5331 = vmatprep.mubr.bf16.mxu0 0
    %5332 = vmatmul.mubr.bf16.gmra.mrb[0].mxu0 %v5298
    %v5333 = vpop.f32.mrb[0].mxu0
    %v5334 = vadd.f32 0.0, %v5333
    %v5335 = vpop.f32.mrb[0].mxu0
    %v5336 = vadd.f32 0.0, %v5335
    %v5337 = vpop.f32.mrb[0].mxu0
    %v5338 = vpop.f32.mrb[0].mxu0
    %5339 = vdwg.mxu0
    %5340 = vmatprep.subr.bf16.mxu0 %v5099
    %5341 = vmatpush1.bf16.msra.mxu0 %v5098
    %5342 = vmatprep.subr.bf16.mxu0 %v5103
    %5343 = vmatpush1.bf16.msra.mxu0 %v5102
    %5344 = vmatprep.subr.bf16.mxu0 %v5107
    %5345 = vmatpush1.bf16.msra.mxu0 %v5106
    %5346 = vmatprep.subr.bf16.mxu0 %v5111
    %5347 = vmatpush1.bf16.msra.mxu0 %v5110
    %5348 = vmatprep.subr.bf16.mxu0 %v5115
    %5349 = vmatpush1.bf16.msra.mxu0 %v5114
    %5350 = vmatprep.subr.bf16.mxu0 %v5119
    %5351 = vmatpush1.bf16.msra.mxu0 %v5118
    %5352 = vmatprep.subr.bf16.mxu0 %v5123
    %5353 = vmatpush1.bf16.msra.mxu0 %v5122
    %5354 = vmatprep.subr.bf16.mxu0 %v5127
    %5355 = vmatpush1.bf16.msra.mxu0 %v5126
    %5356 = vmatprep.subr.bf16.mxu0 0
    %5357 = vmatpush1.bf16.msra.mxu0 0
    %5358 = vmatprep.subr.bf16.mxu0 0
    %5359 = vmatpush1.bf16.msra.mxu0 0
    %5360 = vmatprep.subr.bf16.mxu0 0
    %5361 = vmatpush1.bf16.msra.mxu0 0
    %5362 = vmatprep.subr.bf16.mxu0 0
    %5363 = vmatpush1.bf16.msra.mxu0 0
    %5364 = vmatprep.subr.bf16.mxu0 0
    %5365 = vmatpush1.bf16.msra.mxu0 0
    %5366 = vmatprep.subr.bf16.mxu0 0
    %5367 = vmatpush1.bf16.msra.mxu0 0
    %5368 = vmatprep.subr.bf16.mxu0 0
    %5369 = vmatpush1.bf16.msra.mxu0 0
    %5370 = vmatprep.subr.bf16.mxu0 0
    %5371 = vmatpush1.bf16.msra.mxu0 0
    %5372 = vmatprep.mubr.bf16.mxu0 0
    %5373 = vmatmul.mubr.bf16.gmra.mrb[0].mxu0 %v5298
    %v5374 = vpop.f32.mrb[0].mxu0
    %v5375 = vadd.f32 0.0, %v5374
    %v5376 = vpop.f32.mrb[0].mxu0
    %v5377 = vadd.f32 0.0, %v5376
    %v5378 = vpop.f32.mrb[0].mxu0
    %v5379 = vpop.f32.mrb[0].mxu0
    %5380 = vdwg.mxu0
    %v5381 = vadd.f32 %v5280, %v5334
    %v5382 = vadd.f32 %v5281, %v5336
    %v5383 = vadd.f32 %v5282, %v5375
    %v5384 = vadd.f32 %v5283, %v5377
    %v5385 = vxor.u32 %v5381, 2147483648
    %v5386 = vxor.u32 %v5382, 2147483648
    %v5387 = vxor.u32 %v5383, 2147483648
    %v5388 = vmul.f32 %v5385, 1.442695
    %v5389 = vpow.pop %v5388
    %v5390 = vmul.f32 %v5386, 1.442695
    %v5391 = vpow.pop %v5390
    %v5392 = vmul.f32 %v5387, 1.442695
    %v5393 = vpow.pop %v5392
    %v5394 = vadd.f32 %v5389, 1.0
    %v5395 = vadd.f32 %v5391, 1.0
    %v5396 = vadd.f32 %v5393, 1.0
    %v5397 = vrcp.pop %v5394
    %v5398 = vmul.f32 1.0, %v5397
    %v5399 = vrcp.pop %v5395
    %v5400 = vmul.f32 1.0, %v5399
    %v5401 = vrcp.pop %v5396
    %v5402 = vmul.f32 1.0, %v5401
    %v5403 = vtanh.pop %v5384
    %v5404 = vmul.f32 %v5400, %v5271
    %v5405 = vmul.f32 %v5398, %v5403
    %v5406 = vadd.f32 %v5404, %v5405
    %v5407 = vtanh.pop %v5406
    %v5408 = vmul.f32 %v5402, %v5407
    %v5409 = vsel %vm5297, %v5408, %v5270
    %v5410 = vsel %vm5297, %v5406, %v5271
    %v5411 = vld [vmem:[%s1398] sm:$0xff]
    %v5412 = vld [vmem:[%s1398 + $0x8] sm:$0xff]
    %v5413 = vld [vmem:[%s1398 + $0x10] sm:$0xff]
    %v5414 = vld [vmem:[%s1398 + $0x18] sm:$0xff]
    %v5415 = vld [vmem:[%s1405] sm:$0xff]
    %v5416 = vld [vmem:[%s1405 + $0x8] sm:$0xff]
    %v5417 = vld [vmem:[%s1405 + $0x10] sm:$0xff]
    %v5418 = vld [vmem:[%s1405 + $0x18] sm:$0xff]
    %v5419 = vadd.f32 %v5411, %v5415
    %v5420 = vadd.f32 %v5412, %v5416
    %v5421 = vadd.f32 %v5413, %v5417
    %v5422 = vadd.f32 %v5414, %v5418
    %v5423 = vld [vmem:[%s1414] sm:$0xff]
    %v5424 = vld [vmem:[%s1416] sm:$0xff]
    %5426 = vset.pattern.permute.xlu0 0
    %5427 = vperm.xlu0 %5426, %v5423
    %v5428 = vpop.permute.xlu0 %5427
    %5431 = vset.pattern.permute.xlu0 0
    %5432 = vperm.xlu0 %5431, %v5424
    %v5433 = vpop.permute.xlu0 %5432
    %v5435 = vsel %vm731, %v5428, %v5433
    %vm5436 = vcmp.ne.f32.partialorder %v5435, 0.0
    %v5437 = vpack.c.bf16 %v5409, %v5409
    %5438 = vmatprep.subr.bf16.mxu0 %v5097
    %5439 = vmatpush1.bf16.msra.mxu0 %v5096
    %5440 = vmatprep.subr.bf16.mxu0 %v5101
    %5441 = vmatpush1.bf16.msra.mxu0 %v5100
    %5442 = vmatprep.subr.bf16.mxu0 %v5105
    %5443 = vmatpush1.bf16.msra.mxu0 %v5104
    %5444 = vmatprep.subr.bf16.mxu0 %v5109
    %5445 = vmatpush1.bf16.msra.mxu0 %v5108
    %5446 = vmatprep.subr.bf16.mxu0 %v5113
    %5447 = vmatpush1.bf16.msra.mxu0 %v5112
    %5448 = vmatprep.subr.bf16.mxu0 %v5117
    %5449 = vmatpush1.bf16.msra.mxu0 %v5116
    %5450 = vmatprep.subr.bf16.mxu0 %v5121
    %5451 = vmatpush1.bf16.msra.mxu0 %v5120
    %5452 = vmatprep.subr.bf16.mxu0 %v5125
    %5453 = vmatpush1.bf16.msra.mxu0 %v5124
    %5454 = vmatprep.subr.bf16.mxu0 0
    %5455 = vmatpush1.bf16.msra.mxu0 0
    %5456 = vmatprep.subr.bf16.mxu0 0
    %5457 = vmatpush1.bf16.msra.mxu0 0
    %5458 = vmatprep.subr.bf16.mxu0 0
    %5459 = vmatpush1.bf16.msra.mxu0 0
    %5460 = vmatprep.subr.bf16.mxu0 0
    %5461 = vmatpush1.bf16.msra.mxu0 0
    %5462 = vmatprep.subr.bf16.mxu0 0
    %5463 = vmatpush1.bf16.msra.mxu0 0
    %5464 = vmatprep.subr.bf16.mxu0 0
    %5465 = vmatpush1.bf16.msra.mxu0 0
    %5466 = vmatprep.subr.bf16.mxu0 0
    %5467 = vmatpush1.bf16.msra.mxu0 0
    %5468 = vmatprep.subr.bf16.mxu0 0
    %5469 = vmatpush1.bf16.msra.mxu0 0
    %5470 = vmatprep.mubr.bf16.mxu0 0
    %5471 = vmatmul.mubr.bf16.gmra.mrb[0].mxu0 %v5437
    %v5472 = vpop.f32.mrb[0].mxu0
    %v5473 = vadd.f32 0.0, %v5472
    %v5474 = vpop.f32.mrb[0].mxu0
    %v5475 = vadd.f32 0.0, %v5474
    %v5476 = vpop.f32.mrb[0].mxu0
    %v5477 = vpop.f32.mrb[0].mxu0
    %5478 = vdwg.mxu0
    %5479 = vmatprep.subr.bf16.mxu0 %v5099
    %5480 = vmatpush1.bf16.msra.mxu0 %v5098
    %5481 = vmatprep.subr.bf16.mxu0 %v5103
    %5482 = vmatpush1.bf16.msra.mxu0 %v5102
    %5483 = vmatprep.subr.bf16.mxu0 %v5107
    %5484 = vmatpush1.bf16.msra.mxu0 %v5106
    %5485 = vmatprep.subr.bf16.mxu0 %v5111
    %5486 = vmatpush1.bf16.msra.mxu0 %v5110
    %5487 = vmatprep.subr.bf16.mxu0 %v5115
    %5488 = vmatpush1.bf16.msra.mxu0 %v5114
    %5489 = vmatprep.subr.bf16.mxu0 %v5119
    %5490 = vmatpush1.bf16.msra.mxu0 %v5118
    %5491 = vmatprep.subr.bf16.mxu0 %v5123
    %5492 = vmatpush1.bf16.msra.mxu0 %v5122
    %5493 = vmatprep.subr.bf16.mxu0 %v5127
    %5494 = vmatpush1.bf16.msra.mxu0 %v5126
    %5495 = vmatprep.subr.bf16.mxu0 0
    %5496 = vmatpush1.bf16.msra.mxu0 0
    %5497 = vmatprep.subr.bf16.mxu0 0
    %5498 = vmatpush1.bf16.msra.mxu0 0
    %5499 = vmatprep.subr.bf16.mxu0 0
    %5500 = vmatpush1.bf16.msra.mxu0 0
    %5501 = vmatprep.subr.bf16.mxu0 0
    %5502 = vmatpush1.bf16.msra.mxu0 0
    %5503 = vmatprep.subr.bf16.mxu0 0
    %5504 = vmatpush1.bf16.msra.mxu0 0
    %5505 = vmatprep.subr.bf16.mxu0 0
    %5506 = vmatpush1.bf16.msra.mxu0 0
    %5507 = vmatprep.subr.bf16.mxu0 0
    %5508 = vmatpush1.bf16.msra.mxu0 0
    %5509 = vmatprep.subr.bf16.mxu0 0
    %5510 = vmatpush1.bf16.msra.mxu0 0
    %5511 = vmatprep.mubr.bf16.mxu0 0
    %5512 = vmatmul.mubr.bf16.gmra.mrb[0].mxu0 %v5437
    %v5513 = vpop.f32.mrb[0].mxu0
    %v5514 = vadd.f32 0.0, %v5513
    %v5515 = vpop.f32.mrb[0].mxu0
    %v5516 = vadd.f32 0.0, %v5515
    %v5517 = vpop.f32.mrb[0].mxu0
    %v5518 = vpop.f32.mrb[0].mxu0
    %5519 = vdwg.mxu0
    %v5520 = vadd.f32 %v5419, %v5473
    %v5521 = vadd.f32 %v5420, %v5475
    %v5522 = vadd.f32 %v5421, %v5514
    %v5523 = vadd.f32 %v5422, %v5516
    %v5524 = vxor.u32 %v5520, 2147483648
    %v5525 = vxor.u32 %v5521, 2147483648
    %v5526 = vxor.u32 %v5522, 2147483648
    %v5527 = vmul.f32 %v5524, 1.442695
    %v5528 = vpow.pop %v5527
    %v5529 = vmul.f32 %v5525, 1.442695
    %v5530 = vpow.pop %v5529
    %v5531 = vmul.f32 %v5526, 1.442695
    %v5532 = vpow.pop %v5531
    %v5533 = vadd.f32 %v5528, 1.0
    %v5534 = vadd.f32 %v5530, 1.0
    %v5535 = vadd.f32 %v5532, 1.0
    %v5536 = vrcp.pop %v5533
    %v5537 = vmul.f32 1.0, %v5536
    %v5538 = vrcp.pop %v5534
    %v5539 = vmul.f32 1.0, %v5538
    %v5540 = vrcp.pop %v5535
    %v5541 = vmul.f32 1.0, %v5540
    %v5542 = vtanh.pop %v5523
    %v5543 = vmul.f32 %v5539, %v5410
    %v5544 = vmul.f32 %v5537, %v5542
    %v5545 = vadd.f32 %v5543, %v5544
    %v5546 = vtanh.pop %v5545
    %v5547 = vmul.f32 %v5541, %v5546
    %v5548 = vsel %vm5436, %v5547, %v5409
    %v5549 = vsel %vm5436, %v5545, %v5410
    %v5550 = vld [vmem:[%s1741] sm:$0xff]
    %v5551 = vld [vmem:[%s1741 + $0x8] sm:$0xff]
    %v5552 = vld [vmem:[%s1741 + $0x10] sm:$0xff]
    %v5553 = vld [vmem:[%s1741 + $0x18] sm:$0xff]
    %v5554 = vld [vmem:[%s1748] sm:$0xff]
    %v5555 = vld [vmem:[%s1748 + $0x8] sm:$0xff]
    %v5556 = vld [vmem:[%s1748 + $0x10] sm:$0xff]
    %v5557 = vld [vmem:[%s1748 + $0x18] sm:$0xff]
    %v5558 = vadd.f32 %v5550, %v5554
    %v5559 = vadd.f32 %v5551, %v5555
    %v5560 = vadd.f32 %v5552, %v5556
    %v5561 = vadd.f32 %v5553, %v5557
    %v5562 = vld [vmem:[%s1757] sm:$0xff]
    %v5563 = vld [vmem:[%s1759] sm:$0xff]
    %5565 = vset.pattern.permute.xlu0 0
    %5566 = vperm.xlu0 %5565, %v5562
    %v5567 = vpop.permute.xlu0 %5566
    %5570 = vset.pattern.permute.xlu0 0
    %5571 = vperm.xlu0 %5570, %v5563
    %v5572 = vpop.permute.xlu0 %5571
    %v5574 = vsel %vm731, %v5567, %v5572
    %vm5575 = vcmp.ne.f32.partialorder %v5574, 0.0
    %v5576 = vpack.c.bf16 %v5548, %v5548
    %5577 = vmatprep.subr.bf16.mxu0 %v5097
    %5578 = vmatpush1.bf16.msra.mxu0 %v5096
    %5579 = vmatprep.subr.bf16.mxu0 %v5101
    %5580 = vmatpush1.bf16.msra.mxu0 %v5100
    %5581 = vmatprep.subr.bf16.mxu0 %v5105
    %5582 = vmatpush1.bf16.msra.mxu0 %v5104
    %5583 = vmatprep.subr.bf16.mxu0 %v5109
    %5584 = vmatpush1.bf16.msra.mxu0 %v5108
    %5585 = vmatprep.subr.bf16.mxu0 %v5113
    %5586 = vmatpush1.bf16.msra.mxu0 %v5112
    %5587 = vmatprep.subr.bf16.mxu0 %v5117
    %5588 = vmatpush1.bf16.msra.mxu0 %v5116
    %5589 = vmatprep.subr.bf16.mxu0 %v5121
    %5590 = vmatpush1.bf16.msra.mxu0 %v5120
    %5591 = vmatprep.subr.bf16.mxu0 %v5125
    %5592 = vmatpush1.bf16.msra.mxu0 %v5124
    %5593 = vmatprep.subr.bf16.mxu0 0
    %5594 = vmatpush1.bf16.msra.mxu0 0
    %5595 = vmatprep.subr.bf16.mxu0 0
    %5596 = vmatpush1.bf16.msra.mxu0 0
    %5597 = vmatprep.subr.bf16.mxu0 0
    %5598 = vmatpush1.bf16.msra.mxu0 0
    %5599 = vmatprep.subr.bf16.mxu0 0
    %5600 = vmatpush1.bf16.msra.mxu0 0
    %5601 = vmatprep.subr.bf16.mxu0 0
    %5602 = vmatpush1.bf16.msra.mxu0 0
    %5603 = vmatprep.subr.bf16.mxu0 0
    %5604 = vmatpush1.bf16.msra.mxu0 0
    %5605 = vmatprep.subr.bf16.mxu0 0
    %5606 = vmatpush1.bf16.msra.mxu0 0
    %5607 = vmatprep.subr.bf16.mxu0 0
    %5608 = vmatpush1.bf16.msra.mxu0 0
    %5609 = vmatprep.mubr.bf16.mxu0 0
    %5610 = vmatmul.mubr.bf16.gmra.mrb[0].mxu0 %v5576
    %v5611 = vpop.f32.mrb[0].mxu0
    %v5612 = vadd.f32 0.0, %v5611
    %v5613 = vpop.f32.mrb[0].mxu0
    %v5614 = vadd.f32 0.0, %v5613
    %v5615 = vpop.f32.mrb[0].mxu0
    %v5616 = vpop.f32.mrb[0].mxu0
    %5617 = vdwg.mxu0
    %5618 = vmatprep.subr.bf16.mxu0 %v5099
    %5619 = vmatpush1.bf16.msra.mxu0 %v5098
    %5620 = vmatprep.subr.bf16.mxu0 %v5103
    %5621 = vmatpush1.bf16.msra.mxu0 %v5102
    %5622 = vmatprep.subr.bf16.mxu0 %v5107
    %5623 = vmatpush1.bf16.msra.mxu0 %v5106
    %5624 = vmatprep.subr.bf16.mxu0 %v5111
    %5625 = vmatpush1.bf16.msra.mxu0 %v5110
    %5626 = vmatprep.subr.bf16.mxu0 %v5115
    %5627 = vmatpush1.bf16.msra.mxu0 %v5114
    %5628 = vmatprep.subr.bf16.mxu0 %v5119
    %5629 = vmatpush1.bf16.msra.mxu0 %v5118
    %5630 = vmatprep.subr.bf16.mxu0 %v5123
    %5631 = vmatpush1.bf16.msra.mxu0 %v5122
    %5632 = vmatprep.subr.bf16.mxu0 %v5127
    %5633 = vmatpush1.bf16.msra.mxu0 %v5126
    %5634 = vmatprep.subr.bf16.mxu0 0
    %5635 = vmatpush1.bf16.msra.mxu0 0
    %5636 = vmatprep.subr.bf16.mxu0 0
    %5637 = vmatpush1.bf16.msra.mxu0 0
    %5638 = vmatprep.subr.bf16.mxu0 0
    %5639 = vmatpush1.bf16.msra.mxu0 0
    %5640 = vmatprep.subr.bf16.mxu0 0
    %5641 = vmatpush1.bf16.msra.mxu0 0
    %5642 = vmatprep.subr.bf16.mxu0 0
    %5643 = vmatpush1.bf16.msra.mxu0 0
    %5644 = vmatprep.subr.bf16.mxu0 0
    %5645 = vmatpush1.bf16.msra.mxu0 0
    %5646 = vmatprep.subr.bf16.mxu0 0
    %5647 = vmatpush1.bf16.msra.mxu0 0
    %5648 = vmatprep.subr.bf16.mxu0 0
    %5649 = vmatpush1.bf16.msra.mxu0 0
    %5650 = vmatprep.mubr.bf16.mxu0 0
    %5651 = vmatmul.mubr.bf16.gmra.mrb[0].mxu0 %v5576
    %v5652 = vpop.f32.mrb[0].mxu0
    %v5653 = vadd.f32 0.0, %v5652
    %v5654 = vpop.f32.mrb[0].mxu0
    %v5655 = vadd.f32 0.0, %v5654
    %v5656 = vpop.f32.mrb[0].mxu0
    %v5657 = vpop.f32.mrb[0].mxu0
    %5658 = vdwg.mxu0
    %v5659 = vadd.f32 %v5558, %v5612
    %v5660 = vadd.f32 %v5559, %v5614
    %v5661 = vadd.f32 %v5560, %v5653
    %v5662 = vadd.f32 %v5561, %v5655
    %v5663 = vxor.u32 %v5659, 2147483648
    %v5664 = vxor.u32 %v5660, 2147483648
    %v5665 = vxor.u32 %v5661, 2147483648
    %v5666 = vmul.f32 %v5663, 1.442695
    %v5667 = vpow.pop %v5666
    %v5668 = vmul.f32 %v5664, 1.442695
    %v5669 = vpow.pop %v5668
    %v5670 = vmul.f32 %v5665, 1.442695
    %v5671 = vpow.pop %v5670
    %v5672 = vadd.f32 %v5667, 1.0
    %v5673 = vadd.f32 %v5669, 1.0
    %v5674 = vadd.f32 %v5671, 1.0
    %v5675 = vrcp.pop %v5672
    %v5676 = vmul.f32 1.0, %v5675
    %v5677 = vrcp.pop %v5673
    %v5678 = vmul.f32 1.0, %v5677
    %v5679 = vrcp.pop %v5674
    %v5680 = vmul.f32 1.0, %v5679
    %v5681 = vtanh.pop %v5662
    %v5682 = vmul.f32 %v5678, %v5549
    %v5683 = vmul.f32 %v5676, %v5681
    %v5684 = vadd.f32 %v5682, %v5683
    %v5685 = vtanh.pop %v5684
    %v5686 = vmul.f32 %v5680, %v5685
    %v5687 = vsel %vm5575, %v5686, %v5548
    %v5688 = vsel %vm5575, %v5684, %v5549
    %v5689 = vld [vmem:[%s2084] sm:$0xff]
    %v5690 = vld [vmem:[%s2084 + $0x8] sm:$0xff]
    %v5691 = vld [vmem:[%s2084 + $0x10] sm:$0xff]
    %v5692 = vld [vmem:[%s2084 + $0x18] sm:$0xff]
    %v5693 = vld [vmem:[%s2091] sm:$0xff]
    %v5694 = vld [vmem:[%s2091 + $0x8] sm:$0xff]
    %v5695 = vld [vmem:[%s2091 + $0x10] sm:$0xff]
    %v5696 = vld [vmem:[%s2091 + $0x18] sm:$0xff]
    %v5697 = vadd.f32 %v5689, %v5693
    %v5698 = vadd.f32 %v5690, %v5694
    %v5699 = vadd.f32 %v5691, %v5695
    %v5700 = vadd.f32 %v5692, %v5696
    %v5701 = vld [vmem:[%s2100] sm:$0xff]
    %v5702 = vld [vmem:[%s2102] sm:$0xff]
    %5704 = vset.pattern.permute.xlu0 0
    %5705 = vperm.xlu0 %5704, %v5701
    %v5706 = vpop.permute.xlu0 %5705
    %5709 = vset.pattern.permute.xlu0 0
    %5710 = vperm.xlu0 %5709, %v5702
    %v5711 = vpop.permute.xlu0 %5710
    %v5713 = vsel %vm731, %v5706, %v5711
    %vm5714 = vcmp.ne.f32.partialorder %v5713, 0.0
    %v5715 = vpack.c.bf16 %v5687, %v5687
    %5716 = vmatprep.subr.bf16.mxu0 %v5097
    %5717 = vmatpush1.bf16.msra.mxu0 %v5096
    %5718 = vmatprep.subr.bf16.mxu0 %v5101
    %5719 = vmatpush1.bf16.msra.mxu0 %v5100
    %5720 = vmatprep.subr.bf16.mxu0 %v5105
    %5721 = vmatpush1.bf16.msra.mxu0 %v5104
    %5722 = vmatprep.subr.bf16.mxu0 %v5109
    %5723 = vmatpush1.bf16.msra.mxu0 %v5108
    %5724 = vmatprep.subr.bf16.mxu0 %v5113
    %5725 = vmatpush1.bf16.msra.mxu0 %v5112
    %5726 = vmatprep.subr.bf16.mxu0 %v5117
    %5727 = vmatpush1.bf16.msra.mxu0 %v5116
    %5728 = vmatprep.subr.bf16.mxu0 %v5121
    %5729 = vmatpush1.bf16.msra.mxu0 %v5120
    %5730 = vmatprep.subr.bf16.mxu0 %v5125
    %5731 = vmatpush1.bf16.msra.mxu0 %v5124
    %5732 = vmatprep.subr.bf16.mxu0 0
    %5733 = vmatpush1.bf16.msra.mxu0 0
    %5734 = vmatprep.subr.bf16.mxu0 0
    %5735 = vmatpush1.bf16.msra.mxu0 0
    %5736 = vmatprep.subr.bf16.mxu0 0
    %5737 = vmatpush1.bf16.msra.mxu0 0
    %5738 = vmatprep.subr.bf16.mxu0 0
    %5739 = vmatpush1.bf16.msra.mxu0 0
    %5740 = vmatprep.subr.bf16.mxu0 0
    %5741 = vmatpush1.bf16.msra.mxu0 0
    %5742 = vmatprep.subr.bf16.mxu0 0
    %5743 = vmatpush1.bf16.msra.mxu0 0
    %5744 = vmatprep.subr.bf16.mxu0 0
    %5745 = vmatpush1.bf16.msra.mxu0 0
    %5746 = vmatprep.subr.bf16.mxu0 0
    %5747 = vmatpush1.bf16.msra.mxu0 0
    %5748 = vmatprep.mubr.bf16.mxu0 0
    %5749 = vmatmul.mubr.bf16.gmra.mrb[0].mxu0 %v5715
    %v5750 = vpop.f32.mrb[0].mxu0
    %v5751 = vadd.f32 0.0, %v5750
    %v5752 = vpop.f32.mrb[0].mxu0
    %v5753 = vadd.f32 0.0, %v5752
    %v5754 = vpop.f32.mrb[0].mxu0
    %v5755 = vpop.f32.mrb[0].mxu0
    %5756 = vdwg.mxu0
    %5757 = vmatprep.subr.bf16.mxu0 %v5099
    %5758 = vmatpush1.bf16.msra.mxu0 %v5098
    %5759 = vmatprep.subr.bf16.mxu0 %v5103
    %5760 = vmatpush1.bf16.msra.mxu0 %v5102
    %5761 = vmatprep.subr.bf16.mxu0 %v5107
    %5762 = vmatpush1.bf16.msra.mxu0 %v5106
    %5763 = vmatprep.subr.bf16.mxu0 %v5111
    %5764 = vmatpush1.bf16.msra.mxu0 %v5110
    %5765 = vmatprep.subr.bf16.mxu0 %v5115
    %5766 = vmatpush1.bf16.msra.mxu0 %v5114
    %5767 = vmatprep.subr.bf16.mxu0 %v5119
    %5768 = vmatpush1.bf16.msra.mxu0 %v5118
    %5769 = vmatprep.subr.bf16.mxu0 %v5123
    %5770 = vmatpush1.bf16.msra.mxu0 %v5122
    %5771 = vmatprep.subr.bf16.mxu0 %v5127
    %5772 = vmatpush1.bf16.msra.mxu0 %v5126
    %5773 = vmatprep.subr.bf16.mxu0 0
    %5774 = vmatpush1.bf16.msra.mxu0 0
    %5775 = vmatprep.subr.bf16.mxu0 0
    %5776 = vmatpush1.bf16.msra.mxu0 0
    %5777 = vmatprep.subr.bf16.mxu0 0
    %5778 = vmatpush1.bf16.msra.mxu0 0
    %5779 = vmatprep.subr.bf16.mxu0 0
    %5780 = vmatpush1.bf16.msra.mxu0 0
    %5781 = vmatprep.subr.bf16.mxu0 0
    %5782 = vmatpush1.bf16.msra.mxu0 0
    %5783 = vmatprep.subr.bf16.mxu0 0
    %5784 = vmatpush1.bf16.msra.mxu0 0
    %5785 = vmatprep.subr.bf16.mxu0 0
    %5786 = vmatpush1.bf16.msra.mxu0 0
    %5787 = vmatprep.subr.bf16.mxu0 0
    %5788 = vmatpush1.bf16.msra.mxu0 0
    %5789 = vmatprep.mubr.bf16.mxu0 0
    %5790 = vmatmul.mubr.bf16.gmra.mrb[0].mxu0 %v5715
    %v5791 = vpop.f32.mrb[0].mxu0
    %v5792 = vadd.f32 0.0, %v5791
    %v5793 = vpop.f32.mrb[0].mxu0
    %v5794 = vadd.f32 0.0, %v5793
    %v5795 = vpop.f32.mrb[0].mxu0
    %v5796 = vpop.f32.mrb[0].mxu0
    %5797 = vdwg.mxu0
    %v5798 = vadd.f32 %v5697, %v5751
    %v5799 = vadd.f32 %v5698, %v5753
    %v5800 = vadd.f32 %v5699, %v5792
    %v5801 = vadd.f32 %v5700, %v5794
    %v5802 = vxor.u32 %v5798, 2147483648
    %v5803 = vxor.u32 %v5799, 2147483648
    %v5804 = vxor.u32 %v5800, 2147483648
    %v5805 = vmul.f32 %v5802, 1.442695
    %v5806 = vpow.pop %v5805
    %v5807 = vmul.f32 %v5803, 1.442695
    %v5808 = vpow.pop %v5807
    %v5809 = vmul.f32 %v5804, 1.442695
    %v5810 = vpow.pop %v5809
    %v5811 = vadd.f32 %v5806, 1.0
    %v5812 = vadd.f32 %v5808, 1.0
    %v5813 = vadd.f32 %v5810, 1.0
    %v5814 = vrcp.pop %v5811
    %v5815 = vmul.f32 1.0, %v5814
    %v5816 = vrcp.pop %v5812
    %v5817 = vmul.f32 1.0, %v5816
    %v5818 = vrcp.pop %v5813
    %v5819 = vmul.f32 1.0, %v5818
    %v5820 = vtanh.pop %v5801
    %v5821 = vmul.f32 %v5817, %v5688
    %v5822 = vmul.f32 %v5815, %v5820
    %v5823 = vadd.f32 %v5821, %v5822
    %v5824 = vtanh.pop %v5823
    %v5825 = vmul.f32 %v5819, %v5824
    %v5826 = vsel %vm5714, %v5825, %v5687
    %v5827 = vsel %vm5714, %v5823, %v5688
    %v5828 = vld [vmem:[%s2426] sm:$0xff]
    %v5829 = vld [vmem:[%s2426 + $0x8] sm:$0xff]
    %v5830 = vld [vmem:[%s2426 + $0x10] sm:$0xff]
    %v5831 = vld [vmem:[%s2426 + $0x18] sm:$0xff]
    %v5832 = vld [vmem:[%s2432] sm:$0xff]
    %v5833 = vld [vmem:[%s2432 + $0x8] sm:$0xff]
    %v5834 = vld [vmem:[%s2432 + $0x10] sm:$0xff]
    %v5835 = vld [vmem:[%s2432 + $0x18] sm:$0xff]
    %v5836 = vadd.f32 %v5828, %v5832
    %v5837 = vadd.f32 %v5829, %v5833
    %v5838 = vadd.f32 %v5830, %v5834
    %v5839 = vadd.f32 %v5831, %v5835
    %v5840 = vsel %vm731, %v5711, %v5706
    %vm5841 = vcmp.ne.f32.partialorder %v5840, 0.0
    %v5842 = vpack.c.bf16 %v5826, %v5826
    %5843 = vmatprep.subr.bf16.mxu0 %v5097
    %5844 = vmatpush1.bf16.msra.mxu0 %v5096
    %5845 = vmatprep.subr.bf16.mxu0 %v5101
    %5846 = vmatpush1.bf16.msra.mxu0 %v5100
    %5847 = vmatprep.subr.bf16.mxu0 %v5105
    %5848 = vmatpush1.bf16.msra.mxu0 %v5104
    %5849 = vmatprep.subr.bf16.mxu0 %v5109
    %5850 = vmatpush1.bf16.msra.mxu0 %v5108
    %5851 = vmatprep.subr.bf16.mxu0 %v5113
    %5852 = vmatpush1.bf16.msra.mxu0 %v5112
    %5853 = vmatprep.subr.bf16.mxu0 %v5117
    %5854 = vmatpush1.bf16.msra.mxu0 %v5116
    %5855 = vmatprep.subr.bf16.mxu0 %v5121
    %5856 = vmatpush1.bf16.msra.mxu0 %v5120
    %5857 = vmatprep.subr.bf16.mxu0 %v5125
    %5858 = vmatpush1.bf16.msra.mxu0 %v5124
    %5859 = vmatprep.subr.bf16.mxu0 0
    %5860 = vmatpush1.bf16.msra.mxu0 0
    %5861 = vmatprep.subr.bf16.mxu0 0
    %5862 = vmatpush1.bf16.msra.mxu0 0
    %5863 = vmatprep.subr.bf16.mxu0 0
    %5864 = vmatpush1.bf16.msra.mxu0 0
    %5865 = vmatprep.subr.bf16.mxu0 0
    %5866 = vmatpush1.bf16.msra.mxu0 0
    %5867 = vmatprep.subr.bf16.mxu0 0
    %5868 = vmatpush1.bf16.msra.mxu0 0
    %5869 = vmatprep.subr.bf16.mxu0 0
    %5870 = vmatpush1.bf16.msra.mxu0 0
    %5871 = vmatprep.subr.bf16.mxu0 0
    %5872 = vmatpush1.bf16.msra.mxu0 0
    %5873 = vmatprep.subr.bf16.mxu0 0
    %5874 = vmatpush1.bf16.msra.mxu0 0
    %5875 = vmatprep.mubr.bf16.mxu0 0
    %5876 = vmatmul.mubr.bf16.gmra.mrb[0].mxu0 %v5842
    %v5877 = vpop.f32.mrb[0].mxu0
    %v5878 = vadd.f32 0.0, %v5877
    %v5879 = vpop.f32.mrb[0].mxu0
    %v5880 = vadd.f32 0.0, %v5879
    %v5881 = vpop.f32.mrb[0].mxu0
    %v5882 = vpop.f32.mrb[0].mxu0
    %5883 = vdwg.mxu0
    %5884 = vmatprep.subr.bf16.mxu0 %v5099
    %5885 = vmatpush1.bf16.msra.mxu0 %v5098
    %5886 = vmatprep.subr.bf16.mxu0 %v5103
    %5887 = vmatpush1.bf16.msra.mxu0 %v5102
    %5888 = vmatprep.subr.bf16.mxu0 %v5107
    %5889 = vmatpush1.bf16.msra.mxu0 %v5106
    %5890 = vmatprep.subr.bf16.mxu0 %v5111
    %5891 = vmatpush1.bf16.msra.mxu0 %v5110
    %5892 = vmatprep.subr.bf16.mxu0 %v5115
    %5893 = vmatpush1.bf16.msra.mxu0 %v5114
    %5894 = vmatprep.subr.bf16.mxu0 %v5119
    %5895 = vmatpush1.bf16.msra.mxu0 %v5118
    %5896 = vmatprep.subr.bf16.mxu0 %v5123
    %5897 = vmatpush1.bf16.msra.mxu0 %v5122
    %5898 = vmatprep.subr.bf16.mxu0 %v5127
    %5899 = vmatpush1.bf16.msra.mxu0 %v5126
    %5900 = vmatprep.subr.bf16.mxu0 0
    %5901 = vmatpush1.bf16.msra.mxu0 0
    %5902 = vmatprep.subr.bf16.mxu0 0
    %5903 = vmatpush1.bf16.msra.mxu0 0
    %5904 = vmatprep.subr.bf16.mxu0 0
    %5905 = vmatpush1.bf16.msra.mxu0 0
    %5906 = vmatprep.subr.bf16.mxu0 0
    %5907 = vmatpush1.bf16.msra.mxu0 0
    %5908 = vmatprep.subr.bf16.mxu0 0
    %5909 = vmatpush1.bf16.msra.mxu0 0
    %5910 = vmatprep.subr.bf16.mxu0 0
    %5911 = vmatpush1.bf16.msra.mxu0 0
    %5912 = vmatprep.subr.bf16.mxu0 0
    %5913 = vmatpush1.bf16.msra.mxu0 0
    %5914 = vmatprep.subr.bf16.mxu0 0
    %5915 = vmatpush1.bf16.msra.mxu0 0
    %5916 = vmatprep.mubr.bf16.mxu0 0
    %5917 = vmatmul.mubr.bf16.gmra.mrb[0].mxu0 %v5842
    %v5918 = vpop.f32.mrb[0].mxu0
    %v5919 = vadd.f32 0.0, %v5918
    %v5920 = vpop.f32.mrb[0].mxu0
    %v5921 = vadd.f32 0.0, %v5920
    %v5922 = vpop.f32.mrb[0].mxu0
    %v5923 = vpop.f32.mrb[0].mxu0
    %5924 = vdwg.mxu0
    %v5925 = vadd.f32 %v5836, %v5878
    %v5926 = vadd.f32 %v5837, %v5880
    %v5927 = vadd.f32 %v5838, %v5919
    %v5928 = vadd.f32 %v5839, %v5921
    %v5929 = vxor.u32 %v5925, 2147483648
    %v5930 = vxor.u32 %v5926, 2147483648
    %v5931 = vxor.u32 %v5927, 2147483648
    %v5932 = vmul.f32 %v5929, 1.442695
    %v5933 = vpow.pop %v5932
    %v5934 = vmul.f32 %v5930, 1.442695
    %v5935 = vpow.pop %v5934
    %v5936 = vmul.f32 %v5931, 1.442695
    %v5937 = vpow.pop %v5936
    %v5938 = vadd.f32 %v5933, 1.0
    %v5939 = vadd.f32 %v5935, 1.0
    %v5940 = vadd.f32 %v5937, 1.0
    %v5941 = vrcp.pop %v5938
    %v5942 = vmul.f32 1.0, %v5941
    %v5943 = vrcp.pop %v5939
    %v5944 = vmul.f32 1.0, %v5943
    %v5945 = vrcp.pop %v5940
    %v5946 = vmul.f32 1.0, %v5945
    %v5947 = vtanh.pop %v5928
    %v5948 = vmul.f32 %v5944, %v5827
    %v5949 = vmul.f32 %v5942, %v5947
    %v5950 = vadd.f32 %v5948, %v5949
    %v5951 = vtanh.pop %v5950
    %v5952 = vmul.f32 %v5946, %v5951
    %v5953 = vsel %vm5841, %v5952, %v5826
    %v5954 = vsel %vm5841, %v5950, %v5827
    %v5955 = vld [vmem:[%s2763] sm:$0xff]
    %v5956 = vld [vmem:[%s2763 + $0x8] sm:$0xff]
    %v5957 = vld [vmem:[%s2763 + $0x10] sm:$0xff]
    %v5958 = vld [vmem:[%s2763 + $0x18] sm:$0xff]
    %v5959 = vld [vmem:[%s2769] sm:$0xff]
    %v5960 = vld [vmem:[%s2769 + $0x8] sm:$0xff]
    %v5961 = vld [vmem:[%s2769 + $0x10] sm:$0xff]
    %v5962 = vld [vmem:[%s2769 + $0x18] sm:$0xff]
    %v5963 = vadd.f32 %v5955, %v5959
    %v5964 = vadd.f32 %v5956, %v5960
    %v5965 = vadd.f32 %v5957, %v5961
    %v5966 = vadd.f32 %v5958, %v5962
    %v5967 = vsel %vm731, %v5572, %v5567
    %vm5968 = vcmp.ne.f32.partialorder %v5967, 0.0
    %v5969 = vpack.c.bf16 %v5953, %v5953
    %5970 = vmatprep.subr.bf16.mxu0 %v5097
    %5971 = vmatpush1.bf16.msra.mxu0 %v5096
    %5972 = vmatprep.subr.bf16.mxu0 %v5101
    %5973 = vmatpush1.bf16.msra.mxu0 %v5100
    %5974 = vmatprep.subr.bf16.mxu0 %v5105
    %5975 = vmatpush1.bf16.msra.mxu0 %v5104
    %5976 = vmatprep.subr.bf16.mxu0 %v5109
    %5977 = vmatpush1.bf16.msra.mxu0 %v5108
    %5978 = vmatprep.subr.bf16.mxu0 %v5113
    %5979 = vmatpush1.bf16.msra.mxu0 %v5112
    %5980 = vmatprep.subr.bf16.mxu0 %v5117
    %5981 = vmatpush1.bf16.msra.mxu0 %v5116
    %5982 = vmatprep.subr.bf16.mxu0 %v5121
    %5983 = vmatpush1.bf16.msra.mxu0 %v5120
    %5984 = vmatprep.subr.bf16.mxu0 %v5125
    %5985 = vmatpush1.bf16.msra.mxu0 %v5124
    %5986 = vmatprep.subr.bf16.mxu0 0
    %5987 = vmatpush1.bf16.msra.mxu0 0
    %5988 = vmatprep.subr.bf16.mxu0 0
    %5989 = vmatpush1.bf16.msra.mxu0 0
    %5990 = vmatprep.subr.bf16.mxu0 0
    %5991 = vmatpush1.bf16.msra.mxu0 0
    %5992 = vmatprep.subr.bf16.mxu0 0
    %5993 = vmatpush1.bf16.msra.mxu0 0
    %5994 = vmatprep.subr.bf16.mxu0 0
    %5995 = vmatpush1.bf16.msra.mxu0 0
    %5996 = vmatprep.subr.bf16.mxu0 0
    %5997 = vmatpush1.bf16.msra.mxu0 0
    %5998 = vmatprep.subr.bf16.mxu0 0
    %5999 = vmatpush1.bf16.msra.mxu0 0
    %6000 = vmatprep.subr.bf16.mxu0 0
    %6001 = vmatpush1.bf16.msra.mxu0 0
    %6002 = vmatprep.mubr.bf16.mxu0 0
    %6003 = vmatmul.mubr.bf16.gmra.mrb[0].mxu0 %v5969
    %v6004 = vpop.f32.mrb[0].mxu0
    %v6005 = vadd.f32 0.0, %v6004
    %v6006 = vpop.f32.mrb[0].mxu0
    %v6007 = vadd.f32 0.0, %v6006
    %v6008 = vpop.f32.mrb[0].mxu0
    %v6009 = vpop.f32.mrb[0].mxu0
    %6010 = vdwg.mxu0
    %6011 = vmatprep.subr.bf16.mxu0 %v5099
    %6012 = vmatpush1.bf16.msra.mxu0 %v5098
    %6013 = vmatprep.subr.bf16.mxu0 %v5103
    %6014 = vmatpush1.bf16.msra.mxu0 %v5102
    %6015 = vmatprep.subr.bf16.mxu0 %v5107
    %6016 = vmatpush1.bf16.msra.mxu0 %v5106
    %6017 = vmatprep.subr.bf16.mxu0 %v5111
    %6018 = vmatpush1.bf16.msra.mxu0 %v5110
    %6019 = vmatprep.subr.bf16.mxu0 %v5115
    %6020 = vmatpush1.bf16.msra.mxu0 %v5114
    %6021 = vmatprep.subr.bf16.mxu0 %v5119
    %6022 = vmatpush1.bf16.msra.mxu0 %v5118
    %6023 = vmatprep.subr.bf16.mxu0 %v5123
    %6024 = vmatpush1.bf16.msra.mxu0 %v5122
    %6025 = vmatprep.subr.bf16.mxu0 %v5127
    %6026 = vmatpush1.bf16.msra.mxu0 %v5126
    %6027 = vmatprep.subr.bf16.mxu0 0
    %6028 = vmatpush1.bf16.msra.mxu0 0
    %6029 = vmatprep.subr.bf16.mxu0 0
    %6030 = vmatpush1.bf16.msra.mxu0 0
    %6031 = vmatprep.subr.bf16.mxu0 0
    %6032 = vmatpush1.bf16.msra.mxu0 0
    %6033 = vmatprep.subr.bf16.mxu0 0
    %6034 = vmatpush1.bf16.msra.mxu0 0
    %6035 = vmatprep.subr.bf16.mxu0 0
    %6036 = vmatpush1.bf16.msra.mxu0 0
    %6037 = vmatprep.subr.bf16.mxu0 0
    %6038 = vmatpush1.bf16.msra.mxu0 0
    %6039 = vmatprep.subr.bf16.mxu0 0
    %6040 = vmatpush1.bf16.msra.mxu0 0
    %6041 = vmatprep.subr.bf16.mxu0 0
    %6042 = vmatpush1.bf16.msra.mxu0 0
    %6043 = vmatprep.mubr.bf16.mxu0 0
    %6044 = vmatmul.mubr.bf16.gmra.mrb[0].mxu0 %v5969
    %v6045 = vpop.f32.mrb[0].mxu0
    %v6046 = vadd.f32 0.0, %v6045
    %v6047 = vpop.f32.mrb[0].mxu0
    %v6048 = vadd.f32 0.0, %v6047
    %v6049 = vpop.f32.mrb[0].mxu0
    %v6050 = vpop.f32.mrb[0].mxu0
    %6051 = vdwg.mxu0
    %v6052 = vadd.f32 %v5963, %v6005
    %v6053 = vadd.f32 %v5964, %v6007
    %v6054 = vadd.f32 %v5965, %v6046
    %v6055 = vadd.f32 %v5966, %v6048
    %v6056 = vxor.u32 %v6052, 2147483648
    %v6057 = vxor.u32 %v6053, 2147483648
    %v6058 = vxor.u32 %v6054, 2147483648
    %v6059 = vmul.f32 %v6056, 1.442695
    %v6060 = vpow.pop %v6059
    %v6061 = vmul.f32 %v6057, 1.442695
    %v6062 = vpow.pop %v6061
    %v6063 = vmul.f32 %v6058, 1.442695
    %v6064 = vpow.pop %v6063
    %v6065 = vadd.f32 %v6060, 1.0
    %v6066 = vadd.f32 %v6062, 1.0
    %v6067 = vadd.f32 %v6064, 1.0
    %v6068 = vrcp.pop %v6065
    %v6069 = vmul.f32 1.0, %v6068
    %v6070 = vrcp.pop %v6066
    %v6071 = vmul.f32 1.0, %v6070
    %v6072 = vrcp.pop %v6067
    %v6073 = vmul.f32 1.0, %v6072
    %v6074 = vtanh.pop %v6055
    %v6075 = vmul.f32 %v6071, %v5954
    %v6076 = vmul.f32 %v6069, %v6074
    %v6077 = vadd.f32 %v6075, %v6076
    %v6078 = vtanh.pop %v6077
    %v6079 = vmul.f32 %v6073, %v6078
    %v6080 = vsel %vm5968, %v6079, %v5953
    %v6081 = vsel %vm5968, %v6077, %v5954
    %v6082 = vld [vmem:[%s3100] sm:$0xff]
    %v6083 = vld [vmem:[%s3100 + $0x8] sm:$0xff]
    %v6084 = vld [vmem:[%s3100 + $0x10] sm:$0xff]
    %v6085 = vld [vmem:[%s3100 + $0x18] sm:$0xff]
    %v6086 = vld [vmem:[%s3106] sm:$0xff]
    %v6087 = vld [vmem:[%s3106 + $0x8] sm:$0xff]
    %v6088 = vld [vmem:[%s3106 + $0x10] sm:$0xff]
    %v6089 = vld [vmem:[%s3106 + $0x18] sm:$0xff]
    %v6090 = vadd.f32 %v6082, %v6086
    %v6091 = vadd.f32 %v6083, %v6087
    %v6092 = vadd.f32 %v6084, %v6088
    %v6093 = vadd.f32 %v6085, %v6089
    %v6094 = vsel %vm731, %v5433, %v5428
    %vm6095 = vcmp.ne.f32.partialorder %v6094, 0.0
    %v6096 = vpack.c.bf16 %v6080, %v6080
    %6097 = vmatprep.subr.bf16.mxu0 %v5097
    %6098 = vmatpush1.bf16.msra.mxu0 %v5096
    %6099 = vmatprep.subr.bf16.mxu0 %v5101
    %6100 = vmatpush1.bf16.msra.mxu0 %v5100
    %6101 = vmatprep.subr.bf16.mxu0 %v5105
    %6102 = vmatpush1.bf16.msra.mxu0 %v5104
    %6103 = vmatprep.subr.bf16.mxu0 %v5109
    %6104 = vmatpush1.bf16.msra.mxu0 %v5108
    %6105 = vmatprep.subr.bf16.mxu0 %v5113
    %6106 = vmatpush1.bf16.msra.mxu0 %v5112
    %6107 = vmatprep.subr.bf16.mxu0 %v5117
    %6108 = vmatpush1.bf16.msra.mxu0 %v5116
    %6109 = vmatprep.subr.bf16.mxu0 %v5121
    %6110 = vmatpush1.bf16.msra.mxu0 %v5120
    %6111 = vmatprep.subr.bf16.mxu0 %v5125
    %6112 = vmatpush1.bf16.msra.mxu0 %v5124
    %6113 = vmatprep.subr.bf16.mxu0 0
    %6114 = vmatpush1.bf16.msra.mxu0 0
    %6115 = vmatprep.subr.bf16.mxu0 0
    %6116 = vmatpush1.bf16.msra.mxu0 0
    %6117 = vmatprep.subr.bf16.mxu0 0
    %6118 = vmatpush1.bf16.msra.mxu0 0
    %6119 = vmatprep.subr.bf16.mxu0 0
    %6120 = vmatpush1.bf16.msra.mxu0 0
    %6121 = vmatprep.subr.bf16.mxu0 0
    %6122 = vmatpush1.bf16.msra.mxu0 0
    %6123 = vmatprep.subr.bf16.mxu0 0
    %6124 = vmatpush1.bf16.msra.mxu0 0
    %6125 = vmatprep.subr.bf16.mxu0 0
    %6126 = vmatpush1.bf16.msra.mxu0 0
    %6127 = vmatprep.subr.bf16.mxu0 0
    %6128 = vmatpush1.bf16.msra.mxu0 0
    %6129 = vmatprep.mubr.bf16.mxu0 0
    %6130 = vmatmul.mubr.bf16.gmra.mrb[0].mxu0 %v6096
    %v6131 = vpop.f32.mrb[0].mxu0
    %v6132 = vadd.f32 0.0, %v6131
    %v6133 = vpop.f32.mrb[0].mxu0
    %v6134 = vadd.f32 0.0, %v6133
    %v6135 = vpop.f32.mrb[0].mxu0
    %v6136 = vpop.f32.mrb[0].mxu0
    %6137 = vdwg.mxu0
    %6138 = vmatprep.subr.bf16.mxu0 %v5099
    %6139 = vmatpush1.bf16.msra.mxu0 %v5098
    %6140 = vmatprep.subr.bf16.mxu0 %v5103
    %6141 = vmatpush1.bf16.msra.mxu0 %v5102
    %6142 = vmatprep.subr.bf16.mxu0 %v5107
    %6143 = vmatpush1.bf16.msra.mxu0 %v5106
    %6144 = vmatprep.subr.bf16.mxu0 %v5111
    %6145 = vmatpush1.bf16.msra.mxu0 %v5110
    %6146 = vmatprep.subr.bf16.mxu0 %v5115
    %6147 = vmatpush1.bf16.msra.mxu0 %v5114
    %6148 = vmatprep.subr.bf16.mxu0 %v5119
    %6149 = vmatpush1.bf16.msra.mxu0 %v5118
    %6150 = vmatprep.subr.bf16.mxu0 %v5123
    %6151 = vmatpush1.bf16.msra.mxu0 %v5122
    %6152 = vmatprep.subr.bf16.mxu0 %v5127
    %6153 = vmatpush1.bf16.msra.mxu0 %v5126
    %6154 = vmatprep.subr.bf16.mxu0 0
    %6155 = vmatpush1.bf16.msra.mxu0 0
    %6156 = vmatprep.subr.bf16.mxu0 0
    %6157 = vmatpush1.bf16.msra.mxu0 0
    %6158 = vmatprep.subr.bf16.mxu0 0
    %6159 = vmatpush1.bf16.msra.mxu0 0
    %6160 = vmatprep.subr.bf16.mxu0 0
    %6161 = vmatpush1.bf16.msra.mxu0 0
    %6162 = vmatprep.subr.bf16.mxu0 0
    %6163 = vmatpush1.bf16.msra.mxu0 0
    %6164 = vmatprep.subr.bf16.mxu0 0
    %6165 = vmatpush1.bf16.msra.mxu0 0
    %6166 = vmatprep.subr.bf16.mxu0 0
    %6167 = vmatpush1.bf16.msra.mxu0 0
    %6168 = vmatprep.subr.bf16.mxu0 0
    %6169 = vmatpush1.bf16.msra.mxu0 0
    %6170 = vmatprep.mubr.bf16.mxu0 0
    %6171 = vmatmul.mubr.bf16.gmra.mrb[0].mxu0 %v6096
    %v6172 = vpop.f32.mrb[0].mxu0
    %v6173 = vadd.f32 0.0, %v6172
    %v6174 = vpop.f32.mrb[0].mxu0
    %v6175 = vadd.f32 0.0, %v6174
    %v6176 = vpop.f32.mrb[0].mxu0
    %v6177 = vpop.f32.mrb[0].mxu0
    %6178 = vdwg.mxu0
    %v6179 = vadd.f32 %v6090, %v6132
    %v6180 = vadd.f32 %v6091, %v6134
    %v6181 = vadd.f32 %v6092, %v6173
    %v6182 = vadd.f32 %v6093, %v6175
    %v6183 = vxor.u32 %v6179, 2147483648
    %v6184 = vxor.u32 %v6180, 2147483648
    %v6185 = vxor.u32 %v6181, 2147483648
    %v6186 = vmul.f32 %v6183, 1.442695
    %v6187 = vpow.pop %v6186
    %v6188 = vmul.f32 %v6184, 1.442695
    %v6189 = vpow.pop %v6188
    %v6190 = vmul.f32 %v6185, 1.442695
    %v6191 = vpow.pop %v6190
    %v6192 = vadd.f32 %v6187, 1.0
    %v6193 = vadd.f32 %v6189, 1.0
    %v6194 = vadd.f32 %v6191, 1.0
    %v6195 = vrcp.pop %v6192
    %v6196 = vmul.f32 1.0, %v6195
    %v6197 = vrcp.pop %v6193
    %v6198 = vmul.f32 1.0, %v6197
    %v6199 = vrcp.pop %v6194
    %v6200 = vmul.f32 1.0, %v6199
    %v6201 = vtanh.pop %v6182
    %v6202 = vmul.f32 %v6198, %v6081
    %v6203 = vmul.f32 %v6196, %v6201
    %v6204 = vadd.f32 %v6202, %v6203
    %v6205 = vtanh.pop %v6204
    %v6206 = vmul.f32 %v6200, %v6205
    %v6207 = vsel %vm6095, %v6206, %v6080
    %v6208 = vsel %vm6095, %v6204, %v6081
    %v6209 = vld [vmem:[%s3437] sm:$0xff]
    %v6210 = vld [vmem:[%s3437 + $0x8] sm:$0xff]
    %v6211 = vld [vmem:[%s3437 + $0x10] sm:$0xff]
    %v6212 = vld [vmem:[%s3437 + $0x18] sm:$0xff]
    %v6213 = vld [vmem:[%s3443] sm:$0xff]
    %v6214 = vld [vmem:[%s3443 + $0x8] sm:$0xff]
    %v6215 = vld [vmem:[%s3443 + $0x10] sm:$0xff]
    %v6216 = vld [vmem:[%s3443 + $0x18] sm:$0xff]
    %v6217 = vadd.f32 %v6209, %v6213
    %v6218 = vadd.f32 %v6210, %v6214
    %v6219 = vadd.f32 %v6211, %v6215
    %v6220 = vadd.f32 %v6212, %v6216
    %v6221 = vsel %vm731, %v5294, %v5289
    %vm6222 = vcmp.ne.f32.partialorder %v6221, 0.0
    %v6223 = vpack.c.bf16 %v6207, %v6207
    %6224 = vmatprep.subr.bf16.mxu0 %v5097
    %6225 = vmatpush1.bf16.msra.mxu0 %v5096
    %6226 = vmatprep.subr.bf16.mxu0 %v5101
    %6227 = vmatpush1.bf16.msra.mxu0 %v5100
    %6228 = vmatprep.subr.bf16.mxu0 %v5105
    %6229 = vmatpush1.bf16.msra.mxu0 %v5104
    %6230 = vmatprep.subr.bf16.mxu0 %v5109
    %6231 = vmatpush1.bf16.msra.mxu0 %v5108
    %6232 = vmatprep.subr.bf16.mxu0 %v5113
    %6233 = vmatpush1.bf16.msra.mxu0 %v5112
    %6234 = vmatprep.subr.bf16.mxu0 %v5117
    %6235 = vmatpush1.bf16.msra.mxu0 %v5116
    %6236 = vmatprep.subr.bf16.mxu0 %v5121
    %6237 = vmatpush1.bf16.msra.mxu0 %v5120
    %6238 = vmatprep.subr.bf16.mxu0 %v5125
    %6239 = vmatpush1.bf16.msra.mxu0 %v5124
    %6240 = vmatprep.subr.bf16.mxu0 0
    %6241 = vmatpush1.bf16.msra.mxu0 0
    %6242 = vmatprep.subr.bf16.mxu0 0
    %6243 = vmatpush1.bf16.msra.mxu0 0
    %6244 = vmatprep.subr.bf16.mxu0 0
    %6245 = vmatpush1.bf16.msra.mxu0 0
    %6246 = vmatprep.subr.bf16.mxu0 0
    %6247 = vmatpush1.bf16.msra.mxu0 0
    %6248 = vmatprep.subr.bf16.mxu0 0
    %6249 = vmatpush1.bf16.msra.mxu0 0
    %6250 = vmatprep.subr.bf16.mxu0 0
    %6251 = vmatpush1.bf16.msra.mxu0 0
    %6252 = vmatprep.subr.bf16.mxu0 0
    %6253 = vmatpush1.bf16.msra.mxu0 0
    %6254 = vmatprep.subr.bf16.mxu0 0
    %6255 = vmatpush1.bf16.msra.mxu0 0
    %6256 = vmatprep.mubr.bf16.mxu0 0
    %6257 = vmatmul.mubr.bf16.gmra.mrb[0].mxu0 %v6223
    %v6258 = vpop.f32.mrb[0].mxu0
    %v6259 = vadd.f32 0.0, %v6258
    %v6260 = vpop.f32.mrb[0].mxu0
    %v6261 = vadd.f32 0.0, %v6260
    %v6262 = vpop.f32.mrb[0].mxu0
    %v6263 = vpop.f32.mrb[0].mxu0
    %6264 = vdwg.mxu0
    %6265 = vmatprep.subr.bf16.mxu0 %v5099
    %6266 = vmatpush1.bf16.msra.mxu0 %v5098
    %6267 = vmatprep.subr.bf16.mxu0 %v5103
    %6268 = vmatpush1.bf16.msra.mxu0 %v5102
    %6269 = vmatprep.subr.bf16.mxu0 %v5107
    %6270 = vmatpush1.bf16.msra.mxu0 %v5106
    %6271 = vmatprep.subr.bf16.mxu0 %v5111
    %6272 = vmatpush1.bf16.msra.mxu0 %v5110
    %6273 = vmatprep.subr.bf16.mxu0 %v5115
    %6274 = vmatpush1.bf16.msra.mxu0 %v5114
    %6275 = vmatprep.subr.bf16.mxu0 %v5119
    %6276 = vmatpush1.bf16.msra.mxu0 %v5118
    %6277 = vmatprep.subr.bf16.mxu0 %v5123
    %6278 = vmatpush1.bf16.msra.mxu0 %v5122
    %6279 = vmatprep.subr.bf16.mxu0 %v5127
    %6280 = vmatpush1.bf16.msra.mxu0 %v5126
    %6281 = vmatprep.subr.bf16.mxu0 0
    %6282 = vmatpush1.bf16.msra.mxu0 0
    %6283 = vmatprep.subr.bf16.mxu0 0
    %6284 = vmatpush1.bf16.msra.mxu0 0
    %6285 = vmatprep.subr.bf16.mxu0 0
    %6286 = vmatpush1.bf16.msra.mxu0 0
    %6287 = vmatprep.subr.bf16.mxu0 0
    %6288 = vmatpush1.bf16.msra.mxu0 0
    %6289 = vmatprep.subr.bf16.mxu0 0
    %6290 = vmatpush1.bf16.msra.mxu0 0
    %6291 = vmatprep.subr.bf16.mxu0 0
    %6292 = vmatpush1.bf16.msra.mxu0 0
    %6293 = vmatprep.subr.bf16.mxu0 0
    %6294 = vmatpush1.bf16.msra.mxu0 0
    %6295 = vmatprep.subr.bf16.mxu0 0
    %6296 = vmatpush1.bf16.msra.mxu0 0
    %6297 = vmatprep.mubr.bf16.mxu0 0
    %6298 = vmatmul.mubr.bf16.gmra.mrb[0].mxu0 %v6223
    %v6299 = vpop.f32.mrb[0].mxu0
    %v6300 = vadd.f32 0.0, %v6299
    %v6301 = vpop.f32.mrb[0].mxu0
    %v6302 = vadd.f32 0.0, %v6301
    %v6303 = vpop.f32.mrb[0].mxu0
    %v6304 = vpop.f32.mrb[0].mxu0
    %6305 = vdwg.mxu0
    %v6306 = vadd.f32 %v6217, %v6259
    %v6307 = vadd.f32 %v6218, %v6261
    %v6308 = vadd.f32 %v6219, %v6300
    %v6309 = vadd.f32 %v6220, %v6302
    %v6310 = vxor.u32 %v6306, 2147483648
    %v6311 = vxor.u32 %v6307, 2147483648
    %v6312 = vxor.u32 %v6308, 2147483648
    %v6313 = vmul.f32 %v6310, 1.442695
    %v6314 = vpow.pop %v6313
    %v6315 = vmul.f32 %v6311, 1.442695
    %v6316 = vpow.pop %v6315
    %v6317 = vmul.f32 %v6312, 1.442695
    %v6318 = vpow.pop %v6317
    %v6319 = vadd.f32 %v6314, 1.0
    %v6320 = vadd.f32 %v6316, 1.0
    %v6321 = vadd.f32 %v6318, 1.0
    %v6322 = vrcp.pop %v6319
    %v6323 = vmul.f32 1.0, %v6322
    %v6324 = vrcp.pop %v6320
    %v6325 = vmul.f32 1.0, %v6324
    %v6326 = vrcp.pop %v6321
    %v6327 = vmul.f32 1.0, %v6326
    %v6328 = vtanh.pop %v6309
    %v6329 = vmul.f32 %v6325, %v6208
    %v6330 = vmul.f32 %v6323, %v6328
    %v6331 = vadd.f32 %v6329, %v6330
    %v6332 = vtanh.pop %v6331
    %v6333 = vmul.f32 %v6327, %v6332
    %v6334 = vsel %vm6222, %v6333, %v6207
    %v6335 = vsel %vm6222, %v6331, %v6208
    %v6336 = vld [vmem:[%s3774] sm:$0xff]
    %v6337 = vld [vmem:[%s3774 + $0x8] sm:$0xff]
    %v6338 = vld [vmem:[%s3774 + $0x10] sm:$0xff]
    %v6339 = vld [vmem:[%s3774 + $0x18] sm:$0xff]
    %v6340 = vld [vmem:[%s3780] sm:$0xff]
    %v6341 = vld [vmem:[%s3780 + $0x8] sm:$0xff]
    %v6342 = vld [vmem:[%s3780 + $0x10] sm:$0xff]
    %v6343 = vld [vmem:[%s3780 + $0x18] sm:$0xff]
    %v6344 = vadd.f32 %v6336, %v6340
    %v6345 = vadd.f32 %v6337, %v6341
    %v6346 = vadd.f32 %v6338, %v6342
    %v6347 = vadd.f32 %v6339, %v6343
    %v6348 = vsel %vm731, %v4964, %v4959
    %vm6349 = vcmp.ne.f32.partialorder %v6348, 0.0
    %v6350 = vpack.c.bf16 %v6334, %v6334
    %6351 = vmatprep.subr.bf16.mxu0 %v5097
    %6352 = vmatpush1.bf16.msra.mxu0 %v5096
    %6353 = vmatprep.subr.bf16.mxu0 %v5101
    %6354 = vmatpush1.bf16.msra.mxu0 %v5100
    %6355 = vmatprep.subr.bf16.mxu0 %v5105
    %6356 = vmatpush1.bf16.msra.mxu0 %v5104
    %6357 = vmatprep.subr.bf16.mxu0 %v5109
    %6358 = vmatpush1.bf16.msra.mxu0 %v5108
    %6359 = vmatprep.subr.bf16.mxu0 %v5113
    %6360 = vmatpush1.bf16.msra.mxu0 %v5112
    %6361 = vmatprep.subr.bf16.mxu0 %v5117
    %6362 = vmatpush1.bf16.msra.mxu0 %v5116
    %6363 = vmatprep.subr.bf16.mxu0 %v5121
    %6364 = vmatpush1.bf16.msra.mxu0 %v5120
    %6365 = vmatprep.subr.bf16.mxu0 %v5125
    %6366 = vmatpush1.bf16.msra.mxu0 %v5124
    %6367 = vmatprep.subr.bf16.mxu0 0
    %6368 = vmatpush1.bf16.msra.mxu0 0
    %6369 = vmatprep.subr.bf16.mxu0 0
    %6370 = vmatpush1.bf16.msra.mxu0 0
    %6371 = vmatprep.subr.bf16.mxu0 0
    %6372 = vmatpush1.bf16.msra.mxu0 0
    %6373 = vmatprep.subr.bf16.mxu0 0
    %6374 = vmatpush1.bf16.msra.mxu0 0
    %6375 = vmatprep.subr.bf16.mxu0 0
    %6376 = vmatpush1.bf16.msra.mxu0 0
    %6377 = vmatprep.subr.bf16.mxu0 0
    %6378 = vmatpush1.bf16.msra.mxu0 0
    %6379 = vmatprep.subr.bf16.mxu0 0
    %6380 = vmatpush1.bf16.msra.mxu0 0
    %6381 = vmatprep.subr.bf16.mxu0 0
    %6382 = vmatpush1.bf16.msra.mxu0 0
    %6383 = vmatprep.mubr.bf16.mxu0 0
    %6384 = vmatmul.mubr.bf16.gmra.mrb[0].mxu0 %v6350
    %v6385 = vpop.f32.mrb[0].mxu0
    %v6386 = vadd.f32 0.0, %v6385
    %v6387 = vpop.f32.mrb[0].mxu0
    %v6388 = vadd.f32 0.0, %v6387
    %v6389 = vpop.f32.mrb[0].mxu0
    %v6390 = vpop.f32.mrb[0].mxu0
    %6391 = vdwg.mxu0
    %6392 = vmatprep.subr.bf16.mxu0 %v5099
    %6393 = vmatpush1.bf16.msra.mxu0 %v5098
    %6394 = vmatprep.subr.bf16.mxu0 %v5103
    %6395 = vmatpush1.bf16.msra.mxu0 %v5102
    %6396 = vmatprep.subr.bf16.mxu0 %v5107
    %6397 = vmatpush1.bf16.msra.mxu0 %v5106
    %6398 = vmatprep.subr.bf16.mxu0 %v5111
    %6399 = vmatpush1.bf16.msra.mxu0 %v5110
    %6400 = vmatprep.subr.bf16.mxu0 %v5115
    %6401 = vmatpush1.bf16.msra.mxu0 %v5114
    %6402 = vmatprep.subr.bf16.mxu0 %v5119
    %6403 = vmatpush1.bf16.msra.mxu0 %v5118
    %6404 = vmatprep.subr.bf16.mxu0 %v5123
    %6405 = vmatpush1.bf16.msra.mxu0 %v5122
    %6406 = vmatprep.subr.bf16.mxu0 %v5127
    %6407 = vmatpush1.bf16.msra.mxu0 %v5126
    %6408 = vmatprep.subr.bf16.mxu0 0
    %6409 = vmatpush1.bf16.msra.mxu0 0
    %6410 = vmatprep.subr.bf16.mxu0 0
    %6411 = vmatpush1.bf16.msra.mxu0 0
    %6412 = vmatprep.subr.bf16.mxu0 0
    %6413 = vmatpush1.bf16.msra.mxu0 0
    %6414 = vmatprep.subr.bf16.mxu0 0
    %6415 = vmatpush1.bf16.msra.mxu0 0
    %6416 = vmatprep.subr.bf16.mxu0 0
    %6417 = vmatpush1.bf16.msra.mxu0 0
    %6418 = vmatprep.subr.bf16.mxu0 0
    %6419 = vmatpush1.bf16.msra.mxu0 0
    %6420 = vmatprep.subr.bf16.mxu0 0
    %6421 = vmatpush1.bf16.msra.mxu0 0
    %6422 = vmatprep.subr.bf16.mxu0 0
    %6423 = vmatpush1.bf16.msra.mxu0 0
    %6424 = vmatprep.mubr.bf16.mxu0 0
    %6425 = vmatmul.mubr.bf16.gmra.mrb[0].mxu0 %v6350
    %v6426 = vpop.f32.mrb[0].mxu0
    %v6427 = vadd.f32 0.0, %v6426
    %v6428 = vpop.f32.mrb[0].mxu0
    %v6429 = vadd.f32 0.0, %v6428
    %v6430 = vpop.f32.mrb[0].mxu0
    %v6431 = vpop.f32.mrb[0].mxu0
    %6432 = vdwg.mxu0
    %v6433 = vadd.f32 %v6344, %v6386
    %v6434 = vadd.f32 %v6345, %v6388
    %v6435 = vadd.f32 %v6346, %v6427
    %v6436 = vadd.f32 %v6347, %v6429
    %v6437 = vxor.u32 %v6433, 2147483648
    %v6438 = vxor.u32 %v6434, 2147483648
    %v6439 = vxor.u32 %v6435, 2147483648
    %v6440 = vmul.f32 %v6437, 1.442695
    %v6441 = vpow.pop %v6440
    %v6442 = vmul.f32 %v6438, 1.442695
    %v6443 = vpow.pop %v6442
    %v6444 = vmul.f32 %v6439, 1.442695
    %v6445 = vpow.pop %v6444
    %v6446 = vadd.f32 %v6441, 1.0
    %v6447 = vadd.f32 %v6443, 1.0
    %v6448 = vadd.f32 %v6445, 1.0
    %v6449 = vrcp.pop %v6446
    %v6450 = vmul.f32 1.0, %v6449
    %v6451 = vrcp.pop %v6447
    %v6452 = vmul.f32 1.0, %v6451
    %v6453 = vrcp.pop %v6448
    %v6454 = vmul.f32 1.0, %v6453
    %v6455 = vtanh.pop %v6436
    %v6456 = vmul.f32 %v6452, %v6335
    %v6457 = vmul.f32 %v6450, %v6455
    %v6458 = vadd.f32 %v6456, %v6457
    %v6459 = vtanh.pop %v6458
    %v6460 = vmul.f32 %v6454, %v6459
    %v6461 = vsel %vm6349, %v6460, %v6334
    %v6462 = vld [vmem:[%s10] sm:$0xff]
    %v6463 = vld [vmem:[%s10 + $0x8] sm:$0xff]
    %v6464 = vld [vmem:[%s10 + $0x10] sm:$0xff]
    %v6465 = vld [vmem:[%s10 + $0x18] sm:$0xff]
    %v6466 = vld [vmem:[%s10 + $0x20] sm:$0xff]
    %v6467 = vld [vmem:[%s10 + $0x28] sm:$0xff]
    %v6468 = vld [vmem:[%s10 + $0x30] sm:$0xff]
    %v6469 = vld [vmem:[%s10 + $0x38] sm:$0xff]
    %v6470 = vld [vmem:[%s10 + $0x40] sm:$0xff]
    %v6471 = vld [vmem:[%s10 + $0x48] sm:$0xff]
    %v6472 = vld [vmem:[%s10 + $0x50] sm:$0xff]
    %v6473 = vld [vmem:[%s10 + $0x58] sm:$0xff]
    %v6474 = vld [vmem:[%s10 + $0x60] sm:$0xff]
    %v6475 = vld [vmem:[%s10 + $0x68] sm:$0xff]
    %v6476 = vld [vmem:[%s10 + $0x70] sm:$0xff]
    %v6477 = vld [vmem:[%s10 + $0x78] sm:$0xff]
    %v6478 = vld [vmem:[%s11] sm:$0x1]
    %v6480 = vlaneseq
    %v6481 = vshrl.u32 %v6480, 7
    %v6482 = vsub.s32 0, %v6481
    %v6483 = vrot.slane %v6478, %v6482
    %6485 = vmatprep.subr.mxu0 0.0
    %6486 = vmatpush1.msra.mxu0 %v6462
    %6487 = vmatprep.subr.mxu0 0.0
    %6488 = vmatpush1.msra.mxu0 %v6463
    %6489 = vmatprep.subr.mxu0 0.0
    %6490 = vmatpush1.msra.mxu0 %v6464
    %6491 = vmatprep.subr.mxu0 0.0
    %6492 = vmatpush1.msra.mxu0 %v6465
    %6493 = vmatprep.subr.mxu0 0.0
    %6494 = vmatpush1.msra.mxu0 %v6466
    %6495 = vmatprep.subr.mxu0 0.0
    %6496 = vmatpush1.msra.mxu0 %v6467
    %6497 = vmatprep.subr.mxu0 0.0
    %6498 = vmatpush1.msra.mxu0 %v6468
    %6499 = vmatprep.subr.mxu0 0.0
    %6500 = vmatpush1.msra.mxu0 %v6469
    %6501 = vmatprep.subr.mxu0 0.0
    %6502 = vmatpush1.msra.mxu0 %v6470
    %6503 = vmatprep.subr.mxu0 0.0
    %6504 = vmatpush1.msra.mxu0 %v6471
    %6505 = vmatprep.subr.mxu0 0.0
    %6506 = vmatpush1.msra.mxu0 %v6472
    %6507 = vmatprep.subr.mxu0 0.0
    %6508 = vmatpush1.msra.mxu0 %v6473
    %6509 = vmatprep.subr.mxu0 0.0
    %6510 = vmatpush1.msra.mxu0 %v6474
    %6511 = vmatprep.subr.mxu0 0.0
    %6512 = vmatpush1.msra.mxu0 %v6475
    %6513 = vmatprep.subr.mxu0 0.0
    %6514 = vmatpush1.msra.mxu0 %v6476
    %6515 = vmatprep.subr.mxu0 0.0
    %6516 = vmatpush1.msra.mxu0 %v6477
    %6517 = vmatprep.subr.mxu0 0.0
    %6518 = vmatpush1.msra.mxu0 0.0
    %6519 = vmatprep.subr.mxu0 0.0
    %6520 = vmatpush1.msra.mxu0 0.0
    %6521 = vmatprep.subr.mxu0 0.0
    %6522 = vmatpush1.msra.mxu0 0.0
    %6523 = vmatprep.subr.mxu0 0.0
    %6524 = vmatpush1.msra.mxu0 0.0
    %6525 = vmatprep.subr.mxu0 0.0
    %6526 = vmatpush1.msra.mxu0 0.0
    %6527 = vmatprep.subr.mxu0 0.0
    %6528 = vmatpush1.msra.mxu0 0.0
    %6529 = vmatprep.subr.mxu0 0.0
    %6530 = vmatpush1.msra.mxu0 0.0
    %6531 = vmatprep.subr.mxu0 0.0
    %6532 = vmatpush1.msra.mxu0 0.0
    %6533 = vmatprep.subr.mxu0 0.0
    %6534 = vmatpush1.msra.mxu0 0.0
    %6535 = vmatprep.subr.mxu0 0.0
    %6536 = vmatpush1.msra.mxu0 0.0
    %6537 = vmatprep.subr.mxu0 0.0
    %6538 = vmatpush1.msra.mxu0 0.0
    %6539 = vmatprep.subr.mxu0 0.0
    %6540 = vmatpush1.msra.mxu0 0.0
    %6541 = vmatprep.subr.mxu0 0.0
    %6542 = vmatpush1.msra.mxu0 0.0
    %6543 = vmatprep.subr.mxu0 0.0
    %6544 = vmatpush1.msra.mxu0 0.0
    %6545 = vmatprep.subr.mxu0 0.0
    %6546 = vmatpush1.msra.mxu0 0.0
    %6547 = vmatprep.subr.mxu0 0.0
    %6548 = vmatpush1.msra.mxu0 0.0
    %6549 = vmatprep.mubr.f32.mxu0 0.0
    %6550 = vmatmul.mubr.f32.gmra.mrb[0].mxu0 %v6461
    %v6551 = vpop.f32.mrb[0].mxu0
    %v6552 = vadd.f32 %v6483, %v6551
    %v6553 = vpop.f32.mrb[0].mxu0
    %6554 = vdwg.mxu0
    %6555 = vst [vmem:[#allocation16] sm:$0xff] %v6552
    // Predicated region
    $region74: #{tpu_custom_call.1} parent=1 // pred_check
      _
    $region75: #{tpu_custom_call.1} parent=1 // pred_check_branch
      %6557 = sbr.rel (0) target = $region77
    $region76: #{tpu_custom_call.1} parent=1 // pred_region
      %s6559 = ssub.s32 128, 128
      %6560 = vsyncadd [#allocation7], %s6559
      %s6562 = sshll.u32 [#allocation16], 4
      %s6563 = int_to_ptr.vmem [resolvable:$true] %s6562
      %6565 = dma.vmem_to_hbm [thread:$0]  %s6563, 128, %s12, [#allocation7]
    $region77: #{tpu_custom_call.1} parent=1 // pred_fallthru
      _
    // Predicated region
    $region78: #{tpu_custom_call.1} parent=1 // pred_check
      _
    $region79: #{tpu_custom_call.1} parent=1 // pred_check_branch
      %6567 = sbr.rel (0) target = $region81
    $region80: #{tpu_custom_call.1} parent=1 // pred_region
      %6568 = dma.done [#allocation7], 128
    $region81: #{tpu_custom_call.1} parent=1 // pred_fallthru
      _
    %6569 = vsyncpa [#allocation6], 1
    %6570 = vsyncpa [#allocation9], 1
    %6571 = vsyncpa [#allocation12], 1
    %6572 = vsyncpa [#allocation15], 1
    %6573 = vsyncpa [#allocation7], 1

</llo_original>
